<compile_context>
chip_gen: v7x
topology: tpu7x:2x2x1
jax: 0.10.0
libtpu: 0.0.40
codegen_flags: <defaults>
</compile_context>

<pallas_src>
import functools

import jax
import jax.numpy as jnp
from jax import lax
from jax.experimental import pallas as pl
from jax.experimental.pallas import tpu as pltpu

NEG_SLOPE = 0.01   # nn.LeakyReLU default
EPS = 1e-5         # nn.InstanceNorm1d default


# ----------------------------------------------------------------------------
# Shared elementwise / norm helpers (work for both (C, L) and (B, L, C))
# ----------------------------------------------------------------------------
def _leaky(x):
    return jnp.where(x >= 0, x, NEG_SLOPE * x)


def _inorm(a):
    """InstanceNorm1d(affine=False): normalize over axis=1 (the L axis)."""
    mean = jnp.mean(a, axis=1, keepdims=True)
    var = jnp.mean((a - mean) ** 2, axis=1, keepdims=True)
    return (a - mean) * lax.rsqrt(var + EPS)


# ----------------------------------------------------------------------------
# In-kernel building blocks (channels-first per-example layout: (C, L))
# ----------------------------------------------------------------------------
def _sel(rows, cols, fn):
    """Build a (rows, cols) 0/1 f32 selection matrix from an index predicate."""
    r = lax.broadcasted_iota(jnp.int32, (rows, cols), 0)
    c = lax.broadcasted_iota(jnp.int32, (rows, cols), 1)
    return fn(r, c).astype(jnp.float32)


def _dot(a, b):
    return jnp.dot(a, b, preferred_element_type=jnp.float32)


def _conv_s1(a, w0, w1, b, pad):
    """Conv1d(k=2, stride=1, padding=pad).  a:(Cin,L)  w:(Cout,Cin)  b:(Cout,1)."""
    L = a.shape[1]
    lout = L + 2 * pad - 1
    r0 = _sel(L, lout, lambda r, c: r == c - pad)        # col j -> a[:, j-pad]   (0 outside)
    r1 = _sel(L, lout, lambda r, c: r == c + 1 - pad)    # col j -> a[:, j+1-pad] (0 outside)
    return _dot(w0, _dot(a, r0)) + _dot(w1, _dot(a, r1)) + b


def _conv_s2(a, w0, w1, b):
    """Conv1d(k=2, stride=2, padding=0).  a:(Cin,Lin) -> (Cout, Lin // 2)."""
    lin = a.shape[1]
    lout = lin // 2
    e = _sel(lin, lout, lambda r, c: r == 2 * c)          # col j -> a[:, 2j]
    o = _sel(lin, lout, lambda r, c: r == 2 * c + 1)      # col j -> a[:, 2j+1]
    return _dot(w0, _dot(a, e)) + _dot(w1, _dot(a, o)) + b


def _convT_s2(a, t0, t1, b):
    """ConvTranspose1d(k=2, stride=2, padding=0).  a:(Cin,L) -> (Cout, 2L)."""
    L = a.shape[1]
    eu = _sel(L, 2 * L, lambda r, c: c == 2 * r)          # scatter to even slots
    ou = _sel(L, 2 * L, lambda r, c: c == 2 * r + 1)      # scatter to odd slots
    return _dot(_dot(t0, a), eu) + _dot(_dot(t1, a), ou) + b


# ----------------------------------------------------------------------------
# The fused kernel: whole autoencoder forward for one batch element.
# refs = (x, noise, 48 weight/bias refs..., out)
# ----------------------------------------------------------------------------
def _fused_kernel(*refs, in_dim, real_dim):
    x_ref, noise_ref = refs[0], refs[1]
    w = refs[2:-1]
    o_ref = refs[-1]

    # ---- input: zero-extend the (1, in_dim) row to (1, real_dim) via matmul
    pad_sel = _sel(in_dim, real_dim, lambda r, c: r == c)
    a = _dot(x_ref[0], pad_sel)                           # (1, real_dim)

    # ---- encoder: 4 x ([LeakyReLU] -> IN -> conv(s1,p1) -> LeakyReLU -> IN
    #                    -> conv(s2,p0)),  Tanh after the last block
    for i in range(4):
        w10, w11, b1, w20, w21, b2 = [w[6 * i + j][...] for j in range(6)]
        h = a if i == 0 else _leaky(a)                    # enc1 has no leading LeakyReLU
        h = _inorm(h)
        m = _inorm(_leaky(_conv_s1(h, w10, w11, b1, pad=1)))
        a = _conv_s2(m, w20, w21, b2)
    a = jnp.tanh(a)                                       # (4, real_dim // 16)

    # ---- latent noise injection: emb + 0.1 * N(0, 1)
    a = a + 0.1 * noise_ref[0]

    # ---- decoder: 4 x (LeakyReLU -> IN -> convT(s2) -> LeakyReLU -> IN
    #                    -> conv(s1, pad))
    pads = (1, 1, 1, 2)
    for i in range(4):
        t0, t1, bt, w0, w1, b = [w[24 + 6 * i + j][...] for j in range(6)]
        z = _convT_s2(_inorm(_leaky(a)), t0, t1, bt)
        a = _conv_s1(_inorm(_leaky(z)), w0, w1, b, pad=pads[i])

    # ---- lane-dense output: final conv has Cout=1 -> a is (1, 129); keep the
    #      first in_dim positions (PyTorch: [:, :, :input_shape[-1]]).
    o_ref[0] = a[:, :in_dim].astype(o_ref.dtype)


# ----------------------------------------------------------------------------
# Wrapper: one pallas_call for the whole forward pass.
# ----------------------------------------------------------------------------
def forward(x, noise, params, *, in_dim, real_dim):
    """x: (B, in_dim) f32; noise: (B, 4, real_dim//16) f32; params: 48 arrays."""
    B = x.shape[0]
    lat_ch, lat_len = noise.shape[1], noise.shape[2]
    x3 = x.reshape(B, 1, in_dim)

    kernel = functools.partial(_fused_kernel, in_dim=in_dim, real_dim=real_dim)

    in_specs = [
        pl.BlockSpec((1, 1, in_dim), lambda b: (b, 0, 0)),
        pl.BlockSpec((1, lat_ch, lat_len), lambda b: (b, 0, 0)),
    ]
    for p in params:                                     # weights: resident, batch-invariant
        in_specs.append(pl.BlockSpec(p.shape, lambda b: (0, 0)))

    out = pl.pallas_call(
        kernel,
        out_shape=jax.ShapeDtypeStruct((B, 1, in_dim), jnp.float32),
        grid=(B,),
        in_specs=in_specs,
        out_specs=pl.BlockSpec((1, 1, in_dim), lambda b: (b, 0, 0)),
        compiler_params=pltpu.CompilerParams(
            dimension_semantics=("parallel",)),          # v7x: one example per TensorCore
    )(x3, noise, *params)
    return out.reshape(x.shape)


# ----------------------------------------------------------------------------
# Synthetic parameters in kernel-friendly layout.
# Each conv layer -> (tap0, tap1, bias) with tap? of shape (Cout, Cin) and
# bias of shape (Cout, 1).  For ConvTranspose1d the taps are pre-transposed,
# i.e. tap_k[co, ci] == torch_weight[ci, co, k].
# Order: enc1..enc4 (conv1, conv2) then dec1..dec4 (convT, conv).
# ----------------------------------------------------------------------------
def init_params(key):
    enc_io = [(1, 4, 4), (4, 4, 4), (4, 4, 4), (4, 4, 4)]   # channel_list = [4,4,4,4]
    dec_io = [(4, 64), (64, 64), (64, 8), (8, 1)]           # channel_list_dec = [8,64,64,4]
    keys = iter(jax.random.split(key, 48))

    def conv(cin, cout):
        bound = 1.0 / (2.0 * cin) ** 0.5
        u = lambda shape: jax.random.uniform(next(keys), shape, jnp.float32,
                                             -bound, bound)
        return [u((cout, cin)), u((cout, cin)), u((cout, 1))]

    params = []
    for cin, cmid, cout in enc_io:
        params += conv(cin, cmid) + conv(cmid, cout)
    for c, cout in dec_io:
        params += conv(c, c) + conv(c, cout)
    return tuple(params)


# ----------------------------------------------------------------------------
# Pure-JAX reference (channels-last, previously-reviewed formulation) used to
# validate the fused kernel numerically.
# ----------------------------------------------------------------------------
def reference_forward(x, noise, params, *, in_dim, real_dim):
    B = x.shape[0]
    hi = lax.Precision.HIGHEST
    mm = lambda a, b: jnp.matmul(a, b, precision=hi)

    def conv_s1(t, w0, w1, b, pad):
        tp = jnp.pad(t, ((0, 0), (pad, pad), (0, 0)))
        lout = t.shape[1] + 2 * pad - 1
        return mm(tp[:, :lout], w0.T) + mm(tp[:, 1:lout + 1], w1.T) + b[:, 0]

    def conv_s2(t, w0, w1, b):
        lout = t.shape[1] // 2
        return (mm(t[:, 0:2 * lout:2], w0.T)
                + mm(t[:, 1:2 * lout:2], w1.T) + b[:, 0])

    def convT_s2(t, t0, t1, bt):
        ye = mm(t, t0.T) + bt[:, 0]
        yo = mm(t, t1.T) + bt[:, 0]
        bb, L, C = ye.shape
        return jnp.stack([ye, yo], axis=2).reshape(bb, 2 * L, C)

    a = jnp.pad(x.reshape(B, in_dim, 1),
                ((0, 0), (0, real_dim - in_dim), (0, 0)))
    for i in range(4):
        w10, w11, b1, w20, w21, b2 = params[6 * i: 6 * i + 6]
        h = a if i == 0 else _leaky(a)
        h = _inorm(h)
        m = _inorm(_leaky(conv_s1(h, w10, w11, b1, 1)))
        a = conv_s2(m, w20, w21, b2)
    a = jnp.tanh(a) + 0.1 * jnp.transpose(noise, (0, 2, 1))
    pads = (1, 1, 1, 2)
    for i in range(4):
        t0, t1, bt, w0, w1, b = params[24 + 6 * i: 24 + 6 * i + 6]
        z = convT_s2(_inorm(_leaky(a)), t0, t1, bt)
        a = conv_s1(_inorm(_leaky(z)), w0, w1, b, pads[i])
    return a[:, :in_dim, 0]


if __name__ == "__main__":
    IN_DIM = 100
    BATCH = 2
    FOLD = 2
    REAL_INPUT_DIM = int(IN_DIM / FOLD ** 4 + 1) * FOLD ** 4   # 112
    LAT_LEN = REAL_INPUT_DIM // FOLD ** 4                      # 7
    LAT_CH = 4                                                 # channel_list[-1]

    key = jax.random.PRNGKey(0)
    kx, kp, kn = jax.random.split(key, 3)

    x = jax.random.normal(kx, (BATCH, IN_DIM), jnp.float32)
    params = init_params(kp)
    # torch.randn_like(emb_enc4) realized deterministically in JAX
    # (channels-first (B, C, L) latent layout).
    noise = jax.random.normal(kn, (BATCH, LAT_CH, LAT_LEN), jnp.float32)

    fwd = jax.jit(functools.partial(forward, in_dim=IN_DIM,
                                    real_dim=REAL_INPUT_DIM))
    y = fwd(x, noise, params)
    jax.block_until_ready(y)
    assert y.shape == x.shape and y.dtype == jnp.float32

    y_ref = jax.jit(functools.partial(reference_forward, in_dim=IN_DIM,
                                      real_dim=REAL_INPUT_DIM))(x, noise, params)
    rel_err = float(jnp.linalg.norm(y - y_ref) /
                    (jnp.linalg.norm(y_ref) + 1e-6))
    assert rel_err < 5e-2, f"kernel/reference mismatch: rel err = {rel_err}"
    print("KERNEL_OK")
</pallas_src>

<mosaic_0001>
module attributes {stable_mosaic.version = 11 : i64} {
  func.func @_fused_kernel(%arg0: i32, %arg1: memref<1x1x100xf32, #tpu.memory_space<vmem>>, %arg2: memref<1x4x7xf32, #tpu.memory_space<vmem>>, %arg3: memref<4x1xf32, #tpu.memory_space<vmem>>, %arg4: memref<4x1xf32, #tpu.memory_space<vmem>>, %arg5: memref<4x1xf32, #tpu.memory_space<vmem>>, %arg6: memref<4x4xf32, #tpu.memory_space<vmem>>, %arg7: memref<4x4xf32, #tpu.memory_space<vmem>>, %arg8: memref<4x1xf32, #tpu.memory_space<vmem>>, %arg9: memref<4x4xf32, #tpu.memory_space<vmem>>, %arg10: memref<4x4xf32, #tpu.memory_space<vmem>>, %arg11: memref<4x1xf32, #tpu.memory_space<vmem>>, %arg12: memref<4x4xf32, #tpu.memory_space<vmem>>, %arg13: memref<4x4xf32, #tpu.memory_space<vmem>>, %arg14: memref<4x1xf32, #tpu.memory_space<vmem>>, %arg15: memref<4x4xf32, #tpu.memory_space<vmem>>, %arg16: memref<4x4xf32, #tpu.memory_space<vmem>>, %arg17: memref<4x1xf32, #tpu.memory_space<vmem>>, %arg18: memref<4x4xf32, #tpu.memory_space<vmem>>, %arg19: memref<4x4xf32, #tpu.memory_space<vmem>>, %arg20: memref<4x1xf32, #tpu.memory_space<vmem>>, %arg21: memref<4x4xf32, #tpu.memory_space<vmem>>, %arg22: memref<4x4xf32, #tpu.memory_space<vmem>>, %arg23: memref<4x1xf32, #tpu.memory_space<vmem>>, %arg24: memref<4x4xf32, #tpu.memory_space<vmem>>, %arg25: memref<4x4xf32, #tpu.memory_space<vmem>>, %arg26: memref<4x1xf32, #tpu.memory_space<vmem>>, %arg27: memref<4x4xf32, #tpu.memory_space<vmem>>, %arg28: memref<4x4xf32, #tpu.memory_space<vmem>>, %arg29: memref<4x1xf32, #tpu.memory_space<vmem>>, %arg30: memref<64x4xf32, #tpu.memory_space<vmem>>, %arg31: memref<64x4xf32, #tpu.memory_space<vmem>>, %arg32: memref<64x1xf32, #tpu.memory_space<vmem>>, %arg33: memref<64x64xf32, #tpu.memory_space<vmem>>, %arg34: memref<64x64xf32, #tpu.memory_space<vmem>>, %arg35: memref<64x1xf32, #tpu.memory_space<vmem>>, %arg36: memref<64x64xf32, #tpu.memory_space<vmem>>, %arg37: memref<64x64xf32, #tpu.memory_space<vmem>>, %arg38: memref<64x1xf32, #tpu.memory_space<vmem>>, %arg39: memref<64x64xf32, #tpu.memory_space<vmem>>, %arg40: memref<64x64xf32, #tpu.memory_space<vmem>>, %arg41: memref<64x1xf32, #tpu.memory_space<vmem>>, %arg42: memref<8x64xf32, #tpu.memory_space<vmem>>, %arg43: memref<8x64xf32, #tpu.memory_space<vmem>>, %arg44: memref<8x1xf32, #tpu.memory_space<vmem>>, %arg45: memref<8x8xf32, #tpu.memory_space<vmem>>, %arg46: memref<8x8xf32, #tpu.memory_space<vmem>>, %arg47: memref<8x1xf32, #tpu.memory_space<vmem>>, %arg48: memref<1x8xf32, #tpu.memory_space<vmem>>, %arg49: memref<1x8xf32, #tpu.memory_space<vmem>>, %arg50: memref<1x1xf32, #tpu.memory_space<vmem>>, %arg51: memref<1x1x100xf32, #tpu.memory_space<vmem>>) attributes {dimension_semantics = [#tpu.dimension_semantics<parallel>], iteration_bounds = array<i64: 2>, scalar_prefetch = 0 : i64, scratch_operands = 0 : i64, tpu.core_type = #tpu.core_type<tc>, window_params = [{transform_indices = @transform_0, window_bounds = array<i64: 1, 1, 100>}, {transform_indices = @transform_1, window_bounds = array<i64: 1, 4, 7>}, {pipeline_mode = #tpu.pipeline_mode<synchronous>, transform_indices = @transform_2, window_bounds = array<i64: 4, 1>}, {pipeline_mode = #tpu.pipeline_mode<synchronous>, transform_indices = @transform_3, window_bounds = array<i64: 4, 1>}, {pipeline_mode = #tpu.pipeline_mode<synchronous>, transform_indices = @transform_4, window_bounds = array<i64: 4, 1>}, {pipeline_mode = #tpu.pipeline_mode<synchronous>, transform_indices = @transform_5, window_bounds = array<i64: 4, 4>}, {pipeline_mode = #tpu.pipeline_mode<synchronous>, transform_indices = @transform_6, window_bounds = array<i64: 4, 4>}, {pipeline_mode = #tpu.pipeline_mode<synchronous>, transform_indices = @transform_7, window_bounds = array<i64: 4, 1>}, {pipeline_mode = #tpu.pipeline_mode<synchronous>, transform_indices = @transform_8, window_bounds = array<i64: 4, 4>}, {pipeline_mode = #tpu.pipeline_mode<synchronous>, transform_indices = @transform_9, window_bounds = array<i64: 4, 4>}, {pipeline_mode = #tpu.pipeline_mode<synchronous>, transform_indices = @transform_10, window_bounds = array<i64: 4, 1>}, {pipeline_mode = #tpu.pipeline_mode<synchronous>, transform_indices = @transform_11, window_bounds = array<i64: 4, 4>}, {pipeline_mode = #tpu.pipeline_mode<synchronous>, transform_indices = @transform_12, window_bounds = array<i64: 4, 4>}, {pipeline_mode = #tpu.pipeline_mode<synchronous>, transform_indices = @transform_13, window_bounds = array<i64: 4, 1>}, {pipeline_mode = #tpu.pipeline_mode<synchronous>, transform_indices = @transform_14, window_bounds = array<i64: 4, 4>}, {pipeline_mode = #tpu.pipeline_mode<synchronous>, transform_indices = @transform_15, window_bounds = array<i64: 4, 4>}, {pipeline_mode = #tpu.pipeline_mode<synchronous>, transform_indices = @transform_16, window_bounds = array<i64: 4, 1>}, {pipeline_mode = #tpu.pipeline_mode<synchronous>, transform_indices = @transform_17, window_bounds = array<i64: 4, 4>}, {pipeline_mode = #tpu.pipeline_mode<synchronous>, transform_indices = @transform_18, window_bounds = array<i64: 4, 4>}, {pipeline_mode = #tpu.pipeline_mode<synchronous>, transform_indices = @transform_19, window_bounds = array<i64: 4, 1>}, {pipeline_mode = #tpu.pipeline_mode<synchronous>, transform_indices = @transform_20, window_bounds = array<i64: 4, 4>}, {pipeline_mode = #tpu.pipeline_mode<synchronous>, transform_indices = @transform_21, window_bounds = array<i64: 4, 4>}, {pipeline_mode = #tpu.pipeline_mode<synchronous>, transform_indices = @transform_22, window_bounds = array<i64: 4, 1>}, {pipeline_mode = #tpu.pipeline_mode<synchronous>, transform_indices = @transform_23, window_bounds = array<i64: 4, 4>}, {pipeline_mode = #tpu.pipeline_mode<synchronous>, transform_indices = @transform_24, window_bounds = array<i64: 4, 4>}, {pipeline_mode = #tpu.pipeline_mode<synchronous>, transform_indices = @transform_25, window_bounds = array<i64: 4, 1>}, {pipeline_mode = #tpu.pipeline_mode<synchronous>, transform_indices = @transform_26, window_bounds = array<i64: 4, 4>}, {pipeline_mode = #tpu.pipeline_mode<synchronous>, transform_indices = @transform_27, window_bounds = array<i64: 4, 4>}, {pipeline_mode = #tpu.pipeline_mode<synchronous>, transform_indices = @transform_28, window_bounds = array<i64: 4, 1>}, {pipeline_mode = #tpu.pipeline_mode<synchronous>, transform_indices = @transform_29, window_bounds = array<i64: 64, 4>}, {pipeline_mode = #tpu.pipeline_mode<synchronous>, transform_indices = @transform_30, window_bounds = array<i64: 64, 4>}, {pipeline_mode = #tpu.pipeline_mode<synchronous>, transform_indices = @transform_31, window_bounds = array<i64: 64, 1>}, {pipeline_mode = #tpu.pipeline_mode<synchronous>, transform_indices = @transform_32, window_bounds = array<i64: 64, 64>}, {pipeline_mode = #tpu.pipeline_mode<synchronous>, transform_indices = @transform_33, window_bounds = array<i64: 64, 64>}, {pipeline_mode = #tpu.pipeline_mode<synchronous>, transform_indices = @transform_34, window_bounds = array<i64: 64, 1>}, {pipeline_mode = #tpu.pipeline_mode<synchronous>, transform_indices = @transform_35, window_bounds = array<i64: 64, 64>}, {pipeline_mode = #tpu.pipeline_mode<synchronous>, transform_indices = @transform_36, window_bounds = array<i64: 64, 64>}, {pipeline_mode = #tpu.pipeline_mode<synchronous>, transform_indices = @transform_37, window_bounds = array<i64: 64, 1>}, {pipeline_mode = #tpu.pipeline_mode<synchronous>, transform_indices = @transform_38, window_bounds = array<i64: 64, 64>}, {pipeline_mode = #tpu.pipeline_mode<synchronous>, transform_indices = @transform_39, window_bounds = array<i64: 64, 64>}, {pipeline_mode = #tpu.pipeline_mode<synchronous>, transform_indices = @transform_40, window_bounds = array<i64: 64, 1>}, {pipeline_mode = #tpu.pipeline_mode<synchronous>, transform_indices = @transform_41, window_bounds = array<i64: 8, 64>}, {pipeline_mode = #tpu.pipeline_mode<synchronous>, transform_indices = @transform_42, window_bounds = array<i64: 8, 64>}, {pipeline_mode = #tpu.pipeline_mode<synchronous>, transform_indices = @transform_43, window_bounds = array<i64: 8, 1>}, {pipeline_mode = #tpu.pipeline_mode<synchronous>, transform_indices = @transform_44, window_bounds = array<i64: 8, 8>}, {pipeline_mode = #tpu.pipeline_mode<synchronous>, transform_indices = @transform_45, window_bounds = array<i64: 8, 8>}, {pipeline_mode = #tpu.pipeline_mode<synchronous>, transform_indices = @transform_46, window_bounds = array<i64: 8, 1>}, {pipeline_mode = #tpu.pipeline_mode<synchronous>, transform_indices = @transform_47, window_bounds = array<i64: 1, 8>}, {pipeline_mode = #tpu.pipeline_mode<synchronous>, transform_indices = @transform_48, window_bounds = array<i64: 1, 8>}, {pipeline_mode = #tpu.pipeline_mode<synchronous>, transform_indices = @transform_49, window_bounds = array<i64: 1, 1>}, {transform_indices = @transform_50, window_bounds = array<i64: 1, 1, 100>}]} {
    %0 = tpu.iota {dimensions = array<i32: 0>} : vector<100x112xi32>
    %1 = tpu.iota {dimensions = array<i32: 1>} : vector<100x112xi32>
    %2 = arith.cmpi eq, %0, %1 : vector<100x112xi32>
    %3 = arith.extui %2 : vector<100x112xi1> to vector<100x112xi32>
    %4 = arith.sitofp %3 : vector<100x112xi32> to vector<100x112xf32>
    %c0 = arith.constant 0 : index
    %c0_0 = arith.constant 0 : index
    %c0_1 = arith.constant 0 : index
    %5 = vector.load %arg1[%c0, %c0_0, %c0_1] : memref<1x1x100xf32, #tpu.memory_space<vmem>>, vector<1x1x100xf32>
    %6 = vector.shape_cast %5 : vector<1x1x100xf32> to vector<1x100xf32>
    %cst = arith.constant dense<0.000000e+00> : vector<1x112xf32>
    %7 = tpu.matmul %6, %4, %cst {dimension_numbers = #tpu.dot_dimension_numbers<[1], [0], [0], [1], [0, 0, 1, 1], [], []>} : vector<1x100xf32>, vector<100x112xf32>, vector<1x112xf32> -> vector<1x112xf32>
    %c0_2 = arith.constant 0 : index
    %c0_3 = arith.constant 0 : index
    %8 = vector.load %arg3[%c0_2, %c0_3] : memref<4x1xf32, #tpu.memory_space<vmem>>, vector<4x1xf32>
    %c0_4 = arith.constant 0 : index
    %c0_5 = arith.constant 0 : index
    %9 = vector.load %arg4[%c0_4, %c0_5] : memref<4x1xf32, #tpu.memory_space<vmem>>, vector<4x1xf32>
    %c0_6 = arith.constant 0 : index
    %c0_7 = arith.constant 0 : index
    %10 = vector.load %arg5[%c0_6, %c0_7] : memref<4x1xf32, #tpu.memory_space<vmem>>, vector<4x1xf32>
    %c0_8 = arith.constant 0 : index
    %c0_9 = arith.constant 0 : index
    %11 = vector.load %arg6[%c0_8, %c0_9] : memref<4x4xf32, #tpu.memory_space<vmem>>, vector<4x4xf32>
    %c0_10 = arith.constant 0 : index
    %c0_11 = arith.constant 0 : index
    %12 = vector.load %arg7[%c0_10, %c0_11] : memref<4x4xf32, #tpu.memory_space<vmem>>, vector<4x4xf32>
    %c0_12 = arith.constant 0 : index
    %c0_13 = arith.constant 0 : index
    %13 = vector.load %arg8[%c0_12, %c0_13] : memref<4x1xf32, #tpu.memory_space<vmem>>, vector<4x1xf32>
    %cst_14 = arith.constant dense<0.000000e+00> : vector<1xf32>
    %14 = vector.multi_reduction <add>, %7, %cst_14 [1] : vector<1x112xf32> to vector<1xf32>
    %15 = vector.shape_cast %14 : vector<1xf32> to vector<1x1xf32>
    %cst_15 = arith.constant 1.120000e+02 : f32
    %16 = vector.broadcast %cst_15 : f32 to vector<1x1xf32>
    %17 = arith.divf %15, %16 : vector<1x1xf32>
    %18 = vector.broadcast %17 : vector<1x1xf32> to vector<1x112xf32>
    %19 = arith.subf %7, %18 : vector<1x112xf32>
    %20 = arith.mulf %19, %19 : vector<1x112xf32>
    %cst_16 = arith.constant dense<0.000000e+00> : vector<1xf32>
    %21 = vector.multi_reduction <add>, %20, %cst_16 [1] : vector<1x112xf32> to vector<1xf32>
    %22 = vector.shape_cast %21 : vector<1xf32> to vector<1x1xf32>
    %cst_17 = arith.constant 1.120000e+02 : f32
    %23 = vector.broadcast %cst_17 : f32 to vector<1x1xf32>
    %24 = arith.divf %22, %23 : vector<1x1xf32>
    %25 = vector.broadcast %17 : vector<1x1xf32> to vector<1x112xf32>
    %26 = arith.subf %7, %25 : vector<1x112xf32>
    %cst_18 = arith.constant 9.99999974E-6 : f32
    %27 = vector.broadcast %cst_18 : f32 to vector<1x1xf32>
    %28 = arith.addf %24, %27 : vector<1x1xf32>
    %29 = math.rsqrt %28 : vector<1x1xf32>
    %30 = vector.broadcast %29 : vector<1x1xf32> to vector<1x112xf32>
    %31 = arith.mulf %26, %30 : vector<1x112xf32>
    %32 = tpu.iota {dimensions = array<i32: 0>} : vector<112x113xi32>
    %33 = tpu.iota {dimensions = array<i32: 1>} : vector<112x113xi32>
    %c1_i32 = arith.constant 1 : i32
    %34 = vector.broadcast %c1_i32 : i32 to vector<112x113xi32>
    %35 = arith.subi %33, %34 : vector<112x113xi32>
    %36 = arith.cmpi eq, %32, %35 : vector<112x113xi32>
    %37 = arith.extui %36 : vector<112x113xi1> to vector<112x113xi32>
    %38 = arith.sitofp %37 : vector<112x113xi32> to vector<112x113xf32>
    %39 = tpu.iota {dimensions = array<i32: 0>} : vector<112x113xi32>
    %40 = tpu.iota {dimensions = array<i32: 1>} : vector<112x113xi32>
    %c1_i32_19 = arith.constant 1 : i32
    %41 = vector.broadcast %c1_i32_19 : i32 to vector<112x113xi32>
    %42 = arith.addi %40, %41 : vector<112x113xi32>
    %c1_i32_20 = arith.constant 1 : i32
    %43 = vector.broadcast %c1_i32_20 : i32 to vector<112x113xi32>
    %44 = arith.subi %42, %43 : vector<112x113xi32>
    %45 = arith.cmpi eq, %39, %44 : vector<112x113xi32>
    %46 = arith.extui %45 : vector<112x113xi1> to vector<112x113xi32>
    %47 = arith.sitofp %46 : vector<112x113xi32> to vector<112x113xf32>
    %cst_21 = arith.constant dense<0.000000e+00> : vector<1x113xf32>
    %48 = tpu.matmul %31, %38, %cst_21 {dimension_numbers = #tpu.dot_dimension_numbers<[1], [0], [0], [1], [0, 0, 1, 1], [], []>} : vector<1x112xf32>, vector<112x113xf32>, vector<1x113xf32> -> vector<1x113xf32>
    %cst_22 = arith.constant dense<0.000000e+00> : vector<4x113xf32>
    %49 = tpu.matmul %8, %48, %cst_22 {dimension_numbers = #tpu.dot_dimension_numbers<[1], [0], [0], [1], [0, 0, 1, 1], [], []>} : vector<4x1xf32>, vector<1x113xf32>, vector<4x113xf32> -> vector<4x113xf32>
    %cst_23 = arith.constant dense<0.000000e+00> : vector<1x113xf32>
    %50 = tpu.matmul %31, %47, %cst_23 {dimension_numbers = #tpu.dot_dimension_numbers<[1], [0], [0], [1], [0, 0, 1, 1], [], []>} : vector<1x112xf32>, vector<112x113xf32>, vector<1x113xf32> -> vector<1x113xf32>
    %cst_24 = arith.constant dense<0.000000e+00> : vector<4x113xf32>
    %51 = tpu.matmul %9, %50, %cst_24 {dimension_numbers = #tpu.dot_dimension_numbers<[1], [0], [0], [1], [0, 0, 1, 1], [], []>} : vector<4x1xf32>, vector<1x113xf32>, vector<4x113xf32> -> vector<4x113xf32>
    %52 = arith.addf %49, %51 : vector<4x113xf32>
    %53 = vector.broadcast %10 : vector<4x1xf32> to vector<4x113xf32>
    %54 = arith.addf %52, %53 : vector<4x113xf32>
    %cst_25 = arith.constant 0.000000e+00 : f32
    %55 = vector.broadcast %cst_25 : f32 to vector<4x113xf32>
    %56 = arith.cmpf oge, %54, %55 : vector<4x113xf32>
    %cst_26 = arith.constant 0.00999999977 : f32
    %57 = vector.broadcast %cst_26 : f32 to vector<4x113xf32>
    %58 = arith.mulf %57, %54 : vector<4x113xf32>
    %59 = arith.select %56, %54, %58 : vector<4x113xi1>, vector<4x113xf32>
    %cst_27 = arith.constant dense<0.000000e+00> : vector<4xf32>
    %60 = vector.multi_reduction <add>, %59, %cst_27 [1] : vector<4x113xf32> to vector<4xf32>
    %61 = vector.shape_cast %60 : vector<4xf32> to vector<4x1xf32>
    %cst_28 = arith.constant 1.130000e+02 : f32
    %62 = vector.broadcast %cst_28 : f32 to vector<4x1xf32>
    %63 = arith.divf %61, %62 : vector<4x1xf32>
    %64 = vector.broadcast %63 : vector<4x1xf32> to vector<4x113xf32>
    %65 = arith.subf %59, %64 : vector<4x113xf32>
    %66 = arith.mulf %65, %65 : vector<4x113xf32>
    %cst_29 = arith.constant dense<0.000000e+00> : vector<4xf32>
    %67 = vector.multi_reduction <add>, %66, %cst_29 [1] : vector<4x113xf32> to vector<4xf32>
    %68 = vector.shape_cast %67 : vector<4xf32> to vector<4x1xf32>
    %cst_30 = arith.constant 1.130000e+02 : f32
    %69 = vector.broadcast %cst_30 : f32 to vector<4x1xf32>
    %70 = arith.divf %68, %69 : vector<4x1xf32>
    %71 = vector.broadcast %63 : vector<4x1xf32> to vector<4x113xf32>
    %72 = arith.subf %59, %71 : vector<4x113xf32>
    %cst_31 = arith.constant 9.99999974E-6 : f32
    %73 = vector.broadcast %cst_31 : f32 to vector<4x1xf32>
    %74 = arith.addf %70, %73 : vector<4x1xf32>
    %75 = math.rsqrt %74 : vector<4x1xf32>
    %76 = vector.broadcast %75 : vector<4x1xf32> to vector<4x113xf32>
    %77 = arith.mulf %72, %76 : vector<4x113xf32>
    %78 = tpu.iota {dimensions = array<i32: 0>} : vector<113x56xi32>
    %79 = tpu.iota {dimensions = array<i32: 1>} : vector<113x56xi32>
    %c2_i32 = arith.constant 2 : i32
    %80 = vector.broadcast %c2_i32 : i32 to vector<113x56xi32>
    %81 = arith.muli %80, %79 : vector<113x56xi32>
    %82 = arith.cmpi eq, %78, %81 : vector<113x56xi32>
    %83 = arith.extui %82 : vector<113x56xi1> to vector<113x56xi32>
    %84 = arith.sitofp %83 : vector<113x56xi32> to vector<113x56xf32>
    %85 = tpu.iota {dimensions = array<i32: 0>} : vector<113x56xi32>
    %86 = tpu.iota {dimensions = array<i32: 1>} : vector<113x56xi32>
    %c2_i32_32 = arith.constant 2 : i32
    %87 = vector.broadcast %c2_i32_32 : i32 to vector<113x56xi32>
    %88 = arith.muli %87, %86 : vector<113x56xi32>
    %c1_i32_33 = arith.constant 1 : i32
    %89 = vector.broadcast %c1_i32_33 : i32 to vector<113x56xi32>
    %90 = arith.addi %88, %89 : vector<113x56xi32>
    %91 = arith.cmpi eq, %85, %90 : vector<113x56xi32>
    %92 = arith.extui %91 : vector<113x56xi1> to vector<113x56xi32>
    %93 = arith.sitofp %92 : vector<113x56xi32> to vector<113x56xf32>
    %cst_34 = arith.constant dense<0.000000e+00> : vector<4x56xf32>
    %94 = tpu.matmul %77, %84, %cst_34 {dimension_numbers = #tpu.dot_dimension_numbers<[1], [0], [0], [1], [0, 0, 1, 1], [], []>} : vector<4x113xf32>, vector<113x56xf32>, vector<4x56xf32> -> vector<4x56xf32>
    %cst_35 = arith.constant dense<0.000000e+00> : vector<4x56xf32>
    %95 = tpu.matmul %11, %94, %cst_35 {dimension_numbers = #tpu.dot_dimension_numbers<[1], [0], [0], [1], [0, 0, 1, 1], [], []>} : vector<4x4xf32>, vector<4x56xf32>, vector<4x56xf32> -> vector<4x56xf32>
    %cst_36 = arith.constant dense<0.000000e+00> : vector<4x56xf32>
    %96 = tpu.matmul %77, %93, %cst_36 {dimension_numbers = #tpu.dot_dimension_numbers<[1], [0], [0], [1], [0, 0, 1, 1], [], []>} : vector<4x113xf32>, vector<113x56xf32>, vector<4x56xf32> -> vector<4x56xf32>
    %cst_37 = arith.constant dense<0.000000e+00> : vector<4x56xf32>
    %97 = tpu.matmul %12, %96, %cst_37 {dimension_numbers = #tpu.dot_dimension_numbers<[1], [0], [0], [1], [0, 0, 1, 1], [], []>} : vector<4x4xf32>, vector<4x56xf32>, vector<4x56xf32> -> vector<4x56xf32>
    %98 = arith.addf %95, %97 : vector<4x56xf32>
    %99 = vector.broadcast %13 : vector<4x1xf32> to vector<4x56xf32>
    %100 = arith.addf %98, %99 : vector<4x56xf32>
    %c0_38 = arith.constant 0 : index
    %c0_39 = arith.constant 0 : index
    %101 = vector.load %arg9[%c0_38, %c0_39] : memref<4x4xf32, #tpu.memory_space<vmem>>, vector<4x4xf32>
    %c0_40 = arith.constant 0 : index
    %c0_41 = arith.constant 0 : index
    %102 = vector.load %arg10[%c0_40, %c0_41] : memref<4x4xf32, #tpu.memory_space<vmem>>, vector<4x4xf32>
    %c0_42 = arith.constant 0 : index
    %c0_43 = arith.constant 0 : index
    %103 = vector.load %arg11[%c0_42, %c0_43] : memref<4x1xf32, #tpu.memory_space<vmem>>, vector<4x1xf32>
    %c0_44 = arith.constant 0 : index
    %c0_45 = arith.constant 0 : index
    %104 = vector.load %arg12[%c0_44, %c0_45] : memref<4x4xf32, #tpu.memory_space<vmem>>, vector<4x4xf32>
    %c0_46 = arith.constant 0 : index
    %c0_47 = arith.constant 0 : index
    %105 = vector.load %arg13[%c0_46, %c0_47] : memref<4x4xf32, #tpu.memory_space<vmem>>, vector<4x4xf32>
    %c0_48 = arith.constant 0 : index
    %c0_49 = arith.constant 0 : index
    %106 = vector.load %arg14[%c0_48, %c0_49] : memref<4x1xf32, #tpu.memory_space<vmem>>, vector<4x1xf32>
    %cst_50 = arith.constant 0.000000e+00 : f32
    %107 = vector.broadcast %cst_50 : f32 to vector<4x56xf32>
    %108 = arith.cmpf oge, %100, %107 : vector<4x56xf32>
    %cst_51 = arith.constant 0.00999999977 : f32
    %109 = vector.broadcast %cst_51 : f32 to vector<4x56xf32>
    %110 = arith.mulf %109, %100 : vector<4x56xf32>
    %111 = arith.select %108, %100, %110 : vector<4x56xi1>, vector<4x56xf32>
    %cst_52 = arith.constant dense<0.000000e+00> : vector<4xf32>
    %112 = vector.multi_reduction <add>, %111, %cst_52 [1] : vector<4x56xf32> to vector<4xf32>
    %113 = vector.shape_cast %112 : vector<4xf32> to vector<4x1xf32>
    %cst_53 = arith.constant 5.600000e+01 : f32
    %114 = vector.broadcast %cst_53 : f32 to vector<4x1xf32>
    %115 = arith.divf %113, %114 : vector<4x1xf32>
    %116 = vector.broadcast %115 : vector<4x1xf32> to vector<4x56xf32>
    %117 = arith.subf %111, %116 : vector<4x56xf32>
    %118 = arith.mulf %117, %117 : vector<4x56xf32>
    %cst_54 = arith.constant dense<0.000000e+00> : vector<4xf32>
    %119 = vector.multi_reduction <add>, %118, %cst_54 [1] : vector<4x56xf32> to vector<4xf32>
    %120 = vector.shape_cast %119 : vector<4xf32> to vector<4x1xf32>
    %cst_55 = arith.constant 5.600000e+01 : f32
    %121 = vector.broadcast %cst_55 : f32 to vector<4x1xf32>
    %122 = arith.divf %120, %121 : vector<4x1xf32>
    %123 = vector.broadcast %115 : vector<4x1xf32> to vector<4x56xf32>
    %124 = arith.subf %111, %123 : vector<4x56xf32>
    %cst_56 = arith.constant 9.99999974E-6 : f32
    %125 = vector.broadcast %cst_56 : f32 to vector<4x1xf32>
    %126 = arith.addf %122, %125 : vector<4x1xf32>
    %127 = math.rsqrt %126 : vector<4x1xf32>
    %128 = vector.broadcast %127 : vector<4x1xf32> to vector<4x56xf32>
    %129 = arith.mulf %124, %128 : vector<4x56xf32>
    %130 = tpu.iota {dimensions = array<i32: 0>} : vector<56x57xi32>
    %131 = tpu.iota {dimensions = array<i32: 1>} : vector<56x57xi32>
    %c1_i32_57 = arith.constant 1 : i32
    %132 = vector.broadcast %c1_i32_57 : i32 to vector<56x57xi32>
    %133 = arith.subi %131, %132 : vector<56x57xi32>
    %134 = arith.cmpi eq, %130, %133 : vector<56x57xi32>
    %135 = arith.extui %134 : vector<56x57xi1> to vector<56x57xi32>
    %136 = arith.sitofp %135 : vector<56x57xi32> to vector<56x57xf32>
    %137 = tpu.iota {dimensions = array<i32: 0>} : vector<56x57xi32>
    %138 = tpu.iota {dimensions = array<i32: 1>} : vector<56x57xi32>
    %c1_i32_58 = arith.constant 1 : i32
    %139 = vector.broadcast %c1_i32_58 : i32 to vector<56x57xi32>
    %140 = arith.addi %138, %139 : vector<56x57xi32>
    %c1_i32_59 = arith.constant 1 : i32
    %141 = vector.broadcast %c1_i32_59 : i32 to vector<56x57xi32>
    %142 = arith.subi %140, %141 : vector<56x57xi32>
    %143 = arith.cmpi eq, %137, %142 : vector<56x57xi32>
    %144 = arith.extui %143 : vector<56x57xi1> to vector<56x57xi32>
    %145 = arith.sitofp %144 : vector<56x57xi32> to vector<56x57xf32>
    %cst_60 = arith.constant dense<0.000000e+00> : vector<4x57xf32>
    %146 = tpu.matmul %129, %136, %cst_60 {dimension_numbers = #tpu.dot_dimension_numbers<[1], [0], [0], [1], [0, 0, 1, 1], [], []>} : vector<4x56xf32>, vector<56x57xf32>, vector<4x57xf32> -> vector<4x57xf32>
    %cst_61 = arith.constant dense<0.000000e+00> : vector<4x57xf32>
    %147 = tpu.matmul %101, %146, %cst_61 {dimension_numbers = #tpu.dot_dimension_numbers<[1], [0], [0], [1], [0, 0, 1, 1], [], []>} : vector<4x4xf32>, vector<4x57xf32>, vector<4x57xf32> -> vector<4x57xf32>
    %cst_62 = arith.constant dense<0.000000e+00> : vector<4x57xf32>
    %148 = tpu.matmul %129, %145, %cst_62 {dimension_numbers = #tpu.dot_dimension_numbers<[1], [0], [0], [1], [0, 0, 1, 1], [], []>} : vector<4x56xf32>, vector<56x57xf32>, vector<4x57xf32> -> vector<4x57xf32>
    %cst_63 = arith.constant dense<0.000000e+00> : vector<4x57xf32>
    %149 = tpu.matmul %102, %148, %cst_63 {dimension_numbers = #tpu.dot_dimension_numbers<[1], [0], [0], [1], [0, 0, 1, 1], [], []>} : vector<4x4xf32>, vector<4x57xf32>, vector<4x57xf32> -> vector<4x57xf32>
    %150 = arith.addf %147, %149 : vector<4x57xf32>
    %151 = vector.broadcast %103 : vector<4x1xf32> to vector<4x57xf32>
    %152 = arith.addf %150, %151 : vector<4x57xf32>
    %cst_64 = arith.constant 0.000000e+00 : f32
    %153 = vector.broadcast %cst_64 : f32 to vector<4x57xf32>
    %154 = arith.cmpf oge, %152, %153 : vector<4x57xf32>
    %cst_65 = arith.constant 0.00999999977 : f32
    %155 = vector.broadcast %cst_65 : f32 to vector<4x57xf32>
    %156 = arith.mulf %155, %152 : vector<4x57xf32>
    %157 = arith.select %154, %152, %156 : vector<4x57xi1>, vector<4x57xf32>
    %cst_66 = arith.constant dense<0.000000e+00> : vector<4xf32>
    %158 = vector.multi_reduction <add>, %157, %cst_66 [1] : vector<4x57xf32> to vector<4xf32>
    %159 = vector.shape_cast %158 : vector<4xf32> to vector<4x1xf32>
    %cst_67 = arith.constant 5.700000e+01 : f32
    %160 = vector.broadcast %cst_67 : f32 to vector<4x1xf32>
    %161 = arith.divf %159, %160 : vector<4x1xf32>
    %162 = vector.broadcast %161 : vector<4x1xf32> to vector<4x57xf32>
    %163 = arith.subf %157, %162 : vector<4x57xf32>
    %164 = arith.mulf %163, %163 : vector<4x57xf32>
    %cst_68 = arith.constant dense<0.000000e+00> : vector<4xf32>
    %165 = vector.multi_reduction <add>, %164, %cst_68 [1] : vector<4x57xf32> to vector<4xf32>
    %166 = vector.shape_cast %165 : vector<4xf32> to vector<4x1xf32>
    %cst_69 = arith.constant 5.700000e+01 : f32
    %167 = vector.broadcast %cst_69 : f32 to vector<4x1xf32>
    %168 = arith.divf %166, %167 : vector<4x1xf32>
    %169 = vector.broadcast %161 : vector<4x1xf32> to vector<4x57xf32>
    %170 = arith.subf %157, %169 : vector<4x57xf32>
    %cst_70 = arith.constant 9.99999974E-6 : f32
    %171 = vector.broadcast %cst_70 : f32 to vector<4x1xf32>
    %172 = arith.addf %168, %171 : vector<4x1xf32>
    %173 = math.rsqrt %172 : vector<4x1xf32>
    %174 = vector.broadcast %173 : vector<4x1xf32> to vector<4x57xf32>
    %175 = arith.mulf %170, %174 : vector<4x57xf32>
    %176 = tpu.iota {dimensions = array<i32: 0>} : vector<57x28xi32>
    %177 = tpu.iota {dimensions = array<i32: 1>} : vector<57x28xi32>
    %c2_i32_71 = arith.constant 2 : i32
    %178 = vector.broadcast %c2_i32_71 : i32 to vector<57x28xi32>
    %179 = arith.muli %178, %177 : vector<57x28xi32>
    %180 = arith.cmpi eq, %176, %179 : vector<57x28xi32>
    %181 = arith.extui %180 : vector<57x28xi1> to vector<57x28xi32>
    %182 = arith.sitofp %181 : vector<57x28xi32> to vector<57x28xf32>
    %183 = tpu.iota {dimensions = array<i32: 0>} : vector<57x28xi32>
    %184 = tpu.iota {dimensions = array<i32: 1>} : vector<57x28xi32>
    %c2_i32_72 = arith.constant 2 : i32
    %185 = vector.broadcast %c2_i32_72 : i32 to vector<57x28xi32>
    %186 = arith.muli %185, %184 : vector<57x28xi32>
    %c1_i32_73 = arith.constant 1 : i32
    %187 = vector.broadcast %c1_i32_73 : i32 to vector<57x28xi32>
    %188 = arith.addi %186, %187 : vector<57x28xi32>
    %189 = arith.cmpi eq, %183, %188 : vector<57x28xi32>
    %190 = arith.extui %189 : vector<57x28xi1> to vector<57x28xi32>
    %191 = arith.sitofp %190 : vector<57x28xi32> to vector<57x28xf32>
    %cst_74 = arith.constant dense<0.000000e+00> : vector<4x28xf32>
    %192 = tpu.matmul %175, %182, %cst_74 {dimension_numbers = #tpu.dot_dimension_numbers<[1], [0], [0], [1], [0, 0, 1, 1], [], []>} : vector<4x57xf32>, vector<57x28xf32>, vector<4x28xf32> -> vector<4x28xf32>
    %cst_75 = arith.constant dense<0.000000e+00> : vector<4x28xf32>
    %193 = tpu.matmul %104, %192, %cst_75 {dimension_numbers = #tpu.dot_dimension_numbers<[1], [0], [0], [1], [0, 0, 1, 1], [], []>} : vector<4x4xf32>, vector<4x28xf32>, vector<4x28xf32> -> vector<4x28xf32>
    %cst_76 = arith.constant dense<0.000000e+00> : vector<4x28xf32>
    %194 = tpu.matmul %175, %191, %cst_76 {dimension_numbers = #tpu.dot_dimension_numbers<[1], [0], [0], [1], [0, 0, 1, 1], [], []>} : vector<4x57xf32>, vector<57x28xf32>, vector<4x28xf32> -> vector<4x28xf32>
    %cst_77 = arith.constant dense<0.000000e+00> : vector<4x28xf32>
    %195 = tpu.matmul %105, %194, %cst_77 {dimension_numbers = #tpu.dot_dimension_numbers<[1], [0], [0], [1], [0, 0, 1, 1], [], []>} : vector<4x4xf32>, vector<4x28xf32>, vector<4x28xf32> -> vector<4x28xf32>
    %196 = arith.addf %193, %195 : vector<4x28xf32>
    %197 = vector.broadcast %106 : vector<4x1xf32> to vector<4x28xf32>
    %198 = arith.addf %196, %197 : vector<4x28xf32>
    %c0_78 = arith.constant 0 : index
    %c0_79 = arith.constant 0 : index
    %199 = vector.load %arg15[%c0_78, %c0_79] : memref<4x4xf32, #tpu.memory_space<vmem>>, vector<4x4xf32>
    %c0_80 = arith.constant 0 : index
    %c0_81 = arith.constant 0 : index
    %200 = vector.load %arg16[%c0_80, %c0_81] : memref<4x4xf32, #tpu.memory_space<vmem>>, vector<4x4xf32>
    %c0_82 = arith.constant 0 : index
    %c0_83 = arith.constant 0 : index
    %201 = vector.load %arg17[%c0_82, %c0_83] : memref<4x1xf32, #tpu.memory_space<vmem>>, vector<4x1xf32>
    %c0_84 = arith.constant 0 : index
    %c0_85 = arith.constant 0 : index
    %202 = vector.load %arg18[%c0_84, %c0_85] : memref<4x4xf32, #tpu.memory_space<vmem>>, vector<4x4xf32>
    %c0_86 = arith.constant 0 : index
    %c0_87 = arith.constant 0 : index
    %203 = vector.load %arg19[%c0_86, %c0_87] : memref<4x4xf32, #tpu.memory_space<vmem>>, vector<4x4xf32>
    %c0_88 = arith.constant 0 : index
    %c0_89 = arith.constant 0 : index
    %204 = vector.load %arg20[%c0_88, %c0_89] : memref<4x1xf32, #tpu.memory_space<vmem>>, vector<4x1xf32>
    %cst_90 = arith.constant 0.000000e+00 : f32
    %205 = vector.broadcast %cst_90 : f32 to vector<4x28xf32>
    %206 = arith.cmpf oge, %198, %205 : vector<4x28xf32>
    %cst_91 = arith.constant 0.00999999977 : f32
    %207 = vector.broadcast %cst_91 : f32 to vector<4x28xf32>
    %208 = arith.mulf %207, %198 : vector<4x28xf32>
    %209 = arith.select %206, %198, %208 : vector<4x28xi1>, vector<4x28xf32>
    %cst_92 = arith.constant dense<0.000000e+00> : vector<4xf32>
    %210 = vector.multi_reduction <add>, %209, %cst_92 [1] : vector<4x28xf32> to vector<4xf32>
    %211 = vector.shape_cast %210 : vector<4xf32> to vector<4x1xf32>
    %cst_93 = arith.constant 2.800000e+01 : f32
    %212 = vector.broadcast %cst_93 : f32 to vector<4x1xf32>
    %213 = arith.divf %211, %212 : vector<4x1xf32>
    %214 = vector.broadcast %213 : vector<4x1xf32> to vector<4x28xf32>
    %215 = arith.subf %209, %214 : vector<4x28xf32>
    %216 = arith.mulf %215, %215 : vector<4x28xf32>
    %cst_94 = arith.constant dense<0.000000e+00> : vector<4xf32>
    %217 = vector.multi_reduction <add>, %216, %cst_94 [1] : vector<4x28xf32> to vector<4xf32>
    %218 = vector.shape_cast %217 : vector<4xf32> to vector<4x1xf32>
    %cst_95 = arith.constant 2.800000e+01 : f32
    %219 = vector.broadcast %cst_95 : f32 to vector<4x1xf32>
    %220 = arith.divf %218, %219 : vector<4x1xf32>
    %221 = vector.broadcast %213 : vector<4x1xf32> to vector<4x28xf32>
    %222 = arith.subf %209, %221 : vector<4x28xf32>
    %cst_96 = arith.constant 9.99999974E-6 : f32
    %223 = vector.broadcast %cst_96 : f32 to vector<4x1xf32>
    %224 = arith.addf %220, %223 : vector<4x1xf32>
    %225 = math.rsqrt %224 : vector<4x1xf32>
    %226 = vector.broadcast %225 : vector<4x1xf32> to vector<4x28xf32>
    %227 = arith.mulf %222, %226 : vector<4x28xf32>
    %228 = tpu.iota {dimensions = array<i32: 0>} : vector<28x29xi32>
    %229 = tpu.iota {dimensions = array<i32: 1>} : vector<28x29xi32>
    %c1_i32_97 = arith.constant 1 : i32
    %230 = vector.broadcast %c1_i32_97 : i32 to vector<28x29xi32>
    %231 = arith.subi %229, %230 : vector<28x29xi32>
    %232 = arith.cmpi eq, %228, %231 : vector<28x29xi32>
    %233 = arith.extui %232 : vector<28x29xi1> to vector<28x29xi32>
    %234 = arith.sitofp %233 : vector<28x29xi32> to vector<28x29xf32>
    %235 = tpu.iota {dimensions = array<i32: 0>} : vector<28x29xi32>
    %236 = tpu.iota {dimensions = array<i32: 1>} : vector<28x29xi32>
    %c1_i32_98 = arith.constant 1 : i32
    %237 = vector.broadcast %c1_i32_98 : i32 to vector<28x29xi32>
    %238 = arith.addi %236, %237 : vector<28x29xi32>
    %c1_i32_99 = arith.constant 1 : i32
    %239 = vector.broadcast %c1_i32_99 : i32 to vector<28x29xi32>
    %240 = arith.subi %238, %239 : vector<28x29xi32>
    %241 = arith.cmpi eq, %235, %240 : vector<28x29xi32>
    %242 = arith.extui %241 : vector<28x29xi1> to vector<28x29xi32>
    %243 = arith.sitofp %242 : vector<28x29xi32> to vector<28x29xf32>
    %cst_100 = arith.constant dense<0.000000e+00> : vector<4x29xf32>
    %244 = tpu.matmul %227, %234, %cst_100 {dimension_numbers = #tpu.dot_dimension_numbers<[1], [0], [0], [1], [0, 0, 1, 1], [], []>} : vector<4x28xf32>, vector<28x29xf32>, vector<4x29xf32> -> vector<4x29xf32>
    %cst_101 = arith.constant dense<0.000000e+00> : vector<4x29xf32>
    %245 = tpu.matmul %199, %244, %cst_101 {dimension_numbers = #tpu.dot_dimension_numbers<[1], [0], [0], [1], [0, 0, 1, 1], [], []>} : vector<4x4xf32>, vector<4x29xf32>, vector<4x29xf32> -> vector<4x29xf32>
    %cst_102 = arith.constant dense<0.000000e+00> : vector<4x29xf32>
    %246 = tpu.matmul %227, %243, %cst_102 {dimension_numbers = #tpu.dot_dimension_numbers<[1], [0], [0], [1], [0, 0, 1, 1], [], []>} : vector<4x28xf32>, vector<28x29xf32>, vector<4x29xf32> -> vector<4x29xf32>
    %cst_103 = arith.constant dense<0.000000e+00> : vector<4x29xf32>
    %247 = tpu.matmul %200, %246, %cst_103 {dimension_numbers = #tpu.dot_dimension_numbers<[1], [0], [0], [1], [0, 0, 1, 1], [], []>} : vector<4x4xf32>, vector<4x29xf32>, vector<4x29xf32> -> vector<4x29xf32>
    %248 = arith.addf %245, %247 : vector<4x29xf32>
    %249 = vector.broadcast %201 : vector<4x1xf32> to vector<4x29xf32>
    %250 = arith.addf %248, %249 : vector<4x29xf32>
    %cst_104 = arith.constant 0.000000e+00 : f32
    %251 = vector.broadcast %cst_104 : f32 to vector<4x29xf32>
    %252 = arith.cmpf oge, %250, %251 : vector<4x29xf32>
    %cst_105 = arith.constant 0.00999999977 : f32
    %253 = vector.broadcast %cst_105 : f32 to vector<4x29xf32>
    %254 = arith.mulf %253, %250 : vector<4x29xf32>
    %255 = arith.select %252, %250, %254 : vector<4x29xi1>, vector<4x29xf32>
    %cst_106 = arith.constant dense<0.000000e+00> : vector<4xf32>
    %256 = vector.multi_reduction <add>, %255, %cst_106 [1] : vector<4x29xf32> to vector<4xf32>
    %257 = vector.shape_cast %256 : vector<4xf32> to vector<4x1xf32>
    %cst_107 = arith.constant 2.900000e+01 : f32
    %258 = vector.broadcast %cst_107 : f32 to vector<4x1xf32>
    %259 = arith.divf %257, %258 : vector<4x1xf32>
    %260 = vector.broadcast %259 : vector<4x1xf32> to vector<4x29xf32>
    %261 = arith.subf %255, %260 : vector<4x29xf32>
    %262 = arith.mulf %261, %261 : vector<4x29xf32>
    %cst_108 = arith.constant dense<0.000000e+00> : vector<4xf32>
    %263 = vector.multi_reduction <add>, %262, %cst_108 [1] : vector<4x29xf32> to vector<4xf32>
    %264 = vector.shape_cast %263 : vector<4xf32> to vector<4x1xf32>
    %cst_109 = arith.constant 2.900000e+01 : f32
    %265 = vector.broadcast %cst_109 : f32 to vector<4x1xf32>
    %266 = arith.divf %264, %265 : vector<4x1xf32>
    %267 = vector.broadcast %259 : vector<4x1xf32> to vector<4x29xf32>
    %268 = arith.subf %255, %267 : vector<4x29xf32>
    %cst_110 = arith.constant 9.99999974E-6 : f32
    %269 = vector.broadcast %cst_110 : f32 to vector<4x1xf32>
    %270 = arith.addf %266, %269 : vector<4x1xf32>
    %271 = math.rsqrt %270 : vector<4x1xf32>
    %272 = vector.broadcast %271 : vector<4x1xf32> to vector<4x29xf32>
    %273 = arith.mulf %268, %272 : vector<4x29xf32>
    %274 = tpu.iota {dimensions = array<i32: 0>} : vector<29x14xi32>
    %275 = tpu.iota {dimensions = array<i32: 1>} : vector<29x14xi32>
    %c2_i32_111 = arith.constant 2 : i32
    %276 = vector.broadcast %c2_i32_111 : i32 to vector<29x14xi32>
    %277 = arith.muli %276, %275 : vector<29x14xi32>
    %278 = arith.cmpi eq, %274, %277 : vector<29x14xi32>
    %279 = arith.extui %278 : vector<29x14xi1> to vector<29x14xi32>
    %280 = arith.sitofp %279 : vector<29x14xi32> to vector<29x14xf32>
    %281 = tpu.iota {dimensions = array<i32: 0>} : vector<29x14xi32>
    %282 = tpu.iota {dimensions = array<i32: 1>} : vector<29x14xi32>
    %c2_i32_112 = arith.constant 2 : i32
    %283 = vector.broadcast %c2_i32_112 : i32 to vector<29x14xi32>
    %284 = arith.muli %283, %282 : vector<29x14xi32>
    %c1_i32_113 = arith.constant 1 : i32
    %285 = vector.broadcast %c1_i32_113 : i32 to vector<29x14xi32>
    %286 = arith.addi %284, %285 : vector<29x14xi32>
    %287 = arith.cmpi eq, %281, %286 : vector<29x14xi32>
    %288 = arith.extui %287 : vector<29x14xi1> to vector<29x14xi32>
    %289 = arith.sitofp %288 : vector<29x14xi32> to vector<29x14xf32>
    %cst_114 = arith.constant dense<0.000000e+00> : vector<4x14xf32>
    %290 = tpu.matmul %273, %280, %cst_114 {dimension_numbers = #tpu.dot_dimension_numbers<[1], [0], [0], [1], [0, 0, 1, 1], [], []>} : vector<4x29xf32>, vector<29x14xf32>, vector<4x14xf32> -> vector<4x14xf32>
    %cst_115 = arith.constant dense<0.000000e+00> : vector<4x14xf32>
    %291 = tpu.matmul %202, %290, %cst_115 {dimension_numbers = #tpu.dot_dimension_numbers<[1], [0], [0], [1], [0, 0, 1, 1], [], []>} : vector<4x4xf32>, vector<4x14xf32>, vector<4x14xf32> -> vector<4x14xf32>
    %cst_116 = arith.constant dense<0.000000e+00> : vector<4x14xf32>
    %292 = tpu.matmul %273, %289, %cst_116 {dimension_numbers = #tpu.dot_dimension_numbers<[1], [0], [0], [1], [0, 0, 1, 1], [], []>} : vector<4x29xf32>, vector<29x14xf32>, vector<4x14xf32> -> vector<4x14xf32>
    %cst_117 = arith.constant dense<0.000000e+00> : vector<4x14xf32>
    %293 = tpu.matmul %203, %292, %cst_117 {dimension_numbers = #tpu.dot_dimension_numbers<[1], [0], [0], [1], [0, 0, 1, 1], [], []>} : vector<4x4xf32>, vector<4x14xf32>, vector<4x14xf32> -> vector<4x14xf32>
    %294 = arith.addf %291, %293 : vector<4x14xf32>
    %295 = vector.broadcast %204 : vector<4x1xf32> to vector<4x14xf32>
    %296 = arith.addf %294, %295 : vector<4x14xf32>
    %c0_118 = arith.constant 0 : index
    %c0_119 = arith.constant 0 : index
    %297 = vector.load %arg21[%c0_118, %c0_119] : memref<4x4xf32, #tpu.memory_space<vmem>>, vector<4x4xf32>
    %c0_120 = arith.constant 0 : index
    %c0_121 = arith.constant 0 : index
    %298 = vector.load %arg22[%c0_120, %c0_121] : memref<4x4xf32, #tpu.memory_space<vmem>>, vector<4x4xf32>
    %c0_122 = arith.constant 0 : index
    %c0_123 = arith.constant 0 : index
    %299 = vector.load %arg23[%c0_122, %c0_123] : memref<4x1xf32, #tpu.memory_space<vmem>>, vector<4x1xf32>
    %c0_124 = arith.constant 0 : index
    %c0_125 = arith.constant 0 : index
    %300 = vector.load %arg24[%c0_124, %c0_125] : memref<4x4xf32, #tpu.memory_space<vmem>>, vector<4x4xf32>
    %c0_126 = arith.constant 0 : index
    %c0_127 = arith.constant 0 : index
    %301 = vector.load %arg25[%c0_126, %c0_127] : memref<4x4xf32, #tpu.memory_space<vmem>>, vector<4x4xf32>
    %c0_128 = arith.constant 0 : index
    %c0_129 = arith.constant 0 : index
    %302 = vector.load %arg26[%c0_128, %c0_129] : memref<4x1xf32, #tpu.memory_space<vmem>>, vector<4x1xf32>
    %cst_130 = arith.constant 0.000000e+00 : f32
    %303 = vector.broadcast %cst_130 : f32 to vector<4x14xf32>
    %304 = arith.cmpf oge, %296, %303 : vector<4x14xf32>
    %cst_131 = arith.constant 0.00999999977 : f32
    %305 = vector.broadcast %cst_131 : f32 to vector<4x14xf32>
    %306 = arith.mulf %305, %296 : vector<4x14xf32>
    %307 = arith.select %304, %296, %306 : vector<4x14xi1>, vector<4x14xf32>
    %cst_132 = arith.constant dense<0.000000e+00> : vector<4xf32>
    %308 = vector.multi_reduction <add>, %307, %cst_132 [1] : vector<4x14xf32> to vector<4xf32>
    %309 = vector.shape_cast %308 : vector<4xf32> to vector<4x1xf32>
    %cst_133 = arith.constant 1.400000e+01 : f32
    %310 = vector.broadcast %cst_133 : f32 to vector<4x1xf32>
    %311 = arith.divf %309, %310 : vector<4x1xf32>
    %312 = vector.broadcast %311 : vector<4x1xf32> to vector<4x14xf32>
    %313 = arith.subf %307, %312 : vector<4x14xf32>
    %314 = arith.mulf %313, %313 : vector<4x14xf32>
    %cst_134 = arith.constant dense<0.000000e+00> : vector<4xf32>
    %315 = vector.multi_reduction <add>, %314, %cst_134 [1] : vector<4x14xf32> to vector<4xf32>
    %316 = vector.shape_cast %315 : vector<4xf32> to vector<4x1xf32>
    %cst_135 = arith.constant 1.400000e+01 : f32
    %317 = vector.broadcast %cst_135 : f32 to vector<4x1xf32>
    %318 = arith.divf %316, %317 : vector<4x1xf32>
    %319 = vector.broadcast %311 : vector<4x1xf32> to vector<4x14xf32>
    %320 = arith.subf %307, %319 : vector<4x14xf32>
    %cst_136 = arith.constant 9.99999974E-6 : f32
    %321 = vector.broadcast %cst_136 : f32 to vector<4x1xf32>
    %322 = arith.addf %318, %321 : vector<4x1xf32>
    %323 = math.rsqrt %322 : vector<4x1xf32>
    %324 = vector.broadcast %323 : vector<4x1xf32> to vector<4x14xf32>
    %325 = arith.mulf %320, %324 : vector<4x14xf32>
    %326 = tpu.iota {dimensions = array<i32: 0>} : vector<14x15xi32>
    %327 = tpu.iota {dimensions = array<i32: 1>} : vector<14x15xi32>
    %c1_i32_137 = arith.constant 1 : i32
    %328 = vector.broadcast %c1_i32_137 : i32 to vector<14x15xi32>
    %329 = arith.subi %327, %328 : vector<14x15xi32>
    %330 = arith.cmpi eq, %326, %329 : vector<14x15xi32>
    %331 = arith.extui %330 : vector<14x15xi1> to vector<14x15xi32>
    %332 = arith.sitofp %331 : vector<14x15xi32> to vector<14x15xf32>
    %333 = tpu.iota {dimensions = array<i32: 0>} : vector<14x15xi32>
    %334 = tpu.iota {dimensions = array<i32: 1>} : vector<14x15xi32>
    %c1_i32_138 = arith.constant 1 : i32
    %335 = vector.broadcast %c1_i32_138 : i32 to vector<14x15xi32>
    %336 = arith.addi %334, %335 : vector<14x15xi32>
    %c1_i32_139 = arith.constant 1 : i32
    %337 = vector.broadcast %c1_i32_139 : i32 to vector<14x15xi32>
    %338 = arith.subi %336, %337 : vector<14x15xi32>
    %339 = arith.cmpi eq, %333, %338 : vector<14x15xi32>
    %340 = arith.extui %339 : vector<14x15xi1> to vector<14x15xi32>
    %341 = arith.sitofp %340 : vector<14x15xi32> to vector<14x15xf32>
    %cst_140 = arith.constant dense<0.000000e+00> : vector<4x15xf32>
    %342 = tpu.matmul %325, %332, %cst_140 {dimension_numbers = #tpu.dot_dimension_numbers<[1], [0], [0], [1], [0, 0, 1, 1], [], []>} : vector<4x14xf32>, vector<14x15xf32>, vector<4x15xf32> -> vector<4x15xf32>
    %cst_141 = arith.constant dense<0.000000e+00> : vector<4x15xf32>
    %343 = tpu.matmul %297, %342, %cst_141 {dimension_numbers = #tpu.dot_dimension_numbers<[1], [0], [0], [1], [0, 0, 1, 1], [], []>} : vector<4x4xf32>, vector<4x15xf32>, vector<4x15xf32> -> vector<4x15xf32>
    %cst_142 = arith.constant dense<0.000000e+00> : vector<4x15xf32>
    %344 = tpu.matmul %325, %341, %cst_142 {dimension_numbers = #tpu.dot_dimension_numbers<[1], [0], [0], [1], [0, 0, 1, 1], [], []>} : vector<4x14xf32>, vector<14x15xf32>, vector<4x15xf32> -> vector<4x15xf32>
    %cst_143 = arith.constant dense<0.000000e+00> : vector<4x15xf32>
    %345 = tpu.matmul %298, %344, %cst_143 {dimension_numbers = #tpu.dot_dimension_numbers<[1], [0], [0], [1], [0, 0, 1, 1], [], []>} : vector<4x4xf32>, vector<4x15xf32>, vector<4x15xf32> -> vector<4x15xf32>
    %346 = arith.addf %343, %345 : vector<4x15xf32>
    %347 = vector.broadcast %299 : vector<4x1xf32> to vector<4x15xf32>
    %348 = arith.addf %346, %347 : vector<4x15xf32>
    %cst_144 = arith.constant 0.000000e+00 : f32
    %349 = vector.broadcast %cst_144 : f32 to vector<4x15xf32>
    %350 = arith.cmpf oge, %348, %349 : vector<4x15xf32>
    %cst_145 = arith.constant 0.00999999977 : f32
    %351 = vector.broadcast %cst_145 : f32 to vector<4x15xf32>
    %352 = arith.mulf %351, %348 : vector<4x15xf32>
    %353 = arith.select %350, %348, %352 : vector<4x15xi1>, vector<4x15xf32>
    %cst_146 = arith.constant dense<0.000000e+00> : vector<4xf32>
    %354 = vector.multi_reduction <add>, %353, %cst_146 [1] : vector<4x15xf32> to vector<4xf32>
    %355 = vector.shape_cast %354 : vector<4xf32> to vector<4x1xf32>
    %cst_147 = arith.constant 1.500000e+01 : f32
    %356 = vector.broadcast %cst_147 : f32 to vector<4x1xf32>
    %357 = arith.divf %355, %356 : vector<4x1xf32>
    %358 = vector.broadcast %357 : vector<4x1xf32> to vector<4x15xf32>
    %359 = arith.subf %353, %358 : vector<4x15xf32>
    %360 = arith.mulf %359, %359 : vector<4x15xf32>
    %cst_148 = arith.constant dense<0.000000e+00> : vector<4xf32>
    %361 = vector.multi_reduction <add>, %360, %cst_148 [1] : vector<4x15xf32> to vector<4xf32>
    %362 = vector.shape_cast %361 : vector<4xf32> to vector<4x1xf32>
    %cst_149 = arith.constant 1.500000e+01 : f32
    %363 = vector.broadcast %cst_149 : f32 to vector<4x1xf32>
    %364 = arith.divf %362, %363 : vector<4x1xf32>
    %365 = vector.broadcast %357 : vector<4x1xf32> to vector<4x15xf32>
    %366 = arith.subf %353, %365 : vector<4x15xf32>
    %cst_150 = arith.constant 9.99999974E-6 : f32
    %367 = vector.broadcast %cst_150 : f32 to vector<4x1xf32>
    %368 = arith.addf %364, %367 : vector<4x1xf32>
    %369 = math.rsqrt %368 : vector<4x1xf32>
    %370 = vector.broadcast %369 : vector<4x1xf32> to vector<4x15xf32>
    %371 = arith.mulf %366, %370 : vector<4x15xf32>
    %372 = tpu.iota {dimensions = array<i32: 0>} : vector<15x7xi32>
    %373 = tpu.iota {dimensions = array<i32: 1>} : vector<15x7xi32>
    %c2_i32_151 = arith.constant 2 : i32
    %374 = vector.broadcast %c2_i32_151 : i32 to vector<15x7xi32>
    %375 = arith.muli %374, %373 : vector<15x7xi32>
    %376 = arith.cmpi eq, %372, %375 : vector<15x7xi32>
    %377 = arith.extui %376 : vector<15x7xi1> to vector<15x7xi32>
    %378 = arith.sitofp %377 : vector<15x7xi32> to vector<15x7xf32>
    %379 = tpu.iota {dimensions = array<i32: 0>} : vector<15x7xi32>
    %380 = tpu.iota {dimensions = array<i32: 1>} : vector<15x7xi32>
    %c2_i32_152 = arith.constant 2 : i32
    %381 = vector.broadcast %c2_i32_152 : i32 to vector<15x7xi32>
    %382 = arith.muli %381, %380 : vector<15x7xi32>
    %c1_i32_153 = arith.constant 1 : i32
    %383 = vector.broadcast %c1_i32_153 : i32 to vector<15x7xi32>
    %384 = arith.addi %382, %383 : vector<15x7xi32>
    %385 = arith.cmpi eq, %379, %384 : vector<15x7xi32>
    %386 = arith.extui %385 : vector<15x7xi1> to vector<15x7xi32>
    %387 = arith.sitofp %386 : vector<15x7xi32> to vector<15x7xf32>
    %cst_154 = arith.constant dense<0.000000e+00> : vector<4x7xf32>
    %388 = tpu.matmul %371, %378, %cst_154 {dimension_numbers = #tpu.dot_dimension_numbers<[1], [0], [0], [1], [0, 0, 1, 1], [], []>} : vector<4x15xf32>, vector<15x7xf32>, vector<4x7xf32> -> vector<4x7xf32>
    %cst_155 = arith.constant dense<0.000000e+00> : vector<4x7xf32>
    %389 = tpu.matmul %300, %388, %cst_155 {dimension_numbers = #tpu.dot_dimension_numbers<[1], [0], [0], [1], [0, 0, 1, 1], [], []>} : vector<4x4xf32>, vector<4x7xf32>, vector<4x7xf32> -> vector<4x7xf32>
    %cst_156 = arith.constant dense<0.000000e+00> : vector<4x7xf32>
    %390 = tpu.matmul %371, %387, %cst_156 {dimension_numbers = #tpu.dot_dimension_numbers<[1], [0], [0], [1], [0, 0, 1, 1], [], []>} : vector<4x15xf32>, vector<15x7xf32>, vector<4x7xf32> -> vector<4x7xf32>
    %cst_157 = arith.constant dense<0.000000e+00> : vector<4x7xf32>
    %391 = tpu.matmul %301, %390, %cst_157 {dimension_numbers = #tpu.dot_dimension_numbers<[1], [0], [0], [1], [0, 0, 1, 1], [], []>} : vector<4x4xf32>, vector<4x7xf32>, vector<4x7xf32> -> vector<4x7xf32>
    %392 = arith.addf %389, %391 : vector<4x7xf32>
    %393 = vector.broadcast %302 : vector<4x1xf32> to vector<4x7xf32>
    %394 = arith.addf %392, %393 : vector<4x7xf32>
    %395 = math.tanh %394 : vector<4x7xf32>
    %c0_158 = arith.constant 0 : index
    %c0_159 = arith.constant 0 : index
    %c0_160 = arith.constant 0 : index
    %396 = vector.load %arg2[%c0_158, %c0_159, %c0_160] : memref<1x4x7xf32, #tpu.memory_space<vmem>>, vector<1x4x7xf32>
    %397 = vector.shape_cast %396 : vector<1x4x7xf32> to vector<4x7xf32>
    %cst_161 = arith.constant 1.000000e-01 : f32
    %398 = vector.broadcast %cst_161 : f32 to vector<4x7xf32>
    %399 = arith.mulf %398, %397 : vector<4x7xf32>
    %400 = arith.addf %395, %399 : vector<4x7xf32>
    %c0_162 = arith.constant 0 : index
    %c0_163 = arith.constant 0 : index
    %401 = vector.load %arg27[%c0_162, %c0_163] : memref<4x4xf32, #tpu.memory_space<vmem>>, vector<4x4xf32>
    %c0_164 = arith.constant 0 : index
    %c0_165 = arith.constant 0 : index
    %402 = vector.load %arg28[%c0_164, %c0_165] : memref<4x4xf32, #tpu.memory_space<vmem>>, vector<4x4xf32>
    %c0_166 = arith.constant 0 : index
    %c0_167 = arith.constant 0 : index
    %403 = vector.load %arg29[%c0_166, %c0_167] : memref<4x1xf32, #tpu.memory_space<vmem>>, vector<4x1xf32>
    %c0_168 = arith.constant 0 : index
    %c0_169 = arith.constant 0 : index
    %404 = vector.load %arg30[%c0_168, %c0_169] : memref<64x4xf32, #tpu.memory_space<vmem>>, vector<64x4xf32>
    %c0_170 = arith.constant 0 : index
    %c0_171 = arith.constant 0 : index
    %405 = vector.load %arg31[%c0_170, %c0_171] : memref<64x4xf32, #tpu.memory_space<vmem>>, vector<64x4xf32>
    %c0_172 = arith.constant 0 : index
    %c0_173 = arith.constant 0 : index
    %406 = vector.load %arg32[%c0_172, %c0_173] : memref<64x1xf32, #tpu.memory_space<vmem>>, vector<64x1xf32>
    %cst_174 = arith.constant 0.000000e+00 : f32
    %407 = vector.broadcast %cst_174 : f32 to vector<4x7xf32>
    %408 = arith.cmpf oge, %400, %407 : vector<4x7xf32>
    %cst_175 = arith.constant 0.00999999977 : f32
    %409 = vector.broadcast %cst_175 : f32 to vector<4x7xf32>
    %410 = arith.mulf %409, %400 : vector<4x7xf32>
    %411 = arith.select %408, %400, %410 : vector<4x7xi1>, vector<4x7xf32>
    %cst_176 = arith.constant dense<0.000000e+00> : vector<4xf32>
    %412 = vector.multi_reduction <add>, %411, %cst_176 [1] : vector<4x7xf32> to vector<4xf32>
    %413 = vector.shape_cast %412 : vector<4xf32> to vector<4x1xf32>
    %cst_177 = arith.constant 7.000000e+00 : f32
    %414 = vector.broadcast %cst_177 : f32 to vector<4x1xf32>
    %415 = arith.divf %413, %414 : vector<4x1xf32>
    %416 = vector.broadcast %415 : vector<4x1xf32> to vector<4x7xf32>
    %417 = arith.subf %411, %416 : vector<4x7xf32>
    %418 = arith.mulf %417, %417 : vector<4x7xf32>
    %cst_178 = arith.constant dense<0.000000e+00> : vector<4xf32>
    %419 = vector.multi_reduction <add>, %418, %cst_178 [1] : vector<4x7xf32> to vector<4xf32>
    %420 = vector.shape_cast %419 : vector<4xf32> to vector<4x1xf32>
    %cst_179 = arith.constant 7.000000e+00 : f32
    %421 = vector.broadcast %cst_179 : f32 to vector<4x1xf32>
    %422 = arith.divf %420, %421 : vector<4x1xf32>
    %423 = vector.broadcast %415 : vector<4x1xf32> to vector<4x7xf32>
    %424 = arith.subf %411, %423 : vector<4x7xf32>
    %cst_180 = arith.constant 9.99999974E-6 : f32
    %425 = vector.broadcast %cst_180 : f32 to vector<4x1xf32>
    %426 = arith.addf %422, %425 : vector<4x1xf32>
    %427 = math.rsqrt %426 : vector<4x1xf32>
    %428 = vector.broadcast %427 : vector<4x1xf32> to vector<4x7xf32>
    %429 = arith.mulf %424, %428 : vector<4x7xf32>
    %430 = tpu.iota {dimensions = array<i32: 0>} : vector<7x14xi32>
    %431 = tpu.iota {dimensions = array<i32: 1>} : vector<7x14xi32>
    %c2_i32_181 = arith.constant 2 : i32
    %432 = vector.broadcast %c2_i32_181 : i32 to vector<7x14xi32>
    %433 = arith.muli %432, %430 : vector<7x14xi32>
    %434 = arith.cmpi eq, %431, %433 : vector<7x14xi32>
    %435 = arith.extui %434 : vector<7x14xi1> to vector<7x14xi32>
    %436 = arith.sitofp %435 : vector<7x14xi32> to vector<7x14xf32>
    %437 = tpu.iota {dimensions = array<i32: 0>} : vector<7x14xi32>
    %438 = tpu.iota {dimensions = array<i32: 1>} : vector<7x14xi32>
    %c2_i32_182 = arith.constant 2 : i32
    %439 = vector.broadcast %c2_i32_182 : i32 to vector<7x14xi32>
    %440 = arith.muli %439, %437 : vector<7x14xi32>
    %c1_i32_183 = arith.constant 1 : i32
    %441 = vector.broadcast %c1_i32_183 : i32 to vector<7x14xi32>
    %442 = arith.addi %440, %441 : vector<7x14xi32>
    %443 = arith.cmpi eq, %438, %442 : vector<7x14xi32>
    %444 = arith.extui %443 : vector<7x14xi1> to vector<7x14xi32>
    %445 = arith.sitofp %444 : vector<7x14xi32> to vector<7x14xf32>
    %cst_184 = arith.constant dense<0.000000e+00> : vector<4x7xf32>
    %446 = tpu.matmul %401, %429, %cst_184 {dimension_numbers = #tpu.dot_dimension_numbers<[1], [0], [0], [1], [0, 0, 1, 1], [], []>} : vector<4x4xf32>, vector<4x7xf32>, vector<4x7xf32> -> vector<4x7xf32>
    %cst_185 = arith.constant dense<0.000000e+00> : vector<4x14xf32>
    %447 = tpu.matmul %446, %436, %cst_185 {dimension_numbers = #tpu.dot_dimension_numbers<[1], [0], [0], [1], [0, 0, 1, 1], [], []>} : vector<4x7xf32>, vector<7x14xf32>, vector<4x14xf32> -> vector<4x14xf32>
    %cst_186 = arith.constant dense<0.000000e+00> : vector<4x7xf32>
    %448 = tpu.matmul %402, %429, %cst_186 {dimension_numbers = #tpu.dot_dimension_numbers<[1], [0], [0], [1], [0, 0, 1, 1], [], []>} : vector<4x4xf32>, vector<4x7xf32>, vector<4x7xf32> -> vector<4x7xf32>
    %cst_187 = arith.constant dense<0.000000e+00> : vector<4x14xf32>
    %449 = tpu.matmul %448, %445, %cst_187 {dimension_numbers = #tpu.dot_dimension_numbers<[1], [0], [0], [1], [0, 0, 1, 1], [], []>} : vector<4x7xf32>, vector<7x14xf32>, vector<4x14xf32> -> vector<4x14xf32>
    %450 = arith.addf %447, %449 : vector<4x14xf32>
    %451 = vector.broadcast %403 : vector<4x1xf32> to vector<4x14xf32>
    %452 = arith.addf %450, %451 : vector<4x14xf32>
    %cst_188 = arith.constant 0.000000e+00 : f32
    %453 = vector.broadcast %cst_188 : f32 to vector<4x14xf32>
    %454 = arith.cmpf oge, %452, %453 : vector<4x14xf32>
    %cst_189 = arith.constant 0.00999999977 : f32
    %455 = vector.broadcast %cst_189 : f32 to vector<4x14xf32>
    %456 = arith.mulf %455, %452 : vector<4x14xf32>
    %457 = arith.select %454, %452, %456 : vector<4x14xi1>, vector<4x14xf32>
    %cst_190 = arith.constant dense<0.000000e+00> : vector<4xf32>
    %458 = vector.multi_reduction <add>, %457, %cst_190 [1] : vector<4x14xf32> to vector<4xf32>
    %459 = vector.shape_cast %458 : vector<4xf32> to vector<4x1xf32>
    %cst_191 = arith.constant 1.400000e+01 : f32
    %460 = vector.broadcast %cst_191 : f32 to vector<4x1xf32>
    %461 = arith.divf %459, %460 : vector<4x1xf32>
    %462 = vector.broadcast %461 : vector<4x1xf32> to vector<4x14xf32>
    %463 = arith.subf %457, %462 : vector<4x14xf32>
    %464 = arith.mulf %463, %463 : vector<4x14xf32>
    %cst_192 = arith.constant dense<0.000000e+00> : vector<4xf32>
    %465 = vector.multi_reduction <add>, %464, %cst_192 [1] : vector<4x14xf32> to vector<4xf32>
    %466 = vector.shape_cast %465 : vector<4xf32> to vector<4x1xf32>
    %cst_193 = arith.constant 1.400000e+01 : f32
    %467 = vector.broadcast %cst_193 : f32 to vector<4x1xf32>
    %468 = arith.divf %466, %467 : vector<4x1xf32>
    %469 = vector.broadcast %461 : vector<4x1xf32> to vector<4x14xf32>
    %470 = arith.subf %457, %469 : vector<4x14xf32>
    %cst_194 = arith.constant 9.99999974E-6 : f32
    %471 = vector.broadcast %cst_194 : f32 to vector<4x1xf32>
    %472 = arith.addf %468, %471 : vector<4x1xf32>
    %473 = math.rsqrt %472 : vector<4x1xf32>
    %474 = vector.broadcast %473 : vector<4x1xf32> to vector<4x14xf32>
    %475 = arith.mulf %470, %474 : vector<4x14xf32>
    %476 = tpu.iota {dimensions = array<i32: 0>} : vector<14x15xi32>
    %477 = tpu.iota {dimensions = array<i32: 1>} : vector<14x15xi32>
    %c1_i32_195 = arith.constant 1 : i32
    %478 = vector.broadcast %c1_i32_195 : i32 to vector<14x15xi32>
    %479 = arith.subi %477, %478 : vector<14x15xi32>
    %480 = arith.cmpi eq, %476, %479 : vector<14x15xi32>
    %481 = arith.extui %480 : vector<14x15xi1> to vector<14x15xi32>
    %482 = arith.sitofp %481 : vector<14x15xi32> to vector<14x15xf32>
    %483 = tpu.iota {dimensions = array<i32: 0>} : vector<14x15xi32>
    %484 = tpu.iota {dimensions = array<i32: 1>} : vector<14x15xi32>
    %c1_i32_196 = arith.constant 1 : i32
    %485 = vector.broadcast %c1_i32_196 : i32 to vector<14x15xi32>
    %486 = arith.addi %484, %485 : vector<14x15xi32>
    %c1_i32_197 = arith.constant 1 : i32
    %487 = vector.broadcast %c1_i32_197 : i32 to vector<14x15xi32>
    %488 = arith.subi %486, %487 : vector<14x15xi32>
    %489 = arith.cmpi eq, %483, %488 : vector<14x15xi32>
    %490 = arith.extui %489 : vector<14x15xi1> to vector<14x15xi32>
    %491 = arith.sitofp %490 : vector<14x15xi32> to vector<14x15xf32>
    %cst_198 = arith.constant dense<0.000000e+00> : vector<4x15xf32>
    %492 = tpu.matmul %475, %482, %cst_198 {dimension_numbers = #tpu.dot_dimension_numbers<[1], [0], [0], [1], [0, 0, 1, 1], [], []>} : vector<4x14xf32>, vector<14x15xf32>, vector<4x15xf32> -> vector<4x15xf32>
    %cst_199 = arith.constant dense<0.000000e+00> : vector<64x15xf32>
    %493 = tpu.matmul %404, %492, %cst_199 {dimension_numbers = #tpu.dot_dimension_numbers<[1], [0], [0], [1], [0, 0, 1, 1], [], []>} : vector<64x4xf32>, vector<4x15xf32>, vector<64x15xf32> -> vector<64x15xf32>
    %cst_200 = arith.constant dense<0.000000e+00> : vector<4x15xf32>
    %494 = tpu.matmul %475, %491, %cst_200 {dimension_numbers = #tpu.dot_dimension_numbers<[1], [0], [0], [1], [0, 0, 1, 1], [], []>} : vector<4x14xf32>, vector<14x15xf32>, vector<4x15xf32> -> vector<4x15xf32>
    %cst_201 = arith.constant dense<0.000000e+00> : vector<64x15xf32>
    %495 = tpu.matmul %405, %494, %cst_201 {dimension_numbers = #tpu.dot_dimension_numbers<[1], [0], [0], [1], [0, 0, 1, 1], [], []>} : vector<64x4xf32>, vector<4x15xf32>, vector<64x15xf32> -> vector<64x15xf32>
    %496 = arith.addf %493, %495 : vector<64x15xf32>
    %497 = vector.broadcast %406 : vector<64x1xf32> to vector<64x15xf32>
    %498 = arith.addf %496, %497 : vector<64x15xf32>
    %c0_202 = arith.constant 0 : index
    %c0_203 = arith.constant 0 : index
    %499 = vector.load %arg33[%c0_202, %c0_203] : memref<64x64xf32, #tpu.memory_space<vmem>>, vector<64x64xf32>
    %c0_204 = arith.constant 0 : index
    %c0_205 = arith.constant 0 : index
    %500 = vector.load %arg34[%c0_204, %c0_205] : memref<64x64xf32, #tpu.memory_space<vmem>>, vector<64x64xf32>
    %c0_206 = arith.constant 0 : index
    %c0_207 = arith.constant 0 : index
    %501 = vector.load %arg35[%c0_206, %c0_207] : memref<64x1xf32, #tpu.memory_space<vmem>>, vector<64x1xf32>
    %c0_208 = arith.constant 0 : index
    %c0_209 = arith.constant 0 : index
    %502 = vector.load %arg36[%c0_208, %c0_209] : memref<64x64xf32, #tpu.memory_space<vmem>>, vector<64x64xf32>
    %c0_210 = arith.constant 0 : index
    %c0_211 = arith.constant 0 : index
    %503 = vector.load %arg37[%c0_210, %c0_211] : memref<64x64xf32, #tpu.memory_space<vmem>>, vector<64x64xf32>
    %c0_212 = arith.constant 0 : index
    %c0_213 = arith.constant 0 : index
    %504 = vector.load %arg38[%c0_212, %c0_213] : memref<64x1xf32, #tpu.memory_space<vmem>>, vector<64x1xf32>
    %cst_214 = arith.constant 0.000000e+00 : f32
    %505 = vector.broadcast %cst_214 : f32 to vector<64x15xf32>
    %506 = arith.cmpf oge, %498, %505 : vector<64x15xf32>
    %cst_215 = arith.constant 0.00999999977 : f32
    %507 = vector.broadcast %cst_215 : f32 to vector<64x15xf32>
    %508 = arith.mulf %507, %498 : vector<64x15xf32>
    %509 = arith.select %506, %498, %508 : vector<64x15xi1>, vector<64x15xf32>
    %cst_216 = arith.constant dense<0.000000e+00> : vector<64xf32>
    %510 = vector.multi_reduction <add>, %509, %cst_216 [1] : vector<64x15xf32> to vector<64xf32>
    %511 = vector.shape_cast %510 : vector<64xf32> to vector<64x1xf32>
    %cst_217 = arith.constant 1.500000e+01 : f32
    %512 = vector.broadcast %cst_217 : f32 to vector<64x1xf32>
    %513 = arith.divf %511, %512 : vector<64x1xf32>
    %514 = vector.broadcast %513 : vector<64x1xf32> to vector<64x15xf32>
    %515 = arith.subf %509, %514 : vector<64x15xf32>
    %516 = arith.mulf %515, %515 : vector<64x15xf32>
    %cst_218 = arith.constant dense<0.000000e+00> : vector<64xf32>
    %517 = vector.multi_reduction <add>, %516, %cst_218 [1] : vector<64x15xf32> to vector<64xf32>
    %518 = vector.shape_cast %517 : vector<64xf32> to vector<64x1xf32>
    %cst_219 = arith.constant 1.500000e+01 : f32
    %519 = vector.broadcast %cst_219 : f32 to vector<64x1xf32>
    %520 = arith.divf %518, %519 : vector<64x1xf32>
    %521 = vector.broadcast %513 : vector<64x1xf32> to vector<64x15xf32>
    %522 = arith.subf %509, %521 : vector<64x15xf32>
    %cst_220 = arith.constant 9.99999974E-6 : f32
    %523 = vector.broadcast %cst_220 : f32 to vector<64x1xf32>
    %524 = arith.addf %520, %523 : vector<64x1xf32>
    %525 = math.rsqrt %524 : vector<64x1xf32>
    %526 = vector.broadcast %525 : vector<64x1xf32> to vector<64x15xf32>
    %527 = arith.mulf %522, %526 : vector<64x15xf32>
    %528 = tpu.iota {dimensions = array<i32: 0>} : vector<15x30xi32>
    %529 = tpu.iota {dimensions = array<i32: 1>} : vector<15x30xi32>
    %c2_i32_221 = arith.constant 2 : i32
    %530 = vector.broadcast %c2_i32_221 : i32 to vector<15x30xi32>
    %531 = arith.muli %530, %528 : vector<15x30xi32>
    %532 = arith.cmpi eq, %529, %531 : vector<15x30xi32>
    %533 = arith.extui %532 : vector<15x30xi1> to vector<15x30xi32>
    %534 = arith.sitofp %533 : vector<15x30xi32> to vector<15x30xf32>
    %535 = tpu.iota {dimensions = array<i32: 0>} : vector<15x30xi32>
    %536 = tpu.iota {dimensions = array<i32: 1>} : vector<15x30xi32>
    %c2_i32_222 = arith.constant 2 : i32
    %537 = vector.broadcast %c2_i32_222 : i32 to vector<15x30xi32>
    %538 = arith.muli %537, %535 : vector<15x30xi32>
    %c1_i32_223 = arith.constant 1 : i32
    %539 = vector.broadcast %c1_i32_223 : i32 to vector<15x30xi32>
    %540 = arith.addi %538, %539 : vector<15x30xi32>
    %541 = arith.cmpi eq, %536, %540 : vector<15x30xi32>
    %542 = arith.extui %541 : vector<15x30xi1> to vector<15x30xi32>
    %543 = arith.sitofp %542 : vector<15x30xi32> to vector<15x30xf32>
    %cst_224 = arith.constant dense<0.000000e+00> : vector<64x15xf32>
    %544 = tpu.matmul %499, %527, %cst_224 {dimension_numbers = #tpu.dot_dimension_numbers<[1], [0], [0], [1], [0, 0, 1, 1], [], []>} : vector<64x64xf32>, vector<64x15xf32>, vector<64x15xf32> -> vector<64x15xf32>
    %cst_225 = arith.constant dense<0.000000e+00> : vector<64x30xf32>
    %545 = tpu.matmul %544, %534, %cst_225 {dimension_numbers = #tpu.dot_dimension_numbers<[1], [0], [0], [1], [0, 0, 1, 1], [], []>} : vector<64x15xf32>, vector<15x30xf32>, vector<64x30xf32> -> vector<64x30xf32>
    %cst_226 = arith.constant dense<0.000000e+00> : vector<64x15xf32>
    %546 = tpu.matmul %500, %527, %cst_226 {dimension_numbers = #tpu.dot_dimension_numbers<[1], [0], [0], [1], [0, 0, 1, 1], [], []>} : vector<64x64xf32>, vector<64x15xf32>, vector<64x15xf32> -> vector<64x15xf32>
    %cst_227 = arith.constant dense<0.000000e+00> : vector<64x30xf32>
    %547 = tpu.matmul %546, %543, %cst_227 {dimension_numbers = #tpu.dot_dimension_numbers<[1], [0], [0], [1], [0, 0, 1, 1], [], []>} : vector<64x15xf32>, vector<15x30xf32>, vector<64x30xf32> -> vector<64x30xf32>
    %548 = arith.addf %545, %547 : vector<64x30xf32>
    %549 = vector.broadcast %501 : vector<64x1xf32> to vector<64x30xf32>
    %550 = arith.addf %548, %549 : vector<64x30xf32>
    %cst_228 = arith.constant 0.000000e+00 : f32
    %551 = vector.broadcast %cst_228 : f32 to vector<64x30xf32>
    %552 = arith.cmpf oge, %550, %551 : vector<64x30xf32>
    %cst_229 = arith.constant 0.00999999977 : f32
    %553 = vector.broadcast %cst_229 : f32 to vector<64x30xf32>
    %554 = arith.mulf %553, %550 : vector<64x30xf32>
    %555 = arith.select %552, %550, %554 : vector<64x30xi1>, vector<64x30xf32>
    %cst_230 = arith.constant dense<0.000000e+00> : vector<64xf32>
    %556 = vector.multi_reduction <add>, %555, %cst_230 [1] : vector<64x30xf32> to vector<64xf32>
    %557 = vector.shape_cast %556 : vector<64xf32> to vector<64x1xf32>
    %cst_231 = arith.constant 3.000000e+01 : f32
    %558 = vector.broadcast %cst_231 : f32 to vector<64x1xf32>
    %559 = arith.divf %557, %558 : vector<64x1xf32>
    %560 = vector.broadcast %559 : vector<64x1xf32> to vector<64x30xf32>
    %561 = arith.subf %555, %560 : vector<64x30xf32>
    %562 = arith.mulf %561, %561 : vector<64x30xf32>
    %cst_232 = arith.constant dense<0.000000e+00> : vector<64xf32>
    %563 = vector.multi_reduction <add>, %562, %cst_232 [1] : vector<64x30xf32> to vector<64xf32>
    %564 = vector.shape_cast %563 : vector<64xf32> to vector<64x1xf32>
    %cst_233 = arith.constant 3.000000e+01 : f32
    %565 = vector.broadcast %cst_233 : f32 to vector<64x1xf32>
    %566 = arith.divf %564, %565 : vector<64x1xf32>
    %567 = vector.broadcast %559 : vector<64x1xf32> to vector<64x30xf32>
    %568 = arith.subf %555, %567 : vector<64x30xf32>
    %cst_234 = arith.constant 9.99999974E-6 : f32
    %569 = vector.broadcast %cst_234 : f32 to vector<64x1xf32>
    %570 = arith.addf %566, %569 : vector<64x1xf32>
    %571 = math.rsqrt %570 : vector<64x1xf32>
    %572 = vector.broadcast %571 : vector<64x1xf32> to vector<64x30xf32>
    %573 = arith.mulf %568, %572 : vector<64x30xf32>
    %574 = tpu.iota {dimensions = array<i32: 0>} : vector<30x31xi32>
    %575 = tpu.iota {dimensions = array<i32: 1>} : vector<30x31xi32>
    %c1_i32_235 = arith.constant 1 : i32
    %576 = vector.broadcast %c1_i32_235 : i32 to vector<30x31xi32>
    %577 = arith.subi %575, %576 : vector<30x31xi32>
    %578 = arith.cmpi eq, %574, %577 : vector<30x31xi32>
    %579 = arith.extui %578 : vector<30x31xi1> to vector<30x31xi32>
    %580 = arith.sitofp %579 : vector<30x31xi32> to vector<30x31xf32>
    %581 = tpu.iota {dimensions = array<i32: 0>} : vector<30x31xi32>
    %582 = tpu.iota {dimensions = array<i32: 1>} : vector<30x31xi32>
    %c1_i32_236 = arith.constant 1 : i32
    %583 = vector.broadcast %c1_i32_236 : i32 to vector<30x31xi32>
    %584 = arith.addi %582, %583 : vector<30x31xi32>
    %c1_i32_237 = arith.constant 1 : i32
    %585 = vector.broadcast %c1_i32_237 : i32 to vector<30x31xi32>
    %586 = arith.subi %584, %585 : vector<30x31xi32>
    %587 = arith.cmpi eq, %581, %586 : vector<30x31xi32>
    %588 = arith.extui %587 : vector<30x31xi1> to vector<30x31xi32>
    %589 = arith.sitofp %588 : vector<30x31xi32> to vector<30x31xf32>
    %cst_238 = arith.constant dense<0.000000e+00> : vector<64x31xf32>
    %590 = tpu.matmul %573, %580, %cst_238 {dimension_numbers = #tpu.dot_dimension_numbers<[1], [0], [0], [1], [0, 0, 1, 1], [], []>} : vector<64x30xf32>, vector<30x31xf32>, vector<64x31xf32> -> vector<64x31xf32>
    %cst_239 = arith.constant dense<0.000000e+00> : vector<64x31xf32>
    %591 = tpu.matmul %502, %590, %cst_239 {dimension_numbers = #tpu.dot_dimension_numbers<[1], [0], [0], [1], [0, 0, 1, 1], [], []>} : vector<64x64xf32>, vector<64x31xf32>, vector<64x31xf32> -> vector<64x31xf32>
    %cst_240 = arith.constant dense<0.000000e+00> : vector<64x31xf32>
    %592 = tpu.matmul %573, %589, %cst_240 {dimension_numbers = #tpu.dot_dimension_numbers<[1], [0], [0], [1], [0, 0, 1, 1], [], []>} : vector<64x30xf32>, vector<30x31xf32>, vector<64x31xf32> -> vector<64x31xf32>
    %cst_241 = arith.constant dense<0.000000e+00> : vector<64x31xf32>
    %593 = tpu.matmul %503, %592, %cst_241 {dimension_numbers = #tpu.dot_dimension_numbers<[1], [0], [0], [1], [0, 0, 1, 1], [], []>} : vector<64x64xf32>, vector<64x31xf32>, vector<64x31xf32> -> vector<64x31xf32>
    %594 = arith.addf %591, %593 : vector<64x31xf32>
    %595 = vector.broadcast %504 : vector<64x1xf32> to vector<64x31xf32>
    %596 = arith.addf %594, %595 : vector<64x31xf32>
    %c0_242 = arith.constant 0 : index
    %c0_243 = arith.constant 0 : index
    %597 = vector.load %arg39[%c0_242, %c0_243] : memref<64x64xf32, #tpu.memory_space<vmem>>, vector<64x64xf32>
    %c0_244 = arith.constant 0 : index
    %c0_245 = arith.constant 0 : index
    %598 = vector.load %arg40[%c0_244, %c0_245] : memref<64x64xf32, #tpu.memory_space<vmem>>, vector<64x64xf32>
    %c0_246 = arith.constant 0 : index
    %c0_247 = arith.constant 0 : index
    %599 = vector.load %arg41[%c0_246, %c0_247] : memref<64x1xf32, #tpu.memory_space<vmem>>, vector<64x1xf32>
    %c0_248 = arith.constant 0 : index
    %c0_249 = arith.constant 0 : index
    %600 = vector.load %arg42[%c0_248, %c0_249] : memref<8x64xf32, #tpu.memory_space<vmem>>, vector<8x64xf32>
    %c0_250 = arith.constant 0 : index
    %c0_251 = arith.constant 0 : index
    %601 = vector.load %arg43[%c0_250, %c0_251] : memref<8x64xf32, #tpu.memory_space<vmem>>, vector<8x64xf32>
    %c0_252 = arith.constant 0 : index
    %c0_253 = arith.constant 0 : index
    %602 = vector.load %arg44[%c0_252, %c0_253] : memref<8x1xf32, #tpu.memory_space<vmem>>, vector<8x1xf32>
    %cst_254 = arith.constant 0.000000e+00 : f32
    %603 = vector.broadcast %cst_254 : f32 to vector<64x31xf32>
    %604 = arith.cmpf oge, %596, %603 : vector<64x31xf32>
    %cst_255 = arith.constant 0.00999999977 : f32
    %605 = vector.broadcast %cst_255 : f32 to vector<64x31xf32>
    %606 = arith.mulf %605, %596 : vector<64x31xf32>
    %607 = arith.select %604, %596, %606 : vector<64x31xi1>, vector<64x31xf32>
    %cst_256 = arith.constant dense<0.000000e+00> : vector<64xf32>
    %608 = vector.multi_reduction <add>, %607, %cst_256 [1] : vector<64x31xf32> to vector<64xf32>
    %609 = vector.shape_cast %608 : vector<64xf32> to vector<64x1xf32>
    %cst_257 = arith.constant 3.100000e+01 : f32
    %610 = vector.broadcast %cst_257 : f32 to vector<64x1xf32>
    %611 = arith.divf %609, %610 : vector<64x1xf32>
    %612 = vector.broadcast %611 : vector<64x1xf32> to vector<64x31xf32>
    %613 = arith.subf %607, %612 : vector<64x31xf32>
    %614 = arith.mulf %613, %613 : vector<64x31xf32>
    %cst_258 = arith.constant dense<0.000000e+00> : vector<64xf32>
    %615 = vector.multi_reduction <add>, %614, %cst_258 [1] : vector<64x31xf32> to vector<64xf32>
    %616 = vector.shape_cast %615 : vector<64xf32> to vector<64x1xf32>
    %cst_259 = arith.constant 3.100000e+01 : f32
    %617 = vector.broadcast %cst_259 : f32 to vector<64x1xf32>
    %618 = arith.divf %616, %617 : vector<64x1xf32>
    %619 = vector.broadcast %611 : vector<64x1xf32> to vector<64x31xf32>
    %620 = arith.subf %607, %619 : vector<64x31xf32>
    %cst_260 = arith.constant 9.99999974E-6 : f32
    %621 = vector.broadcast %cst_260 : f32 to vector<64x1xf32>
    %622 = arith.addf %618, %621 : vector<64x1xf32>
    %623 = math.rsqrt %622 : vector<64x1xf32>
    %624 = vector.broadcast %623 : vector<64x1xf32> to vector<64x31xf32>
    %625 = arith.mulf %620, %624 : vector<64x31xf32>
    %626 = tpu.iota {dimensions = array<i32: 0>} : vector<31x62xi32>
    %627 = tpu.iota {dimensions = array<i32: 1>} : vector<31x62xi32>
    %c2_i32_261 = arith.constant 2 : i32
    %628 = vector.broadcast %c2_i32_261 : i32 to vector<31x62xi32>
    %629 = arith.muli %628, %626 : vector<31x62xi32>
    %630 = arith.cmpi eq, %627, %629 : vector<31x62xi32>
    %631 = arith.extui %630 : vector<31x62xi1> to vector<31x62xi32>
    %632 = arith.sitofp %631 : vector<31x62xi32> to vector<31x62xf32>
    %633 = tpu.iota {dimensions = array<i32: 0>} : vector<31x62xi32>
    %634 = tpu.iota {dimensions = array<i32: 1>} : vector<31x62xi32>
    %c2_i32_262 = arith.constant 2 : i32
    %635 = vector.broadcast %c2_i32_262 : i32 to vector<31x62xi32>
    %636 = arith.muli %635, %633 : vector<31x62xi32>
    %c1_i32_263 = arith.constant 1 : i32
    %637 = vector.broadcast %c1_i32_263 : i32 to vector<31x62xi32>
    %638 = arith.addi %636, %637 : vector<31x62xi32>
    %639 = arith.cmpi eq, %634, %638 : vector<31x62xi32>
    %640 = arith.extui %639 : vector<31x62xi1> to vector<31x62xi32>
    %641 = arith.sitofp %640 : vector<31x62xi32> to vector<31x62xf32>
    %cst_264 = arith.constant dense<0.000000e+00> : vector<64x31xf32>
    %642 = tpu.matmul %597, %625, %cst_264 {dimension_numbers = #tpu.dot_dimension_numbers<[1], [0], [0], [1], [0, 0, 1, 1], [], []>} : vector<64x64xf32>, vector<64x31xf32>, vector<64x31xf32> -> vector<64x31xf32>
    %cst_265 = arith.constant dense<0.000000e+00> : vector<64x62xf32>
    %643 = tpu.matmul %642, %632, %cst_265 {dimension_numbers = #tpu.dot_dimension_numbers<[1], [0], [0], [1], [0, 0, 1, 1], [], []>} : vector<64x31xf32>, vector<31x62xf32>, vector<64x62xf32> -> vector<64x62xf32>
    %cst_266 = arith.constant dense<0.000000e+00> : vector<64x31xf32>
    %644 = tpu.matmul %598, %625, %cst_266 {dimension_numbers = #tpu.dot_dimension_numbers<[1], [0], [0], [1], [0, 0, 1, 1], [], []>} : vector<64x64xf32>, vector<64x31xf32>, vector<64x31xf32> -> vector<64x31xf32>
    %cst_267 = arith.constant dense<0.000000e+00> : vector<64x62xf32>
    %645 = tpu.matmul %644, %641, %cst_267 {dimension_numbers = #tpu.dot_dimension_numbers<[1], [0], [0], [1], [0, 0, 1, 1], [], []>} : vector<64x31xf32>, vector<31x62xf32>, vector<64x62xf32> -> vector<64x62xf32>
    %646 = arith.addf %643, %645 : vector<64x62xf32>
    %647 = vector.broadcast %599 : vector<64x1xf32> to vector<64x62xf32>
    %648 = arith.addf %646, %647 : vector<64x62xf32>
    %cst_268 = arith.constant 0.000000e+00 : f32
    %649 = vector.broadcast %cst_268 : f32 to vector<64x62xf32>
    %650 = arith.cmpf oge, %648, %649 : vector<64x62xf32>
    %cst_269 = arith.constant 0.00999999977 : f32
    %651 = vector.broadcast %cst_269 : f32 to vector<64x62xf32>
    %652 = arith.mulf %651, %648 : vector<64x62xf32>
    %653 = arith.select %650, %648, %652 : vector<64x62xi1>, vector<64x62xf32>
    %cst_270 = arith.constant dense<0.000000e+00> : vector<64xf32>
    %654 = vector.multi_reduction <add>, %653, %cst_270 [1] : vector<64x62xf32> to vector<64xf32>
    %655 = vector.shape_cast %654 : vector<64xf32> to vector<64x1xf32>
    %cst_271 = arith.constant 6.200000e+01 : f32
    %656 = vector.broadcast %cst_271 : f32 to vector<64x1xf32>
    %657 = arith.divf %655, %656 : vector<64x1xf32>
    %658 = vector.broadcast %657 : vector<64x1xf32> to vector<64x62xf32>
    %659 = arith.subf %653, %658 : vector<64x62xf32>
    %660 = arith.mulf %659, %659 : vector<64x62xf32>
    %cst_272 = arith.constant dense<0.000000e+00> : vector<64xf32>
    %661 = vector.multi_reduction <add>, %660, %cst_272 [1] : vector<64x62xf32> to vector<64xf32>
    %662 = vector.shape_cast %661 : vector<64xf32> to vector<64x1xf32>
    %cst_273 = arith.constant 6.200000e+01 : f32
    %663 = vector.broadcast %cst_273 : f32 to vector<64x1xf32>
    %664 = arith.divf %662, %663 : vector<64x1xf32>
    %665 = vector.broadcast %657 : vector<64x1xf32> to vector<64x62xf32>
    %666 = arith.subf %653, %665 : vector<64x62xf32>
    %cst_274 = arith.constant 9.99999974E-6 : f32
    %667 = vector.broadcast %cst_274 : f32 to vector<64x1xf32>
    %668 = arith.addf %664, %667 : vector<64x1xf32>
    %669 = math.rsqrt %668 : vector<64x1xf32>
    %670 = vector.broadcast %669 : vector<64x1xf32> to vector<64x62xf32>
    %671 = arith.mulf %666, %670 : vector<64x62xf32>
    %672 = tpu.iota {dimensions = array<i32: 0>} : vector<62x63xi32>
    %673 = tpu.iota {dimensions = array<i32: 1>} : vector<62x63xi32>
    %c1_i32_275 = arith.constant 1 : i32
    %674 = vector.broadcast %c1_i32_275 : i32 to vector<62x63xi32>
    %675 = arith.subi %673, %674 : vector<62x63xi32>
    %676 = arith.cmpi eq, %672, %675 : vector<62x63xi32>
    %677 = arith.extui %676 : vector<62x63xi1> to vector<62x63xi32>
    %678 = arith.sitofp %677 : vector<62x63xi32> to vector<62x63xf32>
    %679 = tpu.iota {dimensions = array<i32: 0>} : vector<62x63xi32>
    %680 = tpu.iota {dimensions = array<i32: 1>} : vector<62x63xi32>
    %c1_i32_276 = arith.constant 1 : i32
    %681 = vector.broadcast %c1_i32_276 : i32 to vector<62x63xi32>
    %682 = arith.addi %680, %681 : vector<62x63xi32>
    %c1_i32_277 = arith.constant 1 : i32
    %683 = vector.broadcast %c1_i32_277 : i32 to vector<62x63xi32>
    %684 = arith.subi %682, %683 : vector<62x63xi32>
    %685 = arith.cmpi eq, %679, %684 : vector<62x63xi32>
    %686 = arith.extui %685 : vector<62x63xi1> to vector<62x63xi32>
    %687 = arith.sitofp %686 : vector<62x63xi32> to vector<62x63xf32>
    %cst_278 = arith.constant dense<0.000000e+00> : vector<64x63xf32>
    %688 = tpu.matmul %671, %678, %cst_278 {dimension_numbers = #tpu.dot_dimension_numbers<[1], [0], [0], [1], [0, 0, 1, 1], [], []>} : vector<64x62xf32>, vector<62x63xf32>, vector<64x63xf32> -> vector<64x63xf32>
    %cst_279 = arith.constant dense<0.000000e+00> : vector<8x63xf32>
    %689 = tpu.matmul %600, %688, %cst_279 {dimension_numbers = #tpu.dot_dimension_numbers<[1], [0], [0], [1], [0, 0, 1, 1], [], []>} : vector<8x64xf32>, vector<64x63xf32>, vector<8x63xf32> -> vector<8x63xf32>
    %cst_280 = arith.constant dense<0.000000e+00> : vector<64x63xf32>
    %690 = tpu.matmul %671, %687, %cst_280 {dimension_numbers = #tpu.dot_dimension_numbers<[1], [0], [0], [1], [0, 0, 1, 1], [], []>} : vector<64x62xf32>, vector<62x63xf32>, vector<64x63xf32> -> vector<64x63xf32>
    %cst_281 = arith.constant dense<0.000000e+00> : vector<8x63xf32>
    %691 = tpu.matmul %601, %690, %cst_281 {dimension_numbers = #tpu.dot_dimension_numbers<[1], [0], [0], [1], [0, 0, 1, 1], [], []>} : vector<8x64xf32>, vector<64x63xf32>, vector<8x63xf32> -> vector<8x63xf32>
    %692 = arith.addf %689, %691 : vector<8x63xf32>
    %693 = vector.broadcast %602 : vector<8x1xf32> to vector<8x63xf32>
    %694 = arith.addf %692, %693 : vector<8x63xf32>
    %c0_282 = arith.constant 0 : index
    %c0_283 = arith.constant 0 : index
    %695 = vector.load %arg45[%c0_282, %c0_283] : memref<8x8xf32, #tpu.memory_space<vmem>>, vector<8x8xf32>
    %c0_284 = arith.constant 0 : index
    %c0_285 = arith.constant 0 : index
    %696 = vector.load %arg46[%c0_284, %c0_285] : memref<8x8xf32, #tpu.memory_space<vmem>>, vector<8x8xf32>
    %c0_286 = arith.constant 0 : index
    %c0_287 = arith.constant 0 : index
    %697 = vector.load %arg47[%c0_286, %c0_287] : memref<8x1xf32, #tpu.memory_space<vmem>>, vector<8x1xf32>
    %c0_288 = arith.constant 0 : index
    %c0_289 = arith.constant 0 : index
    %698 = vector.load %arg48[%c0_288, %c0_289] : memref<1x8xf32, #tpu.memory_space<vmem>>, vector<1x8xf32>
    %c0_290 = arith.constant 0 : index
    %c0_291 = arith.constant 0 : index
    %699 = vector.load %arg49[%c0_290, %c0_291] : memref<1x8xf32, #tpu.memory_space<vmem>>, vector<1x8xf32>
    %c0_292 = arith.constant 0 : index
    %c0_293 = arith.constant 0 : index
    %700 = vector.load %arg50[%c0_292, %c0_293] : memref<1x1xf32, #tpu.memory_space<vmem>>, vector<1x1xf32>
    %cst_294 = arith.constant 0.000000e+00 : f32
    %701 = vector.broadcast %cst_294 : f32 to vector<8x63xf32>
    %702 = arith.cmpf oge, %694, %701 : vector<8x63xf32>
    %cst_295 = arith.constant 0.00999999977 : f32
    %703 = vector.broadcast %cst_295 : f32 to vector<8x63xf32>
    %704 = arith.mulf %703, %694 : vector<8x63xf32>
    %705 = arith.select %702, %694, %704 : vector<8x63xi1>, vector<8x63xf32>
    %cst_296 = arith.constant dense<0.000000e+00> : vector<8xf32>
    %706 = vector.multi_reduction <add>, %705, %cst_296 [1] : vector<8x63xf32> to vector<8xf32>
    %707 = vector.shape_cast %706 : vector<8xf32> to vector<8x1xf32>
    %cst_297 = arith.constant 6.300000e+01 : f32
    %708 = vector.broadcast %cst_297 : f32 to vector<8x1xf32>
    %709 = arith.divf %707, %708 : vector<8x1xf32>
    %710 = vector.broadcast %709 : vector<8x1xf32> to vector<8x63xf32>
    %711 = arith.subf %705, %710 : vector<8x63xf32>
    %712 = arith.mulf %711, %711 : vector<8x63xf32>
    %cst_298 = arith.constant dense<0.000000e+00> : vector<8xf32>
    %713 = vector.multi_reduction <add>, %712, %cst_298 [1] : vector<8x63xf32> to vector<8xf32>
    %714 = vector.shape_cast %713 : vector<8xf32> to vector<8x1xf32>
    %cst_299 = arith.constant 6.300000e+01 : f32
    %715 = vector.broadcast %cst_299 : f32 to vector<8x1xf32>
    %716 = arith.divf %714, %715 : vector<8x1xf32>
    %717 = vector.broadcast %709 : vector<8x1xf32> to vector<8x63xf32>
    %718 = arith.subf %705, %717 : vector<8x63xf32>
    %cst_300 = arith.constant 9.99999974E-6 : f32
    %719 = vector.broadcast %cst_300 : f32 to vector<8x1xf32>
    %720 = arith.addf %716, %719 : vector<8x1xf32>
    %721 = math.rsqrt %720 : vector<8x1xf32>
    %722 = vector.broadcast %721 : vector<8x1xf32> to vector<8x63xf32>
    %723 = arith.mulf %718, %722 : vector<8x63xf32>
    %724 = tpu.iota {dimensions = array<i32: 0>} : vector<63x126xi32>
    %725 = tpu.iota {dimensions = array<i32: 1>} : vector<63x126xi32>
    %c2_i32_301 = arith.constant 2 : i32
    %726 = vector.broadcast %c2_i32_301 : i32 to vector<63x126xi32>
    %727 = arith.muli %726, %724 : vector<63x126xi32>
    %728 = arith.cmpi eq, %725, %727 : vector<63x126xi32>
    %729 = arith.extui %728 : vector<63x126xi1> to vector<63x126xi32>
    %730 = arith.sitofp %729 : vector<63x126xi32> to vector<63x126xf32>
    %731 = tpu.iota {dimensions = array<i32: 0>} : vector<63x126xi32>
    %732 = tpu.iota {dimensions = array<i32: 1>} : vector<63x126xi32>
    %c2_i32_302 = arith.constant 2 : i32
    %733 = vector.broadcast %c2_i32_302 : i32 to vector<63x126xi32>
    %734 = arith.muli %733, %731 : vector<63x126xi32>
    %c1_i32_303 = arith.constant 1 : i32
    %735 = vector.broadcast %c1_i32_303 : i32 to vector<63x126xi32>
    %736 = arith.addi %734, %735 : vector<63x126xi32>
    %737 = arith.cmpi eq, %732, %736 : vector<63x126xi32>
    %738 = arith.extui %737 : vector<63x126xi1> to vector<63x126xi32>
    %739 = arith.sitofp %738 : vector<63x126xi32> to vector<63x126xf32>
    %cst_304 = arith.constant dense<0.000000e+00> : vector<8x63xf32>
    %740 = tpu.matmul %695, %723, %cst_304 {dimension_numbers = #tpu.dot_dimension_numbers<[1], [0], [0], [1], [0, 0, 1, 1], [], []>} : vector<8x8xf32>, vector<8x63xf32>, vector<8x63xf32> -> vector<8x63xf32>
    %cst_305 = arith.constant dense<0.000000e+00> : vector<8x126xf32>
    %741 = tpu.matmul %740, %730, %cst_305 {dimension_numbers = #tpu.dot_dimension_numbers<[1], [0], [0], [1], [0, 0, 1, 1], [], []>} : vector<8x63xf32>, vector<63x126xf32>, vector<8x126xf32> -> vector<8x126xf32>
    %cst_306 = arith.constant dense<0.000000e+00> : vector<8x63xf32>
    %742 = tpu.matmul %696, %723, %cst_306 {dimension_numbers = #tpu.dot_dimension_numbers<[1], [0], [0], [1], [0, 0, 1, 1], [], []>} : vector<8x8xf32>, vector<8x63xf32>, vector<8x63xf32> -> vector<8x63xf32>
    %cst_307 = arith.constant dense<0.000000e+00> : vector<8x126xf32>
    %743 = tpu.matmul %742, %739, %cst_307 {dimension_numbers = #tpu.dot_dimension_numbers<[1], [0], [0], [1], [0, 0, 1, 1], [], []>} : vector<8x63xf32>, vector<63x126xf32>, vector<8x126xf32> -> vector<8x126xf32>
    %744 = arith.addf %741, %743 : vector<8x126xf32>
    %745 = vector.broadcast %697 : vector<8x1xf32> to vector<8x126xf32>
    %746 = arith.addf %744, %745 : vector<8x126xf32>
    %cst_308 = arith.constant 0.000000e+00 : f32
    %747 = vector.broadcast %cst_308 : f32 to vector<8x126xf32>
    %748 = arith.cmpf oge, %746, %747 : vector<8x126xf32>
    %cst_309 = arith.constant 0.00999999977 : f32
    %749 = vector.broadcast %cst_309 : f32 to vector<8x126xf32>
    %750 = arith.mulf %749, %746 : vector<8x126xf32>
    %751 = arith.select %748, %746, %750 : vector<8x126xi1>, vector<8x126xf32>
    %cst_310 = arith.constant dense<0.000000e+00> : vector<8xf32>
    %752 = vector.multi_reduction <add>, %751, %cst_310 [1] : vector<8x126xf32> to vector<8xf32>
    %753 = vector.shape_cast %752 : vector<8xf32> to vector<8x1xf32>
    %cst_311 = arith.constant 1.260000e+02 : f32
    %754 = vector.broadcast %cst_311 : f32 to vector<8x1xf32>
    %755 = arith.divf %753, %754 : vector<8x1xf32>
    %756 = vector.broadcast %755 : vector<8x1xf32> to vector<8x126xf32>
    %757 = arith.subf %751, %756 : vector<8x126xf32>
    %758 = arith.mulf %757, %757 : vector<8x126xf32>
    %cst_312 = arith.constant dense<0.000000e+00> : vector<8xf32>
    %759 = vector.multi_reduction <add>, %758, %cst_312 [1] : vector<8x126xf32> to vector<8xf32>
    %760 = vector.shape_cast %759 : vector<8xf32> to vector<8x1xf32>
    %cst_313 = arith.constant 1.260000e+02 : f32
    %761 = vector.broadcast %cst_313 : f32 to vector<8x1xf32>
    %762 = arith.divf %760, %761 : vector<8x1xf32>
    %763 = vector.broadcast %755 : vector<8x1xf32> to vector<8x126xf32>
    %764 = arith.subf %751, %763 : vector<8x126xf32>
    %cst_314 = arith.constant 9.99999974E-6 : f32
    %765 = vector.broadcast %cst_314 : f32 to vector<8x1xf32>
    %766 = arith.addf %762, %765 : vector<8x1xf32>
    %767 = math.rsqrt %766 : vector<8x1xf32>
    %768 = vector.broadcast %767 : vector<8x1xf32> to vector<8x126xf32>
    %769 = arith.mulf %764, %768 : vector<8x126xf32>
    %770 = tpu.iota {dimensions = array<i32: 0>} : vector<126x129xi32>
    %771 = tpu.iota {dimensions = array<i32: 1>} : vector<126x129xi32>
    %c2_i32_315 = arith.constant 2 : i32
    %772 = vector.broadcast %c2_i32_315 : i32 to vector<126x129xi32>
    %773 = arith.subi %771, %772 : vector<126x129xi32>
    %774 = arith.cmpi eq, %770, %773 : vector<126x129xi32>
    %775 = arith.extui %774 : vector<126x129xi1> to vector<126x129xi32>
    %776 = arith.sitofp %775 : vector<126x129xi32> to vector<126x129xf32>
    %777 = tpu.iota {dimensions = array<i32: 0>} : vector<126x129xi32>
    %778 = tpu.iota {dimensions = array<i32: 1>} : vector<126x129xi32>
    %c1_i32_316 = arith.constant 1 : i32
    %779 = vector.broadcast %c1_i32_316 : i32 to vector<126x129xi32>
    %780 = arith.addi %778, %779 : vector<126x129xi32>
    %c2_i32_317 = arith.constant 2 : i32
    %781 = vector.broadcast %c2_i32_317 : i32 to vector<126x129xi32>
    %782 = arith.subi %780, %781 : vector<126x129xi32>
    %783 = arith.cmpi eq, %777, %782 : vector<126x129xi32>
    %784 = arith.extui %783 : vector<126x129xi1> to vector<126x129xi32>
    %785 = arith.sitofp %784 : vector<126x129xi32> to vector<126x129xf32>
    %cst_318 = arith.constant dense<0.000000e+00> : vector<8x129xf32>
    %786 = tpu.matmul %769, %776, %cst_318 {dimension_numbers = #tpu.dot_dimension_numbers<[1], [0], [0], [1], [0, 0, 1, 1], [], []>} : vector<8x126xf32>, vector<126x129xf32>, vector<8x129xf32> -> vector<8x129xf32>
    %cst_319 = arith.constant dense<0.000000e+00> : vector<1x129xf32>
    %787 = tpu.matmul %698, %786, %cst_319 {dimension_numbers = #tpu.dot_dimension_numbers<[1], [0], [0], [1], [0, 0, 1, 1], [], []>} : vector<1x8xf32>, vector<8x129xf32>, vector<1x129xf32> -> vector<1x129xf32>
    %cst_320 = arith.constant dense<0.000000e+00> : vector<8x129xf32>
    %788 = tpu.matmul %769, %785, %cst_320 {dimension_numbers = #tpu.dot_dimension_numbers<[1], [0], [0], [1], [0, 0, 1, 1], [], []>} : vector<8x126xf32>, vector<126x129xf32>, vector<8x129xf32> -> vector<8x129xf32>
    %cst_321 = arith.constant dense<0.000000e+00> : vector<1x129xf32>
    %789 = tpu.matmul %699, %788, %cst_321 {dimension_numbers = #tpu.dot_dimension_numbers<[1], [0], [0], [1], [0, 0, 1, 1], [], []>} : vector<1x8xf32>, vector<8x129xf32>, vector<1x129xf32> -> vector<1x129xf32>
    %790 = arith.addf %787, %789 : vector<1x129xf32>
    %791 = vector.broadcast %700 : vector<1x1xf32> to vector<1x129xf32>
    %792 = arith.addf %790, %791 : vector<1x129xf32>
    %793 = vector.extract_strided_slice %792 {offsets = [0, 0], sizes = [1, 100], strides = [1, 1]} : vector<1x129xf32> to vector<1x100xf32>
    %c0_322 = arith.constant 0 : index
    %c0_323 = arith.constant 0 : index
    %c0_324 = arith.constant 0 : index
    %794 = vector.load %arg51[%c0_322, %c0_323, %c0_324] : memref<1x1x100xf32, #tpu.memory_space<vmem>>, vector<1x1x100xf32>
    %795 = vector.shape_cast %794 : vector<1x1x100xf32> to vector<1x100xf32>
    %796 = vector.shape_cast %793 : vector<1x100xf32> to vector<1x1x100xf32>
    tpu.vector_store %arg51[%c0_322, %c0_323, %c0_324], %796 {strides = array<i32>} : memref<1x1x100xf32, #tpu.memory_space<vmem>>, vector<1x1x100xf32>,
    return
  }
  func.func @transform_0(%arg0: i32) -> (i32, i32, i32) {
    %c0_i32 = arith.constant 0 : i32
    %c0_i32_0 = arith.constant 0 : i32
    %c0_i32_1 = arith.constant 0 : i32
    return %arg0, %c0_i32, %c0_i32_0 : i32, i32, i32
  }
  func.func @transform_1(%arg0: i32) -> (i32, i32, i32) {
    %c0_i32 = arith.constant 0 : i32
    %c0_i32_0 = arith.constant 0 : i32
    %c0_i32_1 = arith.constant 0 : i32
    return %arg0, %c0_i32, %c0_i32_0 : i32, i32, i32
  }
  func.func @transform_2(%arg0: i32) -> (i32, i32) {
    %c0_i32 = arith.constant 0 : i32
    %c0_i32_0 = arith.constant 0 : i32
    %c0_i32_1 = arith.constant 0 : i32
    return %c0_i32, %c0_i32_0 : i32, i32
  }
  func.func @transform_3(%arg0: i32) -> (i32, i32) {
    %c0_i32 = arith.constant 0 : i32
    %c0_i32_0 = arith.constant 0 : i32
    %c0_i32_1 = arith.constant 0 : i32
    return %c0_i32, %c0_i32_0 : i32, i32
  }
  func.func @transform_4(%arg0: i32) -> (i32, i32) {
    %c0_i32 = arith.constant 0 : i32
    %c0_i32_0 = arith.constant 0 : i32
    %c0_i32_1 = arith.constant 0 : i32
    return %c0_i32, %c0_i32_0 : i32, i32
  }
  func.func @transform_5(%arg0: i32) -> (i32, i32) {
    %c0_i32 = arith.constant 0 : i32
    %c0_i32_0 = arith.constant 0 : i32
    %c0_i32_1 = arith.constant 0 : i32
    return %c0_i32, %c0_i32_0 : i32, i32
  }
  func.func @transform_6(%arg0: i32) -> (i32, i32) {
    %c0_i32 = arith.constant 0 : i32
    %c0_i32_0 = arith.constant 0 : i32
    %c0_i32_1 = arith.constant 0 : i32
    return %c0_i32, %c0_i32_0 : i32, i32
  }
  func.func @transform_7(%arg0: i32) -> (i32, i32) {
    %c0_i32 = arith.constant 0 : i32
    %c0_i32_0 = arith.constant 0 : i32
    %c0_i32_1 = arith.constant 0 : i32
    return %c0_i32, %c0_i32_0 : i32, i32
  }
  func.func @transform_8(%arg0: i32) -> (i32, i32) {
    %c0_i32 = arith.constant 0 : i32
    %c0_i32_0 = arith.constant 0 : i32
    %c0_i32_1 = arith.constant 0 : i32
    return %c0_i32, %c0_i32_0 : i32, i32
  }
  func.func @transform_9(%arg0: i32) -> (i32, i32) {
    %c0_i32 = arith.constant 0 : i32
    %c0_i32_0 = arith.constant 0 : i32
    %c0_i32_1 = arith.constant 0 : i32
    return %c0_i32, %c0_i32_0 : i32, i32
  }
  func.func @transform_10(%arg0: i32) -> (i32, i32) {
    %c0_i32 = arith.constant 0 : i32
    %c0_i32_0 = arith.constant 0 : i32
    %c0_i32_1 = arith.constant 0 : i32
    return %c0_i32, %c0_i32_0 : i32, i32
  }
  func.func @transform_11(%arg0: i32) -> (i32, i32) {
    %c0_i32 = arith.constant 0 : i32
    %c0_i32_0 = arith.constant 0 : i32
    %c0_i32_1 = arith.constant 0 : i32
    return %c0_i32, %c0_i32_0 : i32, i32
  }
  func.func @transform_12(%arg0: i32) -> (i32, i32) {
    %c0_i32 = arith.constant 0 : i32
    %c0_i32_0 = arith.constant 0 : i32
    %c0_i32_1 = arith.constant 0 : i32
    return %c0_i32, %c0_i32_0 : i32, i32
  }
  func.func @transform_13(%arg0: i32) -> (i32, i32) {
    %c0_i32 = arith.constant 0 : i32
    %c0_i32_0 = arith.constant 0 : i32
    %c0_i32_1 = arith.constant 0 : i32
    return %c0_i32, %c0_i32_0 : i32, i32
  }
  func.func @transform_14(%arg0: i32) -> (i32, i32) {
    %c0_i32 = arith.constant 0 : i32
    %c0_i32_0 = arith.constant 0 : i32
    %c0_i32_1 = arith.constant 0 : i32
    return %c0_i32, %c0_i32_0 : i32, i32
  }
  func.func @transform_15(%arg0: i32) -> (i32, i32) {
    %c0_i32 = arith.constant 0 : i32
    %c0_i32_0 = arith.constant 0 : i32
    %c0_i32_1 = arith.constant 0 : i32
    return %c0_i32, %c0_i32_0 : i32, i32
  }
  func.func @transform_16(%arg0: i32) -> (i32, i32) {
    %c0_i32 = arith.constant 0 : i32
    %c0_i32_0 = arith.constant 0 : i32
    %c0_i32_1 = arith.constant 0 : i32
    return %c0_i32, %c0_i32_0 : i32, i32
  }
  func.func @transform_17(%arg0: i32) -> (i32, i32) {
    %c0_i32 = arith.constant 0 : i32
    %c0_i32_0 = arith.constant 0 : i32
    %c0_i32_1 = arith.constant 0 : i32
    return %c0_i32, %c0_i32_0 : i32, i32
  }
  func.func @transform_18(%arg0: i32) -> (i32, i32) {
    %c0_i32 = arith.constant 0 : i32
    %c0_i32_0 = arith.constant 0 : i32
    %c0_i32_1 = arith.constant 0 : i32
    return %c0_i32, %c0_i32_0 : i32, i32
  }
  func.func @transform_19(%arg0: i32) -> (i32, i32) {
    %c0_i32 = arith.constant 0 : i32
    %c0_i32_0 = arith.constant 0 : i32
    %c0_i32_1 = arith.constant 0 : i32
    return %c0_i32, %c0_i32_0 : i32, i32
  }
  func.func @transform_20(%arg0: i32) -> (i32, i32) {
    %c0_i32 = arith.constant 0 : i32
    %c0_i32_0 = arith.constant 0 : i32
    %c0_i32_1 = arith.constant 0 : i32
    return %c0_i32, %c0_i32_0 : i32, i32
  }
  func.func @transform_21(%arg0: i32) -> (i32, i32) {
    %c0_i32 = arith.constant 0 : i32
    %c0_i32_0 = arith.constant 0 : i32
    %c0_i32_1 = arith.constant 0 : i32
    return %c0_i32, %c0_i32_0 : i32, i32
  }
  func.func @transform_22(%arg0: i32) -> (i32, i32) {
    %c0_i32 = arith.constant 0 : i32
    %c0_i32_0 = arith.constant 0 : i32
    %c0_i32_1 = arith.constant 0 : i32
    return %c0_i32, %c0_i32_0 : i32, i32
  }
  func.func @transform_23(%arg0: i32) -> (i32, i32) {
    %c0_i32 = arith.constant 0 : i32
    %c0_i32_0 = arith.constant 0 : i32
    %c0_i32_1 = arith.constant 0 : i32
    return %c0_i32, %c0_i32_0 : i32, i32
  }
  func.func @transform_24(%arg0: i32) -> (i32, i32) {
    %c0_i32 = arith.constant 0 : i32
    %c0_i32_0 = arith.constant 0 : i32
    %c0_i32_1 = arith.constant 0 : i32
    return %c0_i32, %c0_i32_0 : i32, i32
  }
  func.func @transform_25(%arg0: i32) -> (i32, i32) {
    %c0_i32 = arith.constant 0 : i32
    %c0_i32_0 = arith.constant 0 : i32
    %c0_i32_1 = arith.constant 0 : i32
    return %c0_i32, %c0_i32_0 : i32, i32
  }
  func.func @transform_26(%arg0: i32) -> (i32, i32) {
    %c0_i32 = arith.constant 0 : i32
    %c0_i32_0 = arith.constant 0 : i32
    %c0_i32_1 = arith.constant 0 : i32
    return %c0_i32, %c0_i32_0 : i32, i32
  }
  func.func @transform_27(%arg0: i32) -> (i32, i32) {
    %c0_i32 = arith.constant 0 : i32
    %c0_i32_0 = arith.constant 0 : i32
    %c0_i32_1 = arith.constant 0 : i32
    return %c0_i32, %c0_i32_0 : i32, i32
  }
  func.func @transform_28(%arg0: i32) -> (i32, i32) {
    %c0_i32 = arith.constant 0 : i32
    %c0_i32_0 = arith.constant 0 : i32
    %c0_i32_1 = arith.constant 0 : i32
    return %c0_i32, %c0_i32_0 : i32, i32
  }
  func.func @transform_29(%arg0: i32) -> (i32, i32) {
    %c0_i32 = arith.constant 0 : i32
    %c0_i32_0 = arith.constant 0 : i32
    %c0_i32_1 = arith.constant 0 : i32
    return %c0_i32, %c0_i32_0 : i32, i32
  }
  func.func @transform_30(%arg0: i32) -> (i32, i32) {
    %c0_i32 = arith.constant 0 : i32
    %c0_i32_0 = arith.constant 0 : i32
    %c0_i32_1 = arith.constant 0 : i32
    return %c0_i32, %c0_i32_0 : i32, i32
  }
  func.func @transform_31(%arg0: i32) -> (i32, i32) {
    %c0_i32 = arith.constant 0 : i32
    %c0_i32_0 = arith.constant 0 : i32
    %c0_i32_1 = arith.constant 0 : i32
    return %c0_i32, %c0_i32_0 : i32, i32
  }
  func.func @transform_32(%arg0: i32) -> (i32, i32) {
    %c0_i32 = arith.constant 0 : i32
    %c0_i32_0 = arith.constant 0 : i32
    %c0_i32_1 = arith.constant 0 : i32
    return %c0_i32, %c0_i32_0 : i32, i32
  }
  func.func @transform_33(%arg0: i32) -> (i32, i32) {
    %c0_i32 = arith.constant 0 : i32
    %c0_i32_0 = arith.constant 0 : i32
    %c0_i32_1 = arith.constant 0 : i32
    return %c0_i32, %c0_i32_0 : i32, i32
  }
  func.func @transform_34(%arg0: i32) -> (i32, i32) {
    %c0_i32 = arith.constant 0 : i32
    %c0_i32_0 = arith.constant 0 : i32
    %c0_i32_1 = arith.constant 0 : i32
    return %c0_i32, %c0_i32_0 : i32, i32
  }
  func.func @transform_35(%arg0: i32) -> (i32, i32) {
    %c0_i32 = arith.constant 0 : i32
    %c0_i32_0 = arith.constant 0 : i32
    %c0_i32_1 = arith.constant 0 : i32
    return %c0_i32, %c0_i32_0 : i32, i32
  }
  func.func @transform_36(%arg0: i32) -> (i32, i32) {
    %c0_i32 = arith.constant 0 : i32
    %c0_i32_0 = arith.constant 0 : i32
    %c0_i32_1 = arith.constant 0 : i32
    return %c0_i32, %c0_i32_0 : i32, i32
  }
  func.func @transform_37(%arg0: i32) -> (i32, i32) {
    %c0_i32 = arith.constant 0 : i32
    %c0_i32_0 = arith.constant 0 : i32
    %c0_i32_1 = arith.constant 0 : i32
    return %c0_i32, %c0_i32_0 : i32, i32
  }
  func.func @transform_38(%arg0: i32) -> (i32, i32) {
    %c0_i32 = arith.constant 0 : i32
    %c0_i32_0 = arith.constant 0 : i32
    %c0_i32_1 = arith.constant 0 : i32
    return %c0_i32, %c0_i32_0 : i32, i32
  }
  func.func @transform_39(%arg0: i32) -> (i32, i32) {
    %c0_i32 = arith.constant 0 : i32
    %c0_i32_0 = arith.constant 0 : i32
    %c0_i32_1 = arith.constant 0 : i32
    return %c0_i32, %c0_i32_0 : i32, i32
  }
  func.func @transform_40(%arg0: i32) -> (i32, i32) {
    %c0_i32 = arith.constant 0 : i32
    %c0_i32_0 = arith.constant 0 : i32
    %c0_i32_1 = arith.constant 0 : i32
    return %c0_i32, %c0_i32_0 : i32, i32
  }
  func.func @transform_41(%arg0: i32) -> (i32, i32) {
    %c0_i32 = arith.constant 0 : i32
    %c0_i32_0 = arith.constant 0 : i32
    %c0_i32_1 = arith.constant 0 : i32
    return %c0_i32, %c0_i32_0 : i32, i32
  }
  func.func @transform_42(%arg0: i32) -> (i32, i32) {
    %c0_i32 = arith.constant 0 : i32
    %c0_i32_0 = arith.constant 0 : i32
    %c0_i32_1 = arith.constant 0 : i32
    return %c0_i32, %c0_i32_0 : i32, i32
  }
  func.func @transform_43(%arg0: i32) -> (i32, i32) {
    %c0_i32 = arith.constant 0 : i32
    %c0_i32_0 = arith.constant 0 : i32
    %c0_i32_1 = arith.constant 0 : i32
    return %c0_i32, %c0_i32_0 : i32, i32
  }
  func.func @transform_44(%arg0: i32) -> (i32, i32) {
    %c0_i32 = arith.constant 0 : i32
    %c0_i32_0 = arith.constant 0 : i32
    %c0_i32_1 = arith.constant 0 : i32
    return %c0_i32, %c0_i32_0 : i32, i32
  }
  func.func @transform_45(%arg0: i32) -> (i32, i32) {
    %c0_i32 = arith.constant 0 : i32
    %c0_i32_0 = arith.constant 0 : i32
    %c0_i32_1 = arith.constant 0 : i32
    return %c0_i32, %c0_i32_0 : i32, i32
  }
  func.func @transform_46(%arg0: i32) -> (i32, i32) {
    %c0_i32 = arith.constant 0 : i32
    %c0_i32_0 = arith.constant 0 : i32
    %c0_i32_1 = arith.constant 0 : i32
    return %c0_i32, %c0_i32_0 : i32, i32
  }
  func.func @transform_47(%arg0: i32) -> (i32, i32) {
    %c0_i32 = arith.constant 0 : i32
    %c0_i32_0 = arith.constant 0 : i32
    %c0_i32_1 = arith.constant 0 : i32
    return %c0_i32, %c0_i32_0 : i32, i32
  }
  func.func @transform_48(%arg0: i32) -> (i32, i32) {
    %c0_i32 = arith.constant 0 : i32
    %c0_i32_0 = arith.constant 0 : i32
    %c0_i32_1 = arith.constant 0 : i32
    return %c0_i32, %c0_i32_0 : i32, i32
  }
  func.func @transform_49(%arg0: i32) -> (i32, i32) {
    %c0_i32 = arith.constant 0 : i32
    %c0_i32_0 = arith.constant 0 : i32
    %c0_i32_1 = arith.constant 0 : i32
    return %c0_i32, %c0_i32_0 : i32, i32
  }
  func.func @transform_50(%arg0: i32) -> (i32, i32, i32) {
    %c0_i32 = arith.constant 0 : i32
    %c0_i32_0 = arith.constant 0 : i32
    %c0_i32_1 = arith.constant 0 : i32
    return %arg0, %c0_i32, %c0_i32_0 : i32, i32, i32
  }
}

</mosaic_0001>

<llo_original>
// kernel: forward.1
$region0: #{forward.1}
  #allocation0 [shape = 'u32[]', space=smem, size = 0x4, offset = 0x4, fixed_abs, tag = 'smem constant byte address 0x4 - core index']
  #allocation1 [shape = 'u32[144,128]{1,0:T(1,128)}', space=vmem, size = 0x12000, scoped, tag = 'internal scratch']
  #allocation2 [shape = 'f32[1,1]{1,0:T(1,128)S(1)}', space=vmem, size = 0x200, scoped, tag = 'scoped memory for forward.1']
  %s0 = inlined_call_operand.smem [shape: u32[51], index: -1, kind: input, shape index: {}]
  %s1 = sld [smem:[%s0]]
  %s2 = scalar_lea.smem %s0, 1
  %s3 = sld [smem:[%s2]]
  %s4 = scalar_lea.smem %s0, 2
  %s5 = sld [smem:[%s4]]
  %s6 = scalar_lea.smem %s0, 3
  %s7 = sld [smem:[%s6]]
  %s8 = scalar_lea.smem %s0, 4
  %s9 = sld [smem:[%s8]]
  %s10 = scalar_lea.smem %s0, 5
  %s11 = sld [smem:[%s10]]
  %s12 = scalar_lea.smem %s0, 6
  %s13 = sld [smem:[%s12]]
  %s14 = scalar_lea.smem %s0, 7
  %s15 = sld [smem:[%s14]]
  %s16 = scalar_lea.smem %s0, 8
  %s17 = sld [smem:[%s16]]
  %s18 = scalar_lea.smem %s0, 9
  %s19 = sld [smem:[%s18]]
  %s20 = scalar_lea.smem %s0, 10
  %s21 = sld [smem:[%s20]]
  %s22 = scalar_lea.smem %s0, 11
  %s23 = sld [smem:[%s22]]
  %s24 = scalar_lea.smem %s0, 12
  %s25 = sld [smem:[%s24]]
  %s26 = scalar_lea.smem %s0, 13
  %s27 = sld [smem:[%s26]]
  %s28 = scalar_lea.smem %s0, 14
  %s29 = sld [smem:[%s28]]
  %s30 = scalar_lea.smem %s0, 15
  %s31 = sld [smem:[%s30]]
  %s32 = scalar_lea.smem %s0, 16
  %s33 = sld [smem:[%s32]]
  %s34 = scalar_lea.smem %s0, 17
  %s35 = sld [smem:[%s34]]
  %s36 = scalar_lea.smem %s0, 18
  %s37 = sld [smem:[%s36]]
  %s38 = scalar_lea.smem %s0, 19
  %s39 = sld [smem:[%s38]]
  %s40 = scalar_lea.smem %s0, 20
  %s41 = sld [smem:[%s40]]
  %s42 = scalar_lea.smem %s0, 21
  %s43 = sld [smem:[%s42]]
  %s44 = scalar_lea.smem %s0, 22
  %s45 = sld [smem:[%s44]]
  %s46 = scalar_lea.smem %s0, 23
  %s47 = sld [smem:[%s46]]
  %s48 = scalar_lea.smem %s0, 24
  %s49 = sld [smem:[%s48]]
  %s50 = scalar_lea.smem %s0, 25
  %s51 = sld [smem:[%s50]]
  %s52 = scalar_lea.smem %s0, 26
  %s53 = sld [smem:[%s52]]
  %s54 = scalar_lea.smem %s0, 27
  %s55 = sld [smem:[%s54]]
  %s56 = scalar_lea.smem %s0, 28
  %s57 = sld [smem:[%s56]]
  %s58 = scalar_lea.smem %s0, 29
  %s59 = sld [smem:[%s58]]
  %s60 = scalar_lea.smem %s0, 30
  %s61 = sld [smem:[%s60]]
  %s62 = scalar_lea.smem %s0, 31
  %s63 = sld [smem:[%s62]]
  %s64 = scalar_lea.smem %s0, 32
  %s65 = sld [smem:[%s64]]
  %s66 = scalar_lea.smem %s0, 33
  %s67 = sld [smem:[%s66]]
  %s68 = scalar_lea.smem %s0, 34
  %s69 = sld [smem:[%s68]]
  %s70 = scalar_lea.smem %s0, 35
  %s71 = sld [smem:[%s70]]
  %s72 = scalar_lea.smem %s0, 36
  %s73 = sld [smem:[%s72]]
  %s74 = scalar_lea.smem %s0, 37
  %s75 = sld [smem:[%s74]]
  %s76 = scalar_lea.smem %s0, 38
  %s77 = sld [smem:[%s76]]
  %s78 = scalar_lea.smem %s0, 39
  %s79 = sld [smem:[%s78]]
  %s80 = scalar_lea.smem %s0, 40
  %s81 = sld [smem:[%s80]]
  %s82 = scalar_lea.smem %s0, 41
  %s83 = sld [smem:[%s82]]
  %s84 = scalar_lea.smem %s0, 42
  %s85 = sld [smem:[%s84]]
  %s86 = scalar_lea.smem %s0, 43
  %s87 = sld [smem:[%s86]]
  %s88 = scalar_lea.smem %s0, 44
  %s89 = sld [smem:[%s88]]
  %s90 = scalar_lea.smem %s0, 45
  %s91 = sld [smem:[%s90]]
  %s92 = scalar_lea.smem %s0, 46
  %s93 = sld [smem:[%s92]]
  %s94 = scalar_lea.smem %s0, 47
  %s95 = sld [smem:[%s94]]
  %s96 = scalar_lea.smem %s0, 48
  %s97 = sld [smem:[%s96]]
  %s98 = scalar_lea.smem %s0, 49
  %s99 = sld [smem:[%s98]]
  %s100 = scalar_lea.smem %s0, 50
  %s101 = sld [smem:[%s100]]
  %s102 = sld [smem:[#allocation0]]
  $region237: #{forward.1} parent=0
    _
  %s104 = ssub.s32 1, %s102
  %s105 = scalar_select 0, %s104, %s102
  %v106 = vstv %s99
  %107 = vst [vmem:[#allocation2] sm:$0x1] %v106
  $region1: #{forward.1} parent=0
    #allocation3 [shape = 'u8[1024]{0}', space=vmem, size = 0x400, scoped, tag = 'input window, operand 0']
    #allocation4 [shape = 's32[2]{0}', space=sflag, size = 0x8, scoped, tag = 'scoped memory for forward.1']
    #allocation5 [shape = 's32[2]{0}', space=sflag, size = 0x8, scoped, tag = 'scoped memory for forward.1']
    #allocation6 [shape = 'u8[1024]{0}', space=vmem, size = 0x400, scoped, tag = 'output window, operand 0']
    %108 = vsyncpa [#allocation4], 0
    %s109 = scalar_lea.sflag [#allocation4], 1
    %110 = vsyncpa %s109, 0
    %111 = vsyncpa [#allocation5], 0
    %s112 = scalar_lea.sflag [#allocation5], 1
    %113 = vsyncpa %s112, 0
    loop: start=0, step=1, limit=4
    $region2: #{forward.1} parent=1 // loop_pre_header
      _
    $region3: #{forward.1} parent=1 // loop_header
      %s115 = sphi 0, %s119
      %p116 = scmp.ge.s32.totalorder %s115, 4
      %s125 = sphi 0, %s127
      %s128 = sphi 0, %s125
      %s129 = sphi 0, %s128
      %s145 = sphi 0, %s129
      %s151 = sphi 0, %s153
      %s154 = sphi 0, %s151
      %s155 = sphi 0, %s154
      %s171 = sphi 0, %s155
      %s175 = sphi 0, %s175
      %s177 = sphi 0, %s175
      %s178 = sphi 0, %s177
      %s192 = sphi 0, %s178
      %s196 = sphi 0, %s196
      %s198 = sphi 0, %s196
      %s199 = sphi 0, %s198
      %s213 = sphi 0, %s199
      %s217 = sphi 0, %s217
      %s219 = sphi 0, %s217
      %s220 = sphi 0, %s219
      %s234 = sphi 0, %s220
      %s238 = sphi 0, %s238
      %s240 = sphi 0, %s238
      %s241 = sphi 0, %s240
      %s255 = sphi 0, %s241
      %s259 = sphi 0, %s259
      %s261 = sphi 0, %s259
      %s262 = sphi 0, %s261
      %s276 = sphi 0, %s262
      %s280 = sphi 0, %s280
      %s282 = sphi 0, %s280
      %s283 = sphi 0, %s282
      %s297 = sphi 0, %s283
      %s301 = sphi 0, %s301
      %s303 = sphi 0, %s301
      %s304 = sphi 0, %s303
      %s318 = sphi 0, %s304
      %s322 = sphi 0, %s322
      %s324 = sphi 0, %s322
      %s325 = sphi 0, %s324
      %s339 = sphi 0, %s325
      %s343 = sphi 0, %s343
      %s345 = sphi 0, %s343
      %s346 = sphi 0, %s345
      %s360 = sphi 0, %s346
      %s364 = sphi 0, %s364
      %s366 = sphi 0, %s364
      %s367 = sphi 0, %s366
      %s381 = sphi 0, %s367
      %s385 = sphi 0, %s385
      %s387 = sphi 0, %s385
      %s388 = sphi 0, %s387
      %s402 = sphi 0, %s388
      %s406 = sphi 0, %s406
      %s408 = sphi 0, %s406
      %s409 = sphi 0, %s408
      %s423 = sphi 0, %s409
      %s427 = sphi 0, %s427
      %s429 = sphi 0, %s427
      %s430 = sphi 0, %s429
      %s444 = sphi 0, %s430
      %s448 = sphi 0, %s448
      %s450 = sphi 0, %s448
      %s451 = sphi 0, %s450
      %s465 = sphi 0, %s451
      %s469 = sphi 0, %s469
      %s471 = sphi 0, %s469
      %s472 = sphi 0, %s471
      %s486 = sphi 0, %s472
      %s490 = sphi 0, %s490
      %s492 = sphi 0, %s490
      %s493 = sphi 0, %s492
      %s507 = sphi 0, %s493
      %s511 = sphi 0, %s511
      %s513 = sphi 0, %s511
      %s514 = sphi 0, %s513
      %s528 = sphi 0, %s514
      %s532 = sphi 0, %s532
      %s534 = sphi 0, %s532
      %s535 = sphi 0, %s534
      %s549 = sphi 0, %s535
      %s553 = sphi 0, %s553
      %s555 = sphi 0, %s553
      %s556 = sphi 0, %s555
      %s570 = sphi 0, %s556
      %s574 = sphi 0, %s574
      %s576 = sphi 0, %s574
      %s577 = sphi 0, %s576
      %s591 = sphi 0, %s577
      %s595 = sphi 0, %s595
      %s597 = sphi 0, %s595
      %s598 = sphi 0, %s597
      %s612 = sphi 0, %s598
      %s616 = sphi 0, %s616
      %s618 = sphi 0, %s616
      %s619 = sphi 0, %s618
      %s633 = sphi 0, %s619
      %s637 = sphi 0, %s637
      %s639 = sphi 0, %s637
      %s640 = sphi 0, %s639
      %s654 = sphi 0, %s640
      %s658 = sphi 0, %s658
      %s660 = sphi 0, %s658
      %s661 = sphi 0, %s660
      %s675 = sphi 0, %s661
      %s679 = sphi 0, %s679
      %s681 = sphi 0, %s679
      %s682 = sphi 0, %s681
      %s696 = sphi 0, %s682
      %s700 = sphi 0, %s700
      %s702 = sphi 0, %s700
      %s703 = sphi 0, %s702
      %s717 = sphi 0, %s703
      %s721 = sphi 0, %s721
      %s723 = sphi 0, %s721
      %s724 = sphi 0, %s723
      %s738 = sphi 0, %s724
      %s742 = sphi 0, %s742
      %s744 = sphi 0, %s742
      %s745 = sphi 0, %s744
      %s759 = sphi 0, %s745
      %s763 = sphi 0, %s763
      %s765 = sphi 0, %s763
      %s766 = sphi 0, %s765
      %s780 = sphi 0, %s766
      %s784 = sphi 0, %s784
      %s786 = sphi 0, %s784
      %s787 = sphi 0, %s786
      %s801 = sphi 0, %s787
      %s805 = sphi 0, %s805
      %s807 = sphi 0, %s805
      %s808 = sphi 0, %s807
      %s822 = sphi 0, %s808
      %s826 = sphi 0, %s826
      %s828 = sphi 0, %s826
      %s829 = sphi 0, %s828
      %s843 = sphi 0, %s829
      %s847 = sphi 0, %s847
      %s849 = sphi 0, %s847
      %s850 = sphi 0, %s849
      %s864 = sphi 0, %s850
      %s868 = sphi 0, %s868
      %s870 = sphi 0, %s868
      %s871 = sphi 0, %s870
      %s885 = sphi 0, %s871
      %s889 = sphi 0, %s889
      %s891 = sphi 0, %s889
      %s892 = sphi 0, %s891
      %s906 = sphi 0, %s892
      %s910 = sphi 0, %s910
      %s912 = sphi 0, %s910
      %s913 = sphi 0, %s912
      %s927 = sphi 0, %s913
      %s931 = sphi 0, %s931
      %s933 = sphi 0, %s931
      %s934 = sphi 0, %s933
      %s948 = sphi 0, %s934
      %s952 = sphi 0, %s952
      %s954 = sphi 0, %s952
      %s955 = sphi 0, %s954
      %s969 = sphi 0, %s955
      %s973 = sphi 0, %s973
      %s975 = sphi 0, %s973
      %s976 = sphi 0, %s975
      %s990 = sphi 0, %s976
      %s994 = sphi 0, %s994
      %s996 = sphi 0, %s994
      %s997 = sphi 0, %s996
      %s1011 = sphi 0, %s997
      %s1015 = sphi 0, %s1015
      %s1017 = sphi 0, %s1015
      %s1018 = sphi 0, %s1017
      %s1032 = sphi 0, %s1018
      %s1036 = sphi 0, %s1036
      %s1038 = sphi 0, %s1036
      %s1039 = sphi 0, %s1038
      %s1053 = sphi 0, %s1039
      %s1057 = sphi 0, %s1057
      %s1059 = sphi 0, %s1057
      %s1060 = sphi 0, %s1059
      %s1074 = sphi 0, %s1060
      %s1078 = sphi 0, %s1078
      %s1080 = sphi 0, %s1078
      %s1081 = sphi 0, %s1080
      %s1095 = sphi 0, %s1081
      %s1099 = sphi 0, %s1099
      %s1101 = sphi 0, %s1099
      %s1102 = sphi 0, %s1101
      %s1116 = sphi 0, %s1102
      %s1120 = sphi 0, %s1120
      %s1122 = sphi 0, %s1120
      %s1123 = sphi 0, %s1122
      %s1137 = sphi 0, %s1123
      %s1141 = sphi 0, %s1141
      %s1143 = sphi 0, %s1141
      %s1144 = sphi 0, %s1143
      %s1158 = sphi 0, %s1144
      %s1162 = sphi 0, %s1162
      %s1164 = sphi 0, %s1162
      %s1165 = sphi 0, %s1164
      %s1179 = sphi 0, %s1165
      %s1185 = sphi 0, %s1187
      %s1188 = sphi 0, %s1185
      %s1189 = sphi 0, %s1188
      %s1205 = sphi 0, %s1189
    $region4: #{forward.1} parent=1 // loop_header_branch
      %118 = sbr.rel (%p116) target = $region8
    $region5: #{forward.1} parent=1 // loop_body
      %s120 = ssub.s32 %s115, 1
      %s121 = ssub.s32 %s115, 2
      %s122 = sadd.s32 %s115, 1
      %s123 = ssub.s32 %s115, %s122
      %p124 = scmp.eq.s32.totalorder %s123, 0
      %s126 = sadd.s32 %s125, 1
      %s127 = scalar_select %p124, %s125, %s126
      %p130 = pneg %p124
      %p131 = scmp.eq.s32.totalorder %s115, 1
      %p132 = por %p130, %p131
      %p133 = scmp.ne.s32.totalorder %s125, %s128
      %p134 = scmp.eq.s32.totalorder %s115, 0
      %p135 = por %p133, %p134
      %p136 = scmp.ne.s32.totalorder %s125, %s128
      %p137 = scmp.eq.s32.totalorder %s120, 1
      %p138 = por %p136, %p137
      %p139 = scmp.ne.s32.totalorder %s128, %s129
      %p140 = scmp.eq.s32.totalorder %s120, 0
      %p141 = por %p139, %p140
      %p142 = scmp.ne.s32.totalorder %s128, %s129
      %p143 = scmp.eq.s32.totalorder %s121, 1
      %p144 = por %p142, %p143
      %p146 = scmp.ne.s32.totalorder %s129, %s145
      %p147 = scmp.eq.s32.totalorder %s121, 0
      %p148 = por %p146, %p147
      %s149 = ssub.s32 %s115, %s122
      %p150 = scmp.eq.s32.totalorder %s149, 0
      %s152 = sadd.s32 %s151, 1
      %s153 = scalar_select %p150, %s151, %s152
      %p156 = pneg %p150
      %p157 = scmp.eq.s32.totalorder %s115, 1
      %p158 = por %p156, %p157
      %p159 = scmp.ne.s32.totalorder %s151, %s154
      %p160 = scmp.eq.s32.totalorder %s115, 0
      %p161 = por %p159, %p160
      %p162 = scmp.ne.s32.totalorder %s151, %s154
      %p163 = scmp.eq.s32.totalorder %s120, 1
      %p164 = por %p162, %p163
      %p165 = scmp.ne.s32.totalorder %s154, %s155
      %p166 = scmp.eq.s32.totalorder %s120, 0
      %p167 = por %p165, %p166
      %p168 = scmp.ne.s32.totalorder %s154, %s155
      %p169 = scmp.eq.s32.totalorder %s121, 1
      %p170 = por %p168, %p169
      %p172 = scmp.ne.s32.totalorder %s155, %s171
      %p173 = scmp.eq.s32.totalorder %s121, 0
      %p174 = por %p172, %p173
      %s176 = sadd.s32 %s175, 1
      %p179 = scmp.eq.s32.totalorder %s115, 1
      %p180 = scmp.ne.s32.totalorder %s175, %s177
      %p181 = scmp.eq.s32.totalorder %s115, 0
      %p182 = por %p180, %p181
      %p183 = scmp.ne.s32.totalorder %s175, %s177
      %p184 = scmp.eq.s32.totalorder %s120, 1
      %p185 = por %p183, %p184
      %p186 = scmp.ne.s32.totalorder %s177, %s178
      %p187 = scmp.eq.s32.totalorder %s120, 0
      %p188 = por %p186, %p187
      %p189 = scmp.ne.s32.totalorder %s177, %s178
      %p190 = scmp.eq.s32.totalorder %s121, 1
      %p191 = por %p189, %p190
      %p193 = scmp.ne.s32.totalorder %s178, %s192
      %p194 = scmp.eq.s32.totalorder %s121, 0
      %p195 = por %p193, %p194
      %s197 = sadd.s32 %s196, 1
      %p200 = scmp.eq.s32.totalorder %s115, 1
      %p201 = scmp.ne.s32.totalorder %s196, %s198
      %p202 = scmp.eq.s32.totalorder %s115, 0
      %p203 = por %p201, %p202
      %p204 = scmp.ne.s32.totalorder %s196, %s198
      %p205 = scmp.eq.s32.totalorder %s120, 1
      %p206 = por %p204, %p205
      %p207 = scmp.ne.s32.totalorder %s198, %s199
      %p208 = scmp.eq.s32.totalorder %s120, 0
      %p209 = por %p207, %p208
      %p210 = scmp.ne.s32.totalorder %s198, %s199
      %p211 = scmp.eq.s32.totalorder %s121, 1
      %p212 = por %p210, %p211
      %p214 = scmp.ne.s32.totalorder %s199, %s213
      %p215 = scmp.eq.s32.totalorder %s121, 0
      %p216 = por %p214, %p215
      %s218 = sadd.s32 %s217, 1
      %p221 = scmp.eq.s32.totalorder %s115, 1
      %p222 = scmp.ne.s32.totalorder %s217, %s219
      %p223 = scmp.eq.s32.totalorder %s115, 0
      %p224 = por %p222, %p223
      %p225 = scmp.ne.s32.totalorder %s217, %s219
      %p226 = scmp.eq.s32.totalorder %s120, 1
      %p227 = por %p225, %p226
      %p228 = scmp.ne.s32.totalorder %s219, %s220
      %p229 = scmp.eq.s32.totalorder %s120, 0
      %p230 = por %p228, %p229
      %p231 = scmp.ne.s32.totalorder %s219, %s220
      %p232 = scmp.eq.s32.totalorder %s121, 1
      %p233 = por %p231, %p232
      %p235 = scmp.ne.s32.totalorder %s220, %s234
      %p236 = scmp.eq.s32.totalorder %s121, 0
      %p237 = por %p235, %p236
      %s239 = sadd.s32 %s238, 1
      %p242 = scmp.eq.s32.totalorder %s115, 1
      %p243 = scmp.ne.s32.totalorder %s238, %s240
      %p244 = scmp.eq.s32.totalorder %s115, 0
      %p245 = por %p243, %p244
      %p246 = scmp.ne.s32.totalorder %s238, %s240
      %p247 = scmp.eq.s32.totalorder %s120, 1
      %p248 = por %p246, %p247
      %p249 = scmp.ne.s32.totalorder %s240, %s241
      %p250 = scmp.eq.s32.totalorder %s120, 0
      %p251 = por %p249, %p250
      %p252 = scmp.ne.s32.totalorder %s240, %s241
      %p253 = scmp.eq.s32.totalorder %s121, 1
      %p254 = por %p252, %p253
      %p256 = scmp.ne.s32.totalorder %s241, %s255
      %p257 = scmp.eq.s32.totalorder %s121, 0
      %p258 = por %p256, %p257
      %s260 = sadd.s32 %s259, 1
      %p263 = scmp.eq.s32.totalorder %s115, 1
      %p264 = scmp.ne.s32.totalorder %s259, %s261
      %p265 = scmp.eq.s32.totalorder %s115, 0
      %p266 = por %p264, %p265
      %p267 = scmp.ne.s32.totalorder %s259, %s261
      %p268 = scmp.eq.s32.totalorder %s120, 1
      %p269 = por %p267, %p268
      %p270 = scmp.ne.s32.totalorder %s261, %s262
      %p271 = scmp.eq.s32.totalorder %s120, 0
      %p272 = por %p270, %p271
      %p273 = scmp.ne.s32.totalorder %s261, %s262
      %p274 = scmp.eq.s32.totalorder %s121, 1
      %p275 = por %p273, %p274
      %p277 = scmp.ne.s32.totalorder %s262, %s276
      %p278 = scmp.eq.s32.totalorder %s121, 0
      %p279 = por %p277, %p278
      %s281 = sadd.s32 %s280, 1
      %p284 = scmp.eq.s32.totalorder %s115, 1
      %p285 = scmp.ne.s32.totalorder %s280, %s282
      %p286 = scmp.eq.s32.totalorder %s115, 0
      %p287 = por %p285, %p286
      %p288 = scmp.ne.s32.totalorder %s280, %s282
      %p289 = scmp.eq.s32.totalorder %s120, 1
      %p290 = por %p288, %p289
      %p291 = scmp.ne.s32.totalorder %s282, %s283
      %p292 = scmp.eq.s32.totalorder %s120, 0
      %p293 = por %p291, %p292
      %p294 = scmp.ne.s32.totalorder %s282, %s283
      %p295 = scmp.eq.s32.totalorder %s121, 1
      %p296 = por %p294, %p295
      %p298 = scmp.ne.s32.totalorder %s283, %s297
      %p299 = scmp.eq.s32.totalorder %s121, 0
      %p300 = por %p298, %p299
      %s302 = sadd.s32 %s301, 1
      %p305 = scmp.eq.s32.totalorder %s115, 1
      %p306 = scmp.ne.s32.totalorder %s301, %s303
      %p307 = scmp.eq.s32.totalorder %s115, 0
      %p308 = por %p306, %p307
      %p309 = scmp.ne.s32.totalorder %s301, %s303
      %p310 = scmp.eq.s32.totalorder %s120, 1
      %p311 = por %p309, %p310
      %p312 = scmp.ne.s32.totalorder %s303, %s304
      %p313 = scmp.eq.s32.totalorder %s120, 0
      %p314 = por %p312, %p313
      %p315 = scmp.ne.s32.totalorder %s303, %s304
      %p316 = scmp.eq.s32.totalorder %s121, 1
      %p317 = por %p315, %p316
      %p319 = scmp.ne.s32.totalorder %s304, %s318
      %p320 = scmp.eq.s32.totalorder %s121, 0
      %p321 = por %p319, %p320
      %s323 = sadd.s32 %s322, 1
      %p326 = scmp.eq.s32.totalorder %s115, 1
      %p327 = scmp.ne.s32.totalorder %s322, %s324
      %p328 = scmp.eq.s32.totalorder %s115, 0
      %p329 = por %p327, %p328
      %p330 = scmp.ne.s32.totalorder %s322, %s324
      %p331 = scmp.eq.s32.totalorder %s120, 1
      %p332 = por %p330, %p331
      %p333 = scmp.ne.s32.totalorder %s324, %s325
      %p334 = scmp.eq.s32.totalorder %s120, 0
      %p335 = por %p333, %p334
      %p336 = scmp.ne.s32.totalorder %s324, %s325
      %p337 = scmp.eq.s32.totalorder %s121, 1
      %p338 = por %p336, %p337
      %p340 = scmp.ne.s32.totalorder %s325, %s339
      %p341 = scmp.eq.s32.totalorder %s121, 0
      %p342 = por %p340, %p341
      %s344 = sadd.s32 %s343, 1
      %p347 = scmp.eq.s32.totalorder %s115, 1
      %p348 = scmp.ne.s32.totalorder %s343, %s345
      %p349 = scmp.eq.s32.totalorder %s115, 0
      %p350 = por %p348, %p349
      %p351 = scmp.ne.s32.totalorder %s343, %s345
      %p352 = scmp.eq.s32.totalorder %s120, 1
      %p353 = por %p351, %p352
      %p354 = scmp.ne.s32.totalorder %s345, %s346
      %p355 = scmp.eq.s32.totalorder %s120, 0
      %p356 = por %p354, %p355
      %p357 = scmp.ne.s32.totalorder %s345, %s346
      %p358 = scmp.eq.s32.totalorder %s121, 1
      %p359 = por %p357, %p358
      %p361 = scmp.ne.s32.totalorder %s346, %s360
      %p362 = scmp.eq.s32.totalorder %s121, 0
      %p363 = por %p361, %p362
      %s365 = sadd.s32 %s364, 1
      %p368 = scmp.eq.s32.totalorder %s115, 1
      %p369 = scmp.ne.s32.totalorder %s364, %s366
      %p370 = scmp.eq.s32.totalorder %s115, 0
      %p371 = por %p369, %p370
      %p372 = scmp.ne.s32.totalorder %s364, %s366
      %p373 = scmp.eq.s32.totalorder %s120, 1
      %p374 = por %p372, %p373
      %p375 = scmp.ne.s32.totalorder %s366, %s367
      %p376 = scmp.eq.s32.totalorder %s120, 0
      %p377 = por %p375, %p376
      %p378 = scmp.ne.s32.totalorder %s366, %s367
      %p379 = scmp.eq.s32.totalorder %s121, 1
      %p380 = por %p378, %p379
      %p382 = scmp.ne.s32.totalorder %s367, %s381
      %p383 = scmp.eq.s32.totalorder %s121, 0
      %p384 = por %p382, %p383
      %s386 = sadd.s32 %s385, 1
      %p389 = scmp.eq.s32.totalorder %s115, 1
      %p390 = scmp.ne.s32.totalorder %s385, %s387
      %p391 = scmp.eq.s32.totalorder %s115, 0
      %p392 = por %p390, %p391
      %p393 = scmp.ne.s32.totalorder %s385, %s387
      %p394 = scmp.eq.s32.totalorder %s120, 1
      %p395 = por %p393, %p394
      %p396 = scmp.ne.s32.totalorder %s387, %s388
      %p397 = scmp.eq.s32.totalorder %s120, 0
      %p398 = por %p396, %p397
      %p399 = scmp.ne.s32.totalorder %s387, %s388
      %p400 = scmp.eq.s32.totalorder %s121, 1
      %p401 = por %p399, %p400
      %p403 = scmp.ne.s32.totalorder %s388, %s402
      %p404 = scmp.eq.s32.totalorder %s121, 0
      %p405 = por %p403, %p404
      %s407 = sadd.s32 %s406, 1
      %p410 = scmp.eq.s32.totalorder %s115, 1
      %p411 = scmp.ne.s32.totalorder %s406, %s408
      %p412 = scmp.eq.s32.totalorder %s115, 0
      %p413 = por %p411, %p412
      %p414 = scmp.ne.s32.totalorder %s406, %s408
      %p415 = scmp.eq.s32.totalorder %s120, 1
      %p416 = por %p414, %p415
      %p417 = scmp.ne.s32.totalorder %s408, %s409
      %p418 = scmp.eq.s32.totalorder %s120, 0
      %p419 = por %p417, %p418
      %p420 = scmp.ne.s32.totalorder %s408, %s409
      %p421 = scmp.eq.s32.totalorder %s121, 1
      %p422 = por %p420, %p421
      %p424 = scmp.ne.s32.totalorder %s409, %s423
      %p425 = scmp.eq.s32.totalorder %s121, 0
      %p426 = por %p424, %p425
      %s428 = sadd.s32 %s427, 1
      %p431 = scmp.eq.s32.totalorder %s115, 1
      %p432 = scmp.ne.s32.totalorder %s427, %s429
      %p433 = scmp.eq.s32.totalorder %s115, 0
      %p434 = por %p432, %p433
      %p435 = scmp.ne.s32.totalorder %s427, %s429
      %p436 = scmp.eq.s32.totalorder %s120, 1
      %p437 = por %p435, %p436
      %p438 = scmp.ne.s32.totalorder %s429, %s430
      %p439 = scmp.eq.s32.totalorder %s120, 0
      %p440 = por %p438, %p439
      %p441 = scmp.ne.s32.totalorder %s429, %s430
      %p442 = scmp.eq.s32.totalorder %s121, 1
      %p443 = por %p441, %p442
      %p445 = scmp.ne.s32.totalorder %s430, %s444
      %p446 = scmp.eq.s32.totalorder %s121, 0
      %p447 = por %p445, %p446
      %s449 = sadd.s32 %s448, 1
      %p452 = scmp.eq.s32.totalorder %s115, 1
      %p453 = scmp.ne.s32.totalorder %s448, %s450
      %p454 = scmp.eq.s32.totalorder %s115, 0
      %p455 = por %p453, %p454
      %p456 = scmp.ne.s32.totalorder %s448, %s450
      %p457 = scmp.eq.s32.totalorder %s120, 1
      %p458 = por %p456, %p457
      %p459 = scmp.ne.s32.totalorder %s450, %s451
      %p460 = scmp.eq.s32.totalorder %s120, 0
      %p461 = por %p459, %p460
      %p462 = scmp.ne.s32.totalorder %s450, %s451
      %p463 = scmp.eq.s32.totalorder %s121, 1
      %p464 = por %p462, %p463
      %p466 = scmp.ne.s32.totalorder %s451, %s465
      %p467 = scmp.eq.s32.totalorder %s121, 0
      %p468 = por %p466, %p467
      %s470 = sadd.s32 %s469, 1
      %p473 = scmp.eq.s32.totalorder %s115, 1
      %p474 = scmp.ne.s32.totalorder %s469, %s471
      %p475 = scmp.eq.s32.totalorder %s115, 0
      %p476 = por %p474, %p475
      %p477 = scmp.ne.s32.totalorder %s469, %s471
      %p478 = scmp.eq.s32.totalorder %s120, 1
      %p479 = por %p477, %p478
      %p480 = scmp.ne.s32.totalorder %s471, %s472
      %p481 = scmp.eq.s32.totalorder %s120, 0
      %p482 = por %p480, %p481
      %p483 = scmp.ne.s32.totalorder %s471, %s472
      %p484 = scmp.eq.s32.totalorder %s121, 1
      %p485 = por %p483, %p484
      %p487 = scmp.ne.s32.totalorder %s472, %s486
      %p488 = scmp.eq.s32.totalorder %s121, 0
      %p489 = por %p487, %p488
      %s491 = sadd.s32 %s490, 1
      %p494 = scmp.eq.s32.totalorder %s115, 1
      %p495 = scmp.ne.s32.totalorder %s490, %s492
      %p496 = scmp.eq.s32.totalorder %s115, 0
      %p497 = por %p495, %p496
      %p498 = scmp.ne.s32.totalorder %s490, %s492
      %p499 = scmp.eq.s32.totalorder %s120, 1
      %p500 = por %p498, %p499
      %p501 = scmp.ne.s32.totalorder %s492, %s493
      %p502 = scmp.eq.s32.totalorder %s120, 0
      %p503 = por %p501, %p502
      %p504 = scmp.ne.s32.totalorder %s492, %s493
      %p505 = scmp.eq.s32.totalorder %s121, 1
      %p506 = por %p504, %p505
      %p508 = scmp.ne.s32.totalorder %s493, %s507
      %p509 = scmp.eq.s32.totalorder %s121, 0
      %p510 = por %p508, %p509
      %s512 = sadd.s32 %s511, 1
      %p515 = scmp.eq.s32.totalorder %s115, 1
      %p516 = scmp.ne.s32.totalorder %s511, %s513
      %p517 = scmp.eq.s32.totalorder %s115, 0
      %p518 = por %p516, %p517
      %p519 = scmp.ne.s32.totalorder %s511, %s513
      %p520 = scmp.eq.s32.totalorder %s120, 1
      %p521 = por %p519, %p520
      %p522 = scmp.ne.s32.totalorder %s513, %s514
      %p523 = scmp.eq.s32.totalorder %s120, 0
      %p524 = por %p522, %p523
      %p525 = scmp.ne.s32.totalorder %s513, %s514
      %p526 = scmp.eq.s32.totalorder %s121, 1
      %p527 = por %p525, %p526
      %p529 = scmp.ne.s32.totalorder %s514, %s528
      %p530 = scmp.eq.s32.totalorder %s121, 0
      %p531 = por %p529, %p530
      %s533 = sadd.s32 %s532, 1
      %p536 = scmp.eq.s32.totalorder %s115, 1
      %p537 = scmp.ne.s32.totalorder %s532, %s534
      %p538 = scmp.eq.s32.totalorder %s115, 0
      %p539 = por %p537, %p538
      %p540 = scmp.ne.s32.totalorder %s532, %s534
      %p541 = scmp.eq.s32.totalorder %s120, 1
      %p542 = por %p540, %p541
      %p543 = scmp.ne.s32.totalorder %s534, %s535
      %p544 = scmp.eq.s32.totalorder %s120, 0
      %p545 = por %p543, %p544
      %p546 = scmp.ne.s32.totalorder %s534, %s535
      %p547 = scmp.eq.s32.totalorder %s121, 1
      %p548 = por %p546, %p547
      %p550 = scmp.ne.s32.totalorder %s535, %s549
      %p551 = scmp.eq.s32.totalorder %s121, 0
      %p552 = por %p550, %p551
      %s554 = sadd.s32 %s553, 1
      %p557 = scmp.eq.s32.totalorder %s115, 1
      %p558 = scmp.ne.s32.totalorder %s553, %s555
      %p559 = scmp.eq.s32.totalorder %s115, 0
      %p560 = por %p558, %p559
      %p561 = scmp.ne.s32.totalorder %s553, %s555
      %p562 = scmp.eq.s32.totalorder %s120, 1
      %p563 = por %p561, %p562
      %p564 = scmp.ne.s32.totalorder %s555, %s556
      %p565 = scmp.eq.s32.totalorder %s120, 0
      %p566 = por %p564, %p565
      %p567 = scmp.ne.s32.totalorder %s555, %s556
      %p568 = scmp.eq.s32.totalorder %s121, 1
      %p569 = por %p567, %p568
      %p571 = scmp.ne.s32.totalorder %s556, %s570
      %p572 = scmp.eq.s32.totalorder %s121, 0
      %p573 = por %p571, %p572
      %s575 = sadd.s32 %s574, 1
      %p578 = scmp.eq.s32.totalorder %s115, 1
      %p579 = scmp.ne.s32.totalorder %s574, %s576
      %p580 = scmp.eq.s32.totalorder %s115, 0
      %p581 = por %p579, %p580
      %p582 = scmp.ne.s32.totalorder %s574, %s576
      %p583 = scmp.eq.s32.totalorder %s120, 1
      %p584 = por %p582, %p583
      %p585 = scmp.ne.s32.totalorder %s576, %s577
      %p586 = scmp.eq.s32.totalorder %s120, 0
      %p587 = por %p585, %p586
      %p588 = scmp.ne.s32.totalorder %s576, %s577
      %p589 = scmp.eq.s32.totalorder %s121, 1
      %p590 = por %p588, %p589
      %p592 = scmp.ne.s32.totalorder %s577, %s591
      %p593 = scmp.eq.s32.totalorder %s121, 0
      %p594 = por %p592, %p593
      %s596 = sadd.s32 %s595, 1
      %p599 = scmp.eq.s32.totalorder %s115, 1
      %p600 = scmp.ne.s32.totalorder %s595, %s597
      %p601 = scmp.eq.s32.totalorder %s115, 0
      %p602 = por %p600, %p601
      %p603 = scmp.ne.s32.totalorder %s595, %s597
      %p604 = scmp.eq.s32.totalorder %s120, 1
      %p605 = por %p603, %p604
      %p606 = scmp.ne.s32.totalorder %s597, %s598
      %p607 = scmp.eq.s32.totalorder %s120, 0
      %p608 = por %p606, %p607
      %p609 = scmp.ne.s32.totalorder %s597, %s598
      %p610 = scmp.eq.s32.totalorder %s121, 1
      %p611 = por %p609, %p610
      %p613 = scmp.ne.s32.totalorder %s598, %s612
      %p614 = scmp.eq.s32.totalorder %s121, 0
      %p615 = por %p613, %p614
      %s617 = sadd.s32 %s616, 1
      %p620 = scmp.eq.s32.totalorder %s115, 1
      %p621 = scmp.ne.s32.totalorder %s616, %s618
      %p622 = scmp.eq.s32.totalorder %s115, 0
      %p623 = por %p621, %p622
      %p624 = scmp.ne.s32.totalorder %s616, %s618
      %p625 = scmp.eq.s32.totalorder %s120, 1
      %p626 = por %p624, %p625
      %p627 = scmp.ne.s32.totalorder %s618, %s619
      %p628 = scmp.eq.s32.totalorder %s120, 0
      %p629 = por %p627, %p628
      %p630 = scmp.ne.s32.totalorder %s618, %s619
      %p631 = scmp.eq.s32.totalorder %s121, 1
      %p632 = por %p630, %p631
      %p634 = scmp.ne.s32.totalorder %s619, %s633
      %p635 = scmp.eq.s32.totalorder %s121, 0
      %p636 = por %p634, %p635
      %s638 = sadd.s32 %s637, 1
      %p641 = scmp.eq.s32.totalorder %s115, 1
      %p642 = scmp.ne.s32.totalorder %s637, %s639
      %p643 = scmp.eq.s32.totalorder %s115, 0
      %p644 = por %p642, %p643
      %p645 = scmp.ne.s32.totalorder %s637, %s639
      %p646 = scmp.eq.s32.totalorder %s120, 1
      %p647 = por %p645, %p646
      %p648 = scmp.ne.s32.totalorder %s639, %s640
      %p649 = scmp.eq.s32.totalorder %s120, 0
      %p650 = por %p648, %p649
      %p651 = scmp.ne.s32.totalorder %s639, %s640
      %p652 = scmp.eq.s32.totalorder %s121, 1
      %p653 = por %p651, %p652
      %p655 = scmp.ne.s32.totalorder %s640, %s654
      %p656 = scmp.eq.s32.totalorder %s121, 0
      %p657 = por %p655, %p656
      %s659 = sadd.s32 %s658, 1
      %p662 = scmp.eq.s32.totalorder %s115, 1
      %p663 = scmp.ne.s32.totalorder %s658, %s660
      %p664 = scmp.eq.s32.totalorder %s115, 0
      %p665 = por %p663, %p664
      %p666 = scmp.ne.s32.totalorder %s658, %s660
      %p667 = scmp.eq.s32.totalorder %s120, 1
      %p668 = por %p666, %p667
      %p669 = scmp.ne.s32.totalorder %s660, %s661
      %p670 = scmp.eq.s32.totalorder %s120, 0
      %p671 = por %p669, %p670
      %p672 = scmp.ne.s32.totalorder %s660, %s661
      %p673 = scmp.eq.s32.totalorder %s121, 1
      %p674 = por %p672, %p673
      %p676 = scmp.ne.s32.totalorder %s661, %s675
      %p677 = scmp.eq.s32.totalorder %s121, 0
      %p678 = por %p676, %p677
      %s680 = sadd.s32 %s679, 1
      %p683 = scmp.eq.s32.totalorder %s115, 1
      %p684 = scmp.ne.s32.totalorder %s679, %s681
      %p685 = scmp.eq.s32.totalorder %s115, 0
      %p686 = por %p684, %p685
      %p687 = scmp.ne.s32.totalorder %s679, %s681
      %p688 = scmp.eq.s32.totalorder %s120, 1
      %p689 = por %p687, %p688
      %p690 = scmp.ne.s32.totalorder %s681, %s682
      %p691 = scmp.eq.s32.totalorder %s120, 0
      %p692 = por %p690, %p691
      %p693 = scmp.ne.s32.totalorder %s681, %s682
      %p694 = scmp.eq.s32.totalorder %s121, 1
      %p695 = por %p693, %p694
      %p697 = scmp.ne.s32.totalorder %s682, %s696
      %p698 = scmp.eq.s32.totalorder %s121, 0
      %p699 = por %p697, %p698
      %s701 = sadd.s32 %s700, 1
      %p704 = scmp.eq.s32.totalorder %s115, 1
      %p705 = scmp.ne.s32.totalorder %s700, %s702
      %p706 = scmp.eq.s32.totalorder %s115, 0
      %p707 = por %p705, %p706
      %p708 = scmp.ne.s32.totalorder %s700, %s702
      %p709 = scmp.eq.s32.totalorder %s120, 1
      %p710 = por %p708, %p709
      %p711 = scmp.ne.s32.totalorder %s702, %s703
      %p712 = scmp.eq.s32.totalorder %s120, 0
      %p713 = por %p711, %p712
      %p714 = scmp.ne.s32.totalorder %s702, %s703
      %p715 = scmp.eq.s32.totalorder %s121, 1
      %p716 = por %p714, %p715
      %p718 = scmp.ne.s32.totalorder %s703, %s717
      %p719 = scmp.eq.s32.totalorder %s121, 0
      %p720 = por %p718, %p719
      %s722 = sadd.s32 %s721, 1
      %p725 = scmp.eq.s32.totalorder %s115, 1
      %p726 = scmp.ne.s32.totalorder %s721, %s723
      %p727 = scmp.eq.s32.totalorder %s115, 0
      %p728 = por %p726, %p727
      %p729 = scmp.ne.s32.totalorder %s721, %s723
      %p730 = scmp.eq.s32.totalorder %s120, 1
      %p731 = por %p729, %p730
      %p732 = scmp.ne.s32.totalorder %s723, %s724
      %p733 = scmp.eq.s32.totalorder %s120, 0
      %p734 = por %p732, %p733
      %p735 = scmp.ne.s32.totalorder %s723, %s724
      %p736 = scmp.eq.s32.totalorder %s121, 1
      %p737 = por %p735, %p736
      %p739 = scmp.ne.s32.totalorder %s724, %s738
      %p740 = scmp.eq.s32.totalorder %s121, 0
      %p741 = por %p739, %p740
      %s743 = sadd.s32 %s742, 1
      %p746 = scmp.eq.s32.totalorder %s115, 1
      %p747 = scmp.ne.s32.totalorder %s742, %s744
      %p748 = scmp.eq.s32.totalorder %s115, 0
      %p749 = por %p747, %p748
      %p750 = scmp.ne.s32.totalorder %s742, %s744
      %p751 = scmp.eq.s32.totalorder %s120, 1
      %p752 = por %p750, %p751
      %p753 = scmp.ne.s32.totalorder %s744, %s745
      %p754 = scmp.eq.s32.totalorder %s120, 0
      %p755 = por %p753, %p754
      %p756 = scmp.ne.s32.totalorder %s744, %s745
      %p757 = scmp.eq.s32.totalorder %s121, 1
      %p758 = por %p756, %p757
      %p760 = scmp.ne.s32.totalorder %s745, %s759
      %p761 = scmp.eq.s32.totalorder %s121, 0
      %p762 = por %p760, %p761
      %s764 = sadd.s32 %s763, 1
      %p767 = scmp.eq.s32.totalorder %s115, 1
      %p768 = scmp.ne.s32.totalorder %s763, %s765
      %p769 = scmp.eq.s32.totalorder %s115, 0
      %p770 = por %p768, %p769
      %p771 = scmp.ne.s32.totalorder %s763, %s765
      %p772 = scmp.eq.s32.totalorder %s120, 1
      %p773 = por %p771, %p772
      %p774 = scmp.ne.s32.totalorder %s765, %s766
      %p775 = scmp.eq.s32.totalorder %s120, 0
      %p776 = por %p774, %p775
      %p777 = scmp.ne.s32.totalorder %s765, %s766
      %p778 = scmp.eq.s32.totalorder %s121, 1
      %p779 = por %p777, %p778
      %p781 = scmp.ne.s32.totalorder %s766, %s780
      %p782 = scmp.eq.s32.totalorder %s121, 0
      %p783 = por %p781, %p782
      %s785 = sadd.s32 %s784, 1
      %p788 = scmp.eq.s32.totalorder %s115, 1
      %p789 = scmp.ne.s32.totalorder %s784, %s786
      %p790 = scmp.eq.s32.totalorder %s115, 0
      %p791 = por %p789, %p790
      %p792 = scmp.ne.s32.totalorder %s784, %s786
      %p793 = scmp.eq.s32.totalorder %s120, 1
      %p794 = por %p792, %p793
      %p795 = scmp.ne.s32.totalorder %s786, %s787
      %p796 = scmp.eq.s32.totalorder %s120, 0
      %p797 = por %p795, %p796
      %p798 = scmp.ne.s32.totalorder %s786, %s787
      %p799 = scmp.eq.s32.totalorder %s121, 1
      %p800 = por %p798, %p799
      %p802 = scmp.ne.s32.totalorder %s787, %s801
      %p803 = scmp.eq.s32.totalorder %s121, 0
      %p804 = por %p802, %p803
      %s806 = sadd.s32 %s805, 1
      %p809 = scmp.eq.s32.totalorder %s115, 1
      %p810 = scmp.ne.s32.totalorder %s805, %s807
      %p811 = scmp.eq.s32.totalorder %s115, 0
      %p812 = por %p810, %p811
      %p813 = scmp.ne.s32.totalorder %s805, %s807
      %p814 = scmp.eq.s32.totalorder %s120, 1
      %p815 = por %p813, %p814
      %p816 = scmp.ne.s32.totalorder %s807, %s808
      %p817 = scmp.eq.s32.totalorder %s120, 0
      %p818 = por %p816, %p817
      %p819 = scmp.ne.s32.totalorder %s807, %s808
      %p820 = scmp.eq.s32.totalorder %s121, 1
      %p821 = por %p819, %p820
      %p823 = scmp.ne.s32.totalorder %s808, %s822
      %p824 = scmp.eq.s32.totalorder %s121, 0
      %p825 = por %p823, %p824
      %s827 = sadd.s32 %s826, 1
      %p830 = scmp.eq.s32.totalorder %s115, 1
      %p831 = scmp.ne.s32.totalorder %s826, %s828
      %p832 = scmp.eq.s32.totalorder %s115, 0
      %p833 = por %p831, %p832
      %p834 = scmp.ne.s32.totalorder %s826, %s828
      %p835 = scmp.eq.s32.totalorder %s120, 1
      %p836 = por %p834, %p835
      %p837 = scmp.ne.s32.totalorder %s828, %s829
      %p838 = scmp.eq.s32.totalorder %s120, 0
      %p839 = por %p837, %p838
      %p840 = scmp.ne.s32.totalorder %s828, %s829
      %p841 = scmp.eq.s32.totalorder %s121, 1
      %p842 = por %p840, %p841
      %p844 = scmp.ne.s32.totalorder %s829, %s843
      %p845 = scmp.eq.s32.totalorder %s121, 0
      %p846 = por %p844, %p845
      %s848 = sadd.s32 %s847, 1
      %p851 = scmp.eq.s32.totalorder %s115, 1
      %p852 = scmp.ne.s32.totalorder %s847, %s849
      %p853 = scmp.eq.s32.totalorder %s115, 0
      %p854 = por %p852, %p853
      %p855 = scmp.ne.s32.totalorder %s847, %s849
      %p856 = scmp.eq.s32.totalorder %s120, 1
      %p857 = por %p855, %p856
      %p858 = scmp.ne.s32.totalorder %s849, %s850
      %p859 = scmp.eq.s32.totalorder %s120, 0
      %p860 = por %p858, %p859
      %p861 = scmp.ne.s32.totalorder %s849, %s850
      %p862 = scmp.eq.s32.totalorder %s121, 1
      %p863 = por %p861, %p862
      %p865 = scmp.ne.s32.totalorder %s850, %s864
      %p866 = scmp.eq.s32.totalorder %s121, 0
      %p867 = por %p865, %p866
      %s869 = sadd.s32 %s868, 1
      %p872 = scmp.eq.s32.totalorder %s115, 1
      %p873 = scmp.ne.s32.totalorder %s868, %s870
      %p874 = scmp.eq.s32.totalorder %s115, 0
      %p875 = por %p873, %p874
      %p876 = scmp.ne.s32.totalorder %s868, %s870
      %p877 = scmp.eq.s32.totalorder %s120, 1
      %p878 = por %p876, %p877
      %p879 = scmp.ne.s32.totalorder %s870, %s871
      %p880 = scmp.eq.s32.totalorder %s120, 0
      %p881 = por %p879, %p880
      %p882 = scmp.ne.s32.totalorder %s870, %s871
      %p883 = scmp.eq.s32.totalorder %s121, 1
      %p884 = por %p882, %p883
      %p886 = scmp.ne.s32.totalorder %s871, %s885
      %p887 = scmp.eq.s32.totalorder %s121, 0
      %p888 = por %p886, %p887
      %s890 = sadd.s32 %s889, 1
      %p893 = scmp.eq.s32.totalorder %s115, 1
      %p894 = scmp.ne.s32.totalorder %s889, %s891
      %p895 = scmp.eq.s32.totalorder %s115, 0
      %p896 = por %p894, %p895
      %p897 = scmp.ne.s32.totalorder %s889, %s891
      %p898 = scmp.eq.s32.totalorder %s120, 1
      %p899 = por %p897, %p898
      %p900 = scmp.ne.s32.totalorder %s891, %s892
      %p901 = scmp.eq.s32.totalorder %s120, 0
      %p902 = por %p900, %p901
      %p903 = scmp.ne.s32.totalorder %s891, %s892
      %p904 = scmp.eq.s32.totalorder %s121, 1
      %p905 = por %p903, %p904
      %p907 = scmp.ne.s32.totalorder %s892, %s906
      %p908 = scmp.eq.s32.totalorder %s121, 0
      %p909 = por %p907, %p908
      %s911 = sadd.s32 %s910, 1
      %p914 = scmp.eq.s32.totalorder %s115, 1
      %p915 = scmp.ne.s32.totalorder %s910, %s912
      %p916 = scmp.eq.s32.totalorder %s115, 0
      %p917 = por %p915, %p916
      %p918 = scmp.ne.s32.totalorder %s910, %s912
      %p919 = scmp.eq.s32.totalorder %s120, 1
      %p920 = por %p918, %p919
      %p921 = scmp.ne.s32.totalorder %s912, %s913
      %p922 = scmp.eq.s32.totalorder %s120, 0
      %p923 = por %p921, %p922
      %p924 = scmp.ne.s32.totalorder %s912, %s913
      %p925 = scmp.eq.s32.totalorder %s121, 1
      %p926 = por %p924, %p925
      %p928 = scmp.ne.s32.totalorder %s913, %s927
      %p929 = scmp.eq.s32.totalorder %s121, 0
      %p930 = por %p928, %p929
      %s932 = sadd.s32 %s931, 1
      %p935 = scmp.eq.s32.totalorder %s115, 1
      %p936 = scmp.ne.s32.totalorder %s931, %s933
      %p937 = scmp.eq.s32.totalorder %s115, 0
      %p938 = por %p936, %p937
      %p939 = scmp.ne.s32.totalorder %s931, %s933
      %p940 = scmp.eq.s32.totalorder %s120, 1
      %p941 = por %p939, %p940
      %p942 = scmp.ne.s32.totalorder %s933, %s934
      %p943 = scmp.eq.s32.totalorder %s120, 0
      %p944 = por %p942, %p943
      %p945 = scmp.ne.s32.totalorder %s933, %s934
      %p946 = scmp.eq.s32.totalorder %s121, 1
      %p947 = por %p945, %p946
      %p949 = scmp.ne.s32.totalorder %s934, %s948
      %p950 = scmp.eq.s32.totalorder %s121, 0
      %p951 = por %p949, %p950
      %s953 = sadd.s32 %s952, 1
      %p956 = scmp.eq.s32.totalorder %s115, 1
      %p957 = scmp.ne.s32.totalorder %s952, %s954
      %p958 = scmp.eq.s32.totalorder %s115, 0
      %p959 = por %p957, %p958
      %p960 = scmp.ne.s32.totalorder %s952, %s954
      %p961 = scmp.eq.s32.totalorder %s120, 1
      %p962 = por %p960, %p961
      %p963 = scmp.ne.s32.totalorder %s954, %s955
      %p964 = scmp.eq.s32.totalorder %s120, 0
      %p965 = por %p963, %p964
      %p966 = scmp.ne.s32.totalorder %s954, %s955
      %p967 = scmp.eq.s32.totalorder %s121, 1
      %p968 = por %p966, %p967
      %p970 = scmp.ne.s32.totalorder %s955, %s969
      %p971 = scmp.eq.s32.totalorder %s121, 0
      %p972 = por %p970, %p971
      %s974 = sadd.s32 %s973, 1
      %p977 = scmp.eq.s32.totalorder %s115, 1
      %p978 = scmp.ne.s32.totalorder %s973, %s975
      %p979 = scmp.eq.s32.totalorder %s115, 0
      %p980 = por %p978, %p979
      %p981 = scmp.ne.s32.totalorder %s973, %s975
      %p982 = scmp.eq.s32.totalorder %s120, 1
      %p983 = por %p981, %p982
      %p984 = scmp.ne.s32.totalorder %s975, %s976
      %p985 = scmp.eq.s32.totalorder %s120, 0
      %p986 = por %p984, %p985
      %p987 = scmp.ne.s32.totalorder %s975, %s976
      %p988 = scmp.eq.s32.totalorder %s121, 1
      %p989 = por %p987, %p988
      %p991 = scmp.ne.s32.totalorder %s976, %s990
      %p992 = scmp.eq.s32.totalorder %s121, 0
      %p993 = por %p991, %p992
      %s995 = sadd.s32 %s994, 1
      %p998 = scmp.eq.s32.totalorder %s115, 1
      %p999 = scmp.ne.s32.totalorder %s994, %s996
      %p1000 = scmp.eq.s32.totalorder %s115, 0
      %p1001 = por %p999, %p1000
      %p1002 = scmp.ne.s32.totalorder %s994, %s996
      %p1003 = scmp.eq.s32.totalorder %s120, 1
      %p1004 = por %p1002, %p1003
      %p1005 = scmp.ne.s32.totalorder %s996, %s997
      %p1006 = scmp.eq.s32.totalorder %s120, 0
      %p1007 = por %p1005, %p1006
      %p1008 = scmp.ne.s32.totalorder %s996, %s997
      %p1009 = scmp.eq.s32.totalorder %s121, 1
      %p1010 = por %p1008, %p1009
      %p1012 = scmp.ne.s32.totalorder %s997, %s1011
      %p1013 = scmp.eq.s32.totalorder %s121, 0
      %p1014 = por %p1012, %p1013
      %s1016 = sadd.s32 %s1015, 1
      %p1019 = scmp.eq.s32.totalorder %s115, 1
      %p1020 = scmp.ne.s32.totalorder %s1015, %s1017
      %p1021 = scmp.eq.s32.totalorder %s115, 0
      %p1022 = por %p1020, %p1021
      %p1023 = scmp.ne.s32.totalorder %s1015, %s1017
      %p1024 = scmp.eq.s32.totalorder %s120, 1
      %p1025 = por %p1023, %p1024
      %p1026 = scmp.ne.s32.totalorder %s1017, %s1018
      %p1027 = scmp.eq.s32.totalorder %s120, 0
      %p1028 = por %p1026, %p1027
      %p1029 = scmp.ne.s32.totalorder %s1017, %s1018
      %p1030 = scmp.eq.s32.totalorder %s121, 1
      %p1031 = por %p1029, %p1030
      %p1033 = scmp.ne.s32.totalorder %s1018, %s1032
      %p1034 = scmp.eq.s32.totalorder %s121, 0
      %p1035 = por %p1033, %p1034
      %s1037 = sadd.s32 %s1036, 1
      %p1040 = scmp.eq.s32.totalorder %s115, 1
      %p1041 = scmp.ne.s32.totalorder %s1036, %s1038
      %p1042 = scmp.eq.s32.totalorder %s115, 0
      %p1043 = por %p1041, %p1042
      %p1044 = scmp.ne.s32.totalorder %s1036, %s1038
      %p1045 = scmp.eq.s32.totalorder %s120, 1
      %p1046 = por %p1044, %p1045
      %p1047 = scmp.ne.s32.totalorder %s1038, %s1039
      %p1048 = scmp.eq.s32.totalorder %s120, 0
      %p1049 = por %p1047, %p1048
      %p1050 = scmp.ne.s32.totalorder %s1038, %s1039
      %p1051 = scmp.eq.s32.totalorder %s121, 1
      %p1052 = por %p1050, %p1051
      %p1054 = scmp.ne.s32.totalorder %s1039, %s1053
      %p1055 = scmp.eq.s32.totalorder %s121, 0
      %p1056 = por %p1054, %p1055
      %s1058 = sadd.s32 %s1057, 1
      %p1061 = scmp.eq.s32.totalorder %s115, 1
      %p1062 = scmp.ne.s32.totalorder %s1057, %s1059
      %p1063 = scmp.eq.s32.totalorder %s115, 0
      %p1064 = por %p1062, %p1063
      %p1065 = scmp.ne.s32.totalorder %s1057, %s1059
      %p1066 = scmp.eq.s32.totalorder %s120, 1
      %p1067 = por %p1065, %p1066
      %p1068 = scmp.ne.s32.totalorder %s1059, %s1060
      %p1069 = scmp.eq.s32.totalorder %s120, 0
      %p1070 = por %p1068, %p1069
      %p1071 = scmp.ne.s32.totalorder %s1059, %s1060
      %p1072 = scmp.eq.s32.totalorder %s121, 1
      %p1073 = por %p1071, %p1072
      %p1075 = scmp.ne.s32.totalorder %s1060, %s1074
      %p1076 = scmp.eq.s32.totalorder %s121, 0
      %p1077 = por %p1075, %p1076
      %s1079 = sadd.s32 %s1078, 1
      %p1082 = scmp.eq.s32.totalorder %s115, 1
      %p1083 = scmp.ne.s32.totalorder %s1078, %s1080
      %p1084 = scmp.eq.s32.totalorder %s115, 0
      %p1085 = por %p1083, %p1084
      %p1086 = scmp.ne.s32.totalorder %s1078, %s1080
      %p1087 = scmp.eq.s32.totalorder %s120, 1
      %p1088 = por %p1086, %p1087
      %p1089 = scmp.ne.s32.totalorder %s1080, %s1081
      %p1090 = scmp.eq.s32.totalorder %s120, 0
      %p1091 = por %p1089, %p1090
      %p1092 = scmp.ne.s32.totalorder %s1080, %s1081
      %p1093 = scmp.eq.s32.totalorder %s121, 1
      %p1094 = por %p1092, %p1093
      %p1096 = scmp.ne.s32.totalorder %s1081, %s1095
      %p1097 = scmp.eq.s32.totalorder %s121, 0
      %p1098 = por %p1096, %p1097
      %s1100 = sadd.s32 %s1099, 1
      %p1103 = scmp.eq.s32.totalorder %s115, 1
      %p1104 = scmp.ne.s32.totalorder %s1099, %s1101
      %p1105 = scmp.eq.s32.totalorder %s115, 0
      %p1106 = por %p1104, %p1105
      %p1107 = scmp.ne.s32.totalorder %s1099, %s1101
      %p1108 = scmp.eq.s32.totalorder %s120, 1
      %p1109 = por %p1107, %p1108
      %p1110 = scmp.ne.s32.totalorder %s1101, %s1102
      %p1111 = scmp.eq.s32.totalorder %s120, 0
      %p1112 = por %p1110, %p1111
      %p1113 = scmp.ne.s32.totalorder %s1101, %s1102
      %p1114 = scmp.eq.s32.totalorder %s121, 1
      %p1115 = por %p1113, %p1114
      %p1117 = scmp.ne.s32.totalorder %s1102, %s1116
      %p1118 = scmp.eq.s32.totalorder %s121, 0
      %p1119 = por %p1117, %p1118
      %s1121 = sadd.s32 %s1120, 1
      %p1124 = scmp.eq.s32.totalorder %s115, 1
      %p1125 = scmp.ne.s32.totalorder %s1120, %s1122
      %p1126 = scmp.eq.s32.totalorder %s115, 0
      %p1127 = por %p1125, %p1126
      %p1128 = scmp.ne.s32.totalorder %s1120, %s1122
      %p1129 = scmp.eq.s32.totalorder %s120, 1
      %p1130 = por %p1128, %p1129
      %p1131 = scmp.ne.s32.totalorder %s1122, %s1123
      %p1132 = scmp.eq.s32.totalorder %s120, 0
      %p1133 = por %p1131, %p1132
      %p1134 = scmp.ne.s32.totalorder %s1122, %s1123
      %p1135 = scmp.eq.s32.totalorder %s121, 1
      %p1136 = por %p1134, %p1135
      %p1138 = scmp.ne.s32.totalorder %s1123, %s1137
      %p1139 = scmp.eq.s32.totalorder %s121, 0
      %p1140 = por %p1138, %p1139
      %s1142 = sadd.s32 %s1141, 1
      %p1145 = scmp.eq.s32.totalorder %s115, 1
      %p1146 = scmp.ne.s32.totalorder %s1141, %s1143
      %p1147 = scmp.eq.s32.totalorder %s115, 0
      %p1148 = por %p1146, %p1147
      %p1149 = scmp.ne.s32.totalorder %s1141, %s1143
      %p1150 = scmp.eq.s32.totalorder %s120, 1
      %p1151 = por %p1149, %p1150
      %p1152 = scmp.ne.s32.totalorder %s1143, %s1144
      %p1153 = scmp.eq.s32.totalorder %s120, 0
      %p1154 = por %p1152, %p1153
      %p1155 = scmp.ne.s32.totalorder %s1143, %s1144
      %p1156 = scmp.eq.s32.totalorder %s121, 1
      %p1157 = por %p1155, %p1156
      %p1159 = scmp.ne.s32.totalorder %s1144, %s1158
      %p1160 = scmp.eq.s32.totalorder %s121, 0
      %p1161 = por %p1159, %p1160
      %s1163 = sadd.s32 %s1162, 1
      %p1166 = scmp.eq.s32.totalorder %s115, 1
      %p1167 = scmp.ne.s32.totalorder %s1162, %s1164
      %p1168 = scmp.eq.s32.totalorder %s115, 0
      %p1169 = por %p1167, %p1168
      %p1170 = scmp.ne.s32.totalorder %s1162, %s1164
      %p1171 = scmp.eq.s32.totalorder %s120, 1
      %p1172 = por %p1170, %p1171
      %p1173 = scmp.ne.s32.totalorder %s1164, %s1165
      %p1174 = scmp.eq.s32.totalorder %s120, 0
      %p1175 = por %p1173, %p1174
      %p1176 = scmp.ne.s32.totalorder %s1164, %s1165
      %p1177 = scmp.eq.s32.totalorder %s121, 1
      %p1178 = por %p1176, %p1177
      %p1180 = scmp.ne.s32.totalorder %s1165, %s1179
      %p1181 = scmp.eq.s32.totalorder %s121, 0
      %p1182 = por %p1180, %p1181
      %s1183 = ssub.s32 %s115, %s122
      %p1184 = scmp.eq.s32.totalorder %s1183, 0
      %s1186 = sadd.s32 %s1185, 1
      %s1187 = scalar_select %p1184, %s1185, %s1186
      %p1190 = pneg %p1184
      %p1191 = scmp.eq.s32.totalorder %s115, 1
      %p1192 = por %p1190, %p1191
      %p1193 = scmp.ne.s32.totalorder %s1185, %s1188
      %p1194 = scmp.eq.s32.totalorder %s115, 0
      %p1195 = por %p1193, %p1194
      %p1196 = scmp.ne.s32.totalorder %s1185, %s1188
      %p1197 = scmp.eq.s32.totalorder %s120, 1
      %p1198 = por %p1196, %p1197
      %p1199 = scmp.ne.s32.totalorder %s1188, %s1189
      %p1200 = scmp.eq.s32.totalorder %s120, 0
      %p1201 = por %p1199, %p1200
      %p1202 = scmp.ne.s32.totalorder %s1188, %s1189
      %p1203 = scmp.eq.s32.totalorder %s121, 1
      %p1204 = por %p1202, %p1203
      %p1206 = scmp.ne.s32.totalorder %s1189, %s1205
      %p1207 = scmp.eq.s32.totalorder %s121, 0
      %p1208 = por %p1206, %p1207
      %p1209 = scmp.le.s32.totalorder 1, %s115
      %p1210 = scmp.lt.s32.totalorder %s115, 3
      %p1211 = pnand %p1209, %p1210
      %p1212 = pneg %p1211
      // Predicated region
      $region9: #{forward.1} parent=5 // pred_check
        _
      $region10: #{forward.1} parent=5 // pred_check_branch
        %1214 = sbr.rel (%p1211) target = $region12
      $region11: #{forward.1} parent=5 // pred_region
        %s1215 = ssub.s32 %s115, 1
        // Predicated region
        $region13: #{forward.1} parent=11 // pred_check
          %p1216 = pneg %p188
        $region14: #{forward.1} parent=11 // pred_check_branch
          %1218 = sbr.rel (%p1216) target = $region16
        $region15: #{forward.1} parent=11 // pred_region
          _
        $region16: #{forward.1} parent=11 // pred_fallthru
          _
        // Predicated region
        $region17: #{forward.1} parent=11 // pred_check
          %p1219 = pneg %p209
        $region18: #{forward.1} parent=11 // pred_check_branch
          %1221 = sbr.rel (%p1219) target = $region20
        $region19: #{forward.1} parent=11 // pred_region
          _
        $region20: #{forward.1} parent=11 // pred_fallthru
          _
        // Predicated region
        $region21: #{forward.1} parent=11 // pred_check
          %p1222 = pneg %p230
        $region22: #{forward.1} parent=11 // pred_check_branch
          %1224 = sbr.rel (%p1222) target = $region24
        $region23: #{forward.1} parent=11 // pred_region
          _
        $region24: #{forward.1} parent=11 // pred_fallthru
          _
        // Predicated region
        $region25: #{forward.1} parent=11 // pred_check
          %p1225 = pneg %p251
        $region26: #{forward.1} parent=11 // pred_check_branch
          %1227 = sbr.rel (%p1225) target = $region28
        $region27: #{forward.1} parent=11 // pred_region
          _
        $region28: #{forward.1} parent=11 // pred_fallthru
          _
        // Predicated region
        $region29: #{forward.1} parent=11 // pred_check
          %p1228 = pneg %p272
        $region30: #{forward.1} parent=11 // pred_check_branch
          %1230 = sbr.rel (%p1228) target = $region32
        $region31: #{forward.1} parent=11 // pred_region
          _
        $region32: #{forward.1} parent=11 // pred_fallthru
          _
        // Predicated region
        $region33: #{forward.1} parent=11 // pred_check
          %p1231 = pneg %p293
        $region34: #{forward.1} parent=11 // pred_check_branch
          %1233 = sbr.rel (%p1231) target = $region36
        $region35: #{forward.1} parent=11 // pred_region
          _
        $region36: #{forward.1} parent=11 // pred_fallthru
          _
        // Predicated region
        $region37: #{forward.1} parent=11 // pred_check
          %p1234 = pneg %p314
        $region38: #{forward.1} parent=11 // pred_check_branch
          %1236 = sbr.rel (%p1234) target = $region40
        $region39: #{forward.1} parent=11 // pred_region
          _
        $region40: #{forward.1} parent=11 // pred_fallthru
          _
        // Predicated region
        $region41: #{forward.1} parent=11 // pred_check
          %p1237 = pneg %p335
        $region42: #{forward.1} parent=11 // pred_check_branch
          %1239 = sbr.rel (%p1237) target = $region44
        $region43: #{forward.1} parent=11 // pred_region
          _
        $region44: #{forward.1} parent=11 // pred_fallthru
          _
        // Predicated region
        $region45: #{forward.1} parent=11 // pred_check
          %p1240 = pneg %p356
        $region46: #{forward.1} parent=11 // pred_check_branch
          %1242 = sbr.rel (%p1240) target = $region48
        $region47: #{forward.1} parent=11 // pred_region
          _
        $region48: #{forward.1} parent=11 // pred_fallthru
          _
        // Predicated region
        $region49: #{forward.1} parent=11 // pred_check
          %p1243 = pneg %p377
        $region50: #{forward.1} parent=11 // pred_check_branch
          %1245 = sbr.rel (%p1243) target = $region52
        $region51: #{forward.1} parent=11 // pred_region
          _
        $region52: #{forward.1} parent=11 // pred_fallthru
          _
        // Predicated region
        $region53: #{forward.1} parent=11 // pred_check
          %p1246 = pneg %p398
        $region54: #{forward.1} parent=11 // pred_check_branch
          %1248 = sbr.rel (%p1246) target = $region56
        $region55: #{forward.1} parent=11 // pred_region
          _
        $region56: #{forward.1} parent=11 // pred_fallthru
          _
        // Predicated region
        $region57: #{forward.1} parent=11 // pred_check
          %p1249 = pneg %p419
        $region58: #{forward.1} parent=11 // pred_check_branch
          %1251 = sbr.rel (%p1249) target = $region60
        $region59: #{forward.1} parent=11 // pred_region
          _
        $region60: #{forward.1} parent=11 // pred_fallthru
          _
        // Predicated region
        $region61: #{forward.1} parent=11 // pred_check
          %p1252 = pneg %p440
        $region62: #{forward.1} parent=11 // pred_check_branch
          %1254 = sbr.rel (%p1252) target = $region64
        $region63: #{forward.1} parent=11 // pred_region
          _
        $region64: #{forward.1} parent=11 // pred_fallthru
          _
        // Predicated region
        $region65: #{forward.1} parent=11 // pred_check
          %p1255 = pneg %p461
        $region66: #{forward.1} parent=11 // pred_check_branch
          %1257 = sbr.rel (%p1255) target = $region68
        $region67: #{forward.1} parent=11 // pred_region
          _
        $region68: #{forward.1} parent=11 // pred_fallthru
          _
        // Predicated region
        $region69: #{forward.1} parent=11 // pred_check
          %p1258 = pneg %p482
        $region70: #{forward.1} parent=11 // pred_check_branch
          %1260 = sbr.rel (%p1258) target = $region72
        $region71: #{forward.1} parent=11 // pred_region
          _
        $region72: #{forward.1} parent=11 // pred_fallthru
          _
        // Predicated region
        $region73: #{forward.1} parent=11 // pred_check
          %p1261 = pneg %p503
        $region74: #{forward.1} parent=11 // pred_check_branch
          %1263 = sbr.rel (%p1261) target = $region76
        $region75: #{forward.1} parent=11 // pred_region
          _
        $region76: #{forward.1} parent=11 // pred_fallthru
          _
        // Predicated region
        $region77: #{forward.1} parent=11 // pred_check
          %p1264 = pneg %p524
        $region78: #{forward.1} parent=11 // pred_check_branch
          %1266 = sbr.rel (%p1264) target = $region80
        $region79: #{forward.1} parent=11 // pred_region
          _
        $region80: #{forward.1} parent=11 // pred_fallthru
          _
        // Predicated region
        $region81: #{forward.1} parent=11 // pred_check
          %p1267 = pneg %p545
        $region82: #{forward.1} parent=11 // pred_check_branch
          %1269 = sbr.rel (%p1267) target = $region84
        $region83: #{forward.1} parent=11 // pred_region
          _
        $region84: #{forward.1} parent=11 // pred_fallthru
          _
        // Predicated region
        $region85: #{forward.1} parent=11 // pred_check
          %p1270 = pneg %p566
        $region86: #{forward.1} parent=11 // pred_check_branch
          %1272 = sbr.rel (%p1270) target = $region88
        $region87: #{forward.1} parent=11 // pred_region
          _
        $region88: #{forward.1} parent=11 // pred_fallthru
          _
        // Predicated region
        $region89: #{forward.1} parent=11 // pred_check
          %p1273 = pneg %p587
        $region90: #{forward.1} parent=11 // pred_check_branch
          %1275 = sbr.rel (%p1273) target = $region92
        $region91: #{forward.1} parent=11 // pred_region
          _
        $region92: #{forward.1} parent=11 // pred_fallthru
          _
        // Predicated region
        $region93: #{forward.1} parent=11 // pred_check
          %p1276 = pneg %p608
        $region94: #{forward.1} parent=11 // pred_check_branch
          %1278 = sbr.rel (%p1276) target = $region96
        $region95: #{forward.1} parent=11 // pred_region
          _
        $region96: #{forward.1} parent=11 // pred_fallthru
          _
        // Predicated region
        $region97: #{forward.1} parent=11 // pred_check
          %p1279 = pneg %p629
        $region98: #{forward.1} parent=11 // pred_check_branch
          %1281 = sbr.rel (%p1279) target = $region100
        $region99: #{forward.1} parent=11 // pred_region
          _
        $region100: #{forward.1} parent=11 // pred_fallthru
          _
        // Predicated region
        $region101: #{forward.1} parent=11 // pred_check
          %p1282 = pneg %p650
        $region102: #{forward.1} parent=11 // pred_check_branch
          %1284 = sbr.rel (%p1282) target = $region104
        $region103: #{forward.1} parent=11 // pred_region
          _
        $region104: #{forward.1} parent=11 // pred_fallthru
          _
        // Predicated region
        $region105: #{forward.1} parent=11 // pred_check
          %p1285 = pneg %p671
        $region106: #{forward.1} parent=11 // pred_check_branch
          %1287 = sbr.rel (%p1285) target = $region108
        $region107: #{forward.1} parent=11 // pred_region
          _
        $region108: #{forward.1} parent=11 // pred_fallthru
          _
        // Predicated region
        $region109: #{forward.1} parent=11 // pred_check
          %p1288 = pneg %p692
        $region110: #{forward.1} parent=11 // pred_check_branch
          %1290 = sbr.rel (%p1288) target = $region112
        $region111: #{forward.1} parent=11 // pred_region
          _
        $region112: #{forward.1} parent=11 // pred_fallthru
          _
        // Predicated region
        $region113: #{forward.1} parent=11 // pred_check
          %p1291 = pneg %p713
        $region114: #{forward.1} parent=11 // pred_check_branch
          %1293 = sbr.rel (%p1291) target = $region116
        $region115: #{forward.1} parent=11 // pred_region
          _
        $region116: #{forward.1} parent=11 // pred_fallthru
          _
        // Predicated region
        $region117: #{forward.1} parent=11 // pred_check
          %p1294 = pneg %p734
        $region118: #{forward.1} parent=11 // pred_check_branch
          %1296 = sbr.rel (%p1294) target = $region120
        $region119: #{forward.1} parent=11 // pred_region
          _
        $region120: #{forward.1} parent=11 // pred_fallthru
          _
        // Predicated region
        $region121: #{forward.1} parent=11 // pred_check
          %p1297 = pneg %p755
        $region122: #{forward.1} parent=11 // pred_check_branch
          %1299 = sbr.rel (%p1297) target = $region124
        $region123: #{forward.1} parent=11 // pred_region
          _
        $region124: #{forward.1} parent=11 // pred_fallthru
          _
        // Predicated region
        $region125: #{forward.1} parent=11 // pred_check
          %p1300 = pneg %p776
        $region126: #{forward.1} parent=11 // pred_check_branch
          %1302 = sbr.rel (%p1300) target = $region128
        $region127: #{forward.1} parent=11 // pred_region
          _
        $region128: #{forward.1} parent=11 // pred_fallthru
          _
        // Predicated region
        $region129: #{forward.1} parent=11 // pred_check
          %p1303 = pneg %p797
        $region130: #{forward.1} parent=11 // pred_check_branch
          %1305 = sbr.rel (%p1303) target = $region132
        $region131: #{forward.1} parent=11 // pred_region
          _
        $region132: #{forward.1} parent=11 // pred_fallthru
          _
        // Predicated region
        $region133: #{forward.1} parent=11 // pred_check
          %p1306 = pneg %p818
        $region134: #{forward.1} parent=11 // pred_check_branch
          %1308 = sbr.rel (%p1306) target = $region136
        $region135: #{forward.1} parent=11 // pred_region
          _
        $region136: #{forward.1} parent=11 // pred_fallthru
          _
        // Predicated region
        $region137: #{forward.1} parent=11 // pred_check
          %p1309 = pneg %p839
        $region138: #{forward.1} parent=11 // pred_check_branch
          %1311 = sbr.rel (%p1309) target = $region140
        $region139: #{forward.1} parent=11 // pred_region
          _
        $region140: #{forward.1} parent=11 // pred_fallthru
          _
        // Predicated region
        $region141: #{forward.1} parent=11 // pred_check
          %p1312 = pneg %p860
        $region142: #{forward.1} parent=11 // pred_check_branch
          %1314 = sbr.rel (%p1312) target = $region144
        $region143: #{forward.1} parent=11 // pred_region
          _
        $region144: #{forward.1} parent=11 // pred_fallthru
          _
        // Predicated region
        $region145: #{forward.1} parent=11 // pred_check
          %p1315 = pneg %p881
        $region146: #{forward.1} parent=11 // pred_check_branch
          %1317 = sbr.rel (%p1315) target = $region148
        $region147: #{forward.1} parent=11 // pred_region
          _
        $region148: #{forward.1} parent=11 // pred_fallthru
          _
        // Predicated region
        $region149: #{forward.1} parent=11 // pred_check
          %p1318 = pneg %p902
        $region150: #{forward.1} parent=11 // pred_check_branch
          %1320 = sbr.rel (%p1318) target = $region152
        $region151: #{forward.1} parent=11 // pred_region
          _
        $region152: #{forward.1} parent=11 // pred_fallthru
          _
        // Predicated region
        $region153: #{forward.1} parent=11 // pred_check
          %p1321 = pneg %p923
        $region154: #{forward.1} parent=11 // pred_check_branch
          %1323 = sbr.rel (%p1321) target = $region156
        $region155: #{forward.1} parent=11 // pred_region
          _
        $region156: #{forward.1} parent=11 // pred_fallthru
          _
        // Predicated region
        $region157: #{forward.1} parent=11 // pred_check
          %p1324 = pneg %p944
        $region158: #{forward.1} parent=11 // pred_check_branch
          %1326 = sbr.rel (%p1324) target = $region160
        $region159: #{forward.1} parent=11 // pred_region
          _
        $region160: #{forward.1} parent=11 // pred_fallthru
          _
        // Predicated region
        $region161: #{forward.1} parent=11 // pred_check
          %p1327 = pneg %p965
        $region162: #{forward.1} parent=11 // pred_check_branch
          %1329 = sbr.rel (%p1327) target = $region164
        $region163: #{forward.1} parent=11 // pred_region
          _
        $region164: #{forward.1} parent=11 // pred_fallthru
          _
        // Predicated region
        $region165: #{forward.1} parent=11 // pred_check
          %p1330 = pneg %p986
        $region166: #{forward.1} parent=11 // pred_check_branch
          %1332 = sbr.rel (%p1330) target = $region168
        $region167: #{forward.1} parent=11 // pred_region
          _
        $region168: #{forward.1} parent=11 // pred_fallthru
          _
        // Predicated region
        $region169: #{forward.1} parent=11 // pred_check
          %p1333 = pneg %p1007
        $region170: #{forward.1} parent=11 // pred_check_branch
          %1335 = sbr.rel (%p1333) target = $region172
        $region171: #{forward.1} parent=11 // pred_region
          _
        $region172: #{forward.1} parent=11 // pred_fallthru
          _
        // Predicated region
        $region173: #{forward.1} parent=11 // pred_check
          %p1336 = pneg %p1028
        $region174: #{forward.1} parent=11 // pred_check_branch
          %1338 = sbr.rel (%p1336) target = $region176
        $region175: #{forward.1} parent=11 // pred_region
          _
        $region176: #{forward.1} parent=11 // pred_fallthru
          _
        // Predicated region
        $region177: #{forward.1} parent=11 // pred_check
          %p1339 = pneg %p1049
        $region178: #{forward.1} parent=11 // pred_check_branch
          %1341 = sbr.rel (%p1339) target = $region180
        $region179: #{forward.1} parent=11 // pred_region
          _
        $region180: #{forward.1} parent=11 // pred_fallthru
          _
        // Predicated region
        $region181: #{forward.1} parent=11 // pred_check
          %p1342 = pneg %p1070
        $region182: #{forward.1} parent=11 // pred_check_branch
          %1344 = sbr.rel (%p1342) target = $region184
        $region183: #{forward.1} parent=11 // pred_region
          _
        $region184: #{forward.1} parent=11 // pred_fallthru
          _
        // Predicated region
        $region185: #{forward.1} parent=11 // pred_check
          %p1345 = pneg %p1091
        $region186: #{forward.1} parent=11 // pred_check_branch
          %1347 = sbr.rel (%p1345) target = $region188
        $region187: #{forward.1} parent=11 // pred_region
          _
        $region188: #{forward.1} parent=11 // pred_fallthru
          _
        // Predicated region
        $region189: #{forward.1} parent=11 // pred_check
          %p1348 = pneg %p1112
        $region190: #{forward.1} parent=11 // pred_check_branch
          %1350 = sbr.rel (%p1348) target = $region192
        $region191: #{forward.1} parent=11 // pred_region
          _
        $region192: #{forward.1} parent=11 // pred_fallthru
          _
        // Predicated region
        $region193: #{forward.1} parent=11 // pred_check
          %p1351 = pneg %p1133
        $region194: #{forward.1} parent=11 // pred_check_branch
          %1353 = sbr.rel (%p1351) target = $region196
        $region195: #{forward.1} parent=11 // pred_region
          _
        $region196: #{forward.1} parent=11 // pred_fallthru
          _
        // Predicated region
        $region197: #{forward.1} parent=11 // pred_check
          %p1354 = pneg %p1154
        $region198: #{forward.1} parent=11 // pred_check_branch
          %1356 = sbr.rel (%p1354) target = $region200
        $region199: #{forward.1} parent=11 // pred_region
          _
        $region200: #{forward.1} parent=11 // pred_fallthru
          _
        // Predicated region
        $region201: #{forward.1} parent=11 // pred_check
          %p1357 = pneg %p1175
        $region202: #{forward.1} parent=11 // pred_check_branch
          %1359 = sbr.rel (%p1357) target = $region204
        $region203: #{forward.1} parent=11 // pred_region
          _
        $region204: #{forward.1} parent=11 // pred_fallthru
          _
      $region12: #{forward.1} parent=5 // pred_fallthru
        _
      %p1360 = scmp.lt.s32.totalorder %s115, 2
      // Predicated region
      $region205: #{forward.1} parent=5 // pred_check
        %p1361 = pneg %p1360
      $region206: #{forward.1} parent=5 // pred_check_branch
        %1363 = sbr.rel (%p1361) target = $region208
      $region207: #{forward.1} parent=5 // pred_region
        // Predicated region
        $region209: #{forward.1} parent=207 // pred_check
          %p1364 = pneg %p135
        $region210: #{forward.1} parent=207 // pred_check_branch
          %1366 = sbr.rel (%p1364) target = $region212
        $region211: #{forward.1} parent=207 // pred_region
          %s1367 = sand.u32 %s125, 1
          %s1368 = scalar_lea.sflag [#allocation4], %s1367
          %s1369 = sand.u32 %s125, 1
          %s1370 = scalar_lea.vmem [#allocation3], %s1369
          %s1372 = ssub.s32 16, 16
          %1373 = vsyncadd %s1368, %s1372
          %s1374 = smul.addr %s115, 16
          %s1375 = scalar_lea.hbm %s1, %s1374
          %s1377 = sshll.u32 %s1370, 4
          %s1378 = int_to_ptr.vmem [resolvable:$true] %s1377
          %1380 = dma.hbm_to_vmem [thread:$0]  %s1375, 16, %s1378, %s1368
        $region212: #{forward.1} parent=207 // pred_fallthru
          _
        // Predicated region
        $region213: #{forward.1} parent=207 // pred_check
          %p1381 = pneg %p161
        $region214: #{forward.1} parent=207 // pred_check_branch
          %1383 = sbr.rel (%p1381) target = $region216
        $region215: #{forward.1} parent=207 // pred_region
          %p1384 = scmp.lt.s32.totalorder %s115, 1
          %s1385 = scalar_select %p1384, %s115, 1
          %s1386 = smul.addr %s1385, 4
          %s1387 = scalar_lea.vmem %s3, %s1386
        $region216: #{forward.1} parent=207 // pred_fallthru
          _
      $region208: #{forward.1} parent=5 // pred_fallthru
        _
      %p1388 = scmp.le.s32.totalorder 1, %s115
      %p1389 = scmp.lt.s32.totalorder %s115, 3
      %p1390 = pnand %p1388, %p1389
      %p1391 = pneg %p1390
      // Predicated region
      $region217: #{forward.1} parent=5 // pred_check
        _
      $region218: #{forward.1} parent=5 // pred_check_branch
        %1393 = sbr.rel (%p1390) target = $region220
      $region219: #{forward.1} parent=5 // pred_region
        %s1394 = ssub.s32 %s115, 1
        %s1395 = sand.u32 %s128, 1
        %s1396 = scalar_lea.sflag [#allocation4], %s1395
        %s1397 = sand.u32 %s128, 1
        %s1398 = scalar_lea.vmem [#allocation3], %s1397
        // Predicated region
        $region221: #{forward.1} parent=219 // pred_check
          %p1399 = pneg %p141
        $region222: #{forward.1} parent=219 // pred_check_branch
          %1401 = sbr.rel (%p1399) target = $region224
        $region223: #{forward.1} parent=219 // pred_region
          %1402 = dma.done %s1396, 16
        $region224: #{forward.1} parent=219 // pred_fallthru
          _
        %s1403 = sand.u32 %s128, 1
        %s1404 = scalar_lea.sflag [#allocation4], %s1403
        %s1405 = sand.u32 %s128, 1
        %s1406 = scalar_lea.vmem [#allocation3], %s1405
        %p1407 = pneg %p141
        %p1408 = pneg %p138
        %p1409 = scmp.lt.s32.totalorder %s120, 1
        %s1410 = scalar_select %p1409, %s120, 1
        %s1411 = smul.addr %s1410, 4
        %s1412 = scalar_lea.vmem %s3, %s1411
        %p1413 = pneg %p167
        %p1414 = pneg %p164
        %p1415 = pneg %p188
        %p1416 = pneg %p185
        %p1417 = pneg %p209
        %p1418 = pneg %p206
        %p1419 = pneg %p230
        %p1420 = pneg %p227
        %p1421 = pneg %p251
        %p1422 = pneg %p248
        %p1423 = pneg %p272
        %p1424 = pneg %p269
        %p1425 = pneg %p293
        %p1426 = pneg %p290
        %p1427 = pneg %p314
        %p1428 = pneg %p311
        %p1429 = pneg %p335
        %p1430 = pneg %p332
        %p1431 = pneg %p356
        %p1432 = pneg %p353
        %p1433 = pneg %p377
        %p1434 = pneg %p374
        %p1435 = pneg %p398
        %p1436 = pneg %p395
        %p1437 = pneg %p419
        %p1438 = pneg %p416
        %p1439 = pneg %p440
        %p1440 = pneg %p437
        %p1441 = pneg %p461
        %p1442 = pneg %p458
        %p1443 = pneg %p482
        %p1444 = pneg %p479
        %p1445 = pneg %p503
        %p1446 = pneg %p500
        %p1447 = pneg %p524
        %p1448 = pneg %p521
        %p1449 = pneg %p545
        %p1450 = pneg %p542
        %p1451 = pneg %p566
        %p1452 = pneg %p563
        %p1453 = pneg %p587
        %p1454 = pneg %p584
        %p1455 = pneg %p608
        %p1456 = pneg %p605
        %p1457 = pneg %p629
        %p1458 = pneg %p626
        %p1459 = pneg %p650
        %p1460 = pneg %p647
        %p1461 = pneg %p671
        %p1462 = pneg %p668
        %p1463 = pneg %p692
        %p1464 = pneg %p689
        %p1465 = pneg %p713
        %p1466 = pneg %p710
        %p1467 = pneg %p734
        %p1468 = pneg %p731
        %p1469 = pneg %p755
        %p1470 = pneg %p752
        %p1471 = pneg %p776
        %p1472 = pneg %p773
        %p1473 = pneg %p797
        %p1474 = pneg %p794
        %p1475 = pneg %p818
        %p1476 = pneg %p815
        %p1477 = pneg %p839
        %p1478 = pneg %p836
        %p1479 = pneg %p860
        %p1480 = pneg %p857
        %p1481 = pneg %p881
        %p1482 = pneg %p878
        %p1483 = pneg %p902
        %p1484 = pneg %p899
        %p1485 = pneg %p923
        %p1486 = pneg %p920
        %p1487 = pneg %p944
        %p1488 = pneg %p941
        %p1489 = pneg %p965
        %p1490 = pneg %p962
        %p1491 = pneg %p986
        %p1492 = pneg %p983
        %p1493 = pneg %p1007
        %p1494 = pneg %p1004
        %p1495 = pneg %p1028
        %p1496 = pneg %p1025
        %p1497 = pneg %p1049
        %p1498 = pneg %p1046
        %p1499 = pneg %p1070
        %p1500 = pneg %p1067
        %p1501 = pneg %p1091
        %p1502 = pneg %p1088
        %p1503 = pneg %p1112
        %p1504 = pneg %p1109
        %p1505 = pneg %p1133
        %p1506 = pneg %p1130
        %p1507 = pneg %p1154
        %p1508 = pneg %p1151
        %p1509 = pneg %p1175
        %p1510 = pneg %p1172
        %p1511 = pneg %p1201
        %p1512 = pneg %p1198
        %s1513 = sand.u32 %s1188, 1
        %s1514 = scalar_lea.sflag [#allocation5], %s1513
        %s1515 = sand.u32 %s1188, 1
        %s1516 = scalar_lea.vmem [#allocation6], %s1515
        %p1517 = scmp.lt.s32.totalorder %s120, 1
        %s1518 = scalar_select %p1517, %s120, 1
        %s1519 = smul.addr %s1518, 4
        %s1520 = scalar_lea.vmem %s3, %s1519
        %v1521 = vlaneseq
        %v1522 = vshrl.u32 %v1521, 7
        %v1523 = vadd.s32 %v1522, 8
        %v1524 = vadd.s32 %v1522, 16
        %v1525 = vadd.s32 %v1522, 24
        %v1526 = vadd.s32 %v1522, 32
        %v1527 = vadd.s32 %v1522, 40
        %v1528 = vadd.s32 %v1522, 48
        %v1529 = vadd.s32 %v1522, 56
        %v1530 = vadd.s32 %v1522, 64
        %v1531 = vadd.s32 %v1522, 72
        %v1532 = vadd.s32 %v1522, 80
        %v1533 = vadd.s32 %v1522, 88
        %v1534 = vadd.s32 %v1522, 96
        %v1535 = vlaneseq
        %v1536 = vand.u32 %v1535, 127
        %vm1537 = vcmp.eq.s32.totalorder %v1522, %v1536
        %vm1538 = vcmp.eq.s32.totalorder %v1523, %v1536
        %vm1539 = vcmp.eq.s32.totalorder %v1524, %v1536
        %vm1540 = vcmp.eq.s32.totalorder %v1525, %v1536
        %vm1541 = vcmp.eq.s32.totalorder %v1526, %v1536
        %vm1542 = vcmp.eq.s32.totalorder %v1527, %v1536
        %vm1543 = vcmp.eq.s32.totalorder %v1528, %v1536
        %vm1544 = vcmp.eq.s32.totalorder %v1529, %v1536
        %vm1545 = vcmp.eq.s32.totalorder %v1530, %v1536
        %vm1546 = vcmp.eq.s32.totalorder %v1531, %v1536
        %vm1547 = vcmp.eq.s32.totalorder %v1532, %v1536
        %vm1548 = vcmp.eq.s32.totalorder %v1533, %v1536
        %vm1549 = vcmp.eq.s32.totalorder %v1534, %v1536
        %v1550 = vsel %vm1537, 1, 0
        %v1551 = vsel %vm1538, 1, 0
        %v1552 = vsel %vm1539, 1, 0
        %v1553 = vsel %vm1540, 1, 0
        %v1554 = vsel %vm1541, 1, 0
        %v1555 = vsel %vm1542, 1, 0
        %v1556 = vsel %vm1543, 1, 0
        %v1557 = vsel %vm1544, 1, 0
        %v1558 = vsel %vm1545, 1, 0
        %v1559 = vsel %vm1546, 1, 0
        %v1560 = vsel %vm1547, 1, 0
        %v1561 = vsel %vm1548, 1, 0
        %v1562 = vsel %vm1549, 1, 0
        %v1563 = vcvt.s32.f32 %v1550
        %v1564 = vcvt.s32.f32 %v1551
        %v1565 = vcvt.s32.f32 %v1552
        %v1566 = vcvt.s32.f32 %v1553
        %v1567 = vcvt.s32.f32 %v1554
        %v1568 = vcvt.s32.f32 %v1555
        %v1569 = vcvt.s32.f32 %v1556
        %v1570 = vcvt.s32.f32 %v1557
        %v1571 = vcvt.s32.f32 %v1558
        %v1572 = vcvt.s32.f32 %v1559
        %v1573 = vcvt.s32.f32 %v1560
        %v1574 = vcvt.s32.f32 %v1561
        %v1575 = vcvt.s32.f32 %v1562
        %v1576 = vld [vmem:[%s1398] sm:$0x1]
        %vm1577 = vcmask 818176
        %v1579 = vsel %vm1577, %v1576, 0
        %vm1581 = vcmask 1043456
        %v1583 = vsel %vm1581, %v1575, 0
        %1585 = vmatprep.subr.mxu0 0.0
        %1586 = vmatpush1.msra.mxu0 %v1563
        %1587 = vmatprep.subr.mxu0 0.0
        %1588 = vmatpush1.msra.mxu0 %v1564
        %1589 = vmatprep.subr.mxu0 0.0
        %1590 = vmatpush1.msra.mxu0 %v1565
        %1591 = vmatprep.subr.mxu0 0.0
        %1592 = vmatpush1.msra.mxu0 %v1566
        %1593 = vmatprep.subr.mxu0 0.0
        %1594 = vmatpush1.msra.mxu0 %v1567
        %1595 = vmatprep.subr.mxu0 0.0
        %1596 = vmatpush1.msra.mxu0 %v1568
        %1597 = vmatprep.subr.mxu0 0.0
        %1598 = vmatpush1.msra.mxu0 %v1569
        %1599 = vmatprep.subr.mxu0 0.0
        %1600 = vmatpush1.msra.mxu0 %v1570
        %1601 = vmatprep.subr.mxu0 0.0
        %1602 = vmatpush1.msra.mxu0 %v1571
        %1603 = vmatprep.subr.mxu0 0.0
        %1604 = vmatpush1.msra.mxu0 %v1572
        %1605 = vmatprep.subr.mxu0 0.0
        %1606 = vmatpush1.msra.mxu0 %v1573
        %1607 = vmatprep.subr.mxu0 0.0
        %1608 = vmatpush1.msra.mxu0 %v1574
        %1609 = vmatprep.subr.mxu0 0.0
        %1610 = vmatpush1.msra.mxu0 %v1583
        %1611 = vmatprep.subr.mxu0 0.0
        %1612 = vmatpush1.msra.mxu0 0.0
        %1613 = vmatprep.subr.mxu0 0.0
        %1614 = vmatpush1.msra.mxu0 0.0
        %1615 = vmatprep.subr.mxu0 0.0
        %1616 = vmatpush1.msra.mxu0 0.0
        %1617 = vmatprep.subr.mxu0 0.0
        %1618 = vmatpush1.msra.mxu0 0.0
        %1619 = vmatprep.subr.mxu0 0.0
        %1620 = vmatpush1.msra.mxu0 0.0
        %1621 = vmatprep.subr.mxu0 0.0
        %1622 = vmatpush1.msra.mxu0 0.0
        %1623 = vmatprep.subr.mxu0 0.0
        %1624 = vmatpush1.msra.mxu0 0.0
        %1625 = vmatprep.subr.mxu0 0.0
        %1626 = vmatpush1.msra.mxu0 0.0
        %1627 = vmatprep.subr.mxu0 0.0
        %1628 = vmatpush1.msra.mxu0 0.0
        %1629 = vmatprep.subr.mxu0 0.0
        %1630 = vmatpush1.msra.mxu0 0.0
        %1631 = vmatprep.subr.mxu0 0.0
        %1632 = vmatpush1.msra.mxu0 0.0
        %1633 = vmatprep.subr.mxu0 0.0
        %1634 = vmatpush1.msra.mxu0 0.0
        %1635 = vmatprep.subr.mxu0 0.0
        %1636 = vmatpush1.msra.mxu0 0.0
        %1637 = vmatprep.subr.mxu0 0.0
        %1638 = vmatpush1.msra.mxu0 0.0
        %1639 = vmatprep.subr.mxu0 0.0
        %1640 = vmatpush1.msra.mxu0 0.0
        %1641 = vmatprep.subr.mxu0 0.0
        %1642 = vmatpush1.msra.mxu0 0.0
        %1643 = vmatprep.subr.mxu0 0.0
        %1644 = vmatpush1.msra.mxu0 0.0
        %1645 = vmatprep.subr.mxu0 0.0
        %1646 = vmatpush1.msra.mxu0 0.0
        %1647 = vmatprep.subr.mxu0 0.0
        %1648 = vmatpush1.msra.mxu0 0.0
        %1649 = vmatprep.mubr.f32.mxu0 0.0
        %1650 = vmatmul.mubr.f32.gmra.mrb[0].mxu0 %v1579
        %v1651 = vpop.f32.mrb[0].mxu0
        %v1652 = vadd.f32 0.0, %v1651
        %v1653 = vpop.f32.mrb[0].mxu0
        %1654 = vdwg.mxu0
        %v1655 = vld [vmem:[%s5] sm:$0xf]
        %v1656 = vld [vmem:[%s7] sm:$0xf]
        %v1657 = vld [vmem:[%s9] sm:$0xf]
        %v1658 = vld [vmem:[%s11] sm:$0xf]
        %v1659 = vld [vmem:[%s13] sm:$0xf]
        %v1660 = vld [vmem:[%s15] sm:$0xf]
        %vm1661 = vcmask 909312
        %v1662 = vsel %vm1661, %v1652, 0.0
        %1663 = vadd.xlane.f32.xlu0 %v1662
        %v1664 = vpop.xlane.xlu0 %1663
        %v1665 = vrcp.pop 112.0
        %v1666 = vmul.f32 %v1664, %v1665
        %v1667 = vsub.f32 %v1652, %v1666
        %v1668 = vmul.f32 %v1667, %v1667
        %v1669 = vsel %vm1661, %v1668, 0.0
        %1670 = vadd.xlane.f32.xlu0 %v1669
        %v1671 = vpop.xlane.xlu0 %1670
        %v1672 = vmul.f32 %v1671, %v1665
        %v1673 = vadd.f32 %v1672, 1e-05
        %v1674 = vrsqrt.pop %v1673
        %v1675 = vmul.f32 %v1667, %v1674
        %v1676 = vadd.s32 %v1522, 104
        %v1677 = vsub.s32 %v1536, 1
        %vm1678 = vcmp.eq.s32.totalorder %v1522, %v1677
        %vm1679 = vcmp.eq.s32.totalorder %v1523, %v1677
        %vm1680 = vcmp.eq.s32.totalorder %v1524, %v1677
        %vm1681 = vcmp.eq.s32.totalorder %v1525, %v1677
        %vm1682 = vcmp.eq.s32.totalorder %v1526, %v1677
        %vm1683 = vcmp.eq.s32.totalorder %v1527, %v1677
        %vm1684 = vcmp.eq.s32.totalorder %v1528, %v1677
        %vm1685 = vcmp.eq.s32.totalorder %v1529, %v1677
        %vm1686 = vcmp.eq.s32.totalorder %v1530, %v1677
        %vm1687 = vcmp.eq.s32.totalorder %v1531, %v1677
        %vm1688 = vcmp.eq.s32.totalorder %v1532, %v1677
        %vm1689 = vcmp.eq.s32.totalorder %v1533, %v1677
        %vm1690 = vcmp.eq.s32.totalorder %v1534, %v1677
        %vm1691 = vcmp.eq.s32.totalorder %v1676, %v1677
        %v1692 = vsel %vm1678, 1, 0
        %v1693 = vsel %vm1679, 1, 0
        %v1694 = vsel %vm1680, 1, 0
        %v1695 = vsel %vm1681, 1, 0
        %v1696 = vsel %vm1682, 1, 0
        %v1697 = vsel %vm1683, 1, 0
        %v1698 = vsel %vm1684, 1, 0
        %v1699 = vsel %vm1685, 1, 0
        %v1700 = vsel %vm1686, 1, 0
        %v1701 = vsel %vm1687, 1, 0
        %v1702 = vsel %vm1688, 1, 0
        %v1703 = vsel %vm1689, 1, 0
        %v1704 = vsel %vm1690, 1, 0
        %v1705 = vsel %vm1691, 1, 0
        %v1706 = vcvt.s32.f32 %v1692
        %v1707 = vcvt.s32.f32 %v1693
        %v1708 = vcvt.s32.f32 %v1694
        %v1709 = vcvt.s32.f32 %v1695
        %v1710 = vcvt.s32.f32 %v1696
        %v1711 = vcvt.s32.f32 %v1697
        %v1712 = vcvt.s32.f32 %v1698
        %v1713 = vcvt.s32.f32 %v1699
        %v1714 = vcvt.s32.f32 %v1700
        %v1715 = vcvt.s32.f32 %v1701
        %v1716 = vcvt.s32.f32 %v1702
        %v1717 = vcvt.s32.f32 %v1703
        %v1718 = vcvt.s32.f32 %v1704
        %v1719 = vcvt.s32.f32 %v1705
        %vm1720 = vcmp.eq.s32.totalorder %v1676, %v1536
        %v1721 = vsel %vm1720, 1, 0
        %v1722 = vcvt.s32.f32 %v1721
        %vm1723 = vcmask 916480
        %v1725 = vsel %vm1723, %v1675, 0
        %1727 = vmatprep.subr.mxu0 0.0
        %1728 = vmatpush1.msra.mxu0 %v1706
        %1729 = vmatprep.subr.mxu0 0.0
        %1730 = vmatpush1.msra.mxu0 %v1707
        %1731 = vmatprep.subr.mxu0 0.0
        %1732 = vmatpush1.msra.mxu0 %v1708
        %1733 = vmatprep.subr.mxu0 0.0
        %1734 = vmatpush1.msra.mxu0 %v1709
        %1735 = vmatprep.subr.mxu0 0.0
        %1736 = vmatpush1.msra.mxu0 %v1710
        %1737 = vmatprep.subr.mxu0 0.0
        %1738 = vmatpush1.msra.mxu0 %v1711
        %1739 = vmatprep.subr.mxu0 0.0
        %1740 = vmatpush1.msra.mxu0 %v1712
        %1741 = vmatprep.subr.mxu0 0.0
        %1742 = vmatpush1.msra.mxu0 %v1713
        %1743 = vmatprep.subr.mxu0 0.0
        %1744 = vmatpush1.msra.mxu0 %v1714
        %1745 = vmatprep.subr.mxu0 0.0
        %1746 = vmatpush1.msra.mxu0 %v1715
        %1747 = vmatprep.subr.mxu0 0.0
        %1748 = vmatpush1.msra.mxu0 %v1716
        %1749 = vmatprep.subr.mxu0 0.0
        %1750 = vmatpush1.msra.mxu0 %v1717
        %1751 = vmatprep.subr.mxu0 0.0
        %1752 = vmatpush1.msra.mxu0 %v1718
        %1753 = vmatprep.subr.mxu0 0.0
        %1754 = vmatpush1.msra.mxu0 %v1719
        %1755 = vmatprep.subr.mxu0 0.0
        %1756 = vmatpush1.msra.mxu0 0.0
        %1757 = vmatprep.subr.mxu0 0.0
        %1758 = vmatpush1.msra.mxu0 0.0
        %1759 = vmatprep.subr.mxu0 0.0
        %1760 = vmatpush1.msra.mxu0 0.0
        %1761 = vmatprep.subr.mxu0 0.0
        %1762 = vmatpush1.msra.mxu0 0.0
        %1763 = vmatprep.subr.mxu0 0.0
        %1764 = vmatpush1.msra.mxu0 0.0
        %1765 = vmatprep.subr.mxu0 0.0
        %1766 = vmatpush1.msra.mxu0 0.0
        %1767 = vmatprep.subr.mxu0 0.0
        %1768 = vmatpush1.msra.mxu0 0.0
        %1769 = vmatprep.subr.mxu0 0.0
        %1770 = vmatpush1.msra.mxu0 0.0
        %1771 = vmatprep.subr.mxu0 0.0
        %1772 = vmatpush1.msra.mxu0 0.0
        %1773 = vmatprep.subr.mxu0 0.0
        %1774 = vmatpush1.msra.mxu0 0.0
        %1775 = vmatprep.subr.mxu0 0.0
        %1776 = vmatpush1.msra.mxu0 0.0
        %1777 = vmatprep.subr.mxu0 0.0
        %1778 = vmatpush1.msra.mxu0 0.0
        %1779 = vmatprep.subr.mxu0 0.0
        %1780 = vmatpush1.msra.mxu0 0.0
        %1781 = vmatprep.subr.mxu0 0.0
        %1782 = vmatpush1.msra.mxu0 0.0
        %1783 = vmatprep.subr.mxu0 0.0
        %1784 = vmatpush1.msra.mxu0 0.0
        %1785 = vmatprep.subr.mxu0 0.0
        %1786 = vmatpush1.msra.mxu0 0.0
        %1787 = vmatprep.subr.mxu0 0.0
        %1788 = vmatpush1.msra.mxu0 0.0
        %1789 = vmatprep.subr.mxu0 0.0
        %1790 = vmatpush1.msra.mxu0 0.0
        %1791 = vmatprep.mubr.f32.mxu0 0.0
        %1792 = vmatmul.mubr.f32.gmra.mrb[0].mxu0 %v1725
        %v1793 = vpop.f32.mrb[0].mxu0
        %v1794 = vadd.f32 0.0, %v1793
        %v1795 = vpop.f32.mrb[0].mxu0
        %1796 = vdwg.mxu0
        %1797 = vmatprep.subr.mxu0 0.0
        %1798 = vmatpush1.msra.mxu0 %v1563
        %1799 = vmatprep.subr.mxu0 0.0
        %1800 = vmatpush1.msra.mxu0 %v1564
        %1801 = vmatprep.subr.mxu0 0.0
        %1802 = vmatpush1.msra.mxu0 %v1565
        %1803 = vmatprep.subr.mxu0 0.0
        %1804 = vmatpush1.msra.mxu0 %v1566
        %1805 = vmatprep.subr.mxu0 0.0
        %1806 = vmatpush1.msra.mxu0 %v1567
        %1807 = vmatprep.subr.mxu0 0.0
        %1808 = vmatpush1.msra.mxu0 %v1568
        %1809 = vmatprep.subr.mxu0 0.0
        %1810 = vmatpush1.msra.mxu0 %v1569
        %1811 = vmatprep.subr.mxu0 0.0
        %1812 = vmatpush1.msra.mxu0 %v1570
        %1813 = vmatprep.subr.mxu0 0.0
        %1814 = vmatpush1.msra.mxu0 %v1571
        %1815 = vmatprep.subr.mxu0 0.0
        %1816 = vmatpush1.msra.mxu0 %v1572
        %1817 = vmatprep.subr.mxu0 0.0
        %1818 = vmatpush1.msra.mxu0 %v1573
        %1819 = vmatprep.subr.mxu0 0.0
        %1820 = vmatpush1.msra.mxu0 %v1574
        %1821 = vmatprep.subr.mxu0 0.0
        %1822 = vmatpush1.msra.mxu0 %v1575
        %1823 = vmatprep.subr.mxu0 0.0
        %1824 = vmatpush1.msra.mxu0 %v1722
        %1825 = vmatprep.subr.mxu0 0.0
        %1826 = vmatpush1.msra.mxu0 0.0
        %1827 = vmatprep.subr.mxu0 0.0
        %1828 = vmatpush1.msra.mxu0 0.0
        %1829 = vmatprep.subr.mxu0 0.0
        %1830 = vmatpush1.msra.mxu0 0.0
        %1831 = vmatprep.subr.mxu0 0.0
        %1832 = vmatpush1.msra.mxu0 0.0
        %1833 = vmatprep.subr.mxu0 0.0
        %1834 = vmatpush1.msra.mxu0 0.0
        %1835 = vmatprep.subr.mxu0 0.0
        %1836 = vmatpush1.msra.mxu0 0.0
        %1837 = vmatprep.subr.mxu0 0.0
        %1838 = vmatpush1.msra.mxu0 0.0
        %1839 = vmatprep.subr.mxu0 0.0
        %1840 = vmatpush1.msra.mxu0 0.0
        %1841 = vmatprep.subr.mxu0 0.0
        %1842 = vmatpush1.msra.mxu0 0.0
        %1843 = vmatprep.subr.mxu0 0.0
        %1844 = vmatpush1.msra.mxu0 0.0
        %1845 = vmatprep.subr.mxu0 0.0
        %1846 = vmatpush1.msra.mxu0 0.0
        %1847 = vmatprep.subr.mxu0 0.0
        %1848 = vmatpush1.msra.mxu0 0.0
        %1849 = vmatprep.subr.mxu0 0.0
        %1850 = vmatpush1.msra.mxu0 0.0
        %1851 = vmatprep.subr.mxu0 0.0
        %1852 = vmatpush1.msra.mxu0 0.0
        %1853 = vmatprep.subr.mxu0 0.0
        %1854 = vmatpush1.msra.mxu0 0.0
        %1855 = vmatprep.subr.mxu0 0.0
        %1856 = vmatpush1.msra.mxu0 0.0
        %1857 = vmatprep.subr.mxu0 0.0
        %1858 = vmatpush1.msra.mxu0 0.0
        %1859 = vmatprep.subr.mxu0 0.0
        %1860 = vmatpush1.msra.mxu0 0.0
        %1861 = vmatprep.mubr.f32.mxu0 0.0
        %1862 = vmatmul.mubr.f32.gmra.mrb[0].mxu0 %v1725
        %v1863 = vpop.f32.mrb[0].mxu0
        %v1864 = vadd.f32 0.0, %v1863
        %v1865 = vpop.f32.mrb[0].mxu0
        %1866 = vdwg.mxu0
        %vm1867 = vcmask 7168
        %v1869 = vsel %vm1867, %v1656, 0
        %vm1871 = vcmask 1040384
        %v1873 = vsel %vm1871, %v1864, 0
        %1875 = vmatprep.subr.mxu0 0.0
        %1876 = vmatpush1.msra.mxu0 %v1873
        %1877 = vmatprep.subr.mxu0 0.0
        %1878 = vmatpush1.msra.mxu0 0.0
        %1879 = vmatprep.subr.mxu0 0.0
        %1880 = vmatpush1.msra.mxu0 0.0
        %1881 = vmatprep.subr.mxu0 0.0
        %1882 = vmatpush1.msra.mxu0 0.0
        %1883 = vmatprep.subr.mxu0 0.0
        %1884 = vmatpush1.msra.mxu0 0.0
        %1885 = vmatprep.subr.mxu0 0.0
        %1886 = vmatpush1.msra.mxu0 0.0
        %1887 = vmatprep.subr.mxu0 0.0
        %1888 = vmatpush1.msra.mxu0 0.0
        %1889 = vmatprep.subr.mxu0 0.0
        %1890 = vmatpush1.msra.mxu0 0.0
        %1891 = vmatprep.subr.mxu0 0.0
        %1892 = vmatpush1.msra.mxu0 0.0
        %1893 = vmatprep.subr.mxu0 0.0
        %1894 = vmatpush1.msra.mxu0 0.0
        %1895 = vmatprep.subr.mxu0 0.0
        %1896 = vmatpush1.msra.mxu0 0.0
        %1897 = vmatprep.subr.mxu0 0.0
        %1898 = vmatpush1.msra.mxu0 0.0
        %1899 = vmatprep.subr.mxu0 0.0
        %1900 = vmatpush1.msra.mxu0 0.0
        %1901 = vmatprep.subr.mxu0 0.0
        %1902 = vmatpush1.msra.mxu0 0.0
        %1903 = vmatprep.subr.mxu0 0.0
        %1904 = vmatpush1.msra.mxu0 0.0
        %1905 = vmatprep.subr.mxu0 0.0
        %1906 = vmatpush1.msra.mxu0 0.0
        %1907 = vmatprep.subr.mxu0 0.0
        %1908 = vmatpush1.msra.mxu0 0.0
        %1909 = vmatprep.subr.mxu0 0.0
        %1910 = vmatpush1.msra.mxu0 0.0
        %1911 = vmatprep.subr.mxu0 0.0
        %1912 = vmatpush1.msra.mxu0 0.0
        %1913 = vmatprep.subr.mxu0 0.0
        %1914 = vmatpush1.msra.mxu0 0.0
        %1915 = vmatprep.subr.mxu0 0.0
        %1916 = vmatpush1.msra.mxu0 0.0
        %1917 = vmatprep.subr.mxu0 0.0
        %1918 = vmatpush1.msra.mxu0 0.0
        %1919 = vmatprep.subr.mxu0 0.0
        %1920 = vmatpush1.msra.mxu0 0.0
        %1921 = vmatprep.subr.mxu0 0.0
        %1922 = vmatpush1.msra.mxu0 0.0
        %1923 = vmatprep.subr.mxu0 0.0
        %1924 = vmatpush1.msra.mxu0 0.0
        %1925 = vmatprep.subr.mxu0 0.0
        %1926 = vmatpush1.msra.mxu0 0.0
        %1927 = vmatprep.subr.mxu0 0.0
        %1928 = vmatpush1.msra.mxu0 0.0
        %1929 = vmatprep.subr.mxu0 0.0
        %1930 = vmatpush1.msra.mxu0 0.0
        %1931 = vmatprep.subr.mxu0 0.0
        %1932 = vmatpush1.msra.mxu0 0.0
        %1933 = vmatprep.subr.mxu0 0.0
        %1934 = vmatpush1.msra.mxu0 0.0
        %1935 = vmatprep.subr.mxu0 0.0
        %1936 = vmatpush1.msra.mxu0 0.0
        %1937 = vmatprep.subr.mxu0 0.0
        %1938 = vmatpush1.msra.mxu0 0.0
        %1939 = vmatprep.mubr.f32.mxu0 0.0
        %1940 = vmatmul.mubr.f32.gmra.mrb[0].mxu0 %v1869
        %v1941 = vpop.f32.mrb[0].mxu0
        %v1942 = vadd.f32 0.0, %v1941
        %v1943 = vpop.f32.mrb[0].mxu0
        %1944 = vdwg.mxu0
        %v1946 = vsel %vm1867, %v1655, 0
        %v1949 = vsel %vm1871, %v1794, 0
        %1951 = vmatprep.subr.mxu0 0.0
        %1952 = vmatpush1.msra.mxu0 %v1949
        %1953 = vmatprep.subr.mxu0 0.0
        %1954 = vmatpush1.msra.mxu0 0.0
        %1955 = vmatprep.subr.mxu0 0.0
        %1956 = vmatpush1.msra.mxu0 0.0
        %1957 = vmatprep.subr.mxu0 0.0
        %1958 = vmatpush1.msra.mxu0 0.0
        %1959 = vmatprep.subr.mxu0 0.0
        %1960 = vmatpush1.msra.mxu0 0.0
        %1961 = vmatprep.subr.mxu0 0.0
        %1962 = vmatpush1.msra.mxu0 0.0
        %1963 = vmatprep.subr.mxu0 0.0
        %1964 = vmatpush1.msra.mxu0 0.0
        %1965 = vmatprep.subr.mxu0 0.0
        %1966 = vmatpush1.msra.mxu0 0.0
        %1967 = vmatprep.subr.mxu0 0.0
        %1968 = vmatpush1.msra.mxu0 0.0
        %1969 = vmatprep.subr.mxu0 0.0
        %1970 = vmatpush1.msra.mxu0 0.0
        %1971 = vmatprep.subr.mxu0 0.0
        %1972 = vmatpush1.msra.mxu0 0.0
        %1973 = vmatprep.subr.mxu0 0.0
        %1974 = vmatpush1.msra.mxu0 0.0
        %1975 = vmatprep.subr.mxu0 0.0
        %1976 = vmatpush1.msra.mxu0 0.0
        %1977 = vmatprep.subr.mxu0 0.0
        %1978 = vmatpush1.msra.mxu0 0.0
        %1979 = vmatprep.subr.mxu0 0.0
        %1980 = vmatpush1.msra.mxu0 0.0
        %1981 = vmatprep.subr.mxu0 0.0
        %1982 = vmatpush1.msra.mxu0 0.0
        %1983 = vmatprep.subr.mxu0 0.0
        %1984 = vmatpush1.msra.mxu0 0.0
        %1985 = vmatprep.subr.mxu0 0.0
        %1986 = vmatpush1.msra.mxu0 0.0
        %1987 = vmatprep.subr.mxu0 0.0
        %1988 = vmatpush1.msra.mxu0 0.0
        %1989 = vmatprep.subr.mxu0 0.0
        %1990 = vmatpush1.msra.mxu0 0.0
        %1991 = vmatprep.subr.mxu0 0.0
        %1992 = vmatpush1.msra.mxu0 0.0
        %1993 = vmatprep.subr.mxu0 0.0
        %1994 = vmatpush1.msra.mxu0 0.0
        %1995 = vmatprep.subr.mxu0 0.0
        %1996 = vmatpush1.msra.mxu0 0.0
        %1997 = vmatprep.subr.mxu0 0.0
        %1998 = vmatpush1.msra.mxu0 0.0
        %1999 = vmatprep.subr.mxu0 0.0
        %2000 = vmatpush1.msra.mxu0 0.0
        %2001 = vmatprep.subr.mxu0 0.0
        %2002 = vmatpush1.msra.mxu0 0.0
        %2003 = vmatprep.subr.mxu0 0.0
        %2004 = vmatpush1.msra.mxu0 0.0
        %2005 = vmatprep.subr.mxu0 0.0
        %2006 = vmatpush1.msra.mxu0 0.0
        %2007 = vmatprep.subr.mxu0 0.0
        %2008 = vmatpush1.msra.mxu0 0.0
        %2009 = vmatprep.subr.mxu0 0.0
        %2010 = vmatpush1.msra.mxu0 0.0
        %2011 = vmatprep.subr.mxu0 0.0
        %2012 = vmatpush1.msra.mxu0 0.0
        %2013 = vmatprep.subr.mxu0 0.0
        %2014 = vmatpush1.msra.mxu0 0.0
        %2015 = vmatprep.mubr.f32.mxu0 0.0
        %2016 = vmatmul.mubr.f32.gmra.mrb[0].mxu0 %v1946
        %v2017 = vpop.f32.mrb[0].mxu0
        %v2018 = vadd.f32 %v1942, %v2017
        %v2019 = vpop.f32.mrb[0].mxu0
        %2020 = vdwg.mxu0
        %2022 = vset.pattern.permute.xlu0 0
        %2023 = vperm.xlu0 %2022, %v1657
        %v2024 = vpop.permute.xlu0 %2023
        %v2026 = vadd.f32 %v2018, %v2024
        %vm2027 = vcmp.ge.f32.partialorder %v2026, 0.0
        %v2028 = vmul.f32 %v2026, 0.01
        %v2029 = vsel %vm2027, %v2026, %v2028
        %vm2030 = vcmask 920576
        %v2031 = vsel %vm2030, %v2029, 0.0
        %2032 = vadd.xlane.f32.xlu0 %v2031
        %v2033 = vpop.xlane.xlu0 %2032
        %v2034 = vrcp.pop 113.0
        %v2035 = vmul.f32 %v2033, %v2034
        %v2036 = vsub.f32 %v2029, %v2035
        %v2037 = vmul.f32 %v2036, %v2036
        %v2038 = vsel %vm2030, %v2037, 0.0
        %2039 = vadd.xlane.f32.xlu0 %v2038
        %v2040 = vpop.xlane.xlu0 %2039
        %v2041 = vmul.f32 %v2040, %v2034
        %v2042 = vadd.f32 %v2041, 1e-05
        %v2043 = vrsqrt.pop %v2042
        %v2044 = vmul.f32 %v2036, %v2043
        %v2045 = vadd.s32 %v1522, 112
        %v2046 = vmul.u32 %v1536, 2
        %vm2047 = vcmp.eq.s32.totalorder %v1522, %v2046
        %vm2048 = vcmp.eq.s32.totalorder %v1523, %v2046
        %vm2049 = vcmp.eq.s32.totalorder %v1524, %v2046
        %vm2050 = vcmp.eq.s32.totalorder %v1525, %v2046
        %vm2051 = vcmp.eq.s32.totalorder %v1526, %v2046
        %vm2052 = vcmp.eq.s32.totalorder %v1527, %v2046
        %vm2053 = vcmp.eq.s32.totalorder %v1528, %v2046
        %vm2054 = vcmp.eq.s32.totalorder %v1529, %v2046
        %vm2055 = vcmp.eq.s32.totalorder %v1530, %v2046
        %vm2056 = vcmp.eq.s32.totalorder %v1531, %v2046
        %vm2057 = vcmp.eq.s32.totalorder %v1532, %v2046
        %vm2058 = vcmp.eq.s32.totalorder %v1533, %v2046
        %vm2059 = vcmp.eq.s32.totalorder %v1534, %v2046
        %vm2060 = vcmp.eq.s32.totalorder %v1676, %v2046
        %vm2061 = vcmp.eq.s32.totalorder %v2045, %v2046
        %v2062 = vsel %vm2047, 1, 0
        %v2063 = vsel %vm2048, 1, 0
        %v2064 = vsel %vm2049, 1, 0
        %v2065 = vsel %vm2050, 1, 0
        %v2066 = vsel %vm2051, 1, 0
        %v2067 = vsel %vm2052, 1, 0
        %v2068 = vsel %vm2053, 1, 0
        %v2069 = vsel %vm2054, 1, 0
        %v2070 = vsel %vm2055, 1, 0
        %v2071 = vsel %vm2056, 1, 0
        %v2072 = vsel %vm2057, 1, 0
        %v2073 = vsel %vm2058, 1, 0
        %v2074 = vsel %vm2059, 1, 0
        %v2075 = vsel %vm2060, 1, 0
        %v2076 = vsel %vm2061, 1, 0
        %v2077 = vcvt.s32.f32 %v2062
        %v2078 = vcvt.s32.f32 %v2063
        %v2079 = vcvt.s32.f32 %v2064
        %v2080 = vcvt.s32.f32 %v2065
        %v2081 = vcvt.s32.f32 %v2066
        %v2082 = vcvt.s32.f32 %v2067
        %v2083 = vcvt.s32.f32 %v2068
        %v2084 = vcvt.s32.f32 %v2069
        %v2085 = vcvt.s32.f32 %v2070
        %v2086 = vcvt.s32.f32 %v2071
        %v2087 = vcvt.s32.f32 %v2072
        %v2088 = vcvt.s32.f32 %v2073
        %v2089 = vcvt.s32.f32 %v2074
        %v2090 = vcvt.s32.f32 %v2075
        %v2091 = vcvt.s32.f32 %v2076
        %v2092 = vadd.s32 %v2046, 1
        %vm2093 = vcmp.eq.s32.totalorder %v1522, %v2092
        %vm2094 = vcmp.eq.s32.totalorder %v1523, %v2092
        %vm2095 = vcmp.eq.s32.totalorder %v1524, %v2092
        %vm2096 = vcmp.eq.s32.totalorder %v1525, %v2092
        %vm2097 = vcmp.eq.s32.totalorder %v1526, %v2092
        %vm2098 = vcmp.eq.s32.totalorder %v1527, %v2092
        %vm2099 = vcmp.eq.s32.totalorder %v1528, %v2092
        %vm2100 = vcmp.eq.s32.totalorder %v1529, %v2092
        %vm2101 = vcmp.eq.s32.totalorder %v1530, %v2092
        %vm2102 = vcmp.eq.s32.totalorder %v1531, %v2092
        %vm2103 = vcmp.eq.s32.totalorder %v1532, %v2092
        %vm2104 = vcmp.eq.s32.totalorder %v1533, %v2092
        %vm2105 = vcmp.eq.s32.totalorder %v1534, %v2092
        %vm2106 = vcmp.eq.s32.totalorder %v1676, %v2092
        %vm2107 = vcmp.eq.s32.totalorder %v2045, %v2092
        %v2108 = vsel %vm2093, 1, 0
        %v2109 = vsel %vm2094, 1, 0
        %v2110 = vsel %vm2095, 1, 0
        %v2111 = vsel %vm2096, 1, 0
        %v2112 = vsel %vm2097, 1, 0
        %v2113 = vsel %vm2098, 1, 0
        %v2114 = vsel %vm2099, 1, 0
        %v2115 = vsel %vm2100, 1, 0
        %v2116 = vsel %vm2101, 1, 0
        %v2117 = vsel %vm2102, 1, 0
        %v2118 = vsel %vm2103, 1, 0
        %v2119 = vsel %vm2104, 1, 0
        %v2120 = vsel %vm2105, 1, 0
        %v2121 = vsel %vm2106, 1, 0
        %v2122 = vsel %vm2107, 1, 0
        %v2123 = vcvt.s32.f32 %v2108
        %v2124 = vcvt.s32.f32 %v2109
        %v2125 = vcvt.s32.f32 %v2110
        %v2126 = vcvt.s32.f32 %v2111
        %v2127 = vcvt.s32.f32 %v2112
        %v2128 = vcvt.s32.f32 %v2113
        %v2129 = vcvt.s32.f32 %v2114
        %v2130 = vcvt.s32.f32 %v2115
        %v2131 = vcvt.s32.f32 %v2116
        %v2132 = vcvt.s32.f32 %v2117
        %v2133 = vcvt.s32.f32 %v2118
        %v2134 = vcvt.s32.f32 %v2119
        %v2135 = vcvt.s32.f32 %v2120
        %v2136 = vcvt.s32.f32 %v2121
        %v2137 = vcvt.s32.f32 %v2122
        %vm2138 = vcmask 924672
        %v2140 = vsel %vm2138, %v2044, 0
        %v2143 = vsel %vm1871, %v2091, 0
        %2145 = vmatprep.subr.mxu0 0.0
        %2146 = vmatpush1.msra.mxu0 %v2077
        %2147 = vmatprep.subr.mxu0 0.0
        %2148 = vmatpush1.msra.mxu0 %v2078
        %2149 = vmatprep.subr.mxu0 0.0
        %2150 = vmatpush1.msra.mxu0 %v2079
        %2151 = vmatprep.subr.mxu0 0.0
        %2152 = vmatpush1.msra.mxu0 %v2080
        %2153 = vmatprep.subr.mxu0 0.0
        %2154 = vmatpush1.msra.mxu0 %v2081
        %2155 = vmatprep.subr.mxu0 0.0
        %2156 = vmatpush1.msra.mxu0 %v2082
        %2157 = vmatprep.subr.mxu0 0.0
        %2158 = vmatpush1.msra.mxu0 %v2083
        %2159 = vmatprep.subr.mxu0 0.0
        %2160 = vmatpush1.msra.mxu0 %v2084
        %2161 = vmatprep.subr.mxu0 0.0
        %2162 = vmatpush1.msra.mxu0 %v2085
        %2163 = vmatprep.subr.mxu0 0.0
        %2164 = vmatpush1.msra.mxu0 %v2086
        %2165 = vmatprep.subr.mxu0 0.0
        %2166 = vmatpush1.msra.mxu0 %v2087
        %2167 = vmatprep.subr.mxu0 0.0
        %2168 = vmatpush1.msra.mxu0 %v2088
        %2169 = vmatprep.subr.mxu0 0.0
        %2170 = vmatpush1.msra.mxu0 %v2089
        %2171 = vmatprep.subr.mxu0 0.0
        %2172 = vmatpush1.msra.mxu0 %v2090
        %2173 = vmatprep.subr.mxu0 0.0
        %2174 = vmatpush1.msra.mxu0 %v2143
        %2175 = vmatprep.subr.mxu0 0.0
        %2176 = vmatpush1.msra.mxu0 0.0
        %2177 = vmatprep.subr.mxu0 0.0
        %2178 = vmatpush1.msra.mxu0 0.0
        %2179 = vmatprep.subr.mxu0 0.0
        %2180 = vmatpush1.msra.mxu0 0.0
        %2181 = vmatprep.subr.mxu0 0.0
        %2182 = vmatpush1.msra.mxu0 0.0
        %2183 = vmatprep.subr.mxu0 0.0
        %2184 = vmatpush1.msra.mxu0 0.0
        %2185 = vmatprep.subr.mxu0 0.0
        %2186 = vmatpush1.msra.mxu0 0.0
        %2187 = vmatprep.subr.mxu0 0.0
        %2188 = vmatpush1.msra.mxu0 0.0
        %2189 = vmatprep.subr.mxu0 0.0
        %2190 = vmatpush1.msra.mxu0 0.0
        %2191 = vmatprep.subr.mxu0 0.0
        %2192 = vmatpush1.msra.mxu0 0.0
        %2193 = vmatprep.subr.mxu0 0.0
        %2194 = vmatpush1.msra.mxu0 0.0
        %2195 = vmatprep.subr.mxu0 0.0
        %2196 = vmatpush1.msra.mxu0 0.0
        %2197 = vmatprep.subr.mxu0 0.0
        %2198 = vmatpush1.msra.mxu0 0.0
        %2199 = vmatprep.subr.mxu0 0.0
        %2200 = vmatpush1.msra.mxu0 0.0
        %2201 = vmatprep.subr.mxu0 0.0
        %2202 = vmatpush1.msra.mxu0 0.0
        %2203 = vmatprep.subr.mxu0 0.0
        %2204 = vmatpush1.msra.mxu0 0.0
        %2205 = vmatprep.subr.mxu0 0.0
        %2206 = vmatpush1.msra.mxu0 0.0
        %2207 = vmatprep.subr.mxu0 0.0
        %2208 = vmatpush1.msra.mxu0 0.0
        %2209 = vmatprep.mubr.f32.mxu0 0.0
        %2210 = vmatmul.mubr.f32.gmra.mrb[0].mxu0 %v2140
        %v2211 = vpop.f32.mrb[0].mxu0
        %v2212 = vadd.f32 0.0, %v2211
        %v2213 = vpop.f32.mrb[0].mxu0
        %2214 = vdwg.mxu0
        %v2216 = vsel %vm1871, %v2137, 0
        %2218 = vmatprep.subr.mxu0 0.0
        %2219 = vmatpush1.msra.mxu0 %v2123
        %2220 = vmatprep.subr.mxu0 0.0
        %2221 = vmatpush1.msra.mxu0 %v2124
        %2222 = vmatprep.subr.mxu0 0.0
        %2223 = vmatpush1.msra.mxu0 %v2125
        %2224 = vmatprep.subr.mxu0 0.0
        %2225 = vmatpush1.msra.mxu0 %v2126
        %2226 = vmatprep.subr.mxu0 0.0
        %2227 = vmatpush1.msra.mxu0 %v2127
        %2228 = vmatprep.subr.mxu0 0.0
        %2229 = vmatpush1.msra.mxu0 %v2128
        %2230 = vmatprep.subr.mxu0 0.0
        %2231 = vmatpush1.msra.mxu0 %v2129
        %2232 = vmatprep.subr.mxu0 0.0
        %2233 = vmatpush1.msra.mxu0 %v2130
        %2234 = vmatprep.subr.mxu0 0.0
        %2235 = vmatpush1.msra.mxu0 %v2131
        %2236 = vmatprep.subr.mxu0 0.0
        %2237 = vmatpush1.msra.mxu0 %v2132
        %2238 = vmatprep.subr.mxu0 0.0
        %2239 = vmatpush1.msra.mxu0 %v2133
        %2240 = vmatprep.subr.mxu0 0.0
        %2241 = vmatpush1.msra.mxu0 %v2134
        %2242 = vmatprep.subr.mxu0 0.0
        %2243 = vmatpush1.msra.mxu0 %v2135
        %2244 = vmatprep.subr.mxu0 0.0
        %2245 = vmatpush1.msra.mxu0 %v2136
        %2246 = vmatprep.subr.mxu0 0.0
        %2247 = vmatpush1.msra.mxu0 %v2216
        %2248 = vmatprep.subr.mxu0 0.0
        %2249 = vmatpush1.msra.mxu0 0.0
        %2250 = vmatprep.subr.mxu0 0.0
        %2251 = vmatpush1.msra.mxu0 0.0
        %2252 = vmatprep.subr.mxu0 0.0
        %2253 = vmatpush1.msra.mxu0 0.0
        %2254 = vmatprep.subr.mxu0 0.0
        %2255 = vmatpush1.msra.mxu0 0.0
        %2256 = vmatprep.subr.mxu0 0.0
        %2257 = vmatpush1.msra.mxu0 0.0
        %2258 = vmatprep.subr.mxu0 0.0
        %2259 = vmatpush1.msra.mxu0 0.0
        %2260 = vmatprep.subr.mxu0 0.0
        %2261 = vmatpush1.msra.mxu0 0.0
        %2262 = vmatprep.subr.mxu0 0.0
        %2263 = vmatpush1.msra.mxu0 0.0
        %2264 = vmatprep.subr.mxu0 0.0
        %2265 = vmatpush1.msra.mxu0 0.0
        %2266 = vmatprep.subr.mxu0 0.0
        %2267 = vmatpush1.msra.mxu0 0.0
        %2268 = vmatprep.subr.mxu0 0.0
        %2269 = vmatpush1.msra.mxu0 0.0
        %2270 = vmatprep.subr.mxu0 0.0
        %2271 = vmatpush1.msra.mxu0 0.0
        %2272 = vmatprep.subr.mxu0 0.0
        %2273 = vmatpush1.msra.mxu0 0.0
        %2274 = vmatprep.subr.mxu0 0.0
        %2275 = vmatpush1.msra.mxu0 0.0
        %2276 = vmatprep.subr.mxu0 0.0
        %2277 = vmatpush1.msra.mxu0 0.0
        %2278 = vmatprep.subr.mxu0 0.0
        %2279 = vmatpush1.msra.mxu0 0.0
        %2280 = vmatprep.subr.mxu0 0.0
        %2281 = vmatpush1.msra.mxu0 0.0
        %2282 = vmatprep.mubr.f32.mxu0 0.0
        %2283 = vmatmul.mubr.f32.gmra.mrb[0].mxu0 %v2140
        %v2284 = vpop.f32.mrb[0].mxu0
        %v2285 = vadd.f32 0.0, %v2284
        %v2286 = vpop.f32.mrb[0].mxu0
        %2287 = vdwg.mxu0
        %vm2288 = vcmask 31744
        %v2290 = vsel %vm2288, %v1659, 0
        %v2293 = vsel %vm1581, %v2285, 0
        %2295 = vmatprep.subr.mxu0 0.0
        %2296 = vmatpush1.msra.mxu0 %v2293
        %2297 = vmatprep.subr.mxu0 0.0
        %2298 = vmatpush1.msra.mxu0 0.0
        %2299 = vmatprep.subr.mxu0 0.0
        %2300 = vmatpush1.msra.mxu0 0.0
        %2301 = vmatprep.subr.mxu0 0.0
        %2302 = vmatpush1.msra.mxu0 0.0
        %2303 = vmatprep.subr.mxu0 0.0
        %2304 = vmatpush1.msra.mxu0 0.0
        %2305 = vmatprep.subr.mxu0 0.0
        %2306 = vmatpush1.msra.mxu0 0.0
        %2307 = vmatprep.subr.mxu0 0.0
        %2308 = vmatpush1.msra.mxu0 0.0
        %2309 = vmatprep.subr.mxu0 0.0
        %2310 = vmatpush1.msra.mxu0 0.0
        %2311 = vmatprep.subr.mxu0 0.0
        %2312 = vmatpush1.msra.mxu0 0.0
        %2313 = vmatprep.subr.mxu0 0.0
        %2314 = vmatpush1.msra.mxu0 0.0
        %2315 = vmatprep.subr.mxu0 0.0
        %2316 = vmatpush1.msra.mxu0 0.0
        %2317 = vmatprep.subr.mxu0 0.0
        %2318 = vmatpush1.msra.mxu0 0.0
        %2319 = vmatprep.subr.mxu0 0.0
        %2320 = vmatpush1.msra.mxu0 0.0
        %2321 = vmatprep.subr.mxu0 0.0
        %2322 = vmatpush1.msra.mxu0 0.0
        %2323 = vmatprep.subr.mxu0 0.0
        %2324 = vmatpush1.msra.mxu0 0.0
        %2325 = vmatprep.subr.mxu0 0.0
        %2326 = vmatpush1.msra.mxu0 0.0
        %2327 = vmatprep.subr.mxu0 0.0
        %2328 = vmatpush1.msra.mxu0 0.0
        %2329 = vmatprep.subr.mxu0 0.0
        %2330 = vmatpush1.msra.mxu0 0.0
        %2331 = vmatprep.subr.mxu0 0.0
        %2332 = vmatpush1.msra.mxu0 0.0
        %2333 = vmatprep.subr.mxu0 0.0
        %2334 = vmatpush1.msra.mxu0 0.0
        %2335 = vmatprep.subr.mxu0 0.0
        %2336 = vmatpush1.msra.mxu0 0.0
        %2337 = vmatprep.subr.mxu0 0.0
        %2338 = vmatpush1.msra.mxu0 0.0
        %2339 = vmatprep.subr.mxu0 0.0
        %2340 = vmatpush1.msra.mxu0 0.0
        %2341 = vmatprep.subr.mxu0 0.0
        %2342 = vmatpush1.msra.mxu0 0.0
        %2343 = vmatprep.subr.mxu0 0.0
        %2344 = vmatpush1.msra.mxu0 0.0
        %2345 = vmatprep.subr.mxu0 0.0
        %2346 = vmatpush1.msra.mxu0 0.0
        %2347 = vmatprep.subr.mxu0 0.0
        %2348 = vmatpush1.msra.mxu0 0.0
        %2349 = vmatprep.subr.mxu0 0.0
        %2350 = vmatpush1.msra.mxu0 0.0
        %2351 = vmatprep.subr.mxu0 0.0
        %2352 = vmatpush1.msra.mxu0 0.0
        %2353 = vmatprep.subr.mxu0 0.0
        %2354 = vmatpush1.msra.mxu0 0.0
        %2355 = vmatprep.subr.mxu0 0.0
        %2356 = vmatpush1.msra.mxu0 0.0
        %2357 = vmatprep.subr.mxu0 0.0
        %2358 = vmatpush1.msra.mxu0 0.0
        %2359 = vmatprep.mubr.f32.mxu0 0.0
        %2360 = vmatmul.mubr.f32.gmra.mrb[0].mxu0 %v2290
        %v2361 = vpop.f32.mrb[0].mxu0
        %v2362 = vadd.f32 0.0, %v2361
        %v2363 = vpop.f32.mrb[0].mxu0
        %2364 = vdwg.mxu0
        %v2366 = vsel %vm2288, %v1658, 0
        %v2369 = vsel %vm1581, %v2212, 0
        %2371 = vmatprep.subr.mxu0 0.0
        %2372 = vmatpush1.msra.mxu0 %v2369
        %2373 = vmatprep.subr.mxu0 0.0
        %2374 = vmatpush1.msra.mxu0 0.0
        %2375 = vmatprep.subr.mxu0 0.0
        %2376 = vmatpush1.msra.mxu0 0.0
        %2377 = vmatprep.subr.mxu0 0.0
        %2378 = vmatpush1.msra.mxu0 0.0
        %2379 = vmatprep.subr.mxu0 0.0
        %2380 = vmatpush1.msra.mxu0 0.0
        %2381 = vmatprep.subr.mxu0 0.0
        %2382 = vmatpush1.msra.mxu0 0.0
        %2383 = vmatprep.subr.mxu0 0.0
        %2384 = vmatpush1.msra.mxu0 0.0
        %2385 = vmatprep.subr.mxu0 0.0
        %2386 = vmatpush1.msra.mxu0 0.0
        %2387 = vmatprep.subr.mxu0 0.0
        %2388 = vmatpush1.msra.mxu0 0.0
        %2389 = vmatprep.subr.mxu0 0.0
        %2390 = vmatpush1.msra.mxu0 0.0
        %2391 = vmatprep.subr.mxu0 0.0
        %2392 = vmatpush1.msra.mxu0 0.0
        %2393 = vmatprep.subr.mxu0 0.0
        %2394 = vmatpush1.msra.mxu0 0.0
        %2395 = vmatprep.subr.mxu0 0.0
        %2396 = vmatpush1.msra.mxu0 0.0
        %2397 = vmatprep.subr.mxu0 0.0
        %2398 = vmatpush1.msra.mxu0 0.0
        %2399 = vmatprep.subr.mxu0 0.0
        %2400 = vmatpush1.msra.mxu0 0.0
        %2401 = vmatprep.subr.mxu0 0.0
        %2402 = vmatpush1.msra.mxu0 0.0
        %2403 = vmatprep.subr.mxu0 0.0
        %2404 = vmatpush1.msra.mxu0 0.0
        %2405 = vmatprep.subr.mxu0 0.0
        %2406 = vmatpush1.msra.mxu0 0.0
        %2407 = vmatprep.subr.mxu0 0.0
        %2408 = vmatpush1.msra.mxu0 0.0
        %2409 = vmatprep.subr.mxu0 0.0
        %2410 = vmatpush1.msra.mxu0 0.0
        %2411 = vmatprep.subr.mxu0 0.0
        %2412 = vmatpush1.msra.mxu0 0.0
        %2413 = vmatprep.subr.mxu0 0.0
        %2414 = vmatpush1.msra.mxu0 0.0
        %2415 = vmatprep.subr.mxu0 0.0
        %2416 = vmatpush1.msra.mxu0 0.0
        %2417 = vmatprep.subr.mxu0 0.0
        %2418 = vmatpush1.msra.mxu0 0.0
        %2419 = vmatprep.subr.mxu0 0.0
        %2420 = vmatpush1.msra.mxu0 0.0
        %2421 = vmatprep.subr.mxu0 0.0
        %2422 = vmatpush1.msra.mxu0 0.0
        %2423 = vmatprep.subr.mxu0 0.0
        %2424 = vmatpush1.msra.mxu0 0.0
        %2425 = vmatprep.subr.mxu0 0.0
        %2426 = vmatpush1.msra.mxu0 0.0
        %2427 = vmatprep.subr.mxu0 0.0
        %2428 = vmatpush1.msra.mxu0 0.0
        %2429 = vmatprep.subr.mxu0 0.0
        %2430 = vmatpush1.msra.mxu0 0.0
        %2431 = vmatprep.subr.mxu0 0.0
        %2432 = vmatpush1.msra.mxu0 0.0
        %2433 = vmatprep.subr.mxu0 0.0
        %2434 = vmatpush1.msra.mxu0 0.0
        %2435 = vmatprep.mubr.f32.mxu0 0.0
        %2436 = vmatmul.mubr.f32.gmra.mrb[0].mxu0 %v2366
        %v2437 = vpop.f32.mrb[0].mxu0
        %v2438 = vadd.f32 %v2362, %v2437
        %v2439 = vpop.f32.mrb[0].mxu0
        %2440 = vdwg.mxu0
        %2442 = vset.pattern.permute.xlu0 0
        %2443 = vperm.xlu0 %2442, %v1660
        %v2444 = vpop.permute.xlu0 %2443
        %v2446 = vadd.f32 %v2438, %v2444
        %v2447 = vld [vmem:[%s17] sm:$0xf]
        %v2448 = vld [vmem:[%s19] sm:$0xf]
        %v2449 = vld [vmem:[%s21] sm:$0xf]
        %v2450 = vld [vmem:[%s23] sm:$0xf]
        %v2451 = vld [vmem:[%s25] sm:$0xf]
        %v2452 = vld [vmem:[%s27] sm:$0xf]
        %vm2453 = vcmp.ge.f32.partialorder %v2446, 0.0
        %v2454 = vmul.f32 %v2446, 0.01
        %v2455 = vsel %vm2453, %v2446, %v2454
        %vm2456 = vcmask 453632
        %v2457 = vsel %vm2456, %v2455, 0.0
        %2458 = vadd.xlane.f32.xlu0 %v2457
        %v2459 = vpop.xlane.xlu0 %2458
        %v2460 = vrcp.pop 56.0
        %v2461 = vmul.f32 %v2459, %v2460
        %v2462 = vsub.f32 %v2455, %v2461
        %v2463 = vmul.f32 %v2462, %v2462
        %v2464 = vsel %vm2456, %v2463, 0.0
        %2465 = vadd.xlane.f32.xlu0 %v2464
        %v2466 = vpop.xlane.xlu0 %2465
        %v2467 = vmul.f32 %v2466, %v2460
        %v2468 = vadd.f32 %v2467, 1e-05
        %v2469 = vrsqrt.pop %v2468
        %v2470 = vmul.f32 %v2462, %v2469
        %vm2471 = vcmask 457728
        %v2473 = vsel %vm2471, %v2470, 0
        %2475 = vmatprep.subr.mxu0 0.0
        %2476 = vmatpush1.msra.mxu0 %v1706
        %2477 = vmatprep.subr.mxu0 0.0
        %2478 = vmatpush1.msra.mxu0 %v1707
        %2479 = vmatprep.subr.mxu0 0.0
        %2480 = vmatpush1.msra.mxu0 %v1708
        %2481 = vmatprep.subr.mxu0 0.0
        %2482 = vmatpush1.msra.mxu0 %v1709
        %2483 = vmatprep.subr.mxu0 0.0
        %2484 = vmatpush1.msra.mxu0 %v1710
        %2485 = vmatprep.subr.mxu0 0.0
        %2486 = vmatpush1.msra.mxu0 %v1711
        %2487 = vmatprep.subr.mxu0 0.0
        %2488 = vmatpush1.msra.mxu0 %v1712
        %2489 = vmatprep.subr.mxu0 0.0
        %2490 = vmatpush1.msra.mxu0 0.0
        %2491 = vmatprep.subr.mxu0 0.0
        %2492 = vmatpush1.msra.mxu0 0.0
        %2493 = vmatprep.subr.mxu0 0.0
        %2494 = vmatpush1.msra.mxu0 0.0
        %2495 = vmatprep.subr.mxu0 0.0
        %2496 = vmatpush1.msra.mxu0 0.0
        %2497 = vmatprep.subr.mxu0 0.0
        %2498 = vmatpush1.msra.mxu0 0.0
        %2499 = vmatprep.subr.mxu0 0.0
        %2500 = vmatpush1.msra.mxu0 0.0
        %2501 = vmatprep.subr.mxu0 0.0
        %2502 = vmatpush1.msra.mxu0 0.0
        %2503 = vmatprep.subr.mxu0 0.0
        %2504 = vmatpush1.msra.mxu0 0.0
        %2505 = vmatprep.subr.mxu0 0.0
        %2506 = vmatpush1.msra.mxu0 0.0
        %2507 = vmatprep.subr.mxu0 0.0
        %2508 = vmatpush1.msra.mxu0 0.0
        %2509 = vmatprep.subr.mxu0 0.0
        %2510 = vmatpush1.msra.mxu0 0.0
        %2511 = vmatprep.subr.mxu0 0.0
        %2512 = vmatpush1.msra.mxu0 0.0
        %2513 = vmatprep.subr.mxu0 0.0
        %2514 = vmatpush1.msra.mxu0 0.0
        %2515 = vmatprep.subr.mxu0 0.0
        %2516 = vmatpush1.msra.mxu0 0.0
        %2517 = vmatprep.subr.mxu0 0.0
        %2518 = vmatpush1.msra.mxu0 0.0
        %2519 = vmatprep.subr.mxu0 0.0
        %2520 = vmatpush1.msra.mxu0 0.0
        %2521 = vmatprep.subr.mxu0 0.0
        %2522 = vmatpush1.msra.mxu0 0.0
        %2523 = vmatprep.subr.mxu0 0.0
        %2524 = vmatpush1.msra.mxu0 0.0
        %2525 = vmatprep.subr.mxu0 0.0
        %2526 = vmatpush1.msra.mxu0 0.0
        %2527 = vmatprep.subr.mxu0 0.0
        %2528 = vmatpush1.msra.mxu0 0.0
        %2529 = vmatprep.subr.mxu0 0.0
        %2530 = vmatpush1.msra.mxu0 0.0
        %2531 = vmatprep.subr.mxu0 0.0
        %2532 = vmatpush1.msra.mxu0 0.0
        %2533 = vmatprep.subr.mxu0 0.0
        %2534 = vmatpush1.msra.mxu0 0.0
        %2535 = vmatprep.subr.mxu0 0.0
        %2536 = vmatpush1.msra.mxu0 0.0
        %2537 = vmatprep.subr.mxu0 0.0
        %2538 = vmatpush1.msra.mxu0 0.0
        %2539 = vmatprep.mubr.f32.mxu0 0.0
        %2540 = vmatmul.mubr.f32.gmra.mrb[0].mxu0 %v2473
        %v2541 = vpop.f32.mrb[0].mxu0
        %v2542 = vadd.f32 0.0, %v2541
        %v2543 = vpop.f32.mrb[0].mxu0
        %2544 = vdwg.mxu0
        %2545 = vmatprep.subr.mxu0 0.0
        %2546 = vmatpush1.msra.mxu0 %v1563
        %2547 = vmatprep.subr.mxu0 0.0
        %2548 = vmatpush1.msra.mxu0 %v1564
        %2549 = vmatprep.subr.mxu0 0.0
        %2550 = vmatpush1.msra.mxu0 %v1565
        %2551 = vmatprep.subr.mxu0 0.0
        %2552 = vmatpush1.msra.mxu0 %v1566
        %2553 = vmatprep.subr.mxu0 0.0
        %2554 = vmatpush1.msra.mxu0 %v1567
        %2555 = vmatprep.subr.mxu0 0.0
        %2556 = vmatpush1.msra.mxu0 %v1568
        %2557 = vmatprep.subr.mxu0 0.0
        %2558 = vmatpush1.msra.mxu0 %v1569
        %2559 = vmatprep.subr.mxu0 0.0
        %2560 = vmatpush1.msra.mxu0 0.0
        %2561 = vmatprep.subr.mxu0 0.0
        %2562 = vmatpush1.msra.mxu0 0.0
        %2563 = vmatprep.subr.mxu0 0.0
        %2564 = vmatpush1.msra.mxu0 0.0
        %2565 = vmatprep.subr.mxu0 0.0
        %2566 = vmatpush1.msra.mxu0 0.0
        %2567 = vmatprep.subr.mxu0 0.0
        %2568 = vmatpush1.msra.mxu0 0.0
        %2569 = vmatprep.subr.mxu0 0.0
        %2570 = vmatpush1.msra.mxu0 0.0
        %2571 = vmatprep.subr.mxu0 0.0
        %2572 = vmatpush1.msra.mxu0 0.0
        %2573 = vmatprep.subr.mxu0 0.0
        %2574 = vmatpush1.msra.mxu0 0.0
        %2575 = vmatprep.subr.mxu0 0.0
        %2576 = vmatpush1.msra.mxu0 0.0
        %2577 = vmatprep.subr.mxu0 0.0
        %2578 = vmatpush1.msra.mxu0 0.0
        %2579 = vmatprep.subr.mxu0 0.0
        %2580 = vmatpush1.msra.mxu0 0.0
        %2581 = vmatprep.subr.mxu0 0.0
        %2582 = vmatpush1.msra.mxu0 0.0
        %2583 = vmatprep.subr.mxu0 0.0
        %2584 = vmatpush1.msra.mxu0 0.0
        %2585 = vmatprep.subr.mxu0 0.0
        %2586 = vmatpush1.msra.mxu0 0.0
        %2587 = vmatprep.subr.mxu0 0.0
        %2588 = vmatpush1.msra.mxu0 0.0
        %2589 = vmatprep.subr.mxu0 0.0
        %2590 = vmatpush1.msra.mxu0 0.0
        %2591 = vmatprep.subr.mxu0 0.0
        %2592 = vmatpush1.msra.mxu0 0.0
        %2593 = vmatprep.subr.mxu0 0.0
        %2594 = vmatpush1.msra.mxu0 0.0
        %2595 = vmatprep.subr.mxu0 0.0
        %2596 = vmatpush1.msra.mxu0 0.0
        %2597 = vmatprep.subr.mxu0 0.0
        %2598 = vmatpush1.msra.mxu0 0.0
        %2599 = vmatprep.subr.mxu0 0.0
        %2600 = vmatpush1.msra.mxu0 0.0
        %2601 = vmatprep.subr.mxu0 0.0
        %2602 = vmatpush1.msra.mxu0 0.0
        %2603 = vmatprep.subr.mxu0 0.0
        %2604 = vmatpush1.msra.mxu0 0.0
        %2605 = vmatprep.subr.mxu0 0.0
        %2606 = vmatpush1.msra.mxu0 0.0
        %2607 = vmatprep.subr.mxu0 0.0
        %2608 = vmatpush1.msra.mxu0 0.0
        %2609 = vmatprep.mubr.f32.mxu0 0.0
        %2610 = vmatmul.mubr.f32.gmra.mrb[0].mxu0 %v2473
        %v2611 = vpop.f32.mrb[0].mxu0
        %v2612 = vadd.f32 0.0, %v2611
        %v2613 = vpop.f32.mrb[0].mxu0
        %2614 = vdwg.mxu0
        %v2616 = vsel %vm2288, %v2448, 0
        %v2619 = vsel %vm1581, %v2612, 0
        %2621 = vmatprep.subr.mxu0 0.0
        %2622 = vmatpush1.msra.mxu0 %v2619
        %2623 = vmatprep.subr.mxu0 0.0
        %2624 = vmatpush1.msra.mxu0 0.0
        %2625 = vmatprep.subr.mxu0 0.0
        %2626 = vmatpush1.msra.mxu0 0.0
        %2627 = vmatprep.subr.mxu0 0.0
        %2628 = vmatpush1.msra.mxu0 0.0
        %2629 = vmatprep.subr.mxu0 0.0
        %2630 = vmatpush1.msra.mxu0 0.0
        %2631 = vmatprep.subr.mxu0 0.0
        %2632 = vmatpush1.msra.mxu0 0.0
        %2633 = vmatprep.subr.mxu0 0.0
        %2634 = vmatpush1.msra.mxu0 0.0
        %2635 = vmatprep.subr.mxu0 0.0
        %2636 = vmatpush1.msra.mxu0 0.0
        %2637 = vmatprep.subr.mxu0 0.0
        %2638 = vmatpush1.msra.mxu0 0.0
        %2639 = vmatprep.subr.mxu0 0.0
        %2640 = vmatpush1.msra.mxu0 0.0
        %2641 = vmatprep.subr.mxu0 0.0
        %2642 = vmatpush1.msra.mxu0 0.0
        %2643 = vmatprep.subr.mxu0 0.0
        %2644 = vmatpush1.msra.mxu0 0.0
        %2645 = vmatprep.subr.mxu0 0.0
        %2646 = vmatpush1.msra.mxu0 0.0
        %2647 = vmatprep.subr.mxu0 0.0
        %2648 = vmatpush1.msra.mxu0 0.0
        %2649 = vmatprep.subr.mxu0 0.0
        %2650 = vmatpush1.msra.mxu0 0.0
        %2651 = vmatprep.subr.mxu0 0.0
        %2652 = vmatpush1.msra.mxu0 0.0
        %2653 = vmatprep.subr.mxu0 0.0
        %2654 = vmatpush1.msra.mxu0 0.0
        %2655 = vmatprep.subr.mxu0 0.0
        %2656 = vmatpush1.msra.mxu0 0.0
        %2657 = vmatprep.subr.mxu0 0.0
        %2658 = vmatpush1.msra.mxu0 0.0
        %2659 = vmatprep.subr.mxu0 0.0
        %2660 = vmatpush1.msra.mxu0 0.0
        %2661 = vmatprep.subr.mxu0 0.0
        %2662 = vmatpush1.msra.mxu0 0.0
        %2663 = vmatprep.subr.mxu0 0.0
        %2664 = vmatpush1.msra.mxu0 0.0
        %2665 = vmatprep.subr.mxu0 0.0
        %2666 = vmatpush1.msra.mxu0 0.0
        %2667 = vmatprep.subr.mxu0 0.0
        %2668 = vmatpush1.msra.mxu0 0.0
        %2669 = vmatprep.subr.mxu0 0.0
        %2670 = vmatpush1.msra.mxu0 0.0
        %2671 = vmatprep.subr.mxu0 0.0
        %2672 = vmatpush1.msra.mxu0 0.0
        %2673 = vmatprep.subr.mxu0 0.0
        %2674 = vmatpush1.msra.mxu0 0.0
        %2675 = vmatprep.subr.mxu0 0.0
        %2676 = vmatpush1.msra.mxu0 0.0
        %2677 = vmatprep.subr.mxu0 0.0
        %2678 = vmatpush1.msra.mxu0 0.0
        %2679 = vmatprep.subr.mxu0 0.0
        %2680 = vmatpush1.msra.mxu0 0.0
        %2681 = vmatprep.subr.mxu0 0.0
        %2682 = vmatpush1.msra.mxu0 0.0
        %2683 = vmatprep.subr.mxu0 0.0
        %2684 = vmatpush1.msra.mxu0 0.0
        %2685 = vmatprep.mubr.f32.mxu0 0.0
        %2686 = vmatmul.mubr.f32.gmra.mrb[0].mxu0 %v2616
        %v2687 = vpop.f32.mrb[0].mxu0
        %v2688 = vadd.f32 0.0, %v2687
        %v2689 = vpop.f32.mrb[0].mxu0
        %2690 = vdwg.mxu0
        %v2692 = vsel %vm2288, %v2447, 0
        %v2695 = vsel %vm1581, %v2542, 0
        %2697 = vmatprep.subr.mxu0 0.0
        %2698 = vmatpush1.msra.mxu0 %v2695
        %2699 = vmatprep.subr.mxu0 0.0
        %2700 = vmatpush1.msra.mxu0 0.0
        %2701 = vmatprep.subr.mxu0 0.0
        %2702 = vmatpush1.msra.mxu0 0.0
        %2703 = vmatprep.subr.mxu0 0.0
        %2704 = vmatpush1.msra.mxu0 0.0
        %2705 = vmatprep.subr.mxu0 0.0
        %2706 = vmatpush1.msra.mxu0 0.0
        %2707 = vmatprep.subr.mxu0 0.0
        %2708 = vmatpush1.msra.mxu0 0.0
        %2709 = vmatprep.subr.mxu0 0.0
        %2710 = vmatpush1.msra.mxu0 0.0
        %2711 = vmatprep.subr.mxu0 0.0
        %2712 = vmatpush1.msra.mxu0 0.0
        %2713 = vmatprep.subr.mxu0 0.0
        %2714 = vmatpush1.msra.mxu0 0.0
        %2715 = vmatprep.subr.mxu0 0.0
        %2716 = vmatpush1.msra.mxu0 0.0
        %2717 = vmatprep.subr.mxu0 0.0
        %2718 = vmatpush1.msra.mxu0 0.0
        %2719 = vmatprep.subr.mxu0 0.0
        %2720 = vmatpush1.msra.mxu0 0.0
        %2721 = vmatprep.subr.mxu0 0.0
        %2722 = vmatpush1.msra.mxu0 0.0
        %2723 = vmatprep.subr.mxu0 0.0
        %2724 = vmatpush1.msra.mxu0 0.0
        %2725 = vmatprep.subr.mxu0 0.0
        %2726 = vmatpush1.msra.mxu0 0.0
        %2727 = vmatprep.subr.mxu0 0.0
        %2728 = vmatpush1.msra.mxu0 0.0
        %2729 = vmatprep.subr.mxu0 0.0
        %2730 = vmatpush1.msra.mxu0 0.0
        %2731 = vmatprep.subr.mxu0 0.0
        %2732 = vmatpush1.msra.mxu0 0.0
        %2733 = vmatprep.subr.mxu0 0.0
        %2734 = vmatpush1.msra.mxu0 0.0
        %2735 = vmatprep.subr.mxu0 0.0
        %2736 = vmatpush1.msra.mxu0 0.0
        %2737 = vmatprep.subr.mxu0 0.0
        %2738 = vmatpush1.msra.mxu0 0.0
        %2739 = vmatprep.subr.mxu0 0.0
        %2740 = vmatpush1.msra.mxu0 0.0
        %2741 = vmatprep.subr.mxu0 0.0
        %2742 = vmatpush1.msra.mxu0 0.0
        %2743 = vmatprep.subr.mxu0 0.0
        %2744 = vmatpush1.msra.mxu0 0.0
        %2745 = vmatprep.subr.mxu0 0.0
        %2746 = vmatpush1.msra.mxu0 0.0
        %2747 = vmatprep.subr.mxu0 0.0
        %2748 = vmatpush1.msra.mxu0 0.0
        %2749 = vmatprep.subr.mxu0 0.0
        %2750 = vmatpush1.msra.mxu0 0.0
        %2751 = vmatprep.subr.mxu0 0.0
        %2752 = vmatpush1.msra.mxu0 0.0
        %2753 = vmatprep.subr.mxu0 0.0
        %2754 = vmatpush1.msra.mxu0 0.0
        %2755 = vmatprep.subr.mxu0 0.0
        %2756 = vmatpush1.msra.mxu0 0.0
        %2757 = vmatprep.subr.mxu0 0.0
        %2758 = vmatpush1.msra.mxu0 0.0
        %2759 = vmatprep.subr.mxu0 0.0
        %2760 = vmatpush1.msra.mxu0 0.0
        %2761 = vmatprep.mubr.f32.mxu0 0.0
        %2762 = vmatmul.mubr.f32.gmra.mrb[0].mxu0 %v2692
        %v2763 = vpop.f32.mrb[0].mxu0
        %v2764 = vadd.f32 %v2688, %v2763
        %v2765 = vpop.f32.mrb[0].mxu0
        %2766 = vdwg.mxu0
        %2768 = vset.pattern.permute.xlu0 0
        %2769 = vperm.xlu0 %2768, %v2449
        %v2770 = vpop.permute.xlu0 %2769
        %v2772 = vadd.f32 %v2764, %v2770
        %vm2773 = vcmp.ge.f32.partialorder %v2772, 0.0
        %v2774 = vmul.f32 %v2772, 0.01
        %v2775 = vsel %vm2773, %v2772, %v2774
        %vm2776 = vcmask 461824
        %v2777 = vsel %vm2776, %v2775, 0.0
        %2778 = vadd.xlane.f32.xlu0 %v2777
        %v2779 = vpop.xlane.xlu0 %2778
        %v2780 = vrcp.pop 57.0
        %v2781 = vmul.f32 %v2779, %v2780
        %v2782 = vsub.f32 %v2775, %v2781
        %v2783 = vmul.f32 %v2782, %v2782
        %v2784 = vsel %vm2776, %v2783, 0.0
        %2785 = vadd.xlane.f32.xlu0 %v2784
        %v2786 = vpop.xlane.xlu0 %2785
        %v2787 = vmul.f32 %v2786, %v2780
        %v2788 = vadd.f32 %v2787, 1e-05
        %v2789 = vrsqrt.pop %v2788
        %v2790 = vmul.f32 %v2782, %v2789
        %vm2791 = vcmask 465920
        %v2793 = vsel %vm2791, %v2790, 0
        %v2796 = vsel %vm1871, %v2084, 0
        %2798 = vmatprep.subr.mxu0 0.0
        %2799 = vmatpush1.msra.mxu0 %v2077
        %2800 = vmatprep.subr.mxu0 0.0
        %2801 = vmatpush1.msra.mxu0 %v2078
        %2802 = vmatprep.subr.mxu0 0.0
        %2803 = vmatpush1.msra.mxu0 %v2079
        %2804 = vmatprep.subr.mxu0 0.0
        %2805 = vmatpush1.msra.mxu0 %v2080
        %2806 = vmatprep.subr.mxu0 0.0
        %2807 = vmatpush1.msra.mxu0 %v2081
        %2808 = vmatprep.subr.mxu0 0.0
        %2809 = vmatpush1.msra.mxu0 %v2082
        %2810 = vmatprep.subr.mxu0 0.0
        %2811 = vmatpush1.msra.mxu0 %v2083
        %2812 = vmatprep.subr.mxu0 0.0
        %2813 = vmatpush1.msra.mxu0 %v2796
        %2814 = vmatprep.subr.mxu0 0.0
        %2815 = vmatpush1.msra.mxu0 0.0
        %2816 = vmatprep.subr.mxu0 0.0
        %2817 = vmatpush1.msra.mxu0 0.0
        %2818 = vmatprep.subr.mxu0 0.0
        %2819 = vmatpush1.msra.mxu0 0.0
        %2820 = vmatprep.subr.mxu0 0.0
        %2821 = vmatpush1.msra.mxu0 0.0
        %2822 = vmatprep.subr.mxu0 0.0
        %2823 = vmatpush1.msra.mxu0 0.0
        %2824 = vmatprep.subr.mxu0 0.0
        %2825 = vmatpush1.msra.mxu0 0.0
        %2826 = vmatprep.subr.mxu0 0.0
        %2827 = vmatpush1.msra.mxu0 0.0
        %2828 = vmatprep.subr.mxu0 0.0
        %2829 = vmatpush1.msra.mxu0 0.0
        %2830 = vmatprep.subr.mxu0 0.0
        %2831 = vmatpush1.msra.mxu0 0.0
        %2832 = vmatprep.subr.mxu0 0.0
        %2833 = vmatpush1.msra.mxu0 0.0
        %2834 = vmatprep.subr.mxu0 0.0
        %2835 = vmatpush1.msra.mxu0 0.0
        %2836 = vmatprep.subr.mxu0 0.0
        %2837 = vmatpush1.msra.mxu0 0.0
        %2838 = vmatprep.subr.mxu0 0.0
        %2839 = vmatpush1.msra.mxu0 0.0
        %2840 = vmatprep.subr.mxu0 0.0
        %2841 = vmatpush1.msra.mxu0 0.0
        %2842 = vmatprep.subr.mxu0 0.0
        %2843 = vmatpush1.msra.mxu0 0.0
        %2844 = vmatprep.subr.mxu0 0.0
        %2845 = vmatpush1.msra.mxu0 0.0
        %2846 = vmatprep.subr.mxu0 0.0
        %2847 = vmatpush1.msra.mxu0 0.0
        %2848 = vmatprep.subr.mxu0 0.0
        %2849 = vmatpush1.msra.mxu0 0.0
        %2850 = vmatprep.subr.mxu0 0.0
        %2851 = vmatpush1.msra.mxu0 0.0
        %2852 = vmatprep.subr.mxu0 0.0
        %2853 = vmatpush1.msra.mxu0 0.0
        %2854 = vmatprep.subr.mxu0 0.0
        %2855 = vmatpush1.msra.mxu0 0.0
        %2856 = vmatprep.subr.mxu0 0.0
        %2857 = vmatpush1.msra.mxu0 0.0
        %2858 = vmatprep.subr.mxu0 0.0
        %2859 = vmatpush1.msra.mxu0 0.0
        %2860 = vmatprep.subr.mxu0 0.0
        %2861 = vmatpush1.msra.mxu0 0.0
        %2862 = vmatprep.mubr.f32.mxu0 0.0
        %2863 = vmatmul.mubr.f32.gmra.mrb[0].mxu0 %v2793
        %v2864 = vpop.f32.mrb[0].mxu0
        %v2865 = vadd.f32 0.0, %v2864
        %v2866 = vpop.f32.mrb[0].mxu0
        %2867 = vdwg.mxu0
        %v2869 = vsel %vm1871, %v2130, 0
        %2871 = vmatprep.subr.mxu0 0.0
        %2872 = vmatpush1.msra.mxu0 %v2123
        %2873 = vmatprep.subr.mxu0 0.0
        %2874 = vmatpush1.msra.mxu0 %v2124
        %2875 = vmatprep.subr.mxu0 0.0
        %2876 = vmatpush1.msra.mxu0 %v2125
        %2877 = vmatprep.subr.mxu0 0.0
        %2878 = vmatpush1.msra.mxu0 %v2126
        %2879 = vmatprep.subr.mxu0 0.0
        %2880 = vmatpush1.msra.mxu0 %v2127
        %2881 = vmatprep.subr.mxu0 0.0
        %2882 = vmatpush1.msra.mxu0 %v2128
        %2883 = vmatprep.subr.mxu0 0.0
        %2884 = vmatpush1.msra.mxu0 %v2129
        %2885 = vmatprep.subr.mxu0 0.0
        %2886 = vmatpush1.msra.mxu0 %v2869
        %2887 = vmatprep.subr.mxu0 0.0
        %2888 = vmatpush1.msra.mxu0 0.0
        %2889 = vmatprep.subr.mxu0 0.0
        %2890 = vmatpush1.msra.mxu0 0.0
        %2891 = vmatprep.subr.mxu0 0.0
        %2892 = vmatpush1.msra.mxu0 0.0
        %2893 = vmatprep.subr.mxu0 0.0
        %2894 = vmatpush1.msra.mxu0 0.0
        %2895 = vmatprep.subr.mxu0 0.0
        %2896 = vmatpush1.msra.mxu0 0.0
        %2897 = vmatprep.subr.mxu0 0.0
        %2898 = vmatpush1.msra.mxu0 0.0
        %2899 = vmatprep.subr.mxu0 0.0
        %2900 = vmatpush1.msra.mxu0 0.0
        %2901 = vmatprep.subr.mxu0 0.0
        %2902 = vmatpush1.msra.mxu0 0.0
        %2903 = vmatprep.subr.mxu0 0.0
        %2904 = vmatpush1.msra.mxu0 0.0
        %2905 = vmatprep.subr.mxu0 0.0
        %2906 = vmatpush1.msra.mxu0 0.0
        %2907 = vmatprep.subr.mxu0 0.0
        %2908 = vmatpush1.msra.mxu0 0.0
        %2909 = vmatprep.subr.mxu0 0.0
        %2910 = vmatpush1.msra.mxu0 0.0
        %2911 = vmatprep.subr.mxu0 0.0
        %2912 = vmatpush1.msra.mxu0 0.0
        %2913 = vmatprep.subr.mxu0 0.0
        %2914 = vmatpush1.msra.mxu0 0.0
        %2915 = vmatprep.subr.mxu0 0.0
        %2916 = vmatpush1.msra.mxu0 0.0
        %2917 = vmatprep.subr.mxu0 0.0
        %2918 = vmatpush1.msra.mxu0 0.0
        %2919 = vmatprep.subr.mxu0 0.0
        %2920 = vmatpush1.msra.mxu0 0.0
        %2921 = vmatprep.subr.mxu0 0.0
        %2922 = vmatpush1.msra.mxu0 0.0
        %2923 = vmatprep.subr.mxu0 0.0
        %2924 = vmatpush1.msra.mxu0 0.0
        %2925 = vmatprep.subr.mxu0 0.0
        %2926 = vmatpush1.msra.mxu0 0.0
        %2927 = vmatprep.subr.mxu0 0.0
        %2928 = vmatpush1.msra.mxu0 0.0
        %2929 = vmatprep.subr.mxu0 0.0
        %2930 = vmatpush1.msra.mxu0 0.0
        %2931 = vmatprep.subr.mxu0 0.0
        %2932 = vmatpush1.msra.mxu0 0.0
        %2933 = vmatprep.subr.mxu0 0.0
        %2934 = vmatpush1.msra.mxu0 0.0
        %2935 = vmatprep.mubr.f32.mxu0 0.0
        %2936 = vmatmul.mubr.f32.gmra.mrb[0].mxu0 %v2793
        %v2937 = vpop.f32.mrb[0].mxu0
        %v2938 = vadd.f32 0.0, %v2937
        %v2939 = vpop.f32.mrb[0].mxu0
        %2940 = vdwg.mxu0
        %v2942 = vsel %vm2288, %v2451, 0
        %v2945 = vsel %vm1581, %v2938, 0
        %2947 = vmatprep.subr.mxu0 0.0
        %2948 = vmatpush1.msra.mxu0 %v2945
        %2949 = vmatprep.subr.mxu0 0.0
        %2950 = vmatpush1.msra.mxu0 0.0
        %2951 = vmatprep.subr.mxu0 0.0
        %2952 = vmatpush1.msra.mxu0 0.0
        %2953 = vmatprep.subr.mxu0 0.0
        %2954 = vmatpush1.msra.mxu0 0.0
        %2955 = vmatprep.subr.mxu0 0.0
        %2956 = vmatpush1.msra.mxu0 0.0
        %2957 = vmatprep.subr.mxu0 0.0
        %2958 = vmatpush1.msra.mxu0 0.0
        %2959 = vmatprep.subr.mxu0 0.0
        %2960 = vmatpush1.msra.mxu0 0.0
        %2961 = vmatprep.subr.mxu0 0.0
        %2962 = vmatpush1.msra.mxu0 0.0
        %2963 = vmatprep.subr.mxu0 0.0
        %2964 = vmatpush1.msra.mxu0 0.0
        %2965 = vmatprep.subr.mxu0 0.0
        %2966 = vmatpush1.msra.mxu0 0.0
        %2967 = vmatprep.subr.mxu0 0.0
        %2968 = vmatpush1.msra.mxu0 0.0
        %2969 = vmatprep.subr.mxu0 0.0
        %2970 = vmatpush1.msra.mxu0 0.0
        %2971 = vmatprep.subr.mxu0 0.0
        %2972 = vmatpush1.msra.mxu0 0.0
        %2973 = vmatprep.subr.mxu0 0.0
        %2974 = vmatpush1.msra.mxu0 0.0
        %2975 = vmatprep.subr.mxu0 0.0
        %2976 = vmatpush1.msra.mxu0 0.0
        %2977 = vmatprep.subr.mxu0 0.0
        %2978 = vmatpush1.msra.mxu0 0.0
        %2979 = vmatprep.subr.mxu0 0.0
        %2980 = vmatpush1.msra.mxu0 0.0
        %2981 = vmatprep.subr.mxu0 0.0
        %2982 = vmatpush1.msra.mxu0 0.0
        %2983 = vmatprep.subr.mxu0 0.0
        %2984 = vmatpush1.msra.mxu0 0.0
        %2985 = vmatprep.subr.mxu0 0.0
        %2986 = vmatpush1.msra.mxu0 0.0
        %2987 = vmatprep.subr.mxu0 0.0
        %2988 = vmatpush1.msra.mxu0 0.0
        %2989 = vmatprep.subr.mxu0 0.0
        %2990 = vmatpush1.msra.mxu0 0.0
        %2991 = vmatprep.subr.mxu0 0.0
        %2992 = vmatpush1.msra.mxu0 0.0
        %2993 = vmatprep.subr.mxu0 0.0
        %2994 = vmatpush1.msra.mxu0 0.0
        %2995 = vmatprep.subr.mxu0 0.0
        %2996 = vmatpush1.msra.mxu0 0.0
        %2997 = vmatprep.subr.mxu0 0.0
        %2998 = vmatpush1.msra.mxu0 0.0
        %2999 = vmatprep.subr.mxu0 0.0
        %3000 = vmatpush1.msra.mxu0 0.0
        %3001 = vmatprep.subr.mxu0 0.0
        %3002 = vmatpush1.msra.mxu0 0.0
        %3003 = vmatprep.subr.mxu0 0.0
        %3004 = vmatpush1.msra.mxu0 0.0
        %3005 = vmatprep.subr.mxu0 0.0
        %3006 = vmatpush1.msra.mxu0 0.0
        %3007 = vmatprep.subr.mxu0 0.0
        %3008 = vmatpush1.msra.mxu0 0.0
        %3009 = vmatprep.subr.mxu0 0.0
        %3010 = vmatpush1.msra.mxu0 0.0
        %3011 = vmatprep.mubr.f32.mxu0 0.0
        %3012 = vmatmul.mubr.f32.gmra.mrb[0].mxu0 %v2942
        %v3013 = vpop.f32.mrb[0].mxu0
        %v3014 = vadd.f32 0.0, %v3013
        %v3015 = vpop.f32.mrb[0].mxu0
        %3016 = vdwg.mxu0
        %v3018 = vsel %vm2288, %v2450, 0
        %v3021 = vsel %vm1581, %v2865, 0
        %3023 = vmatprep.subr.mxu0 0.0
        %3024 = vmatpush1.msra.mxu0 %v3021
        %3025 = vmatprep.subr.mxu0 0.0
        %3026 = vmatpush1.msra.mxu0 0.0
        %3027 = vmatprep.subr.mxu0 0.0
        %3028 = vmatpush1.msra.mxu0 0.0
        %3029 = vmatprep.subr.mxu0 0.0
        %3030 = vmatpush1.msra.mxu0 0.0
        %3031 = vmatprep.subr.mxu0 0.0
        %3032 = vmatpush1.msra.mxu0 0.0
        %3033 = vmatprep.subr.mxu0 0.0
        %3034 = vmatpush1.msra.mxu0 0.0
        %3035 = vmatprep.subr.mxu0 0.0
        %3036 = vmatpush1.msra.mxu0 0.0
        %3037 = vmatprep.subr.mxu0 0.0
        %3038 = vmatpush1.msra.mxu0 0.0
        %3039 = vmatprep.subr.mxu0 0.0
        %3040 = vmatpush1.msra.mxu0 0.0
        %3041 = vmatprep.subr.mxu0 0.0
        %3042 = vmatpush1.msra.mxu0 0.0
        %3043 = vmatprep.subr.mxu0 0.0
        %3044 = vmatpush1.msra.mxu0 0.0
        %3045 = vmatprep.subr.mxu0 0.0
        %3046 = vmatpush1.msra.mxu0 0.0
        %3047 = vmatprep.subr.mxu0 0.0
        %3048 = vmatpush1.msra.mxu0 0.0
        %3049 = vmatprep.subr.mxu0 0.0
        %3050 = vmatpush1.msra.mxu0 0.0
        %3051 = vmatprep.subr.mxu0 0.0
        %3052 = vmatpush1.msra.mxu0 0.0
        %3053 = vmatprep.subr.mxu0 0.0
        %3054 = vmatpush1.msra.mxu0 0.0
        %3055 = vmatprep.subr.mxu0 0.0
        %3056 = vmatpush1.msra.mxu0 0.0
        %3057 = vmatprep.subr.mxu0 0.0
        %3058 = vmatpush1.msra.mxu0 0.0
        %3059 = vmatprep.subr.mxu0 0.0
        %3060 = vmatpush1.msra.mxu0 0.0
        %3061 = vmatprep.subr.mxu0 0.0
        %3062 = vmatpush1.msra.mxu0 0.0
        %3063 = vmatprep.subr.mxu0 0.0
        %3064 = vmatpush1.msra.mxu0 0.0
        %3065 = vmatprep.subr.mxu0 0.0
        %3066 = vmatpush1.msra.mxu0 0.0
        %3067 = vmatprep.subr.mxu0 0.0
        %3068 = vmatpush1.msra.mxu0 0.0
        %3069 = vmatprep.subr.mxu0 0.0
        %3070 = vmatpush1.msra.mxu0 0.0
        %3071 = vmatprep.subr.mxu0 0.0
        %3072 = vmatpush1.msra.mxu0 0.0
        %3073 = vmatprep.subr.mxu0 0.0
        %3074 = vmatpush1.msra.mxu0 0.0
        %3075 = vmatprep.subr.mxu0 0.0
        %3076 = vmatpush1.msra.mxu0 0.0
        %3077 = vmatprep.subr.mxu0 0.0
        %3078 = vmatpush1.msra.mxu0 0.0
        %3079 = vmatprep.subr.mxu0 0.0
        %3080 = vmatpush1.msra.mxu0 0.0
        %3081 = vmatprep.subr.mxu0 0.0
        %3082 = vmatpush1.msra.mxu0 0.0
        %3083 = vmatprep.subr.mxu0 0.0
        %3084 = vmatpush1.msra.mxu0 0.0
        %3085 = vmatprep.subr.mxu0 0.0
        %3086 = vmatpush1.msra.mxu0 0.0
        %3087 = vmatprep.mubr.f32.mxu0 0.0
        %3088 = vmatmul.mubr.f32.gmra.mrb[0].mxu0 %v3018
        %v3089 = vpop.f32.mrb[0].mxu0
        %v3090 = vadd.f32 %v3014, %v3089
        %v3091 = vpop.f32.mrb[0].mxu0
        %3092 = vdwg.mxu0
        %3094 = vset.pattern.permute.xlu0 0
        %3095 = vperm.xlu0 %3094, %v2452
        %v3096 = vpop.permute.xlu0 %3095
        %v3098 = vadd.f32 %v3090, %v3096
        %v3099 = vld [vmem:[%s29] sm:$0xf]
        %v3100 = vld [vmem:[%s31] sm:$0xf]
        %v3101 = vld [vmem:[%s33] sm:$0xf]
        %v3102 = vld [vmem:[%s35] sm:$0xf]
        %v3103 = vld [vmem:[%s37] sm:$0xf]
        %v3104 = vld [vmem:[%s39] sm:$0xf]
        %vm3105 = vcmp.ge.f32.partialorder %v3098, 0.0
        %v3106 = vmul.f32 %v3098, 0.01
        %v3107 = vsel %vm3105, %v3098, %v3106
        %vm3108 = vcmask 224256
        %v3109 = vsel %vm3108, %v3107, 0.0
        %3110 = vadd.xlane.f32.xlu0 %v3109
        %v3111 = vpop.xlane.xlu0 %3110
        %v3112 = vrcp.pop 28.0
        %v3113 = vmul.f32 %v3111, %v3112
        %v3114 = vsub.f32 %v3107, %v3113
        %v3115 = vmul.f32 %v3114, %v3114
        %v3116 = vsel %vm3108, %v3115, 0.0
        %3117 = vadd.xlane.f32.xlu0 %v3116
        %v3118 = vpop.xlane.xlu0 %3117
        %v3119 = vmul.f32 %v3118, %v3112
        %v3120 = vadd.f32 %v3119, 1e-05
        %v3121 = vrsqrt.pop %v3120
        %v3122 = vmul.f32 %v3114, %v3121
        %vm3123 = vcmask 228352
        %v3125 = vsel %vm3123, %v3122, 0
        %v3128 = vsel %vm1581, %v1709, 0
        %3130 = vmatprep.subr.mxu0 0.0
        %3131 = vmatpush1.msra.mxu0 %v1706
        %3132 = vmatprep.subr.mxu0 0.0
        %3133 = vmatpush1.msra.mxu0 %v1707
        %3134 = vmatprep.subr.mxu0 0.0
        %3135 = vmatpush1.msra.mxu0 %v1708
        %3136 = vmatprep.subr.mxu0 0.0
        %3137 = vmatpush1.msra.mxu0 %v3128
        %3138 = vmatprep.subr.mxu0 0.0
        %3139 = vmatpush1.msra.mxu0 0.0
        %3140 = vmatprep.subr.mxu0 0.0
        %3141 = vmatpush1.msra.mxu0 0.0
        %3142 = vmatprep.subr.mxu0 0.0
        %3143 = vmatpush1.msra.mxu0 0.0
        %3144 = vmatprep.subr.mxu0 0.0
        %3145 = vmatpush1.msra.mxu0 0.0
        %3146 = vmatprep.subr.mxu0 0.0
        %3147 = vmatpush1.msra.mxu0 0.0
        %3148 = vmatprep.subr.mxu0 0.0
        %3149 = vmatpush1.msra.mxu0 0.0
        %3150 = vmatprep.subr.mxu0 0.0
        %3151 = vmatpush1.msra.mxu0 0.0
        %3152 = vmatprep.subr.mxu0 0.0
        %3153 = vmatpush1.msra.mxu0 0.0
        %3154 = vmatprep.subr.mxu0 0.0
        %3155 = vmatpush1.msra.mxu0 0.0
        %3156 = vmatprep.subr.mxu0 0.0
        %3157 = vmatpush1.msra.mxu0 0.0
        %3158 = vmatprep.subr.mxu0 0.0
        %3159 = vmatpush1.msra.mxu0 0.0
        %3160 = vmatprep.subr.mxu0 0.0
        %3161 = vmatpush1.msra.mxu0 0.0
        %3162 = vmatprep.subr.mxu0 0.0
        %3163 = vmatpush1.msra.mxu0 0.0
        %3164 = vmatprep.subr.mxu0 0.0
        %3165 = vmatpush1.msra.mxu0 0.0
        %3166 = vmatprep.subr.mxu0 0.0
        %3167 = vmatpush1.msra.mxu0 0.0
        %3168 = vmatprep.subr.mxu0 0.0
        %3169 = vmatpush1.msra.mxu0 0.0
        %3170 = vmatprep.subr.mxu0 0.0
        %3171 = vmatpush1.msra.mxu0 0.0
        %3172 = vmatprep.subr.mxu0 0.0
        %3173 = vmatpush1.msra.mxu0 0.0
        %3174 = vmatprep.subr.mxu0 0.0
        %3175 = vmatpush1.msra.mxu0 0.0
        %3176 = vmatprep.subr.mxu0 0.0
        %3177 = vmatpush1.msra.mxu0 0.0
        %3178 = vmatprep.subr.mxu0 0.0
        %3179 = vmatpush1.msra.mxu0 0.0
        %3180 = vmatprep.subr.mxu0 0.0
        %3181 = vmatpush1.msra.mxu0 0.0
        %3182 = vmatprep.subr.mxu0 0.0
        %3183 = vmatpush1.msra.mxu0 0.0
        %3184 = vmatprep.subr.mxu0 0.0
        %3185 = vmatpush1.msra.mxu0 0.0
        %3186 = vmatprep.subr.mxu0 0.0
        %3187 = vmatpush1.msra.mxu0 0.0
        %3188 = vmatprep.subr.mxu0 0.0
        %3189 = vmatpush1.msra.mxu0 0.0
        %3190 = vmatprep.subr.mxu0 0.0
        %3191 = vmatpush1.msra.mxu0 0.0
        %3192 = vmatprep.subr.mxu0 0.0
        %3193 = vmatpush1.msra.mxu0 0.0
        %3194 = vmatprep.mubr.f32.mxu0 0.0
        %3195 = vmatmul.mubr.f32.gmra.mrb[0].mxu0 %v3125
        %v3196 = vpop.f32.mrb[0].mxu0
        %v3197 = vadd.f32 0.0, %v3196
        %v3198 = vpop.f32.mrb[0].mxu0
        %3199 = vdwg.mxu0
        %v3201 = vsel %vm1581, %v1566, 0
        %3203 = vmatprep.subr.mxu0 0.0
        %3204 = vmatpush1.msra.mxu0 %v1563
        %3205 = vmatprep.subr.mxu0 0.0
        %3206 = vmatpush1.msra.mxu0 %v1564
        %3207 = vmatprep.subr.mxu0 0.0
        %3208 = vmatpush1.msra.mxu0 %v1565
        %3209 = vmatprep.subr.mxu0 0.0
        %3210 = vmatpush1.msra.mxu0 %v3201
        %3211 = vmatprep.subr.mxu0 0.0
        %3212 = vmatpush1.msra.mxu0 0.0
        %3213 = vmatprep.subr.mxu0 0.0
        %3214 = vmatpush1.msra.mxu0 0.0
        %3215 = vmatprep.subr.mxu0 0.0
        %3216 = vmatpush1.msra.mxu0 0.0
        %3217 = vmatprep.subr.mxu0 0.0
        %3218 = vmatpush1.msra.mxu0 0.0
        %3219 = vmatprep.subr.mxu0 0.0
        %3220 = vmatpush1.msra.mxu0 0.0
        %3221 = vmatprep.subr.mxu0 0.0
        %3222 = vmatpush1.msra.mxu0 0.0
        %3223 = vmatprep.subr.mxu0 0.0
        %3224 = vmatpush1.msra.mxu0 0.0
        %3225 = vmatprep.subr.mxu0 0.0
        %3226 = vmatpush1.msra.mxu0 0.0
        %3227 = vmatprep.subr.mxu0 0.0
        %3228 = vmatpush1.msra.mxu0 0.0
        %3229 = vmatprep.subr.mxu0 0.0
        %3230 = vmatpush1.msra.mxu0 0.0
        %3231 = vmatprep.subr.mxu0 0.0
        %3232 = vmatpush1.msra.mxu0 0.0
        %3233 = vmatprep.subr.mxu0 0.0
        %3234 = vmatpush1.msra.mxu0 0.0
        %3235 = vmatprep.subr.mxu0 0.0
        %3236 = vmatpush1.msra.mxu0 0.0
        %3237 = vmatprep.subr.mxu0 0.0
        %3238 = vmatpush1.msra.mxu0 0.0
        %3239 = vmatprep.subr.mxu0 0.0
        %3240 = vmatpush1.msra.mxu0 0.0
        %3241 = vmatprep.subr.mxu0 0.0
        %3242 = vmatpush1.msra.mxu0 0.0
        %3243 = vmatprep.subr.mxu0 0.0
        %3244 = vmatpush1.msra.mxu0 0.0
        %3245 = vmatprep.subr.mxu0 0.0
        %3246 = vmatpush1.msra.mxu0 0.0
        %3247 = vmatprep.subr.mxu0 0.0
        %3248 = vmatpush1.msra.mxu0 0.0
        %3249 = vmatprep.subr.mxu0 0.0
        %3250 = vmatpush1.msra.mxu0 0.0
        %3251 = vmatprep.subr.mxu0 0.0
        %3252 = vmatpush1.msra.mxu0 0.0
        %3253 = vmatprep.subr.mxu0 0.0
        %3254 = vmatpush1.msra.mxu0 0.0
        %3255 = vmatprep.subr.mxu0 0.0
        %3256 = vmatpush1.msra.mxu0 0.0
        %3257 = vmatprep.subr.mxu0 0.0
        %3258 = vmatpush1.msra.mxu0 0.0
        %3259 = vmatprep.subr.mxu0 0.0
        %3260 = vmatpush1.msra.mxu0 0.0
        %3261 = vmatprep.subr.mxu0 0.0
        %3262 = vmatpush1.msra.mxu0 0.0
        %3263 = vmatprep.subr.mxu0 0.0
        %3264 = vmatpush1.msra.mxu0 0.0
        %3265 = vmatprep.subr.mxu0 0.0
        %3266 = vmatpush1.msra.mxu0 0.0
        %3267 = vmatprep.mubr.f32.mxu0 0.0
        %3268 = vmatmul.mubr.f32.gmra.mrb[0].mxu0 %v3125
        %v3269 = vpop.f32.mrb[0].mxu0
        %v3270 = vadd.f32 0.0, %v3269
        %v3271 = vpop.f32.mrb[0].mxu0
        %3272 = vdwg.mxu0
        %v3274 = vsel %vm2288, %v3100, 0
        %v3277 = vsel %vm1581, %v3270, 0
        %3279 = vmatprep.subr.mxu0 0.0
        %3280 = vmatpush1.msra.mxu0 %v3277
        %3281 = vmatprep.subr.mxu0 0.0
        %3282 = vmatpush1.msra.mxu0 0.0
        %3283 = vmatprep.subr.mxu0 0.0
        %3284 = vmatpush1.msra.mxu0 0.0
        %3285 = vmatprep.subr.mxu0 0.0
        %3286 = vmatpush1.msra.mxu0 0.0
        %3287 = vmatprep.subr.mxu0 0.0
        %3288 = vmatpush1.msra.mxu0 0.0
        %3289 = vmatprep.subr.mxu0 0.0
        %3290 = vmatpush1.msra.mxu0 0.0
        %3291 = vmatprep.subr.mxu0 0.0
        %3292 = vmatpush1.msra.mxu0 0.0
        %3293 = vmatprep.subr.mxu0 0.0
        %3294 = vmatpush1.msra.mxu0 0.0
        %3295 = vmatprep.subr.mxu0 0.0
        %3296 = vmatpush1.msra.mxu0 0.0
        %3297 = vmatprep.subr.mxu0 0.0
        %3298 = vmatpush1.msra.mxu0 0.0
        %3299 = vmatprep.subr.mxu0 0.0
        %3300 = vmatpush1.msra.mxu0 0.0
        %3301 = vmatprep.subr.mxu0 0.0
        %3302 = vmatpush1.msra.mxu0 0.0
        %3303 = vmatprep.subr.mxu0 0.0
        %3304 = vmatpush1.msra.mxu0 0.0
        %3305 = vmatprep.subr.mxu0 0.0
        %3306 = vmatpush1.msra.mxu0 0.0
        %3307 = vmatprep.subr.mxu0 0.0
        %3308 = vmatpush1.msra.mxu0 0.0
        %3309 = vmatprep.subr.mxu0 0.0
        %3310 = vmatpush1.msra.mxu0 0.0
        %3311 = vmatprep.subr.mxu0 0.0
        %3312 = vmatpush1.msra.mxu0 0.0
        %3313 = vmatprep.subr.mxu0 0.0
        %3314 = vmatpush1.msra.mxu0 0.0
        %3315 = vmatprep.subr.mxu0 0.0
        %3316 = vmatpush1.msra.mxu0 0.0
        %3317 = vmatprep.subr.mxu0 0.0
        %3318 = vmatpush1.msra.mxu0 0.0
        %3319 = vmatprep.subr.mxu0 0.0
        %3320 = vmatpush1.msra.mxu0 0.0
        %3321 = vmatprep.subr.mxu0 0.0
        %3322 = vmatpush1.msra.mxu0 0.0
        %3323 = vmatprep.subr.mxu0 0.0
        %3324 = vmatpush1.msra.mxu0 0.0
        %3325 = vmatprep.subr.mxu0 0.0
        %3326 = vmatpush1.msra.mxu0 0.0
        %3327 = vmatprep.subr.mxu0 0.0
        %3328 = vmatpush1.msra.mxu0 0.0
        %3329 = vmatprep.subr.mxu0 0.0
        %3330 = vmatpush1.msra.mxu0 0.0
        %3331 = vmatprep.subr.mxu0 0.0
        %3332 = vmatpush1.msra.mxu0 0.0
        %3333 = vmatprep.subr.mxu0 0.0
        %3334 = vmatpush1.msra.mxu0 0.0
        %3335 = vmatprep.subr.mxu0 0.0
        %3336 = vmatpush1.msra.mxu0 0.0
        %3337 = vmatprep.subr.mxu0 0.0
        %3338 = vmatpush1.msra.mxu0 0.0
        %3339 = vmatprep.subr.mxu0 0.0
        %3340 = vmatpush1.msra.mxu0 0.0
        %3341 = vmatprep.subr.mxu0 0.0
        %3342 = vmatpush1.msra.mxu0 0.0
        %3343 = vmatprep.mubr.f32.mxu0 0.0
        %3344 = vmatmul.mubr.f32.gmra.mrb[0].mxu0 %v3274
        %v3345 = vpop.f32.mrb[0].mxu0
        %v3346 = vadd.f32 0.0, %v3345
        %v3347 = vpop.f32.mrb[0].mxu0
        %3348 = vdwg.mxu0
        %v3350 = vsel %vm2288, %v3099, 0
        %v3353 = vsel %vm1581, %v3197, 0
        %3355 = vmatprep.subr.mxu0 0.0
        %3356 = vmatpush1.msra.mxu0 %v3353
        %3357 = vmatprep.subr.mxu0 0.0
        %3358 = vmatpush1.msra.mxu0 0.0
        %3359 = vmatprep.subr.mxu0 0.0
        %3360 = vmatpush1.msra.mxu0 0.0
        %3361 = vmatprep.subr.mxu0 0.0
        %3362 = vmatpush1.msra.mxu0 0.0
        %3363 = vmatprep.subr.mxu0 0.0
        %3364 = vmatpush1.msra.mxu0 0.0
        %3365 = vmatprep.subr.mxu0 0.0
        %3366 = vmatpush1.msra.mxu0 0.0
        %3367 = vmatprep.subr.mxu0 0.0
        %3368 = vmatpush1.msra.mxu0 0.0
        %3369 = vmatprep.subr.mxu0 0.0
        %3370 = vmatpush1.msra.mxu0 0.0
        %3371 = vmatprep.subr.mxu0 0.0
        %3372 = vmatpush1.msra.mxu0 0.0
        %3373 = vmatprep.subr.mxu0 0.0
        %3374 = vmatpush1.msra.mxu0 0.0
        %3375 = vmatprep.subr.mxu0 0.0
        %3376 = vmatpush1.msra.mxu0 0.0
        %3377 = vmatprep.subr.mxu0 0.0
        %3378 = vmatpush1.msra.mxu0 0.0
        %3379 = vmatprep.subr.mxu0 0.0
        %3380 = vmatpush1.msra.mxu0 0.0
        %3381 = vmatprep.subr.mxu0 0.0
        %3382 = vmatpush1.msra.mxu0 0.0
        %3383 = vmatprep.subr.mxu0 0.0
        %3384 = vmatpush1.msra.mxu0 0.0
        %3385 = vmatprep.subr.mxu0 0.0
        %3386 = vmatpush1.msra.mxu0 0.0
        %3387 = vmatprep.subr.mxu0 0.0
        %3388 = vmatpush1.msra.mxu0 0.0
        %3389 = vmatprep.subr.mxu0 0.0
        %3390 = vmatpush1.msra.mxu0 0.0
        %3391 = vmatprep.subr.mxu0 0.0
        %3392 = vmatpush1.msra.mxu0 0.0
        %3393 = vmatprep.subr.mxu0 0.0
        %3394 = vmatpush1.msra.mxu0 0.0
        %3395 = vmatprep.subr.mxu0 0.0
        %3396 = vmatpush1.msra.mxu0 0.0
        %3397 = vmatprep.subr.mxu0 0.0
        %3398 = vmatpush1.msra.mxu0 0.0
        %3399 = vmatprep.subr.mxu0 0.0
        %3400 = vmatpush1.msra.mxu0 0.0
        %3401 = vmatprep.subr.mxu0 0.0
        %3402 = vmatpush1.msra.mxu0 0.0
        %3403 = vmatprep.subr.mxu0 0.0
        %3404 = vmatpush1.msra.mxu0 0.0
        %3405 = vmatprep.subr.mxu0 0.0
        %3406 = vmatpush1.msra.mxu0 0.0
        %3407 = vmatprep.subr.mxu0 0.0
        %3408 = vmatpush1.msra.mxu0 0.0
        %3409 = vmatprep.subr.mxu0 0.0
        %3410 = vmatpush1.msra.mxu0 0.0
        %3411 = vmatprep.subr.mxu0 0.0
        %3412 = vmatpush1.msra.mxu0 0.0
        %3413 = vmatprep.subr.mxu0 0.0
        %3414 = vmatpush1.msra.mxu0 0.0
        %3415 = vmatprep.subr.mxu0 0.0
        %3416 = vmatpush1.msra.mxu0 0.0
        %3417 = vmatprep.subr.mxu0 0.0
        %3418 = vmatpush1.msra.mxu0 0.0
        %3419 = vmatprep.mubr.f32.mxu0 0.0
        %3420 = vmatmul.mubr.f32.gmra.mrb[0].mxu0 %v3350
        %v3421 = vpop.f32.mrb[0].mxu0
        %v3422 = vadd.f32 %v3346, %v3421
        %v3423 = vpop.f32.mrb[0].mxu0
        %3424 = vdwg.mxu0
        %3426 = vset.pattern.permute.xlu0 0
        %3427 = vperm.xlu0 %3426, %v3101
        %v3428 = vpop.permute.xlu0 %3427
        %v3430 = vadd.f32 %v3422, %v3428
        %vm3431 = vcmp.ge.f32.partialorder %v3430, 0.0
        %v3432 = vmul.f32 %v3430, 0.01
        %v3433 = vsel %vm3431, %v3430, %v3432
        %vm3434 = vcmask 232448
        %v3435 = vsel %vm3434, %v3433, 0.0
        %3436 = vadd.xlane.f32.xlu0 %v3435
        %v3437 = vpop.xlane.xlu0 %3436
        %v3438 = vrcp.pop 29.0
        %v3439 = vmul.f32 %v3437, %v3438
        %v3440 = vsub.f32 %v3433, %v3439
        %v3441 = vmul.f32 %v3440, %v3440
        %v3442 = vsel %vm3434, %v3441, 0.0
        %3443 = vadd.xlane.f32.xlu0 %v3442
        %v3444 = vpop.xlane.xlu0 %3443
        %v3445 = vmul.f32 %v3444, %v3438
        %v3446 = vadd.f32 %v3445, 1e-05
        %v3447 = vrsqrt.pop %v3446
        %v3448 = vmul.f32 %v3440, %v3447
        %vm3449 = vcmask 236544
        %v3451 = vsel %vm3449, %v3448, 0
        %vm3453 = vcmask 1044480
        %v3455 = vsel %vm3453, %v2080, 0
        %3457 = vmatprep.subr.mxu0 0.0
        %3458 = vmatpush1.msra.mxu0 %v2077
        %3459 = vmatprep.subr.mxu0 0.0
        %3460 = vmatpush1.msra.mxu0 %v2078
        %3461 = vmatprep.subr.mxu0 0.0
        %3462 = vmatpush1.msra.mxu0 %v2079
        %3463 = vmatprep.subr.mxu0 0.0
        %3464 = vmatpush1.msra.mxu0 %v3455
        %3465 = vmatprep.subr.mxu0 0.0
        %3466 = vmatpush1.msra.mxu0 0.0
        %3467 = vmatprep.subr.mxu0 0.0
        %3468 = vmatpush1.msra.mxu0 0.0
        %3469 = vmatprep.subr.mxu0 0.0
        %3470 = vmatpush1.msra.mxu0 0.0
        %3471 = vmatprep.subr.mxu0 0.0
        %3472 = vmatpush1.msra.mxu0 0.0
        %3473 = vmatprep.subr.mxu0 0.0
        %3474 = vmatpush1.msra.mxu0 0.0
        %3475 = vmatprep.subr.mxu0 0.0
        %3476 = vmatpush1.msra.mxu0 0.0
        %3477 = vmatprep.subr.mxu0 0.0
        %3478 = vmatpush1.msra.mxu0 0.0
        %3479 = vmatprep.subr.mxu0 0.0
        %3480 = vmatpush1.msra.mxu0 0.0
        %3481 = vmatprep.subr.mxu0 0.0
        %3482 = vmatpush1.msra.mxu0 0.0
        %3483 = vmatprep.subr.mxu0 0.0
        %3484 = vmatpush1.msra.mxu0 0.0
        %3485 = vmatprep.subr.mxu0 0.0
        %3486 = vmatpush1.msra.mxu0 0.0
        %3487 = vmatprep.subr.mxu0 0.0
        %3488 = vmatpush1.msra.mxu0 0.0
        %3489 = vmatprep.subr.mxu0 0.0
        %3490 = vmatpush1.msra.mxu0 0.0
        %3491 = vmatprep.subr.mxu0 0.0
        %3492 = vmatpush1.msra.mxu0 0.0
        %3493 = vmatprep.subr.mxu0 0.0
        %3494 = vmatpush1.msra.mxu0 0.0
        %3495 = vmatprep.subr.mxu0 0.0
        %3496 = vmatpush1.msra.mxu0 0.0
        %3497 = vmatprep.subr.mxu0 0.0
        %3498 = vmatpush1.msra.mxu0 0.0
        %3499 = vmatprep.subr.mxu0 0.0
        %3500 = vmatpush1.msra.mxu0 0.0
        %3501 = vmatprep.subr.mxu0 0.0
        %3502 = vmatpush1.msra.mxu0 0.0
        %3503 = vmatprep.subr.mxu0 0.0
        %3504 = vmatpush1.msra.mxu0 0.0
        %3505 = vmatprep.subr.mxu0 0.0
        %3506 = vmatpush1.msra.mxu0 0.0
        %3507 = vmatprep.subr.mxu0 0.0
        %3508 = vmatpush1.msra.mxu0 0.0
        %3509 = vmatprep.subr.mxu0 0.0
        %3510 = vmatpush1.msra.mxu0 0.0
        %3511 = vmatprep.subr.mxu0 0.0
        %3512 = vmatpush1.msra.mxu0 0.0
        %3513 = vmatprep.subr.mxu0 0.0
        %3514 = vmatpush1.msra.mxu0 0.0
        %3515 = vmatprep.subr.mxu0 0.0
        %3516 = vmatpush1.msra.mxu0 0.0
        %3517 = vmatprep.subr.mxu0 0.0
        %3518 = vmatpush1.msra.mxu0 0.0
        %3519 = vmatprep.subr.mxu0 0.0
        %3520 = vmatpush1.msra.mxu0 0.0
        %3521 = vmatprep.mubr.f32.mxu0 0.0
        %3522 = vmatmul.mubr.f32.gmra.mrb[0].mxu0 %v3451
        %v3523 = vpop.f32.mrb[0].mxu0
        %v3524 = vadd.f32 0.0, %v3523
        %v3525 = vpop.f32.mrb[0].mxu0
        %3526 = vdwg.mxu0
        %v3528 = vsel %vm3453, %v2126, 0
        %3530 = vmatprep.subr.mxu0 0.0
        %3531 = vmatpush1.msra.mxu0 %v2123
        %3532 = vmatprep.subr.mxu0 0.0
        %3533 = vmatpush1.msra.mxu0 %v2124
        %3534 = vmatprep.subr.mxu0 0.0
        %3535 = vmatpush1.msra.mxu0 %v2125
        %3536 = vmatprep.subr.mxu0 0.0
        %3537 = vmatpush1.msra.mxu0 %v3528
        %3538 = vmatprep.subr.mxu0 0.0
        %3539 = vmatpush1.msra.mxu0 0.0
        %3540 = vmatprep.subr.mxu0 0.0
        %3541 = vmatpush1.msra.mxu0 0.0
        %3542 = vmatprep.subr.mxu0 0.0
        %3543 = vmatpush1.msra.mxu0 0.0
        %3544 = vmatprep.subr.mxu0 0.0
        %3545 = vmatpush1.msra.mxu0 0.0
        %3546 = vmatprep.subr.mxu0 0.0
        %3547 = vmatpush1.msra.mxu0 0.0
        %3548 = vmatprep.subr.mxu0 0.0
        %3549 = vmatpush1.msra.mxu0 0.0
        %3550 = vmatprep.subr.mxu0 0.0
        %3551 = vmatpush1.msra.mxu0 0.0
        %3552 = vmatprep.subr.mxu0 0.0
        %3553 = vmatpush1.msra.mxu0 0.0
        %3554 = vmatprep.subr.mxu0 0.0
        %3555 = vmatpush1.msra.mxu0 0.0
        %3556 = vmatprep.subr.mxu0 0.0
        %3557 = vmatpush1.msra.mxu0 0.0
        %3558 = vmatprep.subr.mxu0 0.0
        %3559 = vmatpush1.msra.mxu0 0.0
        %3560 = vmatprep.subr.mxu0 0.0
        %3561 = vmatpush1.msra.mxu0 0.0
        %3562 = vmatprep.subr.mxu0 0.0
        %3563 = vmatpush1.msra.mxu0 0.0
        %3564 = vmatprep.subr.mxu0 0.0
        %3565 = vmatpush1.msra.mxu0 0.0
        %3566 = vmatprep.subr.mxu0 0.0
        %3567 = vmatpush1.msra.mxu0 0.0
        %3568 = vmatprep.subr.mxu0 0.0
        %3569 = vmatpush1.msra.mxu0 0.0
        %3570 = vmatprep.subr.mxu0 0.0
        %3571 = vmatpush1.msra.mxu0 0.0
        %3572 = vmatprep.subr.mxu0 0.0
        %3573 = vmatpush1.msra.mxu0 0.0
        %3574 = vmatprep.subr.mxu0 0.0
        %3575 = vmatpush1.msra.mxu0 0.0
        %3576 = vmatprep.subr.mxu0 0.0
        %3577 = vmatpush1.msra.mxu0 0.0
        %3578 = vmatprep.subr.mxu0 0.0
        %3579 = vmatpush1.msra.mxu0 0.0
        %3580 = vmatprep.subr.mxu0 0.0
        %3581 = vmatpush1.msra.mxu0 0.0
        %3582 = vmatprep.subr.mxu0 0.0
        %3583 = vmatpush1.msra.mxu0 0.0
        %3584 = vmatprep.subr.mxu0 0.0
        %3585 = vmatpush1.msra.mxu0 0.0
        %3586 = vmatprep.subr.mxu0 0.0
        %3587 = vmatpush1.msra.mxu0 0.0
        %3588 = vmatprep.subr.mxu0 0.0
        %3589 = vmatpush1.msra.mxu0 0.0
        %3590 = vmatprep.subr.mxu0 0.0
        %3591 = vmatpush1.msra.mxu0 0.0
        %3592 = vmatprep.subr.mxu0 0.0
        %3593 = vmatpush1.msra.mxu0 0.0
        %3594 = vmatprep.mubr.f32.mxu0 0.0
        %3595 = vmatmul.mubr.f32.gmra.mrb[0].mxu0 %v3451
        %v3596 = vpop.f32.mrb[0].mxu0
        %v3597 = vadd.f32 0.0, %v3596
        %v3598 = vpop.f32.mrb[0].mxu0
        %3599 = vdwg.mxu0
        %v3601 = vsel %vm2288, %v3103, 0
        %v3604 = vsel %vm1581, %v3597, 0
        %3606 = vmatprep.subr.mxu0 0.0
        %3607 = vmatpush1.msra.mxu0 %v3604
        %3608 = vmatprep.subr.mxu0 0.0
        %3609 = vmatpush1.msra.mxu0 0.0
        %3610 = vmatprep.subr.mxu0 0.0
        %3611 = vmatpush1.msra.mxu0 0.0
        %3612 = vmatprep.subr.mxu0 0.0
        %3613 = vmatpush1.msra.mxu0 0.0
        %3614 = vmatprep.subr.mxu0 0.0
        %3615 = vmatpush1.msra.mxu0 0.0
        %3616 = vmatprep.subr.mxu0 0.0
        %3617 = vmatpush1.msra.mxu0 0.0
        %3618 = vmatprep.subr.mxu0 0.0
        %3619 = vmatpush1.msra.mxu0 0.0
        %3620 = vmatprep.subr.mxu0 0.0
        %3621 = vmatpush1.msra.mxu0 0.0
        %3622 = vmatprep.subr.mxu0 0.0
        %3623 = vmatpush1.msra.mxu0 0.0
        %3624 = vmatprep.subr.mxu0 0.0
        %3625 = vmatpush1.msra.mxu0 0.0
        %3626 = vmatprep.subr.mxu0 0.0
        %3627 = vmatpush1.msra.mxu0 0.0
        %3628 = vmatprep.subr.mxu0 0.0
        %3629 = vmatpush1.msra.mxu0 0.0
        %3630 = vmatprep.subr.mxu0 0.0
        %3631 = vmatpush1.msra.mxu0 0.0
        %3632 = vmatprep.subr.mxu0 0.0
        %3633 = vmatpush1.msra.mxu0 0.0
        %3634 = vmatprep.subr.mxu0 0.0
        %3635 = vmatpush1.msra.mxu0 0.0
        %3636 = vmatprep.subr.mxu0 0.0
        %3637 = vmatpush1.msra.mxu0 0.0
        %3638 = vmatprep.subr.mxu0 0.0
        %3639 = vmatpush1.msra.mxu0 0.0
        %3640 = vmatprep.subr.mxu0 0.0
        %3641 = vmatpush1.msra.mxu0 0.0
        %3642 = vmatprep.subr.mxu0 0.0
        %3643 = vmatpush1.msra.mxu0 0.0
        %3644 = vmatprep.subr.mxu0 0.0
        %3645 = vmatpush1.msra.mxu0 0.0
        %3646 = vmatprep.subr.mxu0 0.0
        %3647 = vmatpush1.msra.mxu0 0.0
        %3648 = vmatprep.subr.mxu0 0.0
        %3649 = vmatpush1.msra.mxu0 0.0
        %3650 = vmatprep.subr.mxu0 0.0
        %3651 = vmatpush1.msra.mxu0 0.0
        %3652 = vmatprep.subr.mxu0 0.0
        %3653 = vmatpush1.msra.mxu0 0.0
        %3654 = vmatprep.subr.mxu0 0.0
        %3655 = vmatpush1.msra.mxu0 0.0
        %3656 = vmatprep.subr.mxu0 0.0
        %3657 = vmatpush1.msra.mxu0 0.0
        %3658 = vmatprep.subr.mxu0 0.0
        %3659 = vmatpush1.msra.mxu0 0.0
        %3660 = vmatprep.subr.mxu0 0.0
        %3661 = vmatpush1.msra.mxu0 0.0
        %3662 = vmatprep.subr.mxu0 0.0
        %3663 = vmatpush1.msra.mxu0 0.0
        %3664 = vmatprep.subr.mxu0 0.0
        %3665 = vmatpush1.msra.mxu0 0.0
        %3666 = vmatprep.subr.mxu0 0.0
        %3667 = vmatpush1.msra.mxu0 0.0
        %3668 = vmatprep.subr.mxu0 0.0
        %3669 = vmatpush1.msra.mxu0 0.0
        %3670 = vmatprep.mubr.f32.mxu0 0.0
        %3671 = vmatmul.mubr.f32.gmra.mrb[0].mxu0 %v3601
        %v3672 = vpop.f32.mrb[0].mxu0
        %v3673 = vadd.f32 0.0, %v3672
        %v3674 = vpop.f32.mrb[0].mxu0
        %3675 = vdwg.mxu0
        %v3677 = vsel %vm2288, %v3102, 0
        %v3680 = vsel %vm1581, %v3524, 0
        %3682 = vmatprep.subr.mxu0 0.0
        %3683 = vmatpush1.msra.mxu0 %v3680
        %3684 = vmatprep.subr.mxu0 0.0
        %3685 = vmatpush1.msra.mxu0 0.0
        %3686 = vmatprep.subr.mxu0 0.0
        %3687 = vmatpush1.msra.mxu0 0.0
        %3688 = vmatprep.subr.mxu0 0.0
        %3689 = vmatpush1.msra.mxu0 0.0
        %3690 = vmatprep.subr.mxu0 0.0
        %3691 = vmatpush1.msra.mxu0 0.0
        %3692 = vmatprep.subr.mxu0 0.0
        %3693 = vmatpush1.msra.mxu0 0.0
        %3694 = vmatprep.subr.mxu0 0.0
        %3695 = vmatpush1.msra.mxu0 0.0
        %3696 = vmatprep.subr.mxu0 0.0
        %3697 = vmatpush1.msra.mxu0 0.0
        %3698 = vmatprep.subr.mxu0 0.0
        %3699 = vmatpush1.msra.mxu0 0.0
        %3700 = vmatprep.subr.mxu0 0.0
        %3701 = vmatpush1.msra.mxu0 0.0
        %3702 = vmatprep.subr.mxu0 0.0
        %3703 = vmatpush1.msra.mxu0 0.0
        %3704 = vmatprep.subr.mxu0 0.0
        %3705 = vmatpush1.msra.mxu0 0.0
        %3706 = vmatprep.subr.mxu0 0.0
        %3707 = vmatpush1.msra.mxu0 0.0
        %3708 = vmatprep.subr.mxu0 0.0
        %3709 = vmatpush1.msra.mxu0 0.0
        %3710 = vmatprep.subr.mxu0 0.0
        %3711 = vmatpush1.msra.mxu0 0.0
        %3712 = vmatprep.subr.mxu0 0.0
        %3713 = vmatpush1.msra.mxu0 0.0
        %3714 = vmatprep.subr.mxu0 0.0
        %3715 = vmatpush1.msra.mxu0 0.0
        %3716 = vmatprep.subr.mxu0 0.0
        %3717 = vmatpush1.msra.mxu0 0.0
        %3718 = vmatprep.subr.mxu0 0.0
        %3719 = vmatpush1.msra.mxu0 0.0
        %3720 = vmatprep.subr.mxu0 0.0
        %3721 = vmatpush1.msra.mxu0 0.0
        %3722 = vmatprep.subr.mxu0 0.0
        %3723 = vmatpush1.msra.mxu0 0.0
        %3724 = vmatprep.subr.mxu0 0.0
        %3725 = vmatpush1.msra.mxu0 0.0
        %3726 = vmatprep.subr.mxu0 0.0
        %3727 = vmatpush1.msra.mxu0 0.0
        %3728 = vmatprep.subr.mxu0 0.0
        %3729 = vmatpush1.msra.mxu0 0.0
        %3730 = vmatprep.subr.mxu0 0.0
        %3731 = vmatpush1.msra.mxu0 0.0
        %3732 = vmatprep.subr.mxu0 0.0
        %3733 = vmatpush1.msra.mxu0 0.0
        %3734 = vmatprep.subr.mxu0 0.0
        %3735 = vmatpush1.msra.mxu0 0.0
        %3736 = vmatprep.subr.mxu0 0.0
        %3737 = vmatpush1.msra.mxu0 0.0
        %3738 = vmatprep.subr.mxu0 0.0
        %3739 = vmatpush1.msra.mxu0 0.0
        %3740 = vmatprep.subr.mxu0 0.0
        %3741 = vmatpush1.msra.mxu0 0.0
        %3742 = vmatprep.subr.mxu0 0.0
        %3743 = vmatpush1.msra.mxu0 0.0
        %3744 = vmatprep.subr.mxu0 0.0
        %3745 = vmatpush1.msra.mxu0 0.0
        %3746 = vmatprep.mubr.f32.mxu0 0.0
        %3747 = vmatmul.mubr.f32.gmra.mrb[0].mxu0 %v3677
        %v3748 = vpop.f32.mrb[0].mxu0
        %v3749 = vadd.f32 %v3673, %v3748
        %v3750 = vpop.f32.mrb[0].mxu0
        %3751 = vdwg.mxu0
        %3753 = vset.pattern.permute.xlu0 0
        %3754 = vperm.xlu0 %3753, %v3104
        %v3755 = vpop.permute.xlu0 %3754
        %v3757 = vadd.f32 %v3749, %v3755
        %v3758 = vld [vmem:[%s41] sm:$0xf]
        %v3759 = vld [vmem:[%s43] sm:$0xf]
        %v3760 = vld [vmem:[%s45] sm:$0xf]
        %v3761 = vld [vmem:[%s47] sm:$0xf]
        %v3762 = vld [vmem:[%s49] sm:$0xf]
        %v3763 = vld [vmem:[%s51] sm:$0xf]
        %vm3764 = vcmp.ge.f32.partialorder %v3757, 0.0
        %v3765 = vmul.f32 %v3757, 0.01
        %v3766 = vsel %vm3764, %v3757, %v3765
        %vm3767 = vcmask 109568
        %v3768 = vsel %vm3767, %v3766, 0.0
        %3769 = vadd.xlane.f32.xlu0 %v3768
        %v3770 = vpop.xlane.xlu0 %3769
        %v3771 = vrcp.pop 14.0
        %v3772 = vmul.f32 %v3770, %v3771
        %v3773 = vsub.f32 %v3766, %v3772
        %v3774 = vmul.f32 %v3773, %v3773
        %v3775 = vsel %vm3767, %v3774, 0.0
        %3776 = vadd.xlane.f32.xlu0 %v3775
        %v3777 = vpop.xlane.xlu0 %3776
        %v3778 = vmul.f32 %v3777, %v3771
        %v3779 = vadd.f32 %v3778, 1e-05
        %v3780 = vrsqrt.pop %v3779
        %v3781 = vmul.f32 %v3773, %v3780
        %vm3782 = vcmask 113664
        %v3784 = vsel %vm3782, %v3781, 0
        %vm3786 = vcmask 1045504
        %v3788 = vsel %vm3786, %v1707, 0
        %3790 = vmatprep.subr.mxu0 0.0
        %3791 = vmatpush1.msra.mxu0 %v1706
        %3792 = vmatprep.subr.mxu0 0.0
        %3793 = vmatpush1.msra.mxu0 %v3788
        %3794 = vmatprep.subr.mxu0 0.0
        %3795 = vmatpush1.msra.mxu0 0.0
        %3796 = vmatprep.subr.mxu0 0.0
        %3797 = vmatpush1.msra.mxu0 0.0
        %3798 = vmatprep.subr.mxu0 0.0
        %3799 = vmatpush1.msra.mxu0 0.0
        %3800 = vmatprep.subr.mxu0 0.0
        %3801 = vmatpush1.msra.mxu0 0.0
        %3802 = vmatprep.subr.mxu0 0.0
        %3803 = vmatpush1.msra.mxu0 0.0
        %3804 = vmatprep.subr.mxu0 0.0
        %3805 = vmatpush1.msra.mxu0 0.0
        %3806 = vmatprep.subr.mxu0 0.0
        %3807 = vmatpush1.msra.mxu0 0.0
        %3808 = vmatprep.subr.mxu0 0.0
        %3809 = vmatpush1.msra.mxu0 0.0
        %3810 = vmatprep.subr.mxu0 0.0
        %3811 = vmatpush1.msra.mxu0 0.0
        %3812 = vmatprep.subr.mxu0 0.0
        %3813 = vmatpush1.msra.mxu0 0.0
        %3814 = vmatprep.subr.mxu0 0.0
        %3815 = vmatpush1.msra.mxu0 0.0
        %3816 = vmatprep.subr.mxu0 0.0
        %3817 = vmatpush1.msra.mxu0 0.0
        %3818 = vmatprep.subr.mxu0 0.0
        %3819 = vmatpush1.msra.mxu0 0.0
        %3820 = vmatprep.subr.mxu0 0.0
        %3821 = vmatpush1.msra.mxu0 0.0
        %3822 = vmatprep.subr.mxu0 0.0
        %3823 = vmatpush1.msra.mxu0 0.0
        %3824 = vmatprep.subr.mxu0 0.0
        %3825 = vmatpush1.msra.mxu0 0.0
        %3826 = vmatprep.subr.mxu0 0.0
        %3827 = vmatpush1.msra.mxu0 0.0
        %3828 = vmatprep.subr.mxu0 0.0
        %3829 = vmatpush1.msra.mxu0 0.0
        %3830 = vmatprep.subr.mxu0 0.0
        %3831 = vmatpush1.msra.mxu0 0.0
        %3832 = vmatprep.subr.mxu0 0.0
        %3833 = vmatpush1.msra.mxu0 0.0
        %3834 = vmatprep.subr.mxu0 0.0
        %3835 = vmatpush1.msra.mxu0 0.0
        %3836 = vmatprep.subr.mxu0 0.0
        %3837 = vmatpush1.msra.mxu0 0.0
        %3838 = vmatprep.subr.mxu0 0.0
        %3839 = vmatpush1.msra.mxu0 0.0
        %3840 = vmatprep.subr.mxu0 0.0
        %3841 = vmatpush1.msra.mxu0 0.0
        %3842 = vmatprep.subr.mxu0 0.0
        %3843 = vmatpush1.msra.mxu0 0.0
        %3844 = vmatprep.subr.mxu0 0.0
        %3845 = vmatpush1.msra.mxu0 0.0
        %3846 = vmatprep.subr.mxu0 0.0
        %3847 = vmatpush1.msra.mxu0 0.0
        %3848 = vmatprep.subr.mxu0 0.0
        %3849 = vmatpush1.msra.mxu0 0.0
        %3850 = vmatprep.subr.mxu0 0.0
        %3851 = vmatpush1.msra.mxu0 0.0
        %3852 = vmatprep.subr.mxu0 0.0
        %3853 = vmatpush1.msra.mxu0 0.0
        %3854 = vmatprep.mubr.f32.mxu0 0.0
        %3855 = vmatmul.mubr.f32.gmra.mrb[0].mxu0 %v3784
        %v3856 = vpop.f32.mrb[0].mxu0
        %v3857 = vadd.f32 0.0, %v3856
        %v3858 = vpop.f32.mrb[0].mxu0
        %3859 = vdwg.mxu0
        %v3861 = vsel %vm3786, %v1564, 0
        %3863 = vmatprep.subr.mxu0 0.0
        %3864 = vmatpush1.msra.mxu0 %v1563
        %3865 = vmatprep.subr.mxu0 0.0
        %3866 = vmatpush1.msra.mxu0 %v3861
        %3867 = vmatprep.subr.mxu0 0.0
        %3868 = vmatpush1.msra.mxu0 0.0
        %3869 = vmatprep.subr.mxu0 0.0
        %3870 = vmatpush1.msra.mxu0 0.0
        %3871 = vmatprep.subr.mxu0 0.0
        %3872 = vmatpush1.msra.mxu0 0.0
        %3873 = vmatprep.subr.mxu0 0.0
        %3874 = vmatpush1.msra.mxu0 0.0
        %3875 = vmatprep.subr.mxu0 0.0
        %3876 = vmatpush1.msra.mxu0 0.0
        %3877 = vmatprep.subr.mxu0 0.0
        %3878 = vmatpush1.msra.mxu0 0.0
        %3879 = vmatprep.subr.mxu0 0.0
        %3880 = vmatpush1.msra.mxu0 0.0
        %3881 = vmatprep.subr.mxu0 0.0
        %3882 = vmatpush1.msra.mxu0 0.0
        %3883 = vmatprep.subr.mxu0 0.0
        %3884 = vmatpush1.msra.mxu0 0.0
        %3885 = vmatprep.subr.mxu0 0.0
        %3886 = vmatpush1.msra.mxu0 0.0
        %3887 = vmatprep.subr.mxu0 0.0
        %3888 = vmatpush1.msra.mxu0 0.0
        %3889 = vmatprep.subr.mxu0 0.0
        %3890 = vmatpush1.msra.mxu0 0.0
        %3891 = vmatprep.subr.mxu0 0.0
        %3892 = vmatpush1.msra.mxu0 0.0
        %3893 = vmatprep.subr.mxu0 0.0
        %3894 = vmatpush1.msra.mxu0 0.0
        %3895 = vmatprep.subr.mxu0 0.0
        %3896 = vmatpush1.msra.mxu0 0.0
        %3897 = vmatprep.subr.mxu0 0.0
        %3898 = vmatpush1.msra.mxu0 0.0
        %3899 = vmatprep.subr.mxu0 0.0
        %3900 = vmatpush1.msra.mxu0 0.0
        %3901 = vmatprep.subr.mxu0 0.0
        %3902 = vmatpush1.msra.mxu0 0.0
        %3903 = vmatprep.subr.mxu0 0.0
        %3904 = vmatpush1.msra.mxu0 0.0
        %3905 = vmatprep.subr.mxu0 0.0
        %3906 = vmatpush1.msra.mxu0 0.0
        %3907 = vmatprep.subr.mxu0 0.0
        %3908 = vmatpush1.msra.mxu0 0.0
        %3909 = vmatprep.subr.mxu0 0.0
        %3910 = vmatpush1.msra.mxu0 0.0
        %3911 = vmatprep.subr.mxu0 0.0
        %3912 = vmatpush1.msra.mxu0 0.0
        %3913 = vmatprep.subr.mxu0 0.0
        %3914 = vmatpush1.msra.mxu0 0.0
        %3915 = vmatprep.subr.mxu0 0.0
        %3916 = vmatpush1.msra.mxu0 0.0
        %3917 = vmatprep.subr.mxu0 0.0
        %3918 = vmatpush1.msra.mxu0 0.0
        %3919 = vmatprep.subr.mxu0 0.0
        %3920 = vmatpush1.msra.mxu0 0.0
        %3921 = vmatprep.subr.mxu0 0.0
        %3922 = vmatpush1.msra.mxu0 0.0
        %3923 = vmatprep.subr.mxu0 0.0
        %3924 = vmatpush1.msra.mxu0 0.0
        %3925 = vmatprep.subr.mxu0 0.0
        %3926 = vmatpush1.msra.mxu0 0.0
        %3927 = vmatprep.mubr.f32.mxu0 0.0
        %3928 = vmatmul.mubr.f32.gmra.mrb[0].mxu0 %v3784
        %v3929 = vpop.f32.mrb[0].mxu0
        %v3930 = vadd.f32 0.0, %v3929
        %v3931 = vpop.f32.mrb[0].mxu0
        %3932 = vdwg.mxu0
        %v3934 = vsel %vm2288, %v3759, 0
        %v3937 = vsel %vm1581, %v3930, 0
        %3939 = vmatprep.subr.mxu0 0.0
        %3940 = vmatpush1.msra.mxu0 %v3937
        %3941 = vmatprep.subr.mxu0 0.0
        %3942 = vmatpush1.msra.mxu0 0.0
        %3943 = vmatprep.subr.mxu0 0.0
        %3944 = vmatpush1.msra.mxu0 0.0
        %3945 = vmatprep.subr.mxu0 0.0
        %3946 = vmatpush1.msra.mxu0 0.0
        %3947 = vmatprep.subr.mxu0 0.0
        %3948 = vmatpush1.msra.mxu0 0.0
        %3949 = vmatprep.subr.mxu0 0.0
        %3950 = vmatpush1.msra.mxu0 0.0
        %3951 = vmatprep.subr.mxu0 0.0
        %3952 = vmatpush1.msra.mxu0 0.0
        %3953 = vmatprep.subr.mxu0 0.0
        %3954 = vmatpush1.msra.mxu0 0.0
        %3955 = vmatprep.subr.mxu0 0.0
        %3956 = vmatpush1.msra.mxu0 0.0
        %3957 = vmatprep.subr.mxu0 0.0
        %3958 = vmatpush1.msra.mxu0 0.0
        %3959 = vmatprep.subr.mxu0 0.0
        %3960 = vmatpush1.msra.mxu0 0.0
        %3961 = vmatprep.subr.mxu0 0.0
        %3962 = vmatpush1.msra.mxu0 0.0
        %3963 = vmatprep.subr.mxu0 0.0
        %3964 = vmatpush1.msra.mxu0 0.0
        %3965 = vmatprep.subr.mxu0 0.0
        %3966 = vmatpush1.msra.mxu0 0.0
        %3967 = vmatprep.subr.mxu0 0.0
        %3968 = vmatpush1.msra.mxu0 0.0
        %3969 = vmatprep.subr.mxu0 0.0
        %3970 = vmatpush1.msra.mxu0 0.0
        %3971 = vmatprep.subr.mxu0 0.0
        %3972 = vmatpush1.msra.mxu0 0.0
        %3973 = vmatprep.subr.mxu0 0.0
        %3974 = vmatpush1.msra.mxu0 0.0
        %3975 = vmatprep.subr.mxu0 0.0
        %3976 = vmatpush1.msra.mxu0 0.0
        %3977 = vmatprep.subr.mxu0 0.0
        %3978 = vmatpush1.msra.mxu0 0.0
        %3979 = vmatprep.subr.mxu0 0.0
        %3980 = vmatpush1.msra.mxu0 0.0
        %3981 = vmatprep.subr.mxu0 0.0
        %3982 = vmatpush1.msra.mxu0 0.0
        %3983 = vmatprep.subr.mxu0 0.0
        %3984 = vmatpush1.msra.mxu0 0.0
        %3985 = vmatprep.subr.mxu0 0.0
        %3986 = vmatpush1.msra.mxu0 0.0
        %3987 = vmatprep.subr.mxu0 0.0
        %3988 = vmatpush1.msra.mxu0 0.0
        %3989 = vmatprep.subr.mxu0 0.0
        %3990 = vmatpush1.msra.mxu0 0.0
        %3991 = vmatprep.subr.mxu0 0.0
        %3992 = vmatpush1.msra.mxu0 0.0
        %3993 = vmatprep.subr.mxu0 0.0
        %3994 = vmatpush1.msra.mxu0 0.0
        %3995 = vmatprep.subr.mxu0 0.0
        %3996 = vmatpush1.msra.mxu0 0.0
        %3997 = vmatprep.subr.mxu0 0.0
        %3998 = vmatpush1.msra.mxu0 0.0
        %3999 = vmatprep.subr.mxu0 0.0
        %4000 = vmatpush1.msra.mxu0 0.0
        %4001 = vmatprep.subr.mxu0 0.0
        %4002 = vmatpush1.msra.mxu0 0.0
        %4003 = vmatprep.mubr.f32.mxu0 0.0
        %4004 = vmatmul.mubr.f32.gmra.mrb[0].mxu0 %v3934
        %v4005 = vpop.f32.mrb[0].mxu0
        %v4006 = vadd.f32 0.0, %v4005
        %v4007 = vpop.f32.mrb[0].mxu0
        %4008 = vdwg.mxu0
        %v4010 = vsel %vm2288, %v3758, 0
        %v4013 = vsel %vm1581, %v3857, 0
        %4015 = vmatprep.subr.mxu0 0.0
        %4016 = vmatpush1.msra.mxu0 %v4013
        %4017 = vmatprep.subr.mxu0 0.0
        %4018 = vmatpush1.msra.mxu0 0.0
        %4019 = vmatprep.subr.mxu0 0.0
        %4020 = vmatpush1.msra.mxu0 0.0
        %4021 = vmatprep.subr.mxu0 0.0
        %4022 = vmatpush1.msra.mxu0 0.0
        %4023 = vmatprep.subr.mxu0 0.0
        %4024 = vmatpush1.msra.mxu0 0.0
        %4025 = vmatprep.subr.mxu0 0.0
        %4026 = vmatpush1.msra.mxu0 0.0
        %4027 = vmatprep.subr.mxu0 0.0
        %4028 = vmatpush1.msra.mxu0 0.0
        %4029 = vmatprep.subr.mxu0 0.0
        %4030 = vmatpush1.msra.mxu0 0.0
        %4031 = vmatprep.subr.mxu0 0.0
        %4032 = vmatpush1.msra.mxu0 0.0
        %4033 = vmatprep.subr.mxu0 0.0
        %4034 = vmatpush1.msra.mxu0 0.0
        %4035 = vmatprep.subr.mxu0 0.0
        %4036 = vmatpush1.msra.mxu0 0.0
        %4037 = vmatprep.subr.mxu0 0.0
        %4038 = vmatpush1.msra.mxu0 0.0
        %4039 = vmatprep.subr.mxu0 0.0
        %4040 = vmatpush1.msra.mxu0 0.0
        %4041 = vmatprep.subr.mxu0 0.0
        %4042 = vmatpush1.msra.mxu0 0.0
        %4043 = vmatprep.subr.mxu0 0.0
        %4044 = vmatpush1.msra.mxu0 0.0
        %4045 = vmatprep.subr.mxu0 0.0
        %4046 = vmatpush1.msra.mxu0 0.0
        %4047 = vmatprep.subr.mxu0 0.0
        %4048 = vmatpush1.msra.mxu0 0.0
        %4049 = vmatprep.subr.mxu0 0.0
        %4050 = vmatpush1.msra.mxu0 0.0
        %4051 = vmatprep.subr.mxu0 0.0
        %4052 = vmatpush1.msra.mxu0 0.0
        %4053 = vmatprep.subr.mxu0 0.0
        %4054 = vmatpush1.msra.mxu0 0.0
        %4055 = vmatprep.subr.mxu0 0.0
        %4056 = vmatpush1.msra.mxu0 0.0
        %4057 = vmatprep.subr.mxu0 0.0
        %4058 = vmatpush1.msra.mxu0 0.0
        %4059 = vmatprep.subr.mxu0 0.0
        %4060 = vmatpush1.msra.mxu0 0.0
        %4061 = vmatprep.subr.mxu0 0.0
        %4062 = vmatpush1.msra.mxu0 0.0
        %4063 = vmatprep.subr.mxu0 0.0
        %4064 = vmatpush1.msra.mxu0 0.0
        %4065 = vmatprep.subr.mxu0 0.0
        %4066 = vmatpush1.msra.mxu0 0.0
        %4067 = vmatprep.subr.mxu0 0.0
        %4068 = vmatpush1.msra.mxu0 0.0
        %4069 = vmatprep.subr.mxu0 0.0
        %4070 = vmatpush1.msra.mxu0 0.0
        %4071 = vmatprep.subr.mxu0 0.0
        %4072 = vmatpush1.msra.mxu0 0.0
        %4073 = vmatprep.subr.mxu0 0.0
        %4074 = vmatpush1.msra.mxu0 0.0
        %4075 = vmatprep.subr.mxu0 0.0
        %4076 = vmatpush1.msra.mxu0 0.0
        %4077 = vmatprep.subr.mxu0 0.0
        %4078 = vmatpush1.msra.mxu0 0.0
        %4079 = vmatprep.mubr.f32.mxu0 0.0
        %4080 = vmatmul.mubr.f32.gmra.mrb[0].mxu0 %v4010
        %v4081 = vpop.f32.mrb[0].mxu0
        %v4082 = vadd.f32 %v4006, %v4081
        %v4083 = vpop.f32.mrb[0].mxu0
        %4084 = vdwg.mxu0
        %4086 = vset.pattern.permute.xlu0 0
        %4087 = vperm.xlu0 %4086, %v3760
        %v4088 = vpop.permute.xlu0 %4087
        %v4090 = vadd.f32 %v4082, %v4088
        %vm4091 = vcmp.ge.f32.partialorder %v4090, 0.0
        %v4092 = vmul.f32 %v4090, 0.01
        %v4093 = vsel %vm4091, %v4090, %v4092
        %vm4094 = vcmask 117760
        %v4095 = vsel %vm4094, %v4093, 0.0
        %4096 = vadd.xlane.f32.xlu0 %v4095
        %v4097 = vpop.xlane.xlu0 %4096
        %v4098 = vrcp.pop 15.0
        %v4099 = vmul.f32 %v4097, %v4098
        %v4100 = vsub.f32 %v4093, %v4099
        %v4101 = vmul.f32 %v4100, %v4100
        %v4102 = vsel %vm4094, %v4101, 0.0
        %4103 = vadd.xlane.f32.xlu0 %v4102
        %v4104 = vpop.xlane.xlu0 %4103
        %v4105 = vmul.f32 %v4104, %v4098
        %v4106 = vadd.f32 %v4105, 1e-05
        %v4107 = vrsqrt.pop %v4106
        %v4108 = vmul.f32 %v4100, %v4107
        %vm4109 = vcmask 121856
        %v4111 = vsel %vm4109, %v4108, 0
        %vm4113 = vcmask 1046528
        %v4115 = vsel %vm4113, %v2078, 0
        %4117 = vmatprep.subr.mxu0 0.0
        %4118 = vmatpush1.msra.mxu0 %v2077
        %4119 = vmatprep.subr.mxu0 0.0
        %4120 = vmatpush1.msra.mxu0 %v4115
        %4121 = vmatprep.subr.mxu0 0.0
        %4122 = vmatpush1.msra.mxu0 0.0
        %4123 = vmatprep.subr.mxu0 0.0
        %4124 = vmatpush1.msra.mxu0 0.0
        %4125 = vmatprep.subr.mxu0 0.0
        %4126 = vmatpush1.msra.mxu0 0.0
        %4127 = vmatprep.subr.mxu0 0.0
        %4128 = vmatpush1.msra.mxu0 0.0
        %4129 = vmatprep.subr.mxu0 0.0
        %4130 = vmatpush1.msra.mxu0 0.0
        %4131 = vmatprep.subr.mxu0 0.0
        %4132 = vmatpush1.msra.mxu0 0.0
        %4133 = vmatprep.subr.mxu0 0.0
        %4134 = vmatpush1.msra.mxu0 0.0
        %4135 = vmatprep.subr.mxu0 0.0
        %4136 = vmatpush1.msra.mxu0 0.0
        %4137 = vmatprep.subr.mxu0 0.0
        %4138 = vmatpush1.msra.mxu0 0.0
        %4139 = vmatprep.subr.mxu0 0.0
        %4140 = vmatpush1.msra.mxu0 0.0
        %4141 = vmatprep.subr.mxu0 0.0
        %4142 = vmatpush1.msra.mxu0 0.0
        %4143 = vmatprep.subr.mxu0 0.0
        %4144 = vmatpush1.msra.mxu0 0.0
        %4145 = vmatprep.subr.mxu0 0.0
        %4146 = vmatpush1.msra.mxu0 0.0
        %4147 = vmatprep.subr.mxu0 0.0
        %4148 = vmatpush1.msra.mxu0 0.0
        %4149 = vmatprep.subr.mxu0 0.0
        %4150 = vmatpush1.msra.mxu0 0.0
        %4151 = vmatprep.subr.mxu0 0.0
        %4152 = vmatpush1.msra.mxu0 0.0
        %4153 = vmatprep.subr.mxu0 0.0
        %4154 = vmatpush1.msra.mxu0 0.0
        %4155 = vmatprep.subr.mxu0 0.0
        %4156 = vmatpush1.msra.mxu0 0.0
        %4157 = vmatprep.subr.mxu0 0.0
        %4158 = vmatpush1.msra.mxu0 0.0
        %4159 = vmatprep.subr.mxu0 0.0
        %4160 = vmatpush1.msra.mxu0 0.0
        %4161 = vmatprep.subr.mxu0 0.0
        %4162 = vmatpush1.msra.mxu0 0.0
        %4163 = vmatprep.subr.mxu0 0.0
        %4164 = vmatpush1.msra.mxu0 0.0
        %4165 = vmatprep.subr.mxu0 0.0
        %4166 = vmatpush1.msra.mxu0 0.0
        %4167 = vmatprep.subr.mxu0 0.0
        %4168 = vmatpush1.msra.mxu0 0.0
        %4169 = vmatprep.subr.mxu0 0.0
        %4170 = vmatpush1.msra.mxu0 0.0
        %4171 = vmatprep.subr.mxu0 0.0
        %4172 = vmatpush1.msra.mxu0 0.0
        %4173 = vmatprep.subr.mxu0 0.0
        %4174 = vmatpush1.msra.mxu0 0.0
        %4175 = vmatprep.subr.mxu0 0.0
        %4176 = vmatpush1.msra.mxu0 0.0
        %4177 = vmatprep.subr.mxu0 0.0
        %4178 = vmatpush1.msra.mxu0 0.0
        %4179 = vmatprep.subr.mxu0 0.0
        %4180 = vmatpush1.msra.mxu0 0.0
        %4181 = vmatprep.mubr.f32.mxu0 0.0
        %4182 = vmatmul.mubr.f32.gmra.mrb[0].mxu0 %v4111
        %v4183 = vpop.f32.mrb[0].mxu0
        %v4184 = vadd.f32 0.0, %v4183
        %v4185 = vpop.f32.mrb[0].mxu0
        %4186 = vdwg.mxu0
        %v4188 = vsel %vm4113, %v2124, 0
        %4190 = vmatprep.subr.mxu0 0.0
        %4191 = vmatpush1.msra.mxu0 %v2123
        %4192 = vmatprep.subr.mxu0 0.0
        %4193 = vmatpush1.msra.mxu0 %v4188
        %4194 = vmatprep.subr.mxu0 0.0
        %4195 = vmatpush1.msra.mxu0 0.0
        %4196 = vmatprep.subr.mxu0 0.0
        %4197 = vmatpush1.msra.mxu0 0.0
        %4198 = vmatprep.subr.mxu0 0.0
        %4199 = vmatpush1.msra.mxu0 0.0
        %4200 = vmatprep.subr.mxu0 0.0
        %4201 = vmatpush1.msra.mxu0 0.0
        %4202 = vmatprep.subr.mxu0 0.0
        %4203 = vmatpush1.msra.mxu0 0.0
        %4204 = vmatprep.subr.mxu0 0.0
        %4205 = vmatpush1.msra.mxu0 0.0
        %4206 = vmatprep.subr.mxu0 0.0
        %4207 = vmatpush1.msra.mxu0 0.0
        %4208 = vmatprep.subr.mxu0 0.0
        %4209 = vmatpush1.msra.mxu0 0.0
        %4210 = vmatprep.subr.mxu0 0.0
        %4211 = vmatpush1.msra.mxu0 0.0
        %4212 = vmatprep.subr.mxu0 0.0
        %4213 = vmatpush1.msra.mxu0 0.0
        %4214 = vmatprep.subr.mxu0 0.0
        %4215 = vmatpush1.msra.mxu0 0.0
        %4216 = vmatprep.subr.mxu0 0.0
        %4217 = vmatpush1.msra.mxu0 0.0
        %4218 = vmatprep.subr.mxu0 0.0
        %4219 = vmatpush1.msra.mxu0 0.0
        %4220 = vmatprep.subr.mxu0 0.0
        %4221 = vmatpush1.msra.mxu0 0.0
        %4222 = vmatprep.subr.mxu0 0.0
        %4223 = vmatpush1.msra.mxu0 0.0
        %4224 = vmatprep.subr.mxu0 0.0
        %4225 = vmatpush1.msra.mxu0 0.0
        %4226 = vmatprep.subr.mxu0 0.0
        %4227 = vmatpush1.msra.mxu0 0.0
        %4228 = vmatprep.subr.mxu0 0.0
        %4229 = vmatpush1.msra.mxu0 0.0
        %4230 = vmatprep.subr.mxu0 0.0
        %4231 = vmatpush1.msra.mxu0 0.0
        %4232 = vmatprep.subr.mxu0 0.0
        %4233 = vmatpush1.msra.mxu0 0.0
        %4234 = vmatprep.subr.mxu0 0.0
        %4235 = vmatpush1.msra.mxu0 0.0
        %4236 = vmatprep.subr.mxu0 0.0
        %4237 = vmatpush1.msra.mxu0 0.0
        %4238 = vmatprep.subr.mxu0 0.0
        %4239 = vmatpush1.msra.mxu0 0.0
        %4240 = vmatprep.subr.mxu0 0.0
        %4241 = vmatpush1.msra.mxu0 0.0
        %4242 = vmatprep.subr.mxu0 0.0
        %4243 = vmatpush1.msra.mxu0 0.0
        %4244 = vmatprep.subr.mxu0 0.0
        %4245 = vmatpush1.msra.mxu0 0.0
        %4246 = vmatprep.subr.mxu0 0.0
        %4247 = vmatpush1.msra.mxu0 0.0
        %4248 = vmatprep.subr.mxu0 0.0
        %4249 = vmatpush1.msra.mxu0 0.0
        %4250 = vmatprep.subr.mxu0 0.0
        %4251 = vmatpush1.msra.mxu0 0.0
        %4252 = vmatprep.subr.mxu0 0.0
        %4253 = vmatpush1.msra.mxu0 0.0
        %4254 = vmatprep.mubr.f32.mxu0 0.0
        %4255 = vmatmul.mubr.f32.gmra.mrb[0].mxu0 %v4111
        %v4256 = vpop.f32.mrb[0].mxu0
        %v4257 = vadd.f32 0.0, %v4256
        %v4258 = vpop.f32.mrb[0].mxu0
        %4259 = vdwg.mxu0
        %v4261 = vsel %vm2288, %v3762, 0
        %v4264 = vsel %vm1581, %v4257, 0
        %4266 = vmatprep.subr.mxu0 0.0
        %4267 = vmatpush1.msra.mxu0 %v4264
        %4268 = vmatprep.subr.mxu0 0.0
        %4269 = vmatpush1.msra.mxu0 0.0
        %4270 = vmatprep.subr.mxu0 0.0
        %4271 = vmatpush1.msra.mxu0 0.0
        %4272 = vmatprep.subr.mxu0 0.0
        %4273 = vmatpush1.msra.mxu0 0.0
        %4274 = vmatprep.subr.mxu0 0.0
        %4275 = vmatpush1.msra.mxu0 0.0
        %4276 = vmatprep.subr.mxu0 0.0
        %4277 = vmatpush1.msra.mxu0 0.0
        %4278 = vmatprep.subr.mxu0 0.0
        %4279 = vmatpush1.msra.mxu0 0.0
        %4280 = vmatprep.subr.mxu0 0.0
        %4281 = vmatpush1.msra.mxu0 0.0
        %4282 = vmatprep.subr.mxu0 0.0
        %4283 = vmatpush1.msra.mxu0 0.0
        %4284 = vmatprep.subr.mxu0 0.0
        %4285 = vmatpush1.msra.mxu0 0.0
        %4286 = vmatprep.subr.mxu0 0.0
        %4287 = vmatpush1.msra.mxu0 0.0
        %4288 = vmatprep.subr.mxu0 0.0
        %4289 = vmatpush1.msra.mxu0 0.0
        %4290 = vmatprep.subr.mxu0 0.0
        %4291 = vmatpush1.msra.mxu0 0.0
        %4292 = vmatprep.subr.mxu0 0.0
        %4293 = vmatpush1.msra.mxu0 0.0
        %4294 = vmatprep.subr.mxu0 0.0
        %4295 = vmatpush1.msra.mxu0 0.0
        %4296 = vmatprep.subr.mxu0 0.0
        %4297 = vmatpush1.msra.mxu0 0.0
        %4298 = vmatprep.subr.mxu0 0.0
        %4299 = vmatpush1.msra.mxu0 0.0
        %4300 = vmatprep.subr.mxu0 0.0
        %4301 = vmatpush1.msra.mxu0 0.0
        %4302 = vmatprep.subr.mxu0 0.0
        %4303 = vmatpush1.msra.mxu0 0.0
        %4304 = vmatprep.subr.mxu0 0.0
        %4305 = vmatpush1.msra.mxu0 0.0
        %4306 = vmatprep.subr.mxu0 0.0
        %4307 = vmatpush1.msra.mxu0 0.0
        %4308 = vmatprep.subr.mxu0 0.0
        %4309 = vmatpush1.msra.mxu0 0.0
        %4310 = vmatprep.subr.mxu0 0.0
        %4311 = vmatpush1.msra.mxu0 0.0
        %4312 = vmatprep.subr.mxu0 0.0
        %4313 = vmatpush1.msra.mxu0 0.0
        %4314 = vmatprep.subr.mxu0 0.0
        %4315 = vmatpush1.msra.mxu0 0.0
        %4316 = vmatprep.subr.mxu0 0.0
        %4317 = vmatpush1.msra.mxu0 0.0
        %4318 = vmatprep.subr.mxu0 0.0
        %4319 = vmatpush1.msra.mxu0 0.0
        %4320 = vmatprep.subr.mxu0 0.0
        %4321 = vmatpush1.msra.mxu0 0.0
        %4322 = vmatprep.subr.mxu0 0.0
        %4323 = vmatpush1.msra.mxu0 0.0
        %4324 = vmatprep.subr.mxu0 0.0
        %4325 = vmatpush1.msra.mxu0 0.0
        %4326 = vmatprep.subr.mxu0 0.0
        %4327 = vmatpush1.msra.mxu0 0.0
        %4328 = vmatprep.subr.mxu0 0.0
        %4329 = vmatpush1.msra.mxu0 0.0
        %4330 = vmatprep.mubr.f32.mxu0 0.0
        %4331 = vmatmul.mubr.f32.gmra.mrb[0].mxu0 %v4261
        %v4332 = vpop.f32.mrb[0].mxu0
        %v4333 = vadd.f32 0.0, %v4332
        %v4334 = vpop.f32.mrb[0].mxu0
        %4335 = vdwg.mxu0
        %v4337 = vsel %vm2288, %v3761, 0
        %v4340 = vsel %vm1581, %v4184, 0
        %4342 = vmatprep.subr.mxu0 0.0
        %4343 = vmatpush1.msra.mxu0 %v4340
        %4344 = vmatprep.subr.mxu0 0.0
        %4345 = vmatpush1.msra.mxu0 0.0
        %4346 = vmatprep.subr.mxu0 0.0
        %4347 = vmatpush1.msra.mxu0 0.0
        %4348 = vmatprep.subr.mxu0 0.0
        %4349 = vmatpush1.msra.mxu0 0.0
        %4350 = vmatprep.subr.mxu0 0.0
        %4351 = vmatpush1.msra.mxu0 0.0
        %4352 = vmatprep.subr.mxu0 0.0
        %4353 = vmatpush1.msra.mxu0 0.0
        %4354 = vmatprep.subr.mxu0 0.0
        %4355 = vmatpush1.msra.mxu0 0.0
        %4356 = vmatprep.subr.mxu0 0.0
        %4357 = vmatpush1.msra.mxu0 0.0
        %4358 = vmatprep.subr.mxu0 0.0
        %4359 = vmatpush1.msra.mxu0 0.0
        %4360 = vmatprep.subr.mxu0 0.0
        %4361 = vmatpush1.msra.mxu0 0.0
        %4362 = vmatprep.subr.mxu0 0.0
        %4363 = vmatpush1.msra.mxu0 0.0
        %4364 = vmatprep.subr.mxu0 0.0
        %4365 = vmatpush1.msra.mxu0 0.0
        %4366 = vmatprep.subr.mxu0 0.0
        %4367 = vmatpush1.msra.mxu0 0.0
        %4368 = vmatprep.subr.mxu0 0.0
        %4369 = vmatpush1.msra.mxu0 0.0
        %4370 = vmatprep.subr.mxu0 0.0
        %4371 = vmatpush1.msra.mxu0 0.0
        %4372 = vmatprep.subr.mxu0 0.0
        %4373 = vmatpush1.msra.mxu0 0.0
        %4374 = vmatprep.subr.mxu0 0.0
        %4375 = vmatpush1.msra.mxu0 0.0
        %4376 = vmatprep.subr.mxu0 0.0
        %4377 = vmatpush1.msra.mxu0 0.0
        %4378 = vmatprep.subr.mxu0 0.0
        %4379 = vmatpush1.msra.mxu0 0.0
        %4380 = vmatprep.subr.mxu0 0.0
        %4381 = vmatpush1.msra.mxu0 0.0
        %4382 = vmatprep.subr.mxu0 0.0
        %4383 = vmatpush1.msra.mxu0 0.0
        %4384 = vmatprep.subr.mxu0 0.0
        %4385 = vmatpush1.msra.mxu0 0.0
        %4386 = vmatprep.subr.mxu0 0.0
        %4387 = vmatpush1.msra.mxu0 0.0
        %4388 = vmatprep.subr.mxu0 0.0
        %4389 = vmatpush1.msra.mxu0 0.0
        %4390 = vmatprep.subr.mxu0 0.0
        %4391 = vmatpush1.msra.mxu0 0.0
        %4392 = vmatprep.subr.mxu0 0.0
        %4393 = vmatpush1.msra.mxu0 0.0
        %4394 = vmatprep.subr.mxu0 0.0
        %4395 = vmatpush1.msra.mxu0 0.0
        %4396 = vmatprep.subr.mxu0 0.0
        %4397 = vmatpush1.msra.mxu0 0.0
        %4398 = vmatprep.subr.mxu0 0.0
        %4399 = vmatpush1.msra.mxu0 0.0
        %4400 = vmatprep.subr.mxu0 0.0
        %4401 = vmatpush1.msra.mxu0 0.0
        %4402 = vmatprep.subr.mxu0 0.0
        %4403 = vmatpush1.msra.mxu0 0.0
        %4404 = vmatprep.subr.mxu0 0.0
        %4405 = vmatpush1.msra.mxu0 0.0
        %4406 = vmatprep.mubr.f32.mxu0 0.0
        %4407 = vmatmul.mubr.f32.gmra.mrb[0].mxu0 %v4337
        %v4408 = vpop.f32.mrb[0].mxu0
        %v4409 = vadd.f32 %v4333, %v4408
        %v4410 = vpop.f32.mrb[0].mxu0
        %4411 = vdwg.mxu0
        %4413 = vset.pattern.permute.xlu0 0
        %4414 = vperm.xlu0 %4413, %v3763
        %v4415 = vpop.permute.xlu0 %4414
        %v4417 = vadd.f32 %v4409, %v4415
        %v4418 = vtanh.pop %v4417
        %v4419 = vld [vmem:[%s1520] sm:$0xf]
        %v4420 = vmul.f32 %v4419, 0.1
        %v4421 = vadd.f32 %v4418, %v4420
        %v4422 = vld [vmem:[%s53] sm:$0xf]
        %v4423 = vld [vmem:[%s55] sm:$0xf]
        %v4424 = vld [vmem:[%s57] sm:$0xf]
        %v4425 = vld [vmem:[%s59] sm:$0xff]
        %v4426 = vld [vmem:[%s59 + $0x8] sm:$0xff]
        %v4427 = vld [vmem:[%s59 + $0x10] sm:$0xff]
        %v4428 = vld [vmem:[%s59 + $0x18] sm:$0xff]
        %v4429 = vld [vmem:[%s59 + $0x20] sm:$0xff]
        %v4430 = vld [vmem:[%s59 + $0x28] sm:$0xff]
        %v4431 = vld [vmem:[%s59 + $0x30] sm:$0xff]
        %v4432 = vld [vmem:[%s59 + $0x38] sm:$0xff]
        %v4433 = vld [vmem:[%s61] sm:$0xff]
        %v4434 = vld [vmem:[%s61 + $0x8] sm:$0xff]
        %v4435 = vld [vmem:[%s61 + $0x10] sm:$0xff]
        %v4436 = vld [vmem:[%s61 + $0x18] sm:$0xff]
        %v4437 = vld [vmem:[%s61 + $0x20] sm:$0xff]
        %v4438 = vld [vmem:[%s61 + $0x28] sm:$0xff]
        %v4439 = vld [vmem:[%s61 + $0x30] sm:$0xff]
        %v4440 = vld [vmem:[%s61 + $0x38] sm:$0xff]
        %v4441 = vld [vmem:[%s63] sm:$0xff]
        %v4442 = vld [vmem:[%s63 + $0x8] sm:$0xff]
        %v4443 = vld [vmem:[%s63 + $0x10] sm:$0xff]
        %v4444 = vld [vmem:[%s63 + $0x18] sm:$0xff]
        %v4445 = vld [vmem:[%s63 + $0x20] sm:$0xff]
        %v4446 = vld [vmem:[%s63 + $0x28] sm:$0xff]
        %v4447 = vld [vmem:[%s63 + $0x30] sm:$0xff]
        %v4448 = vld [vmem:[%s63 + $0x38] sm:$0xff]
        %vm4449 = vcmp.ge.f32.partialorder %v4421, 0.0
        %v4450 = vmul.f32 %v4421, 0.01
        %v4451 = vsel %vm4449, %v4421, %v4450
        %vm4452 = vcmask 52224
        %v4453 = vsel %vm4452, %v4451, 0.0
        %4454 = vadd.xlane.f32.xlu0 %v4453
        %v4455 = vpop.xlane.xlu0 %4454
        %v4456 = vrcp.pop 7.0
        %v4457 = vmul.f32 %v4455, %v4456
        %v4458 = vsub.f32 %v4451, %v4457
        %v4459 = vmul.f32 %v4458, %v4458
        %v4460 = vsel %vm4452, %v4459, 0.0
        %4461 = vadd.xlane.f32.xlu0 %v4460
        %v4462 = vpop.xlane.xlu0 %4461
        %v4463 = vmul.f32 %v4462, %v4456
        %v4464 = vadd.f32 %v4463, 1e-05
        %v4465 = vrsqrt.pop %v4464
        %v4466 = vmul.f32 %v4458, %v4465
        %v4467 = vmul.u32 %v1522, 2
        %vm4468 = vcmp.eq.s32.totalorder %v1536, %v4467
        %v4469 = vsel %vm4468, 1, 0
        %v4470 = vcvt.s32.f32 %v4469
        %v4471 = vadd.s32 %v4467, 1
        %vm4472 = vcmp.eq.s32.totalorder %v1536, %v4471
        %v4473 = vsel %vm4472, 1, 0
        %v4474 = vcvt.s32.f32 %v4473
        %v4476 = vsel %vm2288, %v4422, 0
        %v4479 = vsel %vm1581, %v4466, 0
        %4481 = vmatprep.subr.mxu0 0.0
        %4482 = vmatpush1.msra.mxu0 %v4479
        %4483 = vmatprep.subr.mxu0 0.0
        %4484 = vmatpush1.msra.mxu0 0.0
        %4485 = vmatprep.subr.mxu0 0.0
        %4486 = vmatpush1.msra.mxu0 0.0
        %4487 = vmatprep.subr.mxu0 0.0
        %4488 = vmatpush1.msra.mxu0 0.0
        %4489 = vmatprep.subr.mxu0 0.0
        %4490 = vmatpush1.msra.mxu0 0.0
        %4491 = vmatprep.subr.mxu0 0.0
        %4492 = vmatpush1.msra.mxu0 0.0
        %4493 = vmatprep.subr.mxu0 0.0
        %4494 = vmatpush1.msra.mxu0 0.0
        %4495 = vmatprep.subr.mxu0 0.0
        %4496 = vmatpush1.msra.mxu0 0.0
        %4497 = vmatprep.subr.mxu0 0.0
        %4498 = vmatpush1.msra.mxu0 0.0
        %4499 = vmatprep.subr.mxu0 0.0
        %4500 = vmatpush1.msra.mxu0 0.0
        %4501 = vmatprep.subr.mxu0 0.0
        %4502 = vmatpush1.msra.mxu0 0.0
        %4503 = vmatprep.subr.mxu0 0.0
        %4504 = vmatpush1.msra.mxu0 0.0
        %4505 = vmatprep.subr.mxu0 0.0
        %4506 = vmatpush1.msra.mxu0 0.0
        %4507 = vmatprep.subr.mxu0 0.0
        %4508 = vmatpush1.msra.mxu0 0.0
        %4509 = vmatprep.subr.mxu0 0.0
        %4510 = vmatpush1.msra.mxu0 0.0
        %4511 = vmatprep.subr.mxu0 0.0
        %4512 = vmatpush1.msra.mxu0 0.0
        %4513 = vmatprep.subr.mxu0 0.0
        %4514 = vmatpush1.msra.mxu0 0.0
        %4515 = vmatprep.subr.mxu0 0.0
        %4516 = vmatpush1.msra.mxu0 0.0
        %4517 = vmatprep.subr.mxu0 0.0
        %4518 = vmatpush1.msra.mxu0 0.0
        %4519 = vmatprep.subr.mxu0 0.0
        %4520 = vmatpush1.msra.mxu0 0.0
        %4521 = vmatprep.subr.mxu0 0.0
        %4522 = vmatpush1.msra.mxu0 0.0
        %4523 = vmatprep.subr.mxu0 0.0
        %4524 = vmatpush1.msra.mxu0 0.0
        %4525 = vmatprep.subr.mxu0 0.0
        %4526 = vmatpush1.msra.mxu0 0.0
        %4527 = vmatprep.subr.mxu0 0.0
        %4528 = vmatpush1.msra.mxu0 0.0
        %4529 = vmatprep.subr.mxu0 0.0
        %4530 = vmatpush1.msra.mxu0 0.0
        %4531 = vmatprep.subr.mxu0 0.0
        %4532 = vmatpush1.msra.mxu0 0.0
        %4533 = vmatprep.subr.mxu0 0.0
        %4534 = vmatpush1.msra.mxu0 0.0
        %4535 = vmatprep.subr.mxu0 0.0
        %4536 = vmatpush1.msra.mxu0 0.0
        %4537 = vmatprep.subr.mxu0 0.0
        %4538 = vmatpush1.msra.mxu0 0.0
        %4539 = vmatprep.subr.mxu0 0.0
        %4540 = vmatpush1.msra.mxu0 0.0
        %4541 = vmatprep.subr.mxu0 0.0
        %4542 = vmatpush1.msra.mxu0 0.0
        %4543 = vmatprep.subr.mxu0 0.0
        %4544 = vmatpush1.msra.mxu0 0.0
        %4545 = vmatprep.mubr.f32.mxu0 0.0
        %4546 = vmatmul.mubr.f32.gmra.mrb[0].mxu0 %v4476
        %v4547 = vpop.f32.mrb[0].mxu0
        %v4548 = vadd.f32 0.0, %v4547
        %v4549 = vpop.f32.mrb[0].mxu0
        %4550 = vdwg.mxu0
        %v4552 = vsel %vm2288, %v4423, 0
        %4554 = vmatprep.subr.mxu0 0.0
        %4555 = vmatpush1.msra.mxu0 %v4479
        %4556 = vmatprep.subr.mxu0 0.0
        %4557 = vmatpush1.msra.mxu0 0.0
        %4558 = vmatprep.subr.mxu0 0.0
        %4559 = vmatpush1.msra.mxu0 0.0
        %4560 = vmatprep.subr.mxu0 0.0
        %4561 = vmatpush1.msra.mxu0 0.0
        %4562 = vmatprep.subr.mxu0 0.0
        %4563 = vmatpush1.msra.mxu0 0.0
        %4564 = vmatprep.subr.mxu0 0.0
        %4565 = vmatpush1.msra.mxu0 0.0
        %4566 = vmatprep.subr.mxu0 0.0
        %4567 = vmatpush1.msra.mxu0 0.0
        %4568 = vmatprep.subr.mxu0 0.0
        %4569 = vmatpush1.msra.mxu0 0.0
        %4570 = vmatprep.subr.mxu0 0.0
        %4571 = vmatpush1.msra.mxu0 0.0
        %4572 = vmatprep.subr.mxu0 0.0
        %4573 = vmatpush1.msra.mxu0 0.0
        %4574 = vmatprep.subr.mxu0 0.0
        %4575 = vmatpush1.msra.mxu0 0.0
        %4576 = vmatprep.subr.mxu0 0.0
        %4577 = vmatpush1.msra.mxu0 0.0
        %4578 = vmatprep.subr.mxu0 0.0
        %4579 = vmatpush1.msra.mxu0 0.0
        %4580 = vmatprep.subr.mxu0 0.0
        %4581 = vmatpush1.msra.mxu0 0.0
        %4582 = vmatprep.subr.mxu0 0.0
        %4583 = vmatpush1.msra.mxu0 0.0
        %4584 = vmatprep.subr.mxu0 0.0
        %4585 = vmatpush1.msra.mxu0 0.0
        %4586 = vmatprep.subr.mxu0 0.0
        %4587 = vmatpush1.msra.mxu0 0.0
        %4588 = vmatprep.subr.mxu0 0.0
        %4589 = vmatpush1.msra.mxu0 0.0
        %4590 = vmatprep.subr.mxu0 0.0
        %4591 = vmatpush1.msra.mxu0 0.0
        %4592 = vmatprep.subr.mxu0 0.0
        %4593 = vmatpush1.msra.mxu0 0.0
        %4594 = vmatprep.subr.mxu0 0.0
        %4595 = vmatpush1.msra.mxu0 0.0
        %4596 = vmatprep.subr.mxu0 0.0
        %4597 = vmatpush1.msra.mxu0 0.0
        %4598 = vmatprep.subr.mxu0 0.0
        %4599 = vmatpush1.msra.mxu0 0.0
        %4600 = vmatprep.subr.mxu0 0.0
        %4601 = vmatpush1.msra.mxu0 0.0
        %4602 = vmatprep.subr.mxu0 0.0
        %4603 = vmatpush1.msra.mxu0 0.0
        %4604 = vmatprep.subr.mxu0 0.0
        %4605 = vmatpush1.msra.mxu0 0.0
        %4606 = vmatprep.subr.mxu0 0.0
        %4607 = vmatpush1.msra.mxu0 0.0
        %4608 = vmatprep.subr.mxu0 0.0
        %4609 = vmatpush1.msra.mxu0 0.0
        %4610 = vmatprep.subr.mxu0 0.0
        %4611 = vmatpush1.msra.mxu0 0.0
        %4612 = vmatprep.subr.mxu0 0.0
        %4613 = vmatpush1.msra.mxu0 0.0
        %4614 = vmatprep.subr.mxu0 0.0
        %4615 = vmatpush1.msra.mxu0 0.0
        %4616 = vmatprep.subr.mxu0 0.0
        %4617 = vmatpush1.msra.mxu0 0.0
        %4618 = vmatprep.mubr.f32.mxu0 0.0
        %4619 = vmatmul.mubr.f32.gmra.mrb[0].mxu0 %v4552
        %v4620 = vpop.f32.mrb[0].mxu0
        %v4621 = vadd.f32 0.0, %v4620
        %v4622 = vpop.f32.mrb[0].mxu0
        %4623 = vdwg.mxu0
        %vm4624 = vcmask 56320
        %v4626 = vsel %vm4624, %v4621, 0
        %v4629 = vsel %vm4113, %v4474, 0
        %4631 = vmatprep.subr.mxu0 0.0
        %4632 = vmatpush1.msra.mxu0 %v4629
        %4633 = vmatprep.subr.mxu0 0.0
        %4634 = vmatpush1.msra.mxu0 0.0
        %4635 = vmatprep.subr.mxu0 0.0
        %4636 = vmatpush1.msra.mxu0 0.0
        %4637 = vmatprep.subr.mxu0 0.0
        %4638 = vmatpush1.msra.mxu0 0.0
        %4639 = vmatprep.subr.mxu0 0.0
        %4640 = vmatpush1.msra.mxu0 0.0
        %4641 = vmatprep.subr.mxu0 0.0
        %4642 = vmatpush1.msra.mxu0 0.0
        %4643 = vmatprep.subr.mxu0 0.0
        %4644 = vmatpush1.msra.mxu0 0.0
        %4645 = vmatprep.subr.mxu0 0.0
        %4646 = vmatpush1.msra.mxu0 0.0
        %4647 = vmatprep.subr.mxu0 0.0
        %4648 = vmatpush1.msra.mxu0 0.0
        %4649 = vmatprep.subr.mxu0 0.0
        %4650 = vmatpush1.msra.mxu0 0.0
        %4651 = vmatprep.subr.mxu0 0.0
        %4652 = vmatpush1.msra.mxu0 0.0
        %4653 = vmatprep.subr.mxu0 0.0
        %4654 = vmatpush1.msra.mxu0 0.0
        %4655 = vmatprep.subr.mxu0 0.0
        %4656 = vmatpush1.msra.mxu0 0.0
        %4657 = vmatprep.subr.mxu0 0.0
        %4658 = vmatpush1.msra.mxu0 0.0
        %4659 = vmatprep.subr.mxu0 0.0
        %4660 = vmatpush1.msra.mxu0 0.0
        %4661 = vmatprep.subr.mxu0 0.0
        %4662 = vmatpush1.msra.mxu0 0.0
        %4663 = vmatprep.subr.mxu0 0.0
        %4664 = vmatpush1.msra.mxu0 0.0
        %4665 = vmatprep.subr.mxu0 0.0
        %4666 = vmatpush1.msra.mxu0 0.0
        %4667 = vmatprep.subr.mxu0 0.0
        %4668 = vmatpush1.msra.mxu0 0.0
        %4669 = vmatprep.subr.mxu0 0.0
        %4670 = vmatpush1.msra.mxu0 0.0
        %4671 = vmatprep.subr.mxu0 0.0
        %4672 = vmatpush1.msra.mxu0 0.0
        %4673 = vmatprep.subr.mxu0 0.0
        %4674 = vmatpush1.msra.mxu0 0.0
        %4675 = vmatprep.subr.mxu0 0.0
        %4676 = vmatpush1.msra.mxu0 0.0
        %4677 = vmatprep.subr.mxu0 0.0
        %4678 = vmatpush1.msra.mxu0 0.0
        %4679 = vmatprep.subr.mxu0 0.0
        %4680 = vmatpush1.msra.mxu0 0.0
        %4681 = vmatprep.subr.mxu0 0.0
        %4682 = vmatpush1.msra.mxu0 0.0
        %4683 = vmatprep.subr.mxu0 0.0
        %4684 = vmatpush1.msra.mxu0 0.0
        %4685 = vmatprep.subr.mxu0 0.0
        %4686 = vmatpush1.msra.mxu0 0.0
        %4687 = vmatprep.subr.mxu0 0.0
        %4688 = vmatpush1.msra.mxu0 0.0
        %4689 = vmatprep.subr.mxu0 0.0
        %4690 = vmatpush1.msra.mxu0 0.0
        %4691 = vmatprep.subr.mxu0 0.0
        %4692 = vmatpush1.msra.mxu0 0.0
        %4693 = vmatprep.subr.mxu0 0.0
        %4694 = vmatpush1.msra.mxu0 0.0
        %4695 = vmatprep.mubr.f32.mxu0 0.0
        %4696 = vmatmul.mubr.f32.gmra.mrb[0].mxu0 %v4626
        %v4697 = vpop.f32.mrb[0].mxu0
        %v4698 = vadd.f32 0.0, %v4697
        %v4699 = vpop.f32.mrb[0].mxu0
        %4700 = vdwg.mxu0
        %v4702 = vsel %vm4624, %v4548, 0
        %v4705 = vsel %vm4113, %v4470, 0
        %4707 = vmatprep.subr.mxu0 0.0
        %4708 = vmatpush1.msra.mxu0 %v4705
        %4709 = vmatprep.subr.mxu0 0.0
        %4710 = vmatpush1.msra.mxu0 0.0
        %4711 = vmatprep.subr.mxu0 0.0
        %4712 = vmatpush1.msra.mxu0 0.0
        %4713 = vmatprep.subr.mxu0 0.0
        %4714 = vmatpush1.msra.mxu0 0.0
        %4715 = vmatprep.subr.mxu0 0.0
        %4716 = vmatpush1.msra.mxu0 0.0
        %4717 = vmatprep.subr.mxu0 0.0
        %4718 = vmatpush1.msra.mxu0 0.0
        %4719 = vmatprep.subr.mxu0 0.0
        %4720 = vmatpush1.msra.mxu0 0.0
        %4721 = vmatprep.subr.mxu0 0.0
        %4722 = vmatpush1.msra.mxu0 0.0
        %4723 = vmatprep.subr.mxu0 0.0
        %4724 = vmatpush1.msra.mxu0 0.0
        %4725 = vmatprep.subr.mxu0 0.0
        %4726 = vmatpush1.msra.mxu0 0.0
        %4727 = vmatprep.subr.mxu0 0.0
        %4728 = vmatpush1.msra.mxu0 0.0
        %4729 = vmatprep.subr.mxu0 0.0
        %4730 = vmatpush1.msra.mxu0 0.0
        %4731 = vmatprep.subr.mxu0 0.0
        %4732 = vmatpush1.msra.mxu0 0.0
        %4733 = vmatprep.subr.mxu0 0.0
        %4734 = vmatpush1.msra.mxu0 0.0
        %4735 = vmatprep.subr.mxu0 0.0
        %4736 = vmatpush1.msra.mxu0 0.0
        %4737 = vmatprep.subr.mxu0 0.0
        %4738 = vmatpush1.msra.mxu0 0.0
        %4739 = vmatprep.subr.mxu0 0.0
        %4740 = vmatpush1.msra.mxu0 0.0
        %4741 = vmatprep.subr.mxu0 0.0
        %4742 = vmatpush1.msra.mxu0 0.0
        %4743 = vmatprep.subr.mxu0 0.0
        %4744 = vmatpush1.msra.mxu0 0.0
        %4745 = vmatprep.subr.mxu0 0.0
        %4746 = vmatpush1.msra.mxu0 0.0
        %4747 = vmatprep.subr.mxu0 0.0
        %4748 = vmatpush1.msra.mxu0 0.0
        %4749 = vmatprep.subr.mxu0 0.0
        %4750 = vmatpush1.msra.mxu0 0.0
        %4751 = vmatprep.subr.mxu0 0.0
        %4752 = vmatpush1.msra.mxu0 0.0
        %4753 = vmatprep.subr.mxu0 0.0
        %4754 = vmatpush1.msra.mxu0 0.0
        %4755 = vmatprep.subr.mxu0 0.0
        %4756 = vmatpush1.msra.mxu0 0.0
        %4757 = vmatprep.subr.mxu0 0.0
        %4758 = vmatpush1.msra.mxu0 0.0
        %4759 = vmatprep.subr.mxu0 0.0
        %4760 = vmatpush1.msra.mxu0 0.0
        %4761 = vmatprep.subr.mxu0 0.0
        %4762 = vmatpush1.msra.mxu0 0.0
        %4763 = vmatprep.subr.mxu0 0.0
        %4764 = vmatpush1.msra.mxu0 0.0
        %4765 = vmatprep.subr.mxu0 0.0
        %4766 = vmatpush1.msra.mxu0 0.0
        %4767 = vmatprep.subr.mxu0 0.0
        %4768 = vmatpush1.msra.mxu0 0.0
        %4769 = vmatprep.subr.mxu0 0.0
        %4770 = vmatpush1.msra.mxu0 0.0
        %4771 = vmatprep.mubr.f32.mxu0 0.0
        %4772 = vmatmul.mubr.f32.gmra.mrb[0].mxu0 %v4702
        %v4773 = vpop.f32.mrb[0].mxu0
        %v4774 = vadd.f32 %v4698, %v4773
        %v4775 = vpop.f32.mrb[0].mxu0
        %4776 = vdwg.mxu0
        %4778 = vset.pattern.permute.xlu0 0
        %4779 = vperm.xlu0 %4778, %v4424
        %v4780 = vpop.permute.xlu0 %4779
        %v4782 = vadd.f32 %v4774, %v4780
        %vm4783 = vcmp.ge.f32.partialorder %v4782, 0.0
        %v4784 = vmul.f32 %v4782, 0.01
        %v4785 = vsel %vm4783, %v4782, %v4784
        %v4786 = vsel %vm3767, %v4785, 0.0
        %4787 = vadd.xlane.f32.xlu0 %v4786
        %v4788 = vpop.xlane.xlu0 %4787
        %v4789 = vmul.f32 %v4788, %v3771
        %v4790 = vsub.f32 %v4785, %v4789
        %v4791 = vmul.f32 %v4790, %v4790
        %v4792 = vsel %vm3767, %v4791, 0.0
        %4793 = vadd.xlane.f32.xlu0 %v4792
        %v4794 = vpop.xlane.xlu0 %4793
        %v4795 = vmul.f32 %v4794, %v3771
        %v4796 = vadd.f32 %v4795, 1e-05
        %v4797 = vrsqrt.pop %v4796
        %v4798 = vmul.f32 %v4790, %v4797
        %v4800 = vsel %vm3782, %v4798, 0
        %4802 = vmatprep.subr.mxu0 0.0
        %4803 = vmatpush1.msra.mxu0 %v1706
        %4804 = vmatprep.subr.mxu0 0.0
        %4805 = vmatpush1.msra.mxu0 %v3788
        %4806 = vmatprep.subr.mxu0 0.0
        %4807 = vmatpush1.msra.mxu0 0.0
        %4808 = vmatprep.subr.mxu0 0.0
        %4809 = vmatpush1.msra.mxu0 0.0
        %4810 = vmatprep.subr.mxu0 0.0
        %4811 = vmatpush1.msra.mxu0 0.0
        %4812 = vmatprep.subr.mxu0 0.0
        %4813 = vmatpush1.msra.mxu0 0.0
        %4814 = vmatprep.subr.mxu0 0.0
        %4815 = vmatpush1.msra.mxu0 0.0
        %4816 = vmatprep.subr.mxu0 0.0
        %4817 = vmatpush1.msra.mxu0 0.0
        %4818 = vmatprep.subr.mxu0 0.0
        %4819 = vmatpush1.msra.mxu0 0.0
        %4820 = vmatprep.subr.mxu0 0.0
        %4821 = vmatpush1.msra.mxu0 0.0
        %4822 = vmatprep.subr.mxu0 0.0
        %4823 = vmatpush1.msra.mxu0 0.0
        %4824 = vmatprep.subr.mxu0 0.0
        %4825 = vmatpush1.msra.mxu0 0.0
        %4826 = vmatprep.subr.mxu0 0.0
        %4827 = vmatpush1.msra.mxu0 0.0
        %4828 = vmatprep.subr.mxu0 0.0
        %4829 = vmatpush1.msra.mxu0 0.0
        %4830 = vmatprep.subr.mxu0 0.0
        %4831 = vmatpush1.msra.mxu0 0.0
        %4832 = vmatprep.subr.mxu0 0.0
        %4833 = vmatpush1.msra.mxu0 0.0
        %4834 = vmatprep.subr.mxu0 0.0
        %4835 = vmatpush1.msra.mxu0 0.0
        %4836 = vmatprep.subr.mxu0 0.0
        %4837 = vmatpush1.msra.mxu0 0.0
        %4838 = vmatprep.subr.mxu0 0.0
        %4839 = vmatpush1.msra.mxu0 0.0
        %4840 = vmatprep.subr.mxu0 0.0
        %4841 = vmatpush1.msra.mxu0 0.0
        %4842 = vmatprep.subr.mxu0 0.0
        %4843 = vmatpush1.msra.mxu0 0.0
        %4844 = vmatprep.subr.mxu0 0.0
        %4845 = vmatpush1.msra.mxu0 0.0
        %4846 = vmatprep.subr.mxu0 0.0
        %4847 = vmatpush1.msra.mxu0 0.0
        %4848 = vmatprep.subr.mxu0 0.0
        %4849 = vmatpush1.msra.mxu0 0.0
        %4850 = vmatprep.subr.mxu0 0.0
        %4851 = vmatpush1.msra.mxu0 0.0
        %4852 = vmatprep.subr.mxu0 0.0
        %4853 = vmatpush1.msra.mxu0 0.0
        %4854 = vmatprep.subr.mxu0 0.0
        %4855 = vmatpush1.msra.mxu0 0.0
        %4856 = vmatprep.subr.mxu0 0.0
        %4857 = vmatpush1.msra.mxu0 0.0
        %4858 = vmatprep.subr.mxu0 0.0
        %4859 = vmatpush1.msra.mxu0 0.0
        %4860 = vmatprep.subr.mxu0 0.0
        %4861 = vmatpush1.msra.mxu0 0.0
        %4862 = vmatprep.subr.mxu0 0.0
        %4863 = vmatpush1.msra.mxu0 0.0
        %4864 = vmatprep.subr.mxu0 0.0
        %4865 = vmatpush1.msra.mxu0 0.0
        %4866 = vmatprep.mubr.f32.mxu0 0.0
        %4867 = vmatmul.mubr.f32.gmra.mrb[0].mxu0 %v4800
        %v4868 = vpop.f32.mrb[0].mxu0
        %v4869 = vadd.f32 0.0, %v4868
        %v4870 = vpop.f32.mrb[0].mxu0
        %4871 = vdwg.mxu0
        %4872 = vmatprep.subr.mxu0 0.0
        %4873 = vmatpush1.msra.mxu0 %v1563
        %4874 = vmatprep.subr.mxu0 0.0
        %4875 = vmatpush1.msra.mxu0 %v3861
        %4876 = vmatprep.subr.mxu0 0.0
        %4877 = vmatpush1.msra.mxu0 0.0
        %4878 = vmatprep.subr.mxu0 0.0
        %4879 = vmatpush1.msra.mxu0 0.0
        %4880 = vmatprep.subr.mxu0 0.0
        %4881 = vmatpush1.msra.mxu0 0.0
        %4882 = vmatprep.subr.mxu0 0.0
        %4883 = vmatpush1.msra.mxu0 0.0
        %4884 = vmatprep.subr.mxu0 0.0
        %4885 = vmatpush1.msra.mxu0 0.0
        %4886 = vmatprep.subr.mxu0 0.0
        %4887 = vmatpush1.msra.mxu0 0.0
        %4888 = vmatprep.subr.mxu0 0.0
        %4889 = vmatpush1.msra.mxu0 0.0
        %4890 = vmatprep.subr.mxu0 0.0
        %4891 = vmatpush1.msra.mxu0 0.0
        %4892 = vmatprep.subr.mxu0 0.0
        %4893 = vmatpush1.msra.mxu0 0.0
        %4894 = vmatprep.subr.mxu0 0.0
        %4895 = vmatpush1.msra.mxu0 0.0
        %4896 = vmatprep.subr.mxu0 0.0
        %4897 = vmatpush1.msra.mxu0 0.0
        %4898 = vmatprep.subr.mxu0 0.0
        %4899 = vmatpush1.msra.mxu0 0.0
        %4900 = vmatprep.subr.mxu0 0.0
        %4901 = vmatpush1.msra.mxu0 0.0
        %4902 = vmatprep.subr.mxu0 0.0
        %4903 = vmatpush1.msra.mxu0 0.0
        %4904 = vmatprep.subr.mxu0 0.0
        %4905 = vmatpush1.msra.mxu0 0.0
        %4906 = vmatprep.subr.mxu0 0.0
        %4907 = vmatpush1.msra.mxu0 0.0
        %4908 = vmatprep.subr.mxu0 0.0
        %4909 = vmatpush1.msra.mxu0 0.0
        %4910 = vmatprep.subr.mxu0 0.0
        %4911 = vmatpush1.msra.mxu0 0.0
        %4912 = vmatprep.subr.mxu0 0.0
        %4913 = vmatpush1.msra.mxu0 0.0
        %4914 = vmatprep.subr.mxu0 0.0
        %4915 = vmatpush1.msra.mxu0 0.0
        %4916 = vmatprep.subr.mxu0 0.0
        %4917 = vmatpush1.msra.mxu0 0.0
        %4918 = vmatprep.subr.mxu0 0.0
        %4919 = vmatpush1.msra.mxu0 0.0
        %4920 = vmatprep.subr.mxu0 0.0
        %4921 = vmatpush1.msra.mxu0 0.0
        %4922 = vmatprep.subr.mxu0 0.0
        %4923 = vmatpush1.msra.mxu0 0.0
        %4924 = vmatprep.subr.mxu0 0.0
        %4925 = vmatpush1.msra.mxu0 0.0
        %4926 = vmatprep.subr.mxu0 0.0
        %4927 = vmatpush1.msra.mxu0 0.0
        %4928 = vmatprep.subr.mxu0 0.0
        %4929 = vmatpush1.msra.mxu0 0.0
        %4930 = vmatprep.subr.mxu0 0.0
        %4931 = vmatpush1.msra.mxu0 0.0
        %4932 = vmatprep.subr.mxu0 0.0
        %4933 = vmatpush1.msra.mxu0 0.0
        %4934 = vmatprep.subr.mxu0 0.0
        %4935 = vmatpush1.msra.mxu0 0.0
        %4936 = vmatprep.mubr.f32.mxu0 0.0
        %4937 = vmatmul.mubr.f32.gmra.mrb[0].mxu0 %v4800
        %v4938 = vpop.f32.mrb[0].mxu0
        %v4939 = vadd.f32 0.0, %v4938
        %v4940 = vpop.f32.mrb[0].mxu0
        %4941 = vdwg.mxu0
        %v4943 = vsel %vm2288, %v4433, 0
        %v4946 = vsel %vm2288, %v4434, 0
        %v4949 = vsel %vm2288, %v4435, 0
        %v4952 = vsel %vm2288, %v4436, 0
        %v4955 = vsel %vm2288, %v4437, 0
        %v4958 = vsel %vm2288, %v4438, 0
        %v4961 = vsel %vm2288, %v4439, 0
        %v4964 = vsel %vm2288, %v4440, 0
        %v4967 = vsel %vm1581, %v4939, 0
        %4969 = vmatprep.subr.mxu0 0.0
        %4970 = vmatpush1.msra.mxu0 %v4967
        %4971 = vmatprep.subr.mxu0 0.0
        %4972 = vmatpush1.msra.mxu0 0.0
        %4973 = vmatprep.subr.mxu0 0.0
        %4974 = vmatpush1.msra.mxu0 0.0
        %4975 = vmatprep.subr.mxu0 0.0
        %4976 = vmatpush1.msra.mxu0 0.0
        %4977 = vmatprep.subr.mxu0 0.0
        %4978 = vmatpush1.msra.mxu0 0.0
        %4979 = vmatprep.subr.mxu0 0.0
        %4980 = vmatpush1.msra.mxu0 0.0
        %4981 = vmatprep.subr.mxu0 0.0
        %4982 = vmatpush1.msra.mxu0 0.0
        %4983 = vmatprep.subr.mxu0 0.0
        %4984 = vmatpush1.msra.mxu0 0.0
        %4985 = vmatprep.subr.mxu0 0.0
        %4986 = vmatpush1.msra.mxu0 0.0
        %4987 = vmatprep.subr.mxu0 0.0
        %4988 = vmatpush1.msra.mxu0 0.0
        %4989 = vmatprep.subr.mxu0 0.0
        %4990 = vmatpush1.msra.mxu0 0.0
        %4991 = vmatprep.subr.mxu0 0.0
        %4992 = vmatpush1.msra.mxu0 0.0
        %4993 = vmatprep.subr.mxu0 0.0
        %4994 = vmatpush1.msra.mxu0 0.0
        %4995 = vmatprep.subr.mxu0 0.0
        %4996 = vmatpush1.msra.mxu0 0.0
        %4997 = vmatprep.subr.mxu0 0.0
        %4998 = vmatpush1.msra.mxu0 0.0
        %4999 = vmatprep.subr.mxu0 0.0
        %5000 = vmatpush1.msra.mxu0 0.0
        %5001 = vmatprep.subr.mxu0 0.0
        %5002 = vmatpush1.msra.mxu0 0.0
        %5003 = vmatprep.subr.mxu0 0.0
        %5004 = vmatpush1.msra.mxu0 0.0
        %5005 = vmatprep.subr.mxu0 0.0
        %5006 = vmatpush1.msra.mxu0 0.0
        %5007 = vmatprep.subr.mxu0 0.0
        %5008 = vmatpush1.msra.mxu0 0.0
        %5009 = vmatprep.subr.mxu0 0.0
        %5010 = vmatpush1.msra.mxu0 0.0
        %5011 = vmatprep.subr.mxu0 0.0
        %5012 = vmatpush1.msra.mxu0 0.0
        %5013 = vmatprep.subr.mxu0 0.0
        %5014 = vmatpush1.msra.mxu0 0.0
        %5015 = vmatprep.subr.mxu0 0.0
        %5016 = vmatpush1.msra.mxu0 0.0
        %5017 = vmatprep.subr.mxu0 0.0
        %5018 = vmatpush1.msra.mxu0 0.0
        %5019 = vmatprep.subr.mxu0 0.0
        %5020 = vmatpush1.msra.mxu0 0.0
        %5021 = vmatprep.subr.mxu0 0.0
        %5022 = vmatpush1.msra.mxu0 0.0
        %5023 = vmatprep.subr.mxu0 0.0
        %5024 = vmatpush1.msra.mxu0 0.0
        %5025 = vmatprep.subr.mxu0 0.0
        %5026 = vmatpush1.msra.mxu0 0.0
        %5027 = vmatprep.subr.mxu0 0.0
        %5028 = vmatpush1.msra.mxu0 0.0
        %5029 = vmatprep.subr.mxu0 0.0
        %5030 = vmatpush1.msra.mxu0 0.0
        %5031 = vmatprep.subr.mxu0 0.0
        %5032 = vmatpush1.msra.mxu0 0.0
        %5033 = vmatprep.mubr.f32.mxu0 0.0
        %5034 = vmatmul.mubr.f32.gmra.mrb[0].mxu0 %v4943
        %v5035 = vpop.f32.mrb[0].mxu0
        %v5036 = vadd.f32 0.0, %v5035
        %v5037 = vpop.f32.mrb[0].mxu0
        %5038 = vmatprep.mubr.f32.mxu0 0.0
        %5039 = vmatmul.mubr.f32.gmra.mrb[0].mxu0 %v4946
        %v5040 = vpop.f32.mrb[0].mxu0
        %v5041 = vadd.f32 0.0, %v5040
        %v5042 = vpop.f32.mrb[0].mxu0
        %5043 = vmatprep.mubr.f32.mxu0 0.0
        %5044 = vmatmul.mubr.f32.gmra.mrb[0].mxu0 %v4949
        %v5045 = vpop.f32.mrb[0].mxu0
        %v5046 = vadd.f32 0.0, %v5045
        %v5047 = vpop.f32.mrb[0].mxu0
        %5048 = vmatprep.mubr.f32.mxu0 0.0
        %5049 = vmatmul.mubr.f32.gmra.mrb[0].mxu0 %v4952
        %v5050 = vpop.f32.mrb[0].mxu0
        %v5051 = vadd.f32 0.0, %v5050
        %v5052 = vpop.f32.mrb[0].mxu0
        %5053 = vmatprep.mubr.f32.mxu0 0.0
        %5054 = vmatmul.mubr.f32.gmra.mrb[0].mxu0 %v4955
        %v5055 = vpop.f32.mrb[0].mxu0
        %v5056 = vadd.f32 0.0, %v5055
        %v5057 = vpop.f32.mrb[0].mxu0
        %5058 = vmatprep.mubr.f32.mxu0 0.0
        %5059 = vmatmul.mubr.f32.gmra.mrb[0].mxu0 %v4958
        %v5060 = vpop.f32.mrb[0].mxu0
        %v5061 = vadd.f32 0.0, %v5060
        %v5062 = vpop.f32.mrb[0].mxu0
        %5063 = vmatprep.mubr.f32.mxu0 0.0
        %5064 = vmatmul.mubr.f32.gmra.mrb[0].mxu0 %v4961
        %v5065 = vpop.f32.mrb[0].mxu0
        %v5066 = vadd.f32 0.0, %v5065
        %v5067 = vpop.f32.mrb[0].mxu0
        %5068 = vmatprep.mubr.f32.mxu0 0.0
        %5069 = vmatmul.mubr.f32.gmra.mrb[0].mxu0 %v4964
        %v5070 = vpop.f32.mrb[0].mxu0
        %v5071 = vadd.f32 0.0, %v5070
        %v5072 = vpop.f32.mrb[0].mxu0
        %5073 = vdwg.mxu0
        %v5075 = vsel %vm2288, %v4425, 0
        %v5078 = vsel %vm2288, %v4426, 0
        %v5081 = vsel %vm2288, %v4427, 0
        %v5084 = vsel %vm2288, %v4428, 0
        %v5087 = vsel %vm2288, %v4429, 0
        %v5090 = vsel %vm2288, %v4430, 0
        %v5093 = vsel %vm2288, %v4431, 0
        %v5096 = vsel %vm2288, %v4432, 0
        %v5099 = vsel %vm1581, %v4869, 0
        %5101 = vmatprep.subr.mxu0 0.0
        %5102 = vmatpush1.msra.mxu0 %v5099
        %5103 = vmatprep.subr.mxu0 0.0
        %5104 = vmatpush1.msra.mxu0 0.0
        %5105 = vmatprep.subr.mxu0 0.0
        %5106 = vmatpush1.msra.mxu0 0.0
        %5107 = vmatprep.subr.mxu0 0.0
        %5108 = vmatpush1.msra.mxu0 0.0
        %5109 = vmatprep.subr.mxu0 0.0
        %5110 = vmatpush1.msra.mxu0 0.0
        %5111 = vmatprep.subr.mxu0 0.0
        %5112 = vmatpush1.msra.mxu0 0.0
        %5113 = vmatprep.subr.mxu0 0.0
        %5114 = vmatpush1.msra.mxu0 0.0
        %5115 = vmatprep.subr.mxu0 0.0
        %5116 = vmatpush1.msra.mxu0 0.0
        %5117 = vmatprep.subr.mxu0 0.0
        %5118 = vmatpush1.msra.mxu0 0.0
        %5119 = vmatprep.subr.mxu0 0.0
        %5120 = vmatpush1.msra.mxu0 0.0
        %5121 = vmatprep.subr.mxu0 0.0
        %5122 = vmatpush1.msra.mxu0 0.0
        %5123 = vmatprep.subr.mxu0 0.0
        %5124 = vmatpush1.msra.mxu0 0.0
        %5125 = vmatprep.subr.mxu0 0.0
        %5126 = vmatpush1.msra.mxu0 0.0
        %5127 = vmatprep.subr.mxu0 0.0
        %5128 = vmatpush1.msra.mxu0 0.0
        %5129 = vmatprep.subr.mxu0 0.0
        %5130 = vmatpush1.msra.mxu0 0.0
        %5131 = vmatprep.subr.mxu0 0.0
        %5132 = vmatpush1.msra.mxu0 0.0
        %5133 = vmatprep.subr.mxu0 0.0
        %5134 = vmatpush1.msra.mxu0 0.0
        %5135 = vmatprep.subr.mxu0 0.0
        %5136 = vmatpush1.msra.mxu0 0.0
        %5137 = vmatprep.subr.mxu0 0.0
        %5138 = vmatpush1.msra.mxu0 0.0
        %5139 = vmatprep.subr.mxu0 0.0
        %5140 = vmatpush1.msra.mxu0 0.0
        %5141 = vmatprep.subr.mxu0 0.0
        %5142 = vmatpush1.msra.mxu0 0.0
        %5143 = vmatprep.subr.mxu0 0.0
        %5144 = vmatpush1.msra.mxu0 0.0
        %5145 = vmatprep.subr.mxu0 0.0
        %5146 = vmatpush1.msra.mxu0 0.0
        %5147 = vmatprep.subr.mxu0 0.0
        %5148 = vmatpush1.msra.mxu0 0.0
        %5149 = vmatprep.subr.mxu0 0.0
        %5150 = vmatpush1.msra.mxu0 0.0
        %5151 = vmatprep.subr.mxu0 0.0
        %5152 = vmatpush1.msra.mxu0 0.0
        %5153 = vmatprep.subr.mxu0 0.0
        %5154 = vmatpush1.msra.mxu0 0.0
        %5155 = vmatprep.subr.mxu0 0.0
        %5156 = vmatpush1.msra.mxu0 0.0
        %5157 = vmatprep.subr.mxu0 0.0
        %5158 = vmatpush1.msra.mxu0 0.0
        %5159 = vmatprep.subr.mxu0 0.0
        %5160 = vmatpush1.msra.mxu0 0.0
        %5161 = vmatprep.subr.mxu0 0.0
        %5162 = vmatpush1.msra.mxu0 0.0
        %5163 = vmatprep.subr.mxu0 0.0
        %5164 = vmatpush1.msra.mxu0 0.0
        %5165 = vmatprep.mubr.f32.mxu0 0.0
        %5166 = vmatmul.mubr.f32.gmra.mrb[0].mxu0 %v5075
        %v5167 = vpop.f32.mrb[0].mxu0
        %v5168 = vadd.f32 %v5036, %v5167
        %v5169 = vpop.f32.mrb[0].mxu0
        %5170 = vmatprep.mubr.f32.mxu0 0.0
        %5171 = vmatmul.mubr.f32.gmra.mrb[0].mxu0 %v5078
        %v5172 = vpop.f32.mrb[0].mxu0
        %v5173 = vadd.f32 %v5041, %v5172
        %v5174 = vpop.f32.mrb[0].mxu0
        %5175 = vmatprep.mubr.f32.mxu0 0.0
        %5176 = vmatmul.mubr.f32.gmra.mrb[0].mxu0 %v5081
        %v5177 = vpop.f32.mrb[0].mxu0
        %v5178 = vadd.f32 %v5046, %v5177
        %v5179 = vpop.f32.mrb[0].mxu0
        %5180 = vmatprep.mubr.f32.mxu0 0.0
        %5181 = vmatmul.mubr.f32.gmra.mrb[0].mxu0 %v5084
        %v5182 = vpop.f32.mrb[0].mxu0
        %v5183 = vadd.f32 %v5051, %v5182
        %v5184 = vpop.f32.mrb[0].mxu0
        %5185 = vmatprep.mubr.f32.mxu0 0.0
        %5186 = vmatmul.mubr.f32.gmra.mrb[0].mxu0 %v5087
        %v5187 = vpop.f32.mrb[0].mxu0
        %v5188 = vadd.f32 %v5056, %v5187
        %v5189 = vpop.f32.mrb[0].mxu0
        %5190 = vmatprep.mubr.f32.mxu0 0.0
        %5191 = vmatmul.mubr.f32.gmra.mrb[0].mxu0 %v5090
        %v5192 = vpop.f32.mrb[0].mxu0
        %v5193 = vadd.f32 %v5061, %v5192
        %v5194 = vpop.f32.mrb[0].mxu0
        %5195 = vmatprep.mubr.f32.mxu0 0.0
        %5196 = vmatmul.mubr.f32.gmra.mrb[0].mxu0 %v5093
        %v5197 = vpop.f32.mrb[0].mxu0
        %v5198 = vadd.f32 %v5066, %v5197
        %v5199 = vpop.f32.mrb[0].mxu0
        %5200 = vmatprep.mubr.f32.mxu0 0.0
        %5201 = vmatmul.mubr.f32.gmra.mrb[0].mxu0 %v5096
        %v5202 = vpop.f32.mrb[0].mxu0
        %v5203 = vadd.f32 %v5071, %v5202
        %v5204 = vpop.f32.mrb[0].mxu0
        %5205 = vdwg.mxu0
        %5207 = vset.pattern.permute.xlu0 0
        %5208 = vperm.xlu0 %5207, %v4441
        %v5209 = vpop.permute.xlu0 %5208
        %5212 = vset.pattern.permute.xlu0 0
        %5213 = vperm.xlu0 %5212, %v4442
        %v5214 = vpop.permute.xlu0 %5213
        %5217 = vset.pattern.permute.xlu0 0
        %5218 = vperm.xlu0 %5217, %v4443
        %v5219 = vpop.permute.xlu0 %5218
        %5222 = vset.pattern.permute.xlu0 0
        %5223 = vperm.xlu0 %5222, %v4444
        %v5224 = vpop.permute.xlu0 %5223
        %5227 = vset.pattern.permute.xlu0 0
        %5228 = vperm.xlu0 %5227, %v4445
        %v5229 = vpop.permute.xlu0 %5228
        %5232 = vset.pattern.permute.xlu0 0
        %5233 = vperm.xlu0 %5232, %v4446
        %v5234 = vpop.permute.xlu0 %5233
        %5237 = vset.pattern.permute.xlu0 0
        %5238 = vperm.xlu0 %5237, %v4447
        %v5239 = vpop.permute.xlu0 %5238
        %5242 = vset.pattern.permute.xlu0 0
        %5243 = vperm.xlu0 %5242, %v4448
        %v5244 = vpop.permute.xlu0 %5243
        %v5246 = vadd.f32 %v5168, %v5209
        %v5247 = vadd.f32 %v5173, %v5214
        %v5248 = vadd.f32 %v5178, %v5219
        %v5249 = vadd.f32 %v5183, %v5224
        %v5250 = vadd.f32 %v5188, %v5229
        %v5251 = vadd.f32 %v5193, %v5234
        %v5252 = vadd.f32 %v5198, %v5239
        %v5253 = vadd.f32 %v5203, %v5244
        %v5254 = vld [vmem:[%s65] sm:$0xff]
        %v5255 = vld [vmem:[%s65 + $0x8] sm:$0xff]
        %v5256 = vld [vmem:[%s65 + $0x10] sm:$0xff]
        %v5257 = vld [vmem:[%s65 + $0x18] sm:$0xff]
        %v5258 = vld [vmem:[%s65 + $0x20] sm:$0xff]
        %v5259 = vld [vmem:[%s65 + $0x28] sm:$0xff]
        %v5260 = vld [vmem:[%s65 + $0x30] sm:$0xff]
        %v5261 = vld [vmem:[%s65 + $0x38] sm:$0xff]
        %v5262 = vld [vmem:[%s67] sm:$0xff]
        %v5263 = vld [vmem:[%s67 + $0x8] sm:$0xff]
        %v5264 = vld [vmem:[%s67 + $0x10] sm:$0xff]
        %v5265 = vld [vmem:[%s67 + $0x18] sm:$0xff]
        %v5266 = vld [vmem:[%s67 + $0x20] sm:$0xff]
        %v5267 = vld [vmem:[%s67 + $0x28] sm:$0xff]
        %v5268 = vld [vmem:[%s67 + $0x30] sm:$0xff]
        %v5269 = vld [vmem:[%s67 + $0x38] sm:$0xff]
        %v5270 = vld [vmem:[%s69] sm:$0xff]
        %v5271 = vld [vmem:[%s69 + $0x8] sm:$0xff]
        %v5272 = vld [vmem:[%s69 + $0x10] sm:$0xff]
        %v5273 = vld [vmem:[%s69 + $0x18] sm:$0xff]
        %v5274 = vld [vmem:[%s69 + $0x20] sm:$0xff]
        %v5275 = vld [vmem:[%s69 + $0x28] sm:$0xff]
        %v5276 = vld [vmem:[%s69 + $0x30] sm:$0xff]
        %v5277 = vld [vmem:[%s69 + $0x38] sm:$0xff]
        %v5278 = vld [vmem:[%s71] sm:$0xff]
        %v5279 = vld [vmem:[%s71 + $0x8] sm:$0xff]
        %v5280 = vld [vmem:[%s71 + $0x10] sm:$0xff]
        %v5281 = vld [vmem:[%s71 + $0x18] sm:$0xff]
        %v5282 = vld [vmem:[%s71 + $0x20] sm:$0xff]
        %v5283 = vld [vmem:[%s71 + $0x28] sm:$0xff]
        %v5284 = vld [vmem:[%s71 + $0x30] sm:$0xff]
        %v5285 = vld [vmem:[%s71 + $0x38] sm:$0xff]
        %v5286 = vld [vmem:[%s73] sm:$0xff]
        %v5287 = vld [vmem:[%s73 + $0x8] sm:$0xff]
        %v5288 = vld [vmem:[%s73 + $0x10] sm:$0xff]
        %v5289 = vld [vmem:[%s73 + $0x18] sm:$0xff]
        %v5290 = vld [vmem:[%s73 + $0x20] sm:$0xff]
        %v5291 = vld [vmem:[%s73 + $0x28] sm:$0xff]
        %v5292 = vld [vmem:[%s73 + $0x30] sm:$0xff]
        %v5293 = vld [vmem:[%s73 + $0x38] sm:$0xff]
        %v5294 = vld [vmem:[%s75] sm:$0xff]
        %v5295 = vld [vmem:[%s75 + $0x8] sm:$0xff]
        %v5296 = vld [vmem:[%s75 + $0x10] sm:$0xff]
        %v5297 = vld [vmem:[%s75 + $0x18] sm:$0xff]
        %v5298 = vld [vmem:[%s75 + $0x20] sm:$0xff]
        %v5299 = vld [vmem:[%s75 + $0x28] sm:$0xff]
        %v5300 = vld [vmem:[%s75 + $0x30] sm:$0xff]
        %v5301 = vld [vmem:[%s75 + $0x38] sm:$0xff]
        %vm5302 = vcmp.ge.f32.partialorder %v5246, 0.0
        %vm5303 = vcmp.ge.f32.partialorder %v5247, 0.0
        %vm5304 = vcmp.ge.f32.partialorder %v5248, 0.0
        %vm5305 = vcmp.ge.f32.partialorder %v5249, 0.0
        %vm5306 = vcmp.ge.f32.partialorder %v5250, 0.0
        %vm5307 = vcmp.ge.f32.partialorder %v5251, 0.0
        %vm5308 = vcmp.ge.f32.partialorder %v5252, 0.0
        %vm5309 = vcmp.ge.f32.partialorder %v5253, 0.0
        %v5310 = vmul.f32 %v5246, 0.01
        %v5311 = vmul.f32 %v5247, 0.01
        %v5312 = vmul.f32 %v5248, 0.01
        %v5313 = vmul.f32 %v5249, 0.01
        %v5314 = vmul.f32 %v5250, 0.01
        %v5315 = vmul.f32 %v5251, 0.01
        %v5316 = vmul.f32 %v5252, 0.01
        %v5317 = vmul.f32 %v5253, 0.01
        %v5318 = vsel %vm5302, %v5246, %v5310
        %v5319 = vsel %vm5303, %v5247, %v5311
        %v5320 = vsel %vm5304, %v5248, %v5312
        %v5321 = vsel %vm5305, %v5249, %v5313
        %v5322 = vsel %vm5306, %v5250, %v5314
        %v5323 = vsel %vm5307, %v5251, %v5315
        %v5324 = vsel %vm5308, %v5252, %v5316
        %v5325 = vsel %vm5309, %v5253, %v5317
        %v5326 = vsel %vm4109, %v5318, 0.0
        %5327 = vadd.xlane.f32.xlu0 %v5326
        %v5328 = vpop.xlane.xlu0 %5327
        %v5329 = vsel %vm4109, %v5319, 0.0
        %5330 = vadd.xlane.f32.xlu0 %v5329
        %v5331 = vpop.xlane.xlu0 %5330
        %v5332 = vsel %vm4109, %v5320, 0.0
        %5333 = vadd.xlane.f32.xlu0 %v5332
        %v5334 = vpop.xlane.xlu0 %5333
        %v5335 = vsel %vm4109, %v5321, 0.0
        %5336 = vadd.xlane.f32.xlu0 %v5335
        %v5337 = vpop.xlane.xlu0 %5336
        %v5338 = vsel %vm4109, %v5322, 0.0
        %5339 = vadd.xlane.f32.xlu0 %v5338
        %v5340 = vpop.xlane.xlu0 %5339
        %v5341 = vsel %vm4109, %v5323, 0.0
        %5342 = vadd.xlane.f32.xlu0 %v5341
        %v5343 = vpop.xlane.xlu0 %5342
        %v5344 = vsel %vm4109, %v5324, 0.0
        %5345 = vadd.xlane.f32.xlu0 %v5344
        %v5346 = vpop.xlane.xlu0 %5345
        %v5347 = vsel %vm4109, %v5325, 0.0
        %5348 = vadd.xlane.f32.xlu0 %v5347
        %v5349 = vpop.xlane.xlu0 %5348
        %v5350 = vmul.f32 %v5328, %v4098
        %v5351 = vmul.f32 %v5331, %v4098
        %v5352 = vmul.f32 %v5334, %v4098
        %v5353 = vmul.f32 %v5337, %v4098
        %v5354 = vmul.f32 %v5340, %v4098
        %v5355 = vmul.f32 %v5343, %v4098
        %v5356 = vmul.f32 %v5346, %v4098
        %v5357 = vmul.f32 %v5349, %v4098
        %v5358 = vsub.f32 %v5318, %v5350
        %v5359 = vsub.f32 %v5319, %v5351
        %v5360 = vsub.f32 %v5320, %v5352
        %v5361 = vsub.f32 %v5321, %v5353
        %v5362 = vsub.f32 %v5322, %v5354
        %v5363 = vsub.f32 %v5323, %v5355
        %v5364 = vsub.f32 %v5324, %v5356
        %v5365 = vsub.f32 %v5325, %v5357
        %v5366 = vmul.f32 %v5358, %v5358
        %v5367 = vmul.f32 %v5359, %v5359
        %v5368 = vmul.f32 %v5360, %v5360
        %v5369 = vmul.f32 %v5361, %v5361
        %v5370 = vmul.f32 %v5362, %v5362
        %v5371 = vmul.f32 %v5363, %v5363
        %v5372 = vmul.f32 %v5364, %v5364
        %v5373 = vmul.f32 %v5365, %v5365
        %v5374 = vsel %vm4109, %v5366, 0.0
        %5375 = vadd.xlane.f32.xlu0 %v5374
        %v5376 = vpop.xlane.xlu0 %5375
        %v5377 = vsel %vm4109, %v5367, 0.0
        %5378 = vadd.xlane.f32.xlu0 %v5377
        %v5379 = vpop.xlane.xlu0 %5378
        %v5380 = vsel %vm4109, %v5368, 0.0
        %5381 = vadd.xlane.f32.xlu0 %v5380
        %v5382 = vpop.xlane.xlu0 %5381
        %v5383 = vsel %vm4109, %v5369, 0.0
        %5384 = vadd.xlane.f32.xlu0 %v5383
        %v5385 = vpop.xlane.xlu0 %5384
        %v5386 = vsel %vm4109, %v5370, 0.0
        %5387 = vadd.xlane.f32.xlu0 %v5386
        %v5388 = vpop.xlane.xlu0 %5387
        %v5389 = vsel %vm4109, %v5371, 0.0
        %5390 = vadd.xlane.f32.xlu0 %v5389
        %v5391 = vpop.xlane.xlu0 %5390
        %v5392 = vsel %vm4109, %v5372, 0.0
        %5393 = vadd.xlane.f32.xlu0 %v5392
        %v5394 = vpop.xlane.xlu0 %5393
        %v5395 = vsel %vm4109, %v5373, 0.0
        %5396 = vadd.xlane.f32.xlu0 %v5395
        %v5397 = vpop.xlane.xlu0 %5396
        %v5398 = vmul.f32 %v5376, %v4098
        %v5399 = vmul.f32 %v5379, %v4098
        %v5400 = vmul.f32 %v5382, %v4098
        %v5401 = vmul.f32 %v5385, %v4098
        %v5402 = vmul.f32 %v5388, %v4098
        %v5403 = vmul.f32 %v5391, %v4098
        %v5404 = vmul.f32 %v5394, %v4098
        %v5405 = vmul.f32 %v5397, %v4098
        %v5406 = vadd.f32 %v5398, 1e-05
        %v5407 = vadd.f32 %v5399, 1e-05
        %v5408 = vadd.f32 %v5400, 1e-05
        %v5409 = vadd.f32 %v5401, 1e-05
        %v5410 = vadd.f32 %v5402, 1e-05
        %v5411 = vadd.f32 %v5403, 1e-05
        %v5412 = vadd.f32 %v5404, 1e-05
        %v5413 = vadd.f32 %v5405, 1e-05
        %v5414 = vrsqrt.pop %v5406
        %v5415 = vrsqrt.pop %v5407
        %v5416 = vrsqrt.pop %v5408
        %v5417 = vrsqrt.pop %v5409
        %v5418 = vrsqrt.pop %v5410
        %v5419 = vrsqrt.pop %v5411
        %v5420 = vrsqrt.pop %v5412
        %v5421 = vrsqrt.pop %v5413
        %v5422 = vmul.f32 %v5358, %v5414
        %v5423 = vmul.f32 %v5359, %v5415
        %v5424 = vmul.f32 %v5360, %v5416
        %v5425 = vmul.f32 %v5361, %v5417
        %v5426 = vmul.f32 %v5362, %v5418
        %v5427 = vmul.f32 %v5363, %v5419
        %v5428 = vmul.f32 %v5364, %v5420
        %v5429 = vmul.f32 %v5365, %v5421
        %v5430 = vmul.u32 %v1523, 2
        %vm5431 = vcmp.eq.s32.totalorder %v1536, %v5430
        %v5432 = vsel %vm5431, 1, 0
        %v5433 = vcvt.s32.f32 %v5432
        %v5434 = vadd.s32 %v5430, 1
        %vm5435 = vcmp.eq.s32.totalorder %v1536, %v5434
        %v5436 = vsel %vm5435, 1, 0
        %v5437 = vcvt.s32.f32 %v5436
        %vm5438 = vcmask 523264
        %v5440 = vsel %vm5438, %v5254, 0
        %v5443 = vsel %vm5438, %v5255, 0
        %v5446 = vsel %vm5438, %v5256, 0
        %v5449 = vsel %vm5438, %v5257, 0
        %v5452 = vsel %vm5438, %v5258, 0
        %v5455 = vsel %vm5438, %v5259, 0
        %v5458 = vsel %vm5438, %v5260, 0
        %v5461 = vsel %vm5438, %v5261, 0
        %5463 = vmatprep.subr.mxu0 0.0
        %5464 = vmatpush1.msra.mxu0 %v5422
        %5465 = vmatprep.subr.mxu0 0.0
        %5466 = vmatpush1.msra.mxu0 %v5423
        %5467 = vmatprep.subr.mxu0 0.0
        %5468 = vmatpush1.msra.mxu0 %v5424
        %5469 = vmatprep.subr.mxu0 0.0
        %5470 = vmatpush1.msra.mxu0 %v5425
        %5471 = vmatprep.subr.mxu0 0.0
        %5472 = vmatpush1.msra.mxu0 %v5426
        %5473 = vmatprep.subr.mxu0 0.0
        %5474 = vmatpush1.msra.mxu0 %v5427
        %5475 = vmatprep.subr.mxu0 0.0
        %5476 = vmatpush1.msra.mxu0 %v5428
        %5477 = vmatprep.subr.mxu0 0.0
        %5478 = vmatpush1.msra.mxu0 %v5429
        %5479 = vmatprep.subr.mxu0 0.0
        %5480 = vmatpush1.msra.mxu0 0.0
        %5481 = vmatprep.subr.mxu0 0.0
        %5482 = vmatpush1.msra.mxu0 0.0
        %5483 = vmatprep.subr.mxu0 0.0
        %5484 = vmatpush1.msra.mxu0 0.0
        %5485 = vmatprep.subr.mxu0 0.0
        %5486 = vmatpush1.msra.mxu0 0.0
        %5487 = vmatprep.subr.mxu0 0.0
        %5488 = vmatpush1.msra.mxu0 0.0
        %5489 = vmatprep.subr.mxu0 0.0
        %5490 = vmatpush1.msra.mxu0 0.0
        %5491 = vmatprep.subr.mxu0 0.0
        %5492 = vmatpush1.msra.mxu0 0.0
        %5493 = vmatprep.subr.mxu0 0.0
        %5494 = vmatpush1.msra.mxu0 0.0
        %5495 = vmatprep.subr.mxu0 0.0
        %5496 = vmatpush1.msra.mxu0 0.0
        %5497 = vmatprep.subr.mxu0 0.0
        %5498 = vmatpush1.msra.mxu0 0.0
        %5499 = vmatprep.subr.mxu0 0.0
        %5500 = vmatpush1.msra.mxu0 0.0
        %5501 = vmatprep.subr.mxu0 0.0
        %5502 = vmatpush1.msra.mxu0 0.0
        %5503 = vmatprep.subr.mxu0 0.0
        %5504 = vmatpush1.msra.mxu0 0.0
        %5505 = vmatprep.subr.mxu0 0.0
        %5506 = vmatpush1.msra.mxu0 0.0
        %5507 = vmatprep.subr.mxu0 0.0
        %5508 = vmatpush1.msra.mxu0 0.0
        %5509 = vmatprep.subr.mxu0 0.0
        %5510 = vmatpush1.msra.mxu0 0.0
        %5511 = vmatprep.subr.mxu0 0.0
        %5512 = vmatpush1.msra.mxu0 0.0
        %5513 = vmatprep.subr.mxu0 0.0
        %5514 = vmatpush1.msra.mxu0 0.0
        %5515 = vmatprep.subr.mxu0 0.0
        %5516 = vmatpush1.msra.mxu0 0.0
        %5517 = vmatprep.subr.mxu0 0.0
        %5518 = vmatpush1.msra.mxu0 0.0
        %5519 = vmatprep.subr.mxu0 0.0
        %5520 = vmatpush1.msra.mxu0 0.0
        %5521 = vmatprep.subr.mxu0 0.0
        %5522 = vmatpush1.msra.mxu0 0.0
        %5523 = vmatprep.subr.mxu0 0.0
        %5524 = vmatpush1.msra.mxu0 0.0
        %5525 = vmatprep.subr.mxu0 0.0
        %5526 = vmatpush1.msra.mxu0 0.0
        %5527 = vmatprep.mubr.f32.mxu0 0.0
        %5528 = vmatmul.mubr.f32.gmra.mrb[0].mxu0 %v5440
        %v5529 = vpop.f32.mrb[0].mxu0
        %v5530 = vadd.f32 0.0, %v5529
        %v5531 = vpop.f32.mrb[0].mxu0
        %5532 = vmatprep.mubr.f32.mxu0 0.0
        %5533 = vmatmul.mubr.f32.gmra.mrb[0].mxu0 %v5443
        %v5534 = vpop.f32.mrb[0].mxu0
        %v5535 = vadd.f32 0.0, %v5534
        %v5536 = vpop.f32.mrb[0].mxu0
        %5537 = vmatprep.mubr.f32.mxu0 0.0
        %5538 = vmatmul.mubr.f32.gmra.mrb[0].mxu0 %v5446
        %v5539 = vpop.f32.mrb[0].mxu0
        %v5540 = vadd.f32 0.0, %v5539
        %v5541 = vpop.f32.mrb[0].mxu0
        %5542 = vmatprep.mubr.f32.mxu0 0.0
        %5543 = vmatmul.mubr.f32.gmra.mrb[0].mxu0 %v5449
        %v5544 = vpop.f32.mrb[0].mxu0
        %v5545 = vadd.f32 0.0, %v5544
        %v5546 = vpop.f32.mrb[0].mxu0
        %5547 = vmatprep.mubr.f32.mxu0 0.0
        %5548 = vmatmul.mubr.f32.gmra.mrb[0].mxu0 %v5452
        %v5549 = vpop.f32.mrb[0].mxu0
        %v5550 = vadd.f32 0.0, %v5549
        %v5551 = vpop.f32.mrb[0].mxu0
        %5552 = vmatprep.mubr.f32.mxu0 0.0
        %5553 = vmatmul.mubr.f32.gmra.mrb[0].mxu0 %v5455
        %v5554 = vpop.f32.mrb[0].mxu0
        %v5555 = vadd.f32 0.0, %v5554
        %v5556 = vpop.f32.mrb[0].mxu0
        %5557 = vmatprep.mubr.f32.mxu0 0.0
        %5558 = vmatmul.mubr.f32.gmra.mrb[0].mxu0 %v5458
        %v5559 = vpop.f32.mrb[0].mxu0
        %v5560 = vadd.f32 0.0, %v5559
        %v5561 = vpop.f32.mrb[0].mxu0
        %5562 = vmatprep.mubr.f32.mxu0 0.0
        %5563 = vmatmul.mubr.f32.gmra.mrb[0].mxu0 %v5461
        %v5564 = vpop.f32.mrb[0].mxu0
        %v5565 = vadd.f32 0.0, %v5564
        %v5566 = vpop.f32.mrb[0].mxu0
        %5567 = vdwg.mxu0
        %v5569 = vsel %vm5438, %v5262, 0
        %v5572 = vsel %vm5438, %v5263, 0
        %v5575 = vsel %vm5438, %v5264, 0
        %v5578 = vsel %vm5438, %v5265, 0
        %v5581 = vsel %vm5438, %v5266, 0
        %v5584 = vsel %vm5438, %v5267, 0
        %v5587 = vsel %vm5438, %v5268, 0
        %v5590 = vsel %vm5438, %v5269, 0
        %5592 = vmatprep.subr.mxu0 0.0
        %5593 = vmatpush1.msra.mxu0 %v5422
        %5594 = vmatprep.subr.mxu0 0.0
        %5595 = vmatpush1.msra.mxu0 %v5423
        %5596 = vmatprep.subr.mxu0 0.0
        %5597 = vmatpush1.msra.mxu0 %v5424
        %5598 = vmatprep.subr.mxu0 0.0
        %5599 = vmatpush1.msra.mxu0 %v5425
        %5600 = vmatprep.subr.mxu0 0.0
        %5601 = vmatpush1.msra.mxu0 %v5426
        %5602 = vmatprep.subr.mxu0 0.0
        %5603 = vmatpush1.msra.mxu0 %v5427
        %5604 = vmatprep.subr.mxu0 0.0
        %5605 = vmatpush1.msra.mxu0 %v5428
        %5606 = vmatprep.subr.mxu0 0.0
        %5607 = vmatpush1.msra.mxu0 %v5429
        %5608 = vmatprep.subr.mxu0 0.0
        %5609 = vmatpush1.msra.mxu0 0.0
        %5610 = vmatprep.subr.mxu0 0.0
        %5611 = vmatpush1.msra.mxu0 0.0
        %5612 = vmatprep.subr.mxu0 0.0
        %5613 = vmatpush1.msra.mxu0 0.0
        %5614 = vmatprep.subr.mxu0 0.0
        %5615 = vmatpush1.msra.mxu0 0.0
        %5616 = vmatprep.subr.mxu0 0.0
        %5617 = vmatpush1.msra.mxu0 0.0
        %5618 = vmatprep.subr.mxu0 0.0
        %5619 = vmatpush1.msra.mxu0 0.0
        %5620 = vmatprep.subr.mxu0 0.0
        %5621 = vmatpush1.msra.mxu0 0.0
        %5622 = vmatprep.subr.mxu0 0.0
        %5623 = vmatpush1.msra.mxu0 0.0
        %5624 = vmatprep.subr.mxu0 0.0
        %5625 = vmatpush1.msra.mxu0 0.0
        %5626 = vmatprep.subr.mxu0 0.0
        %5627 = vmatpush1.msra.mxu0 0.0
        %5628 = vmatprep.subr.mxu0 0.0
        %5629 = vmatpush1.msra.mxu0 0.0
        %5630 = vmatprep.subr.mxu0 0.0
        %5631 = vmatpush1.msra.mxu0 0.0
        %5632 = vmatprep.subr.mxu0 0.0
        %5633 = vmatpush1.msra.mxu0 0.0
        %5634 = vmatprep.subr.mxu0 0.0
        %5635 = vmatpush1.msra.mxu0 0.0
        %5636 = vmatprep.subr.mxu0 0.0
        %5637 = vmatpush1.msra.mxu0 0.0
        %5638 = vmatprep.subr.mxu0 0.0
        %5639 = vmatpush1.msra.mxu0 0.0
        %5640 = vmatprep.subr.mxu0 0.0
        %5641 = vmatpush1.msra.mxu0 0.0
        %5642 = vmatprep.subr.mxu0 0.0
        %5643 = vmatpush1.msra.mxu0 0.0
        %5644 = vmatprep.subr.mxu0 0.0
        %5645 = vmatpush1.msra.mxu0 0.0
        %5646 = vmatprep.subr.mxu0 0.0
        %5647 = vmatpush1.msra.mxu0 0.0
        %5648 = vmatprep.subr.mxu0 0.0
        %5649 = vmatpush1.msra.mxu0 0.0
        %5650 = vmatprep.subr.mxu0 0.0
        %5651 = vmatpush1.msra.mxu0 0.0
        %5652 = vmatprep.subr.mxu0 0.0
        %5653 = vmatpush1.msra.mxu0 0.0
        %5654 = vmatprep.subr.mxu0 0.0
        %5655 = vmatpush1.msra.mxu0 0.0
        %5656 = vmatprep.mubr.f32.mxu0 0.0
        %5657 = vmatmul.mubr.f32.gmra.mrb[0].mxu0 %v5569
        %v5658 = vpop.f32.mrb[0].mxu0
        %v5659 = vadd.f32 0.0, %v5658
        %v5660 = vpop.f32.mrb[0].mxu0
        %5661 = vmatprep.mubr.f32.mxu0 0.0
        %5662 = vmatmul.mubr.f32.gmra.mrb[0].mxu0 %v5572
        %v5663 = vpop.f32.mrb[0].mxu0
        %v5664 = vadd.f32 0.0, %v5663
        %v5665 = vpop.f32.mrb[0].mxu0
        %5666 = vmatprep.mubr.f32.mxu0 0.0
        %5667 = vmatmul.mubr.f32.gmra.mrb[0].mxu0 %v5575
        %v5668 = vpop.f32.mrb[0].mxu0
        %v5669 = vadd.f32 0.0, %v5668
        %v5670 = vpop.f32.mrb[0].mxu0
        %5671 = vmatprep.mubr.f32.mxu0 0.0
        %5672 = vmatmul.mubr.f32.gmra.mrb[0].mxu0 %v5578
        %v5673 = vpop.f32.mrb[0].mxu0
        %v5674 = vadd.f32 0.0, %v5673
        %v5675 = vpop.f32.mrb[0].mxu0
        %5676 = vmatprep.mubr.f32.mxu0 0.0
        %5677 = vmatmul.mubr.f32.gmra.mrb[0].mxu0 %v5581
        %v5678 = vpop.f32.mrb[0].mxu0
        %v5679 = vadd.f32 0.0, %v5678
        %v5680 = vpop.f32.mrb[0].mxu0
        %5681 = vmatprep.mubr.f32.mxu0 0.0
        %5682 = vmatmul.mubr.f32.gmra.mrb[0].mxu0 %v5584
        %v5683 = vpop.f32.mrb[0].mxu0
        %v5684 = vadd.f32 0.0, %v5683
        %v5685 = vpop.f32.mrb[0].mxu0
        %5686 = vmatprep.mubr.f32.mxu0 0.0
        %5687 = vmatmul.mubr.f32.gmra.mrb[0].mxu0 %v5587
        %v5688 = vpop.f32.mrb[0].mxu0
        %v5689 = vadd.f32 0.0, %v5688
        %v5690 = vpop.f32.mrb[0].mxu0
        %5691 = vmatprep.mubr.f32.mxu0 0.0
        %5692 = vmatmul.mubr.f32.gmra.mrb[0].mxu0 %v5590
        %v5693 = vpop.f32.mrb[0].mxu0
        %v5694 = vadd.f32 0.0, %v5693
        %v5695 = vpop.f32.mrb[0].mxu0
        %5696 = vdwg.mxu0
        %v5698 = vsel %vm4109, %v5659, 0
        %v5701 = vsel %vm4109, %v5664, 0
        %v5704 = vsel %vm4109, %v5669, 0
        %v5707 = vsel %vm4109, %v5674, 0
        %v5710 = vsel %vm4109, %v5679, 0
        %v5713 = vsel %vm4109, %v5684, 0
        %v5716 = vsel %vm4109, %v5689, 0
        %v5719 = vsel %vm4109, %v5694, 0
        %v5722 = vsel %vm4113, %v5437, 0
        %5724 = vmatprep.subr.mxu0 0.0
        %5725 = vmatpush1.msra.mxu0 %v4474
        %5726 = vmatprep.subr.mxu0 0.0
        %5727 = vmatpush1.msra.mxu0 %v5722
        %5728 = vmatprep.subr.mxu0 0.0
        %5729 = vmatpush1.msra.mxu0 0.0
        %5730 = vmatprep.subr.mxu0 0.0
        %5731 = vmatpush1.msra.mxu0 0.0
        %5732 = vmatprep.subr.mxu0 0.0
        %5733 = vmatpush1.msra.mxu0 0.0
        %5734 = vmatprep.subr.mxu0 0.0
        %5735 = vmatpush1.msra.mxu0 0.0
        %5736 = vmatprep.subr.mxu0 0.0
        %5737 = vmatpush1.msra.mxu0 0.0
        %5738 = vmatprep.subr.mxu0 0.0
        %5739 = vmatpush1.msra.mxu0 0.0
        %5740 = vmatprep.subr.mxu0 0.0
        %5741 = vmatpush1.msra.mxu0 0.0
        %5742 = vmatprep.subr.mxu0 0.0
        %5743 = vmatpush1.msra.mxu0 0.0
        %5744 = vmatprep.subr.mxu0 0.0
        %5745 = vmatpush1.msra.mxu0 0.0
        %5746 = vmatprep.subr.mxu0 0.0
        %5747 = vmatpush1.msra.mxu0 0.0
        %5748 = vmatprep.subr.mxu0 0.0
        %5749 = vmatpush1.msra.mxu0 0.0
        %5750 = vmatprep.subr.mxu0 0.0
        %5751 = vmatpush1.msra.mxu0 0.0
        %5752 = vmatprep.subr.mxu0 0.0
        %5753 = vmatpush1.msra.mxu0 0.0
        %5754 = vmatprep.subr.mxu0 0.0
        %5755 = vmatpush1.msra.mxu0 0.0
        %5756 = vmatprep.subr.mxu0 0.0
        %5757 = vmatpush1.msra.mxu0 0.0
        %5758 = vmatprep.subr.mxu0 0.0
        %5759 = vmatpush1.msra.mxu0 0.0
        %5760 = vmatprep.subr.mxu0 0.0
        %5761 = vmatpush1.msra.mxu0 0.0
        %5762 = vmatprep.subr.mxu0 0.0
        %5763 = vmatpush1.msra.mxu0 0.0
        %5764 = vmatprep.subr.mxu0 0.0
        %5765 = vmatpush1.msra.mxu0 0.0
        %5766 = vmatprep.subr.mxu0 0.0
        %5767 = vmatpush1.msra.mxu0 0.0
        %5768 = vmatprep.subr.mxu0 0.0
        %5769 = vmatpush1.msra.mxu0 0.0
        %5770 = vmatprep.subr.mxu0 0.0
        %5771 = vmatpush1.msra.mxu0 0.0
        %5772 = vmatprep.subr.mxu0 0.0
        %5773 = vmatpush1.msra.mxu0 0.0
        %5774 = vmatprep.subr.mxu0 0.0
        %5775 = vmatpush1.msra.mxu0 0.0
        %5776 = vmatprep.subr.mxu0 0.0
        %5777 = vmatpush1.msra.mxu0 0.0
        %5778 = vmatprep.subr.mxu0 0.0
        %5779 = vmatpush1.msra.mxu0 0.0
        %5780 = vmatprep.subr.mxu0 0.0
        %5781 = vmatpush1.msra.mxu0 0.0
        %5782 = vmatprep.subr.mxu0 0.0
        %5783 = vmatpush1.msra.mxu0 0.0
        %5784 = vmatprep.subr.mxu0 0.0
        %5785 = vmatpush1.msra.mxu0 0.0
        %5786 = vmatprep.subr.mxu0 0.0
        %5787 = vmatpush1.msra.mxu0 0.0
        %5788 = vmatprep.mubr.f32.mxu0 0.0
        %5789 = vmatmul.mubr.f32.gmra.mrb[0].mxu0 %v5698
        %v5790 = vpop.f32.mrb[0].mxu0
        %v5791 = vadd.f32 0.0, %v5790
        %v5792 = vpop.f32.mrb[0].mxu0
        %5793 = vmatprep.mubr.f32.mxu0 0.0
        %5794 = vmatmul.mubr.f32.gmra.mrb[0].mxu0 %v5701
        %v5795 = vpop.f32.mrb[0].mxu0
        %v5796 = vadd.f32 0.0, %v5795
        %v5797 = vpop.f32.mrb[0].mxu0
        %5798 = vmatprep.mubr.f32.mxu0 0.0
        %5799 = vmatmul.mubr.f32.gmra.mrb[0].mxu0 %v5704
        %v5800 = vpop.f32.mrb[0].mxu0
        %v5801 = vadd.f32 0.0, %v5800
        %v5802 = vpop.f32.mrb[0].mxu0
        %5803 = vmatprep.mubr.f32.mxu0 0.0
        %5804 = vmatmul.mubr.f32.gmra.mrb[0].mxu0 %v5707
        %v5805 = vpop.f32.mrb[0].mxu0
        %v5806 = vadd.f32 0.0, %v5805
        %v5807 = vpop.f32.mrb[0].mxu0
        %5808 = vmatprep.mubr.f32.mxu0 0.0
        %5809 = vmatmul.mubr.f32.gmra.mrb[0].mxu0 %v5710
        %v5810 = vpop.f32.mrb[0].mxu0
        %v5811 = vadd.f32 0.0, %v5810
        %v5812 = vpop.f32.mrb[0].mxu0
        %5813 = vmatprep.mubr.f32.mxu0 0.0
        %5814 = vmatmul.mubr.f32.gmra.mrb[0].mxu0 %v5713
        %v5815 = vpop.f32.mrb[0].mxu0
        %v5816 = vadd.f32 0.0, %v5815
        %v5817 = vpop.f32.mrb[0].mxu0
        %5818 = vmatprep.mubr.f32.mxu0 0.0
        %5819 = vmatmul.mubr.f32.gmra.mrb[0].mxu0 %v5716
        %v5820 = vpop.f32.mrb[0].mxu0
        %v5821 = vadd.f32 0.0, %v5820
        %v5822 = vpop.f32.mrb[0].mxu0
        %5823 = vmatprep.mubr.f32.mxu0 0.0
        %5824 = vmatmul.mubr.f32.gmra.mrb[0].mxu0 %v5719
        %v5825 = vpop.f32.mrb[0].mxu0
        %v5826 = vadd.f32 0.0, %v5825
        %v5827 = vpop.f32.mrb[0].mxu0
        %5828 = vdwg.mxu0
        %v5830 = vsel %vm4109, %v5530, 0
        %v5833 = vsel %vm4109, %v5535, 0
        %v5836 = vsel %vm4109, %v5540, 0
        %v5839 = vsel %vm4109, %v5545, 0
        %v5842 = vsel %vm4109, %v5550, 0
        %v5845 = vsel %vm4109, %v5555, 0
        %v5848 = vsel %vm4109, %v5560, 0
        %v5851 = vsel %vm4109, %v5565, 0
        %v5854 = vsel %vm4113, %v5433, 0
        %5856 = vmatprep.subr.mxu0 0.0
        %5857 = vmatpush1.msra.mxu0 %v4470
        %5858 = vmatprep.subr.mxu0 0.0
        %5859 = vmatpush1.msra.mxu0 %v5854
        %5860 = vmatprep.subr.mxu0 0.0
        %5861 = vmatpush1.msra.mxu0 0.0
        %5862 = vmatprep.subr.mxu0 0.0
        %5863 = vmatpush1.msra.mxu0 0.0
        %5864 = vmatprep.subr.mxu0 0.0
        %5865 = vmatpush1.msra.mxu0 0.0
        %5866 = vmatprep.subr.mxu0 0.0
        %5867 = vmatpush1.msra.mxu0 0.0
        %5868 = vmatprep.subr.mxu0 0.0
        %5869 = vmatpush1.msra.mxu0 0.0
        %5870 = vmatprep.subr.mxu0 0.0
        %5871 = vmatpush1.msra.mxu0 0.0
        %5872 = vmatprep.subr.mxu0 0.0
        %5873 = vmatpush1.msra.mxu0 0.0
        %5874 = vmatprep.subr.mxu0 0.0
        %5875 = vmatpush1.msra.mxu0 0.0
        %5876 = vmatprep.subr.mxu0 0.0
        %5877 = vmatpush1.msra.mxu0 0.0
        %5878 = vmatprep.subr.mxu0 0.0
        %5879 = vmatpush1.msra.mxu0 0.0
        %5880 = vmatprep.subr.mxu0 0.0
        %5881 = vmatpush1.msra.mxu0 0.0
        %5882 = vmatprep.subr.mxu0 0.0
        %5883 = vmatpush1.msra.mxu0 0.0
        %5884 = vmatprep.subr.mxu0 0.0
        %5885 = vmatpush1.msra.mxu0 0.0
        %5886 = vmatprep.subr.mxu0 0.0
        %5887 = vmatpush1.msra.mxu0 0.0
        %5888 = vmatprep.subr.mxu0 0.0
        %5889 = vmatpush1.msra.mxu0 0.0
        %5890 = vmatprep.subr.mxu0 0.0
        %5891 = vmatpush1.msra.mxu0 0.0
        %5892 = vmatprep.subr.mxu0 0.0
        %5893 = vmatpush1.msra.mxu0 0.0
        %5894 = vmatprep.subr.mxu0 0.0
        %5895 = vmatpush1.msra.mxu0 0.0
        %5896 = vmatprep.subr.mxu0 0.0
        %5897 = vmatpush1.msra.mxu0 0.0
        %5898 = vmatprep.subr.mxu0 0.0
        %5899 = vmatpush1.msra.mxu0 0.0
        %5900 = vmatprep.subr.mxu0 0.0
        %5901 = vmatpush1.msra.mxu0 0.0
        %5902 = vmatprep.subr.mxu0 0.0
        %5903 = vmatpush1.msra.mxu0 0.0
        %5904 = vmatprep.subr.mxu0 0.0
        %5905 = vmatpush1.msra.mxu0 0.0
        %5906 = vmatprep.subr.mxu0 0.0
        %5907 = vmatpush1.msra.mxu0 0.0
        %5908 = vmatprep.subr.mxu0 0.0
        %5909 = vmatpush1.msra.mxu0 0.0
        %5910 = vmatprep.subr.mxu0 0.0
        %5911 = vmatpush1.msra.mxu0 0.0
        %5912 = vmatprep.subr.mxu0 0.0
        %5913 = vmatpush1.msra.mxu0 0.0
        %5914 = vmatprep.subr.mxu0 0.0
        %5915 = vmatpush1.msra.mxu0 0.0
        %5916 = vmatprep.subr.mxu0 0.0
        %5917 = vmatpush1.msra.mxu0 0.0
        %5918 = vmatprep.subr.mxu0 0.0
        %5919 = vmatpush1.msra.mxu0 0.0
        %5920 = vmatprep.mubr.f32.mxu0 0.0
        %5921 = vmatmul.mubr.f32.gmra.mrb[0].mxu0 %v5830
        %v5922 = vpop.f32.mrb[0].mxu0
        %v5923 = vadd.f32 %v5791, %v5922
        %v5924 = vpop.f32.mrb[0].mxu0
        %5925 = vmatprep.mubr.f32.mxu0 0.0
        %5926 = vmatmul.mubr.f32.gmra.mrb[0].mxu0 %v5833
        %v5927 = vpop.f32.mrb[0].mxu0
        %v5928 = vadd.f32 %v5796, %v5927
        %v5929 = vpop.f32.mrb[0].mxu0
        %5930 = vmatprep.mubr.f32.mxu0 0.0
        %5931 = vmatmul.mubr.f32.gmra.mrb[0].mxu0 %v5836
        %v5932 = vpop.f32.mrb[0].mxu0
        %v5933 = vadd.f32 %v5801, %v5932
        %v5934 = vpop.f32.mrb[0].mxu0
        %5935 = vmatprep.mubr.f32.mxu0 0.0
        %5936 = vmatmul.mubr.f32.gmra.mrb[0].mxu0 %v5839
        %v5937 = vpop.f32.mrb[0].mxu0
        %v5938 = vadd.f32 %v5806, %v5937
        %v5939 = vpop.f32.mrb[0].mxu0
        %5940 = vmatprep.mubr.f32.mxu0 0.0
        %5941 = vmatmul.mubr.f32.gmra.mrb[0].mxu0 %v5842
        %v5942 = vpop.f32.mrb[0].mxu0
        %v5943 = vadd.f32 %v5811, %v5942
        %v5944 = vpop.f32.mrb[0].mxu0
        %5945 = vmatprep.mubr.f32.mxu0 0.0
        %5946 = vmatmul.mubr.f32.gmra.mrb[0].mxu0 %v5845
        %v5947 = vpop.f32.mrb[0].mxu0
        %v5948 = vadd.f32 %v5816, %v5947
        %v5949 = vpop.f32.mrb[0].mxu0
        %5950 = vmatprep.mubr.f32.mxu0 0.0
        %5951 = vmatmul.mubr.f32.gmra.mrb[0].mxu0 %v5848
        %v5952 = vpop.f32.mrb[0].mxu0
        %v5953 = vadd.f32 %v5821, %v5952
        %v5954 = vpop.f32.mrb[0].mxu0
        %5955 = vmatprep.mubr.f32.mxu0 0.0
        %5956 = vmatmul.mubr.f32.gmra.mrb[0].mxu0 %v5851
        %v5957 = vpop.f32.mrb[0].mxu0
        %v5958 = vadd.f32 %v5826, %v5957
        %v5959 = vpop.f32.mrb[0].mxu0
        %5960 = vdwg.mxu0
        %5962 = vset.pattern.permute.xlu0 0
        %5963 = vperm.xlu0 %5962, %v5270
        %v5964 = vpop.permute.xlu0 %5963
        %5967 = vset.pattern.permute.xlu0 0
        %5968 = vperm.xlu0 %5967, %v5271
        %v5969 = vpop.permute.xlu0 %5968
        %5972 = vset.pattern.permute.xlu0 0
        %5973 = vperm.xlu0 %5972, %v5272
        %v5974 = vpop.permute.xlu0 %5973
        %5977 = vset.pattern.permute.xlu0 0
        %5978 = vperm.xlu0 %5977, %v5273
        %v5979 = vpop.permute.xlu0 %5978
        %5982 = vset.pattern.permute.xlu0 0
        %5983 = vperm.xlu0 %5982, %v5274
        %v5984 = vpop.permute.xlu0 %5983
        %5987 = vset.pattern.permute.xlu0 0
        %5988 = vperm.xlu0 %5987, %v5275
        %v5989 = vpop.permute.xlu0 %5988
        %5992 = vset.pattern.permute.xlu0 0
        %5993 = vperm.xlu0 %5992, %v5276
        %v5994 = vpop.permute.xlu0 %5993
        %5997 = vset.pattern.permute.xlu0 0
        %5998 = vperm.xlu0 %5997, %v5277
        %v5999 = vpop.permute.xlu0 %5998
        %v6001 = vadd.f32 %v5923, %v5964
        %v6002 = vadd.f32 %v5928, %v5969
        %v6003 = vadd.f32 %v5933, %v5974
        %v6004 = vadd.f32 %v5938, %v5979
        %v6005 = vadd.f32 %v5943, %v5984
        %v6006 = vadd.f32 %v5948, %v5989
        %v6007 = vadd.f32 %v5953, %v5994
        %v6008 = vadd.f32 %v5958, %v5999
        %vm6009 = vcmp.ge.f32.partialorder %v6001, 0.0
        %vm6010 = vcmp.ge.f32.partialorder %v6002, 0.0
        %vm6011 = vcmp.ge.f32.partialorder %v6003, 0.0
        %vm6012 = vcmp.ge.f32.partialorder %v6004, 0.0
        %vm6013 = vcmp.ge.f32.partialorder %v6005, 0.0
        %vm6014 = vcmp.ge.f32.partialorder %v6006, 0.0
        %vm6015 = vcmp.ge.f32.partialorder %v6007, 0.0
        %vm6016 = vcmp.ge.f32.partialorder %v6008, 0.0
        %v6017 = vmul.f32 %v6001, 0.01
        %v6018 = vmul.f32 %v6002, 0.01
        %v6019 = vmul.f32 %v6003, 0.01
        %v6020 = vmul.f32 %v6004, 0.01
        %v6021 = vmul.f32 %v6005, 0.01
        %v6022 = vmul.f32 %v6006, 0.01
        %v6023 = vmul.f32 %v6007, 0.01
        %v6024 = vmul.f32 %v6008, 0.01
        %v6025 = vsel %vm6009, %v6001, %v6017
        %v6026 = vsel %vm6010, %v6002, %v6018
        %v6027 = vsel %vm6011, %v6003, %v6019
        %v6028 = vsel %vm6012, %v6004, %v6020
        %v6029 = vsel %vm6013, %v6005, %v6021
        %v6030 = vsel %vm6014, %v6006, %v6022
        %v6031 = vsel %vm6015, %v6007, %v6023
        %v6032 = vsel %vm6016, %v6008, %v6024
        %vm6033 = vcmask 244736
        %v6034 = vsel %vm6033, %v6025, 0.0
        %6035 = vadd.xlane.f32.xlu0 %v6034
        %v6036 = vpop.xlane.xlu0 %6035
        %v6037 = vsel %vm6033, %v6026, 0.0
        %6038 = vadd.xlane.f32.xlu0 %v6037
        %v6039 = vpop.xlane.xlu0 %6038
        %v6040 = vsel %vm6033, %v6027, 0.0
        %6041 = vadd.xlane.f32.xlu0 %v6040
        %v6042 = vpop.xlane.xlu0 %6041
        %v6043 = vsel %vm6033, %v6028, 0.0
        %6044 = vadd.xlane.f32.xlu0 %v6043
        %v6045 = vpop.xlane.xlu0 %6044
        %v6046 = vsel %vm6033, %v6029, 0.0
        %6047 = vadd.xlane.f32.xlu0 %v6046
        %v6048 = vpop.xlane.xlu0 %6047
        %v6049 = vsel %vm6033, %v6030, 0.0
        %6050 = vadd.xlane.f32.xlu0 %v6049
        %v6051 = vpop.xlane.xlu0 %6050
        %v6052 = vsel %vm6033, %v6031, 0.0
        %6053 = vadd.xlane.f32.xlu0 %v6052
        %v6054 = vpop.xlane.xlu0 %6053
        %v6055 = vsel %vm6033, %v6032, 0.0
        %6056 = vadd.xlane.f32.xlu0 %v6055
        %v6057 = vpop.xlane.xlu0 %6056
        %v6058 = vrcp.pop 30.0
        %v6059 = vmul.f32 %v6036, %v6058
        %v6060 = vmul.f32 %v6039, %v6058
        %v6061 = vmul.f32 %v6042, %v6058
        %v6062 = vmul.f32 %v6045, %v6058
        %v6063 = vmul.f32 %v6048, %v6058
        %v6064 = vmul.f32 %v6051, %v6058
        %v6065 = vmul.f32 %v6054, %v6058
        %v6066 = vmul.f32 %v6057, %v6058
        %v6067 = vsub.f32 %v6025, %v6059
        %v6068 = vsub.f32 %v6026, %v6060
        %v6069 = vsub.f32 %v6027, %v6061
        %v6070 = vsub.f32 %v6028, %v6062
        %v6071 = vsub.f32 %v6029, %v6063
        %v6072 = vsub.f32 %v6030, %v6064
        %v6073 = vsub.f32 %v6031, %v6065
        %v6074 = vsub.f32 %v6032, %v6066
        %v6075 = vmul.f32 %v6067, %v6067
        %v6076 = vmul.f32 %v6068, %v6068
        %v6077 = vmul.f32 %v6069, %v6069
        %v6078 = vmul.f32 %v6070, %v6070
        %v6079 = vmul.f32 %v6071, %v6071
        %v6080 = vmul.f32 %v6072, %v6072
        %v6081 = vmul.f32 %v6073, %v6073
        %v6082 = vmul.f32 %v6074, %v6074
        %v6083 = vsel %vm6033, %v6075, 0.0
        %6084 = vadd.xlane.f32.xlu0 %v6083
        %v6085 = vpop.xlane.xlu0 %6084
        %v6086 = vsel %vm6033, %v6076, 0.0
        %6087 = vadd.xlane.f32.xlu0 %v6086
        %v6088 = vpop.xlane.xlu0 %6087
        %v6089 = vsel %vm6033, %v6077, 0.0
        %6090 = vadd.xlane.f32.xlu0 %v6089
        %v6091 = vpop.xlane.xlu0 %6090
        %v6092 = vsel %vm6033, %v6078, 0.0
        %6093 = vadd.xlane.f32.xlu0 %v6092
        %v6094 = vpop.xlane.xlu0 %6093
        %v6095 = vsel %vm6033, %v6079, 0.0
        %6096 = vadd.xlane.f32.xlu0 %v6095
        %v6097 = vpop.xlane.xlu0 %6096
        %v6098 = vsel %vm6033, %v6080, 0.0
        %6099 = vadd.xlane.f32.xlu0 %v6098
        %v6100 = vpop.xlane.xlu0 %6099
        %v6101 = vsel %vm6033, %v6081, 0.0
        %6102 = vadd.xlane.f32.xlu0 %v6101
        %v6103 = vpop.xlane.xlu0 %6102
        %v6104 = vsel %vm6033, %v6082, 0.0
        %6105 = vadd.xlane.f32.xlu0 %v6104
        %v6106 = vpop.xlane.xlu0 %6105
        %v6107 = vmul.f32 %v6085, %v6058
        %v6108 = vmul.f32 %v6088, %v6058
        %v6109 = vmul.f32 %v6091, %v6058
        %v6110 = vmul.f32 %v6094, %v6058
        %v6111 = vmul.f32 %v6097, %v6058
        %v6112 = vmul.f32 %v6100, %v6058
        %v6113 = vmul.f32 %v6103, %v6058
        %v6114 = vmul.f32 %v6106, %v6058
        %v6115 = vadd.f32 %v6107, 1e-05
        %v6116 = vadd.f32 %v6108, 1e-05
        %v6117 = vadd.f32 %v6109, 1e-05
        %v6118 = vadd.f32 %v6110, 1e-05
        %v6119 = vadd.f32 %v6111, 1e-05
        %v6120 = vadd.f32 %v6112, 1e-05
        %v6121 = vadd.f32 %v6113, 1e-05
        %v6122 = vadd.f32 %v6114, 1e-05
        %v6123 = vrsqrt.pop %v6115
        %v6124 = vrsqrt.pop %v6116
        %v6125 = vrsqrt.pop %v6117
        %v6126 = vrsqrt.pop %v6118
        %v6127 = vrsqrt.pop %v6119
        %v6128 = vrsqrt.pop %v6120
        %v6129 = vrsqrt.pop %v6121
        %v6130 = vrsqrt.pop %v6122
        %v6131 = vmul.f32 %v6067, %v6123
        %v6132 = vmul.f32 %v6068, %v6124
        %v6133 = vmul.f32 %v6069, %v6125
        %v6134 = vmul.f32 %v6070, %v6126
        %v6135 = vmul.f32 %v6071, %v6127
        %v6136 = vmul.f32 %v6072, %v6128
        %v6137 = vmul.f32 %v6073, %v6129
        %v6138 = vmul.f32 %v6074, %v6130
        %v6140 = vsel %vm6033, %v6131, 0
        %v6143 = vsel %vm6033, %v6132, 0
        %v6146 = vsel %vm6033, %v6133, 0
        %v6149 = vsel %vm6033, %v6134, 0
        %v6152 = vsel %vm6033, %v6135, 0
        %v6155 = vsel %vm6033, %v6136, 0
        %v6158 = vsel %vm6033, %v6137, 0
        %v6161 = vsel %vm6033, %v6138, 0
        %v6163 = vsel %vm3786, %v1709, 0
        %6165 = vmatprep.subr.mxu0 0.0
        %6166 = vmatpush1.msra.mxu0 %v1706
        %6167 = vmatprep.subr.mxu0 0.0
        %6168 = vmatpush1.msra.mxu0 %v1707
        %6169 = vmatprep.subr.mxu0 0.0
        %6170 = vmatpush1.msra.mxu0 %v1708
        %6171 = vmatprep.subr.mxu0 0.0
        %6172 = vmatpush1.msra.mxu0 %v6163
        %6173 = vmatprep.subr.mxu0 0.0
        %6174 = vmatpush1.msra.mxu0 0.0
        %6175 = vmatprep.subr.mxu0 0.0
        %6176 = vmatpush1.msra.mxu0 0.0
        %6177 = vmatprep.subr.mxu0 0.0
        %6178 = vmatpush1.msra.mxu0 0.0
        %6179 = vmatprep.subr.mxu0 0.0
        %6180 = vmatpush1.msra.mxu0 0.0
        %6181 = vmatprep.subr.mxu0 0.0
        %6182 = vmatpush1.msra.mxu0 0.0
        %6183 = vmatprep.subr.mxu0 0.0
        %6184 = vmatpush1.msra.mxu0 0.0
        %6185 = vmatprep.subr.mxu0 0.0
        %6186 = vmatpush1.msra.mxu0 0.0
        %6187 = vmatprep.subr.mxu0 0.0
        %6188 = vmatpush1.msra.mxu0 0.0
        %6189 = vmatprep.subr.mxu0 0.0
        %6190 = vmatpush1.msra.mxu0 0.0
        %6191 = vmatprep.subr.mxu0 0.0
        %6192 = vmatpush1.msra.mxu0 0.0
        %6193 = vmatprep.subr.mxu0 0.0
        %6194 = vmatpush1.msra.mxu0 0.0
        %6195 = vmatprep.subr.mxu0 0.0
        %6196 = vmatpush1.msra.mxu0 0.0
        %6197 = vmatprep.subr.mxu0 0.0
        %6198 = vmatpush1.msra.mxu0 0.0
        %6199 = vmatprep.subr.mxu0 0.0
        %6200 = vmatpush1.msra.mxu0 0.0
        %6201 = vmatprep.subr.mxu0 0.0
        %6202 = vmatpush1.msra.mxu0 0.0
        %6203 = vmatprep.subr.mxu0 0.0
        %6204 = vmatpush1.msra.mxu0 0.0
        %6205 = vmatprep.subr.mxu0 0.0
        %6206 = vmatpush1.msra.mxu0 0.0
        %6207 = vmatprep.subr.mxu0 0.0
        %6208 = vmatpush1.msra.mxu0 0.0
        %6209 = vmatprep.subr.mxu0 0.0
        %6210 = vmatpush1.msra.mxu0 0.0
        %6211 = vmatprep.subr.mxu0 0.0
        %6212 = vmatpush1.msra.mxu0 0.0
        %6213 = vmatprep.subr.mxu0 0.0
        %6214 = vmatpush1.msra.mxu0 0.0
        %6215 = vmatprep.subr.mxu0 0.0
        %6216 = vmatpush1.msra.mxu0 0.0
        %6217 = vmatprep.subr.mxu0 0.0
        %6218 = vmatpush1.msra.mxu0 0.0
        %6219 = vmatprep.subr.mxu0 0.0
        %6220 = vmatpush1.msra.mxu0 0.0
        %6221 = vmatprep.subr.mxu0 0.0
        %6222 = vmatpush1.msra.mxu0 0.0
        %6223 = vmatprep.subr.mxu0 0.0
        %6224 = vmatpush1.msra.mxu0 0.0
        %6225 = vmatprep.subr.mxu0 0.0
        %6226 = vmatpush1.msra.mxu0 0.0
        %6227 = vmatprep.subr.mxu0 0.0
        %6228 = vmatpush1.msra.mxu0 0.0
        %6229 = vmatprep.mubr.f32.mxu0 0.0
        %6230 = vmatmul.mubr.f32.gmra.mrb[0].mxu0 %v6140
        %v6231 = vpop.f32.mrb[0].mxu0
        %v6232 = vadd.f32 0.0, %v6231
        %v6233 = vpop.f32.mrb[0].mxu0
        %6234 = vmatprep.mubr.f32.mxu0 0.0
        %6235 = vmatmul.mubr.f32.gmra.mrb[0].mxu0 %v6143
        %v6236 = vpop.f32.mrb[0].mxu0
        %v6237 = vadd.f32 0.0, %v6236
        %v6238 = vpop.f32.mrb[0].mxu0
        %6239 = vmatprep.mubr.f32.mxu0 0.0
        %6240 = vmatmul.mubr.f32.gmra.mrb[0].mxu0 %v6146
        %v6241 = vpop.f32.mrb[0].mxu0
        %v6242 = vadd.f32 0.0, %v6241
        %v6243 = vpop.f32.mrb[0].mxu0
        %6244 = vmatprep.mubr.f32.mxu0 0.0
        %6245 = vmatmul.mubr.f32.gmra.mrb[0].mxu0 %v6149
        %v6246 = vpop.f32.mrb[0].mxu0
        %v6247 = vadd.f32 0.0, %v6246
        %v6248 = vpop.f32.mrb[0].mxu0
        %6249 = vmatprep.mubr.f32.mxu0 0.0
        %6250 = vmatmul.mubr.f32.gmra.mrb[0].mxu0 %v6152
        %v6251 = vpop.f32.mrb[0].mxu0
        %v6252 = vadd.f32 0.0, %v6251
        %v6253 = vpop.f32.mrb[0].mxu0
        %6254 = vmatprep.mubr.f32.mxu0 0.0
        %6255 = vmatmul.mubr.f32.gmra.mrb[0].mxu0 %v6155
        %v6256 = vpop.f32.mrb[0].mxu0
        %v6257 = vadd.f32 0.0, %v6256
        %v6258 = vpop.f32.mrb[0].mxu0
        %6259 = vmatprep.mubr.f32.mxu0 0.0
        %6260 = vmatmul.mubr.f32.gmra.mrb[0].mxu0 %v6158
        %v6261 = vpop.f32.mrb[0].mxu0
        %v6262 = vadd.f32 0.0, %v6261
        %v6263 = vpop.f32.mrb[0].mxu0
        %6264 = vmatprep.mubr.f32.mxu0 0.0
        %6265 = vmatmul.mubr.f32.gmra.mrb[0].mxu0 %v6161
        %v6266 = vpop.f32.mrb[0].mxu0
        %v6267 = vadd.f32 0.0, %v6266
        %v6268 = vpop.f32.mrb[0].mxu0
        %6269 = vdwg.mxu0
        %v6270 = vsel %vm3786, %v1566, 0
        %6272 = vmatprep.subr.mxu0 0.0
        %6273 = vmatpush1.msra.mxu0 %v1563
        %6274 = vmatprep.subr.mxu0 0.0
        %6275 = vmatpush1.msra.mxu0 %v1564
        %6276 = vmatprep.subr.mxu0 0.0
        %6277 = vmatpush1.msra.mxu0 %v1565
        %6278 = vmatprep.subr.mxu0 0.0
        %6279 = vmatpush1.msra.mxu0 %v6270
        %6280 = vmatprep.subr.mxu0 0.0
        %6281 = vmatpush1.msra.mxu0 0.0
        %6282 = vmatprep.subr.mxu0 0.0
        %6283 = vmatpush1.msra.mxu0 0.0
        %6284 = vmatprep.subr.mxu0 0.0
        %6285 = vmatpush1.msra.mxu0 0.0
        %6286 = vmatprep.subr.mxu0 0.0
        %6287 = vmatpush1.msra.mxu0 0.0
        %6288 = vmatprep.subr.mxu0 0.0
        %6289 = vmatpush1.msra.mxu0 0.0
        %6290 = vmatprep.subr.mxu0 0.0
        %6291 = vmatpush1.msra.mxu0 0.0
        %6292 = vmatprep.subr.mxu0 0.0
        %6293 = vmatpush1.msra.mxu0 0.0
        %6294 = vmatprep.subr.mxu0 0.0
        %6295 = vmatpush1.msra.mxu0 0.0
        %6296 = vmatprep.subr.mxu0 0.0
        %6297 = vmatpush1.msra.mxu0 0.0
        %6298 = vmatprep.subr.mxu0 0.0
        %6299 = vmatpush1.msra.mxu0 0.0
        %6300 = vmatprep.subr.mxu0 0.0
        %6301 = vmatpush1.msra.mxu0 0.0
        %6302 = vmatprep.subr.mxu0 0.0
        %6303 = vmatpush1.msra.mxu0 0.0
        %6304 = vmatprep.subr.mxu0 0.0
        %6305 = vmatpush1.msra.mxu0 0.0
        %6306 = vmatprep.subr.mxu0 0.0
        %6307 = vmatpush1.msra.mxu0 0.0
        %6308 = vmatprep.subr.mxu0 0.0
        %6309 = vmatpush1.msra.mxu0 0.0
        %6310 = vmatprep.subr.mxu0 0.0
        %6311 = vmatpush1.msra.mxu0 0.0
        %6312 = vmatprep.subr.mxu0 0.0
        %6313 = vmatpush1.msra.mxu0 0.0
        %6314 = vmatprep.subr.mxu0 0.0
        %6315 = vmatpush1.msra.mxu0 0.0
        %6316 = vmatprep.subr.mxu0 0.0
        %6317 = vmatpush1.msra.mxu0 0.0
        %6318 = vmatprep.subr.mxu0 0.0
        %6319 = vmatpush1.msra.mxu0 0.0
        %6320 = vmatprep.subr.mxu0 0.0
        %6321 = vmatpush1.msra.mxu0 0.0
        %6322 = vmatprep.subr.mxu0 0.0
        %6323 = vmatpush1.msra.mxu0 0.0
        %6324 = vmatprep.subr.mxu0 0.0
        %6325 = vmatpush1.msra.mxu0 0.0
        %6326 = vmatprep.subr.mxu0 0.0
        %6327 = vmatpush1.msra.mxu0 0.0
        %6328 = vmatprep.subr.mxu0 0.0
        %6329 = vmatpush1.msra.mxu0 0.0
        %6330 = vmatprep.subr.mxu0 0.0
        %6331 = vmatpush1.msra.mxu0 0.0
        %6332 = vmatprep.subr.mxu0 0.0
        %6333 = vmatpush1.msra.mxu0 0.0
        %6334 = vmatprep.subr.mxu0 0.0
        %6335 = vmatpush1.msra.mxu0 0.0
        %6336 = vmatprep.mubr.f32.mxu0 0.0
        %6337 = vmatmul.mubr.f32.gmra.mrb[0].mxu0 %v6140
        %v6338 = vpop.f32.mrb[0].mxu0
        %v6339 = vadd.f32 0.0, %v6338
        %v6340 = vpop.f32.mrb[0].mxu0
        %6341 = vmatprep.mubr.f32.mxu0 0.0
        %6342 = vmatmul.mubr.f32.gmra.mrb[0].mxu0 %v6143
        %v6343 = vpop.f32.mrb[0].mxu0
        %v6344 = vadd.f32 0.0, %v6343
        %v6345 = vpop.f32.mrb[0].mxu0
        %6346 = vmatprep.mubr.f32.mxu0 0.0
        %6347 = vmatmul.mubr.f32.gmra.mrb[0].mxu0 %v6146
        %v6348 = vpop.f32.mrb[0].mxu0
        %v6349 = vadd.f32 0.0, %v6348
        %v6350 = vpop.f32.mrb[0].mxu0
        %6351 = vmatprep.mubr.f32.mxu0 0.0
        %6352 = vmatmul.mubr.f32.gmra.mrb[0].mxu0 %v6149
        %v6353 = vpop.f32.mrb[0].mxu0
        %v6354 = vadd.f32 0.0, %v6353
        %v6355 = vpop.f32.mrb[0].mxu0
        %6356 = vmatprep.mubr.f32.mxu0 0.0
        %6357 = vmatmul.mubr.f32.gmra.mrb[0].mxu0 %v6152
        %v6358 = vpop.f32.mrb[0].mxu0
        %v6359 = vadd.f32 0.0, %v6358
        %v6360 = vpop.f32.mrb[0].mxu0
        %6361 = vmatprep.mubr.f32.mxu0 0.0
        %6362 = vmatmul.mubr.f32.gmra.mrb[0].mxu0 %v6155
        %v6363 = vpop.f32.mrb[0].mxu0
        %v6364 = vadd.f32 0.0, %v6363
        %v6365 = vpop.f32.mrb[0].mxu0
        %6366 = vmatprep.mubr.f32.mxu0 0.0
        %6367 = vmatmul.mubr.f32.gmra.mrb[0].mxu0 %v6158
        %v6368 = vpop.f32.mrb[0].mxu0
        %v6369 = vadd.f32 0.0, %v6368
        %v6370 = vpop.f32.mrb[0].mxu0
        %6371 = vmatprep.mubr.f32.mxu0 0.0
        %6372 = vmatmul.mubr.f32.gmra.mrb[0].mxu0 %v6161
        %v6373 = vpop.f32.mrb[0].mxu0
        %v6374 = vadd.f32 0.0, %v6373
        %v6375 = vpop.f32.mrb[0].mxu0
        %6376 = vdwg.mxu0
        %v6378 = vsel %vm5438, %v5286, 0
        %v6381 = vsel %vm5438, %v5287, 0
        %v6384 = vsel %vm5438, %v5288, 0
        %v6387 = vsel %vm5438, %v5289, 0
        %v6390 = vsel %vm5438, %v5290, 0
        %v6393 = vsel %vm5438, %v5291, 0
        %v6396 = vsel %vm5438, %v5292, 0
        %v6399 = vsel %vm5438, %v5293, 0
        %6401 = vmatprep.subr.mxu0 0.0
        %6402 = vmatpush1.msra.mxu0 %v6339
        %6403 = vmatprep.subr.mxu0 0.0
        %6404 = vmatpush1.msra.mxu0 %v6344
        %6405 = vmatprep.subr.mxu0 0.0
        %6406 = vmatpush1.msra.mxu0 %v6349
        %6407 = vmatprep.subr.mxu0 0.0
        %6408 = vmatpush1.msra.mxu0 %v6354
        %6409 = vmatprep.subr.mxu0 0.0
        %6410 = vmatpush1.msra.mxu0 %v6359
        %6411 = vmatprep.subr.mxu0 0.0
        %6412 = vmatpush1.msra.mxu0 %v6364
        %6413 = vmatprep.subr.mxu0 0.0
        %6414 = vmatpush1.msra.mxu0 %v6369
        %6415 = vmatprep.subr.mxu0 0.0
        %6416 = vmatpush1.msra.mxu0 %v6374
        %6417 = vmatprep.subr.mxu0 0.0
        %6418 = vmatpush1.msra.mxu0 0.0
        %6419 = vmatprep.subr.mxu0 0.0
        %6420 = vmatpush1.msra.mxu0 0.0
        %6421 = vmatprep.subr.mxu0 0.0
        %6422 = vmatpush1.msra.mxu0 0.0
        %6423 = vmatprep.subr.mxu0 0.0
        %6424 = vmatpush1.msra.mxu0 0.0
        %6425 = vmatprep.subr.mxu0 0.0
        %6426 = vmatpush1.msra.mxu0 0.0
        %6427 = vmatprep.subr.mxu0 0.0
        %6428 = vmatpush1.msra.mxu0 0.0
        %6429 = vmatprep.subr.mxu0 0.0
        %6430 = vmatpush1.msra.mxu0 0.0
        %6431 = vmatprep.subr.mxu0 0.0
        %6432 = vmatpush1.msra.mxu0 0.0
        %6433 = vmatprep.subr.mxu0 0.0
        %6434 = vmatpush1.msra.mxu0 0.0
        %6435 = vmatprep.subr.mxu0 0.0
        %6436 = vmatpush1.msra.mxu0 0.0
        %6437 = vmatprep.subr.mxu0 0.0
        %6438 = vmatpush1.msra.mxu0 0.0
        %6439 = vmatprep.subr.mxu0 0.0
        %6440 = vmatpush1.msra.mxu0 0.0
        %6441 = vmatprep.subr.mxu0 0.0
        %6442 = vmatpush1.msra.mxu0 0.0
        %6443 = vmatprep.subr.mxu0 0.0
        %6444 = vmatpush1.msra.mxu0 0.0
        %6445 = vmatprep.subr.mxu0 0.0
        %6446 = vmatpush1.msra.mxu0 0.0
        %6447 = vmatprep.subr.mxu0 0.0
        %6448 = vmatpush1.msra.mxu0 0.0
        %6449 = vmatprep.subr.mxu0 0.0
        %6450 = vmatpush1.msra.mxu0 0.0
        %6451 = vmatprep.subr.mxu0 0.0
        %6452 = vmatpush1.msra.mxu0 0.0
        %6453 = vmatprep.subr.mxu0 0.0
        %6454 = vmatpush1.msra.mxu0 0.0
        %6455 = vmatprep.subr.mxu0 0.0
        %6456 = vmatpush1.msra.mxu0 0.0
        %6457 = vmatprep.subr.mxu0 0.0
        %6458 = vmatpush1.msra.mxu0 0.0
        %6459 = vmatprep.subr.mxu0 0.0
        %6460 = vmatpush1.msra.mxu0 0.0
        %6461 = vmatprep.subr.mxu0 0.0
        %6462 = vmatpush1.msra.mxu0 0.0
        %6463 = vmatprep.subr.mxu0 0.0
        %6464 = vmatpush1.msra.mxu0 0.0
        %6465 = vmatprep.mubr.f32.mxu0 0.0
        %6466 = vmatmul.mubr.f32.gmra.mrb[0].mxu0 %v6378
        %v6467 = vpop.f32.mrb[0].mxu0
        %v6468 = vadd.f32 0.0, %v6467
        %v6469 = vpop.f32.mrb[0].mxu0
        %6470 = vmatprep.mubr.f32.mxu0 0.0
        %6471 = vmatmul.mubr.f32.gmra.mrb[0].mxu0 %v6381
        %v6472 = vpop.f32.mrb[0].mxu0
        %v6473 = vadd.f32 0.0, %v6472
        %v6474 = vpop.f32.mrb[0].mxu0
        %6475 = vmatprep.mubr.f32.mxu0 0.0
        %6476 = vmatmul.mubr.f32.gmra.mrb[0].mxu0 %v6384
        %v6477 = vpop.f32.mrb[0].mxu0
        %v6478 = vadd.f32 0.0, %v6477
        %v6479 = vpop.f32.mrb[0].mxu0
        %6480 = vmatprep.mubr.f32.mxu0 0.0
        %6481 = vmatmul.mubr.f32.gmra.mrb[0].mxu0 %v6387
        %v6482 = vpop.f32.mrb[0].mxu0
        %v6483 = vadd.f32 0.0, %v6482
        %v6484 = vpop.f32.mrb[0].mxu0
        %6485 = vmatprep.mubr.f32.mxu0 0.0
        %6486 = vmatmul.mubr.f32.gmra.mrb[0].mxu0 %v6390
        %v6487 = vpop.f32.mrb[0].mxu0
        %v6488 = vadd.f32 0.0, %v6487
        %v6489 = vpop.f32.mrb[0].mxu0
        %6490 = vmatprep.mubr.f32.mxu0 0.0
        %6491 = vmatmul.mubr.f32.gmra.mrb[0].mxu0 %v6393
        %v6492 = vpop.f32.mrb[0].mxu0
        %v6493 = vadd.f32 0.0, %v6492
        %v6494 = vpop.f32.mrb[0].mxu0
        %6495 = vmatprep.mubr.f32.mxu0 0.0
        %6496 = vmatmul.mubr.f32.gmra.mrb[0].mxu0 %v6396
        %v6497 = vpop.f32.mrb[0].mxu0
        %v6498 = vadd.f32 0.0, %v6497
        %v6499 = vpop.f32.mrb[0].mxu0
        %6500 = vmatprep.mubr.f32.mxu0 0.0
        %6501 = vmatmul.mubr.f32.gmra.mrb[0].mxu0 %v6399
        %v6502 = vpop.f32.mrb[0].mxu0
        %v6503 = vadd.f32 0.0, %v6502
        %v6504 = vpop.f32.mrb[0].mxu0
        %6505 = vdwg.mxu0
        %v6507 = vsel %vm5438, %v5278, 0
        %v6510 = vsel %vm5438, %v5279, 0
        %v6513 = vsel %vm5438, %v5280, 0
        %v6516 = vsel %vm5438, %v5281, 0
        %v6519 = vsel %vm5438, %v5282, 0
        %v6522 = vsel %vm5438, %v5283, 0
        %v6525 = vsel %vm5438, %v5284, 0
        %v6528 = vsel %vm5438, %v5285, 0
        %6530 = vmatprep.subr.mxu0 0.0
        %6531 = vmatpush1.msra.mxu0 %v6232
        %6532 = vmatprep.subr.mxu0 0.0
        %6533 = vmatpush1.msra.mxu0 %v6237
        %6534 = vmatprep.subr.mxu0 0.0
        %6535 = vmatpush1.msra.mxu0 %v6242
        %6536 = vmatprep.subr.mxu0 0.0
        %6537 = vmatpush1.msra.mxu0 %v6247
        %6538 = vmatprep.subr.mxu0 0.0
        %6539 = vmatpush1.msra.mxu0 %v6252
        %6540 = vmatprep.subr.mxu0 0.0
        %6541 = vmatpush1.msra.mxu0 %v6257
        %6542 = vmatprep.subr.mxu0 0.0
        %6543 = vmatpush1.msra.mxu0 %v6262
        %6544 = vmatprep.subr.mxu0 0.0
        %6545 = vmatpush1.msra.mxu0 %v6267
        %6546 = vmatprep.subr.mxu0 0.0
        %6547 = vmatpush1.msra.mxu0 0.0
        %6548 = vmatprep.subr.mxu0 0.0
        %6549 = vmatpush1.msra.mxu0 0.0
        %6550 = vmatprep.subr.mxu0 0.0
        %6551 = vmatpush1.msra.mxu0 0.0
        %6552 = vmatprep.subr.mxu0 0.0
        %6553 = vmatpush1.msra.mxu0 0.0
        %6554 = vmatprep.subr.mxu0 0.0
        %6555 = vmatpush1.msra.mxu0 0.0
        %6556 = vmatprep.subr.mxu0 0.0
        %6557 = vmatpush1.msra.mxu0 0.0
        %6558 = vmatprep.subr.mxu0 0.0
        %6559 = vmatpush1.msra.mxu0 0.0
        %6560 = vmatprep.subr.mxu0 0.0
        %6561 = vmatpush1.msra.mxu0 0.0
        %6562 = vmatprep.subr.mxu0 0.0
        %6563 = vmatpush1.msra.mxu0 0.0
        %6564 = vmatprep.subr.mxu0 0.0
        %6565 = vmatpush1.msra.mxu0 0.0
        %6566 = vmatprep.subr.mxu0 0.0
        %6567 = vmatpush1.msra.mxu0 0.0
        %6568 = vmatprep.subr.mxu0 0.0
        %6569 = vmatpush1.msra.mxu0 0.0
        %6570 = vmatprep.subr.mxu0 0.0
        %6571 = vmatpush1.msra.mxu0 0.0
        %6572 = vmatprep.subr.mxu0 0.0
        %6573 = vmatpush1.msra.mxu0 0.0
        %6574 = vmatprep.subr.mxu0 0.0
        %6575 = vmatpush1.msra.mxu0 0.0
        %6576 = vmatprep.subr.mxu0 0.0
        %6577 = vmatpush1.msra.mxu0 0.0
        %6578 = vmatprep.subr.mxu0 0.0
        %6579 = vmatpush1.msra.mxu0 0.0
        %6580 = vmatprep.subr.mxu0 0.0
        %6581 = vmatpush1.msra.mxu0 0.0
        %6582 = vmatprep.subr.mxu0 0.0
        %6583 = vmatpush1.msra.mxu0 0.0
        %6584 = vmatprep.subr.mxu0 0.0
        %6585 = vmatpush1.msra.mxu0 0.0
        %6586 = vmatprep.subr.mxu0 0.0
        %6587 = vmatpush1.msra.mxu0 0.0
        %6588 = vmatprep.subr.mxu0 0.0
        %6589 = vmatpush1.msra.mxu0 0.0
        %6590 = vmatprep.subr.mxu0 0.0
        %6591 = vmatpush1.msra.mxu0 0.0
        %6592 = vmatprep.subr.mxu0 0.0
        %6593 = vmatpush1.msra.mxu0 0.0
        %6594 = vmatprep.mubr.f32.mxu0 0.0
        %6595 = vmatmul.mubr.f32.gmra.mrb[0].mxu0 %v6507
        %v6596 = vpop.f32.mrb[0].mxu0
        %v6597 = vadd.f32 %v6468, %v6596
        %v6598 = vpop.f32.mrb[0].mxu0
        %6599 = vmatprep.mubr.f32.mxu0 0.0
        %6600 = vmatmul.mubr.f32.gmra.mrb[0].mxu0 %v6510
        %v6601 = vpop.f32.mrb[0].mxu0
        %v6602 = vadd.f32 %v6473, %v6601
        %v6603 = vpop.f32.mrb[0].mxu0
        %6604 = vmatprep.mubr.f32.mxu0 0.0
        %6605 = vmatmul.mubr.f32.gmra.mrb[0].mxu0 %v6513
        %v6606 = vpop.f32.mrb[0].mxu0
        %v6607 = vadd.f32 %v6478, %v6606
        %v6608 = vpop.f32.mrb[0].mxu0
        %6609 = vmatprep.mubr.f32.mxu0 0.0
        %6610 = vmatmul.mubr.f32.gmra.mrb[0].mxu0 %v6516
        %v6611 = vpop.f32.mrb[0].mxu0
        %v6612 = vadd.f32 %v6483, %v6611
        %v6613 = vpop.f32.mrb[0].mxu0
        %6614 = vmatprep.mubr.f32.mxu0 0.0
        %6615 = vmatmul.mubr.f32.gmra.mrb[0].mxu0 %v6519
        %v6616 = vpop.f32.mrb[0].mxu0
        %v6617 = vadd.f32 %v6488, %v6616
        %v6618 = vpop.f32.mrb[0].mxu0
        %6619 = vmatprep.mubr.f32.mxu0 0.0
        %6620 = vmatmul.mubr.f32.gmra.mrb[0].mxu0 %v6522
        %v6621 = vpop.f32.mrb[0].mxu0
        %v6622 = vadd.f32 %v6493, %v6621
        %v6623 = vpop.f32.mrb[0].mxu0
        %6624 = vmatprep.mubr.f32.mxu0 0.0
        %6625 = vmatmul.mubr.f32.gmra.mrb[0].mxu0 %v6525
        %v6626 = vpop.f32.mrb[0].mxu0
        %v6627 = vadd.f32 %v6498, %v6626
        %v6628 = vpop.f32.mrb[0].mxu0
        %6629 = vmatprep.mubr.f32.mxu0 0.0
        %6630 = vmatmul.mubr.f32.gmra.mrb[0].mxu0 %v6528
        %v6631 = vpop.f32.mrb[0].mxu0
        %v6632 = vadd.f32 %v6503, %v6631
        %v6633 = vpop.f32.mrb[0].mxu0
        %6634 = vdwg.mxu0
        %6636 = vset.pattern.permute.xlu0 0
        %6637 = vperm.xlu0 %6636, %v5294
        %v6638 = vpop.permute.xlu0 %6637
        %6641 = vset.pattern.permute.xlu0 0
        %6642 = vperm.xlu0 %6641, %v5295
        %v6643 = vpop.permute.xlu0 %6642
        %6646 = vset.pattern.permute.xlu0 0
        %6647 = vperm.xlu0 %6646, %v5296
        %v6648 = vpop.permute.xlu0 %6647
        %6651 = vset.pattern.permute.xlu0 0
        %6652 = vperm.xlu0 %6651, %v5297
        %v6653 = vpop.permute.xlu0 %6652
        %6656 = vset.pattern.permute.xlu0 0
        %6657 = vperm.xlu0 %6656, %v5298
        %v6658 = vpop.permute.xlu0 %6657
        %6661 = vset.pattern.permute.xlu0 0
        %6662 = vperm.xlu0 %6661, %v5299
        %v6663 = vpop.permute.xlu0 %6662
        %6666 = vset.pattern.permute.xlu0 0
        %6667 = vperm.xlu0 %6666, %v5300
        %v6668 = vpop.permute.xlu0 %6667
        %6671 = vset.pattern.permute.xlu0 0
        %6672 = vperm.xlu0 %6671, %v5301
        %v6673 = vpop.permute.xlu0 %6672
        %v6675 = vadd.f32 %v6597, %v6638
        %v6676 = vadd.f32 %v6602, %v6643
        %v6677 = vadd.f32 %v6607, %v6648
        %v6678 = vadd.f32 %v6612, %v6653
        %v6679 = vadd.f32 %v6617, %v6658
        %v6680 = vadd.f32 %v6622, %v6663
        %v6681 = vadd.f32 %v6627, %v6668
        %v6682 = vadd.f32 %v6632, %v6673
        %v6683 = vld [vmem:[%s77] sm:$0xff]
        %v6684 = vld [vmem:[%s77 + $0x8] sm:$0xff]
        %v6685 = vld [vmem:[%s77 + $0x10] sm:$0xff]
        %v6686 = vld [vmem:[%s77 + $0x18] sm:$0xff]
        %v6687 = vld [vmem:[%s77 + $0x20] sm:$0xff]
        %v6688 = vld [vmem:[%s77 + $0x28] sm:$0xff]
        %v6689 = vld [vmem:[%s77 + $0x30] sm:$0xff]
        %v6690 = vld [vmem:[%s77 + $0x38] sm:$0xff]
        %v6691 = vld [vmem:[%s79] sm:$0xff]
        %v6692 = vld [vmem:[%s79 + $0x8] sm:$0xff]
        %v6693 = vld [vmem:[%s79 + $0x10] sm:$0xff]
        %v6694 = vld [vmem:[%s79 + $0x18] sm:$0xff]
        %v6695 = vld [vmem:[%s79 + $0x20] sm:$0xff]
        %v6696 = vld [vmem:[%s79 + $0x28] sm:$0xff]
        %v6697 = vld [vmem:[%s79 + $0x30] sm:$0xff]
        %v6698 = vld [vmem:[%s79 + $0x38] sm:$0xff]
        %v6699 = vld [vmem:[%s81] sm:$0xff]
        %v6700 = vld [vmem:[%s81 + $0x8] sm:$0xff]
        %v6701 = vld [vmem:[%s81 + $0x10] sm:$0xff]
        %v6702 = vld [vmem:[%s81 + $0x18] sm:$0xff]
        %v6703 = vld [vmem:[%s81 + $0x20] sm:$0xff]
        %v6704 = vld [vmem:[%s81 + $0x28] sm:$0xff]
        %v6705 = vld [vmem:[%s81 + $0x30] sm:$0xff]
        %v6706 = vld [vmem:[%s81 + $0x38] sm:$0xff]
        %v6707 = vld [vmem:[%s83] sm:$0xff]
        %v6708 = vld [vmem:[%s85] sm:$0xff]
        %v6709 = vld [vmem:[%s87] sm:$0xff]
        %vm6710 = vcmp.ge.f32.partialorder %v6675, 0.0
        %vm6711 = vcmp.ge.f32.partialorder %v6676, 0.0
        %vm6712 = vcmp.ge.f32.partialorder %v6677, 0.0
        %vm6713 = vcmp.ge.f32.partialorder %v6678, 0.0
        %vm6714 = vcmp.ge.f32.partialorder %v6679, 0.0
        %vm6715 = vcmp.ge.f32.partialorder %v6680, 0.0
        %vm6716 = vcmp.ge.f32.partialorder %v6681, 0.0
        %vm6717 = vcmp.ge.f32.partialorder %v6682, 0.0
        %v6718 = vmul.f32 %v6675, 0.01
        %v6719 = vmul.f32 %v6676, 0.01
        %v6720 = vmul.f32 %v6677, 0.01
        %v6721 = vmul.f32 %v6678, 0.01
        %v6722 = vmul.f32 %v6679, 0.01
        %v6723 = vmul.f32 %v6680, 0.01
        %v6724 = vmul.f32 %v6681, 0.01
        %v6725 = vmul.f32 %v6682, 0.01
        %v6726 = vsel %vm6710, %v6675, %v6718
        %v6727 = vsel %vm6711, %v6676, %v6719
        %v6728 = vsel %vm6712, %v6677, %v6720
        %v6729 = vsel %vm6713, %v6678, %v6721
        %v6730 = vsel %vm6714, %v6679, %v6722
        %v6731 = vsel %vm6715, %v6680, %v6723
        %v6732 = vsel %vm6716, %v6681, %v6724
        %v6733 = vsel %vm6717, %v6682, %v6725
        %vm6734 = vcmask 252928
        %v6735 = vsel %vm6734, %v6726, 0.0
        %6736 = vadd.xlane.f32.xlu0 %v6735
        %v6737 = vpop.xlane.xlu0 %6736
        %v6738 = vsel %vm6734, %v6727, 0.0
        %6739 = vadd.xlane.f32.xlu0 %v6738
        %v6740 = vpop.xlane.xlu0 %6739
        %v6741 = vsel %vm6734, %v6728, 0.0
        %6742 = vadd.xlane.f32.xlu0 %v6741
        %v6743 = vpop.xlane.xlu0 %6742
        %v6744 = vsel %vm6734, %v6729, 0.0
        %6745 = vadd.xlane.f32.xlu0 %v6744
        %v6746 = vpop.xlane.xlu0 %6745
        %v6747 = vsel %vm6734, %v6730, 0.0
        %6748 = vadd.xlane.f32.xlu0 %v6747
        %v6749 = vpop.xlane.xlu0 %6748
        %v6750 = vsel %vm6734, %v6731, 0.0
        %6751 = vadd.xlane.f32.xlu0 %v6750
        %v6752 = vpop.xlane.xlu0 %6751
        %v6753 = vsel %vm6734, %v6732, 0.0
        %6754 = vadd.xlane.f32.xlu0 %v6753
        %v6755 = vpop.xlane.xlu0 %6754
        %v6756 = vsel %vm6734, %v6733, 0.0
        %6757 = vadd.xlane.f32.xlu0 %v6756
        %v6758 = vpop.xlane.xlu0 %6757
        %v6759 = vrcp.pop 31.0
        %v6760 = vmul.f32 %v6737, %v6759
        %v6761 = vmul.f32 %v6740, %v6759
        %v6762 = vmul.f32 %v6743, %v6759
        %v6763 = vmul.f32 %v6746, %v6759
        %v6764 = vmul.f32 %v6749, %v6759
        %v6765 = vmul.f32 %v6752, %v6759
        %v6766 = vmul.f32 %v6755, %v6759
        %v6767 = vmul.f32 %v6758, %v6759
        %v6768 = vsub.f32 %v6726, %v6760
        %v6769 = vsub.f32 %v6727, %v6761
        %v6770 = vsub.f32 %v6728, %v6762
        %v6771 = vsub.f32 %v6729, %v6763
        %v6772 = vsub.f32 %v6730, %v6764
        %v6773 = vsub.f32 %v6731, %v6765
        %v6774 = vsub.f32 %v6732, %v6766
        %v6775 = vsub.f32 %v6733, %v6767
        %v6776 = vmul.f32 %v6768, %v6768
        %v6777 = vmul.f32 %v6769, %v6769
        %v6778 = vmul.f32 %v6770, %v6770
        %v6779 = vmul.f32 %v6771, %v6771
        %v6780 = vmul.f32 %v6772, %v6772
        %v6781 = vmul.f32 %v6773, %v6773
        %v6782 = vmul.f32 %v6774, %v6774
        %v6783 = vmul.f32 %v6775, %v6775
        %v6784 = vsel %vm6734, %v6776, 0.0
        %6785 = vadd.xlane.f32.xlu0 %v6784
        %v6786 = vpop.xlane.xlu0 %6785
        %v6787 = vsel %vm6734, %v6777, 0.0
        %6788 = vadd.xlane.f32.xlu0 %v6787
        %v6789 = vpop.xlane.xlu0 %6788
        %v6790 = vsel %vm6734, %v6778, 0.0
        %6791 = vadd.xlane.f32.xlu0 %v6790
        %v6792 = vpop.xlane.xlu0 %6791
        %v6793 = vsel %vm6734, %v6779, 0.0
        %6794 = vadd.xlane.f32.xlu0 %v6793
        %v6795 = vpop.xlane.xlu0 %6794
        %v6796 = vsel %vm6734, %v6780, 0.0
        %6797 = vadd.xlane.f32.xlu0 %v6796
        %v6798 = vpop.xlane.xlu0 %6797
        %v6799 = vsel %vm6734, %v6781, 0.0
        %6800 = vadd.xlane.f32.xlu0 %v6799
        %v6801 = vpop.xlane.xlu0 %6800
        %v6802 = vsel %vm6734, %v6782, 0.0
        %6803 = vadd.xlane.f32.xlu0 %v6802
        %v6804 = vpop.xlane.xlu0 %6803
        %v6805 = vsel %vm6734, %v6783, 0.0
        %6806 = vadd.xlane.f32.xlu0 %v6805
        %v6807 = vpop.xlane.xlu0 %6806
        %v6808 = vmul.f32 %v6786, %v6759
        %v6809 = vmul.f32 %v6789, %v6759
        %v6810 = vmul.f32 %v6792, %v6759
        %v6811 = vmul.f32 %v6795, %v6759
        %v6812 = vmul.f32 %v6798, %v6759
        %v6813 = vmul.f32 %v6801, %v6759
        %v6814 = vmul.f32 %v6804, %v6759
        %v6815 = vmul.f32 %v6807, %v6759
        %v6816 = vadd.f32 %v6808, 1e-05
        %v6817 = vadd.f32 %v6809, 1e-05
        %v6818 = vadd.f32 %v6810, 1e-05
        %v6819 = vadd.f32 %v6811, 1e-05
        %v6820 = vadd.f32 %v6812, 1e-05
        %v6821 = vadd.f32 %v6813, 1e-05
        %v6822 = vadd.f32 %v6814, 1e-05
        %v6823 = vadd.f32 %v6815, 1e-05
        %v6824 = vrsqrt.pop %v6816
        %v6825 = vrsqrt.pop %v6817
        %v6826 = vrsqrt.pop %v6818
        %v6827 = vrsqrt.pop %v6819
        %v6828 = vrsqrt.pop %v6820
        %v6829 = vrsqrt.pop %v6821
        %v6830 = vrsqrt.pop %v6822
        %v6831 = vrsqrt.pop %v6823
        %v6832 = vmul.f32 %v6768, %v6824
        %v6833 = vmul.f32 %v6769, %v6825
        %v6834 = vmul.f32 %v6770, %v6826
        %v6835 = vmul.f32 %v6771, %v6827
        %v6836 = vmul.f32 %v6772, %v6828
        %v6837 = vmul.f32 %v6773, %v6829
        %v6838 = vmul.f32 %v6774, %v6830
        %v6839 = vmul.f32 %v6775, %v6831
        %v6840 = vmul.u32 %v1524, 2
        %v6841 = vmul.u32 %v1525, 2
        %vm6842 = vcmp.eq.s32.totalorder %v1536, %v6840
        %vm6843 = vcmp.eq.s32.totalorder %v1536, %v6841
        %v6844 = vsel %vm6842, 1, 0
        %v6845 = vsel %vm6843, 1, 0
        %v6846 = vcvt.s32.f32 %v6844
        %v6847 = vcvt.s32.f32 %v6845
        %v6848 = vadd.s32 %v6840, 1
        %v6849 = vadd.s32 %v6841, 1
        %vm6850 = vcmp.eq.s32.totalorder %v1536, %v6848
        %vm6851 = vcmp.eq.s32.totalorder %v1536, %v6849
        %v6852 = vsel %vm6850, 1, 0
        %v6853 = vsel %vm6851, 1, 0
        %v6854 = vcvt.s32.f32 %v6852
        %v6855 = vcvt.s32.f32 %v6853
        %v6857 = vsel %vm5438, %v6683, 0
        %v6860 = vsel %vm5438, %v6684, 0
        %v6863 = vsel %vm5438, %v6685, 0
        %v6866 = vsel %vm5438, %v6686, 0
        %v6869 = vsel %vm5438, %v6687, 0
        %v6872 = vsel %vm5438, %v6688, 0
        %v6875 = vsel %vm5438, %v6689, 0
        %v6878 = vsel %vm5438, %v6690, 0
        %6880 = vmatprep.subr.mxu0 0.0
        %6881 = vmatpush1.msra.mxu0 %v6832
        %6882 = vmatprep.subr.mxu0 0.0
        %6883 = vmatpush1.msra.mxu0 %v6833
        %6884 = vmatprep.subr.mxu0 0.0
        %6885 = vmatpush1.msra.mxu0 %v6834
        %6886 = vmatprep.subr.mxu0 0.0
        %6887 = vmatpush1.msra.mxu0 %v6835
        %6888 = vmatprep.subr.mxu0 0.0
        %6889 = vmatpush1.msra.mxu0 %v6836
        %6890 = vmatprep.subr.mxu0 0.0
        %6891 = vmatpush1.msra.mxu0 %v6837
        %6892 = vmatprep.subr.mxu0 0.0
        %6893 = vmatpush1.msra.mxu0 %v6838
        %6894 = vmatprep.subr.mxu0 0.0
        %6895 = vmatpush1.msra.mxu0 %v6839
        %6896 = vmatprep.subr.mxu0 0.0
        %6897 = vmatpush1.msra.mxu0 0.0
        %6898 = vmatprep.subr.mxu0 0.0
        %6899 = vmatpush1.msra.mxu0 0.0
        %6900 = vmatprep.subr.mxu0 0.0
        %6901 = vmatpush1.msra.mxu0 0.0
        %6902 = vmatprep.subr.mxu0 0.0
        %6903 = vmatpush1.msra.mxu0 0.0
        %6904 = vmatprep.subr.mxu0 0.0
        %6905 = vmatpush1.msra.mxu0 0.0
        %6906 = vmatprep.subr.mxu0 0.0
        %6907 = vmatpush1.msra.mxu0 0.0
        %6908 = vmatprep.subr.mxu0 0.0
        %6909 = vmatpush1.msra.mxu0 0.0
        %6910 = vmatprep.subr.mxu0 0.0
        %6911 = vmatpush1.msra.mxu0 0.0
        %6912 = vmatprep.subr.mxu0 0.0
        %6913 = vmatpush1.msra.mxu0 0.0
        %6914 = vmatprep.subr.mxu0 0.0
        %6915 = vmatpush1.msra.mxu0 0.0
        %6916 = vmatprep.subr.mxu0 0.0
        %6917 = vmatpush1.msra.mxu0 0.0
        %6918 = vmatprep.subr.mxu0 0.0
        %6919 = vmatpush1.msra.mxu0 0.0
        %6920 = vmatprep.subr.mxu0 0.0
        %6921 = vmatpush1.msra.mxu0 0.0
        %6922 = vmatprep.subr.mxu0 0.0
        %6923 = vmatpush1.msra.mxu0 0.0
        %6924 = vmatprep.subr.mxu0 0.0
        %6925 = vmatpush1.msra.mxu0 0.0
        %6926 = vmatprep.subr.mxu0 0.0
        %6927 = vmatpush1.msra.mxu0 0.0
        %6928 = vmatprep.subr.mxu0 0.0
        %6929 = vmatpush1.msra.mxu0 0.0
        %6930 = vmatprep.subr.mxu0 0.0
        %6931 = vmatpush1.msra.mxu0 0.0
        %6932 = vmatprep.subr.mxu0 0.0
        %6933 = vmatpush1.msra.mxu0 0.0
        %6934 = vmatprep.subr.mxu0 0.0
        %6935 = vmatpush1.msra.mxu0 0.0
        %6936 = vmatprep.subr.mxu0 0.0
        %6937 = vmatpush1.msra.mxu0 0.0
        %6938 = vmatprep.subr.mxu0 0.0
        %6939 = vmatpush1.msra.mxu0 0.0
        %6940 = vmatprep.subr.mxu0 0.0
        %6941 = vmatpush1.msra.mxu0 0.0
        %6942 = vmatprep.subr.mxu0 0.0
        %6943 = vmatpush1.msra.mxu0 0.0
        %6944 = vmatprep.mubr.f32.mxu0 0.0
        %6945 = vmatmul.mubr.f32.gmra.mrb[0].mxu0 %v6857
        %v6946 = vpop.f32.mrb[0].mxu0
        %v6947 = vadd.f32 0.0, %v6946
        %v6948 = vpop.f32.mrb[0].mxu0
        %6949 = vmatprep.mubr.f32.mxu0 0.0
        %6950 = vmatmul.mubr.f32.gmra.mrb[0].mxu0 %v6860
        %v6951 = vpop.f32.mrb[0].mxu0
        %v6952 = vadd.f32 0.0, %v6951
        %v6953 = vpop.f32.mrb[0].mxu0
        %6954 = vmatprep.mubr.f32.mxu0 0.0
        %6955 = vmatmul.mubr.f32.gmra.mrb[0].mxu0 %v6863
        %v6956 = vpop.f32.mrb[0].mxu0
        %v6957 = vadd.f32 0.0, %v6956
        %v6958 = vpop.f32.mrb[0].mxu0
        %6959 = vmatprep.mubr.f32.mxu0 0.0
        %6960 = vmatmul.mubr.f32.gmra.mrb[0].mxu0 %v6866
        %v6961 = vpop.f32.mrb[0].mxu0
        %v6962 = vadd.f32 0.0, %v6961
        %v6963 = vpop.f32.mrb[0].mxu0
        %6964 = vmatprep.mubr.f32.mxu0 0.0
        %6965 = vmatmul.mubr.f32.gmra.mrb[0].mxu0 %v6869
        %v6966 = vpop.f32.mrb[0].mxu0
        %v6967 = vadd.f32 0.0, %v6966
        %v6968 = vpop.f32.mrb[0].mxu0
        %6969 = vmatprep.mubr.f32.mxu0 0.0
        %6970 = vmatmul.mubr.f32.gmra.mrb[0].mxu0 %v6872
        %v6971 = vpop.f32.mrb[0].mxu0
        %v6972 = vadd.f32 0.0, %v6971
        %v6973 = vpop.f32.mrb[0].mxu0
        %6974 = vmatprep.mubr.f32.mxu0 0.0
        %6975 = vmatmul.mubr.f32.gmra.mrb[0].mxu0 %v6875
        %v6976 = vpop.f32.mrb[0].mxu0
        %v6977 = vadd.f32 0.0, %v6976
        %v6978 = vpop.f32.mrb[0].mxu0
        %6979 = vmatprep.mubr.f32.mxu0 0.0
        %6980 = vmatmul.mubr.f32.gmra.mrb[0].mxu0 %v6878
        %v6981 = vpop.f32.mrb[0].mxu0
        %v6982 = vadd.f32 0.0, %v6981
        %v6983 = vpop.f32.mrb[0].mxu0
        %6984 = vdwg.mxu0
        %v6986 = vsel %vm5438, %v6691, 0
        %v6989 = vsel %vm5438, %v6692, 0
        %v6992 = vsel %vm5438, %v6693, 0
        %v6995 = vsel %vm5438, %v6694, 0
        %v6998 = vsel %vm5438, %v6695, 0
        %v7001 = vsel %vm5438, %v6696, 0
        %v7004 = vsel %vm5438, %v6697, 0
        %v7007 = vsel %vm5438, %v6698, 0
        %7009 = vmatprep.subr.mxu0 0.0
        %7010 = vmatpush1.msra.mxu0 %v6832
        %7011 = vmatprep.subr.mxu0 0.0
        %7012 = vmatpush1.msra.mxu0 %v6833
        %7013 = vmatprep.subr.mxu0 0.0
        %7014 = vmatpush1.msra.mxu0 %v6834
        %7015 = vmatprep.subr.mxu0 0.0
        %7016 = vmatpush1.msra.mxu0 %v6835
        %7017 = vmatprep.subr.mxu0 0.0
        %7018 = vmatpush1.msra.mxu0 %v6836
        %7019 = vmatprep.subr.mxu0 0.0
        %7020 = vmatpush1.msra.mxu0 %v6837
        %7021 = vmatprep.subr.mxu0 0.0
        %7022 = vmatpush1.msra.mxu0 %v6838
        %7023 = vmatprep.subr.mxu0 0.0
        %7024 = vmatpush1.msra.mxu0 %v6839
        %7025 = vmatprep.subr.mxu0 0.0
        %7026 = vmatpush1.msra.mxu0 0.0
        %7027 = vmatprep.subr.mxu0 0.0
        %7028 = vmatpush1.msra.mxu0 0.0
        %7029 = vmatprep.subr.mxu0 0.0
        %7030 = vmatpush1.msra.mxu0 0.0
        %7031 = vmatprep.subr.mxu0 0.0
        %7032 = vmatpush1.msra.mxu0 0.0
        %7033 = vmatprep.subr.mxu0 0.0
        %7034 = vmatpush1.msra.mxu0 0.0
        %7035 = vmatprep.subr.mxu0 0.0
        %7036 = vmatpush1.msra.mxu0 0.0
        %7037 = vmatprep.subr.mxu0 0.0
        %7038 = vmatpush1.msra.mxu0 0.0
        %7039 = vmatprep.subr.mxu0 0.0
        %7040 = vmatpush1.msra.mxu0 0.0
        %7041 = vmatprep.subr.mxu0 0.0
        %7042 = vmatpush1.msra.mxu0 0.0
        %7043 = vmatprep.subr.mxu0 0.0
        %7044 = vmatpush1.msra.mxu0 0.0
        %7045 = vmatprep.subr.mxu0 0.0
        %7046 = vmatpush1.msra.mxu0 0.0
        %7047 = vmatprep.subr.mxu0 0.0
        %7048 = vmatpush1.msra.mxu0 0.0
        %7049 = vmatprep.subr.mxu0 0.0
        %7050 = vmatpush1.msra.mxu0 0.0
        %7051 = vmatprep.subr.mxu0 0.0
        %7052 = vmatpush1.msra.mxu0 0.0
        %7053 = vmatprep.subr.mxu0 0.0
        %7054 = vmatpush1.msra.mxu0 0.0
        %7055 = vmatprep.subr.mxu0 0.0
        %7056 = vmatpush1.msra.mxu0 0.0
        %7057 = vmatprep.subr.mxu0 0.0
        %7058 = vmatpush1.msra.mxu0 0.0
        %7059 = vmatprep.subr.mxu0 0.0
        %7060 = vmatpush1.msra.mxu0 0.0
        %7061 = vmatprep.subr.mxu0 0.0
        %7062 = vmatpush1.msra.mxu0 0.0
        %7063 = vmatprep.subr.mxu0 0.0
        %7064 = vmatpush1.msra.mxu0 0.0
        %7065 = vmatprep.subr.mxu0 0.0
        %7066 = vmatpush1.msra.mxu0 0.0
        %7067 = vmatprep.subr.mxu0 0.0
        %7068 = vmatpush1.msra.mxu0 0.0
        %7069 = vmatprep.subr.mxu0 0.0
        %7070 = vmatpush1.msra.mxu0 0.0
        %7071 = vmatprep.subr.mxu0 0.0
        %7072 = vmatpush1.msra.mxu0 0.0
        %7073 = vmatprep.mubr.f32.mxu0 0.0
        %7074 = vmatmul.mubr.f32.gmra.mrb[0].mxu0 %v6986
        %v7075 = vpop.f32.mrb[0].mxu0
        %v7076 = vadd.f32 0.0, %v7075
        %v7077 = vpop.f32.mrb[0].mxu0
        %7078 = vmatprep.mubr.f32.mxu0 0.0
        %7079 = vmatmul.mubr.f32.gmra.mrb[0].mxu0 %v6989
        %v7080 = vpop.f32.mrb[0].mxu0
        %v7081 = vadd.f32 0.0, %v7080
        %v7082 = vpop.f32.mrb[0].mxu0
        %7083 = vmatprep.mubr.f32.mxu0 0.0
        %7084 = vmatmul.mubr.f32.gmra.mrb[0].mxu0 %v6992
        %v7085 = vpop.f32.mrb[0].mxu0
        %v7086 = vadd.f32 0.0, %v7085
        %v7087 = vpop.f32.mrb[0].mxu0
        %7088 = vmatprep.mubr.f32.mxu0 0.0
        %7089 = vmatmul.mubr.f32.gmra.mrb[0].mxu0 %v6995
        %v7090 = vpop.f32.mrb[0].mxu0
        %v7091 = vadd.f32 0.0, %v7090
        %v7092 = vpop.f32.mrb[0].mxu0
        %7093 = vmatprep.mubr.f32.mxu0 0.0
        %7094 = vmatmul.mubr.f32.gmra.mrb[0].mxu0 %v6998
        %v7095 = vpop.f32.mrb[0].mxu0
        %v7096 = vadd.f32 0.0, %v7095
        %v7097 = vpop.f32.mrb[0].mxu0
        %7098 = vmatprep.mubr.f32.mxu0 0.0
        %7099 = vmatmul.mubr.f32.gmra.mrb[0].mxu0 %v7001
        %v7100 = vpop.f32.mrb[0].mxu0
        %v7101 = vadd.f32 0.0, %v7100
        %v7102 = vpop.f32.mrb[0].mxu0
        %7103 = vmatprep.mubr.f32.mxu0 0.0
        %7104 = vmatmul.mubr.f32.gmra.mrb[0].mxu0 %v7004
        %v7105 = vpop.f32.mrb[0].mxu0
        %v7106 = vadd.f32 0.0, %v7105
        %v7107 = vpop.f32.mrb[0].mxu0
        %7108 = vmatprep.mubr.f32.mxu0 0.0
        %7109 = vmatmul.mubr.f32.gmra.mrb[0].mxu0 %v7007
        %v7110 = vpop.f32.mrb[0].mxu0
        %v7111 = vadd.f32 0.0, %v7110
        %v7112 = vpop.f32.mrb[0].mxu0
        %7113 = vdwg.mxu0
        %v7115 = vsel %vm6734, %v7076, 0
        %v7118 = vsel %vm6734, %v7081, 0
        %v7121 = vsel %vm6734, %v7086, 0
        %v7124 = vsel %vm6734, %v7091, 0
        %v7127 = vsel %vm6734, %v7096, 0
        %v7130 = vsel %vm6734, %v7101, 0
        %v7133 = vsel %vm6734, %v7106, 0
        %v7136 = vsel %vm6734, %v7111, 0
        %v7139 = vsel %vm4113, %v6855, 0
        %7141 = vmatprep.subr.mxu0 0.0
        %7142 = vmatpush1.msra.mxu0 %v4474
        %7143 = vmatprep.subr.mxu0 0.0
        %7144 = vmatpush1.msra.mxu0 %v5437
        %7145 = vmatprep.subr.mxu0 0.0
        %7146 = vmatpush1.msra.mxu0 %v6854
        %7147 = vmatprep.subr.mxu0 0.0
        %7148 = vmatpush1.msra.mxu0 %v7139
        %7149 = vmatprep.subr.mxu0 0.0
        %7150 = vmatpush1.msra.mxu0 0.0
        %7151 = vmatprep.subr.mxu0 0.0
        %7152 = vmatpush1.msra.mxu0 0.0
        %7153 = vmatprep.subr.mxu0 0.0
        %7154 = vmatpush1.msra.mxu0 0.0
        %7155 = vmatprep.subr.mxu0 0.0
        %7156 = vmatpush1.msra.mxu0 0.0
        %7157 = vmatprep.subr.mxu0 0.0
        %7158 = vmatpush1.msra.mxu0 0.0
        %7159 = vmatprep.subr.mxu0 0.0
        %7160 = vmatpush1.msra.mxu0 0.0
        %7161 = vmatprep.subr.mxu0 0.0
        %7162 = vmatpush1.msra.mxu0 0.0
        %7163 = vmatprep.subr.mxu0 0.0
        %7164 = vmatpush1.msra.mxu0 0.0
        %7165 = vmatprep.subr.mxu0 0.0
        %7166 = vmatpush1.msra.mxu0 0.0
        %7167 = vmatprep.subr.mxu0 0.0
        %7168 = vmatpush1.msra.mxu0 0.0
        %7169 = vmatprep.subr.mxu0 0.0
        %7170 = vmatpush1.msra.mxu0 0.0
        %7171 = vmatprep.subr.mxu0 0.0
        %7172 = vmatpush1.msra.mxu0 0.0
        %7173 = vmatprep.subr.mxu0 0.0
        %7174 = vmatpush1.msra.mxu0 0.0
        %7175 = vmatprep.subr.mxu0 0.0
        %7176 = vmatpush1.msra.mxu0 0.0
        %7177 = vmatprep.subr.mxu0 0.0
        %7178 = vmatpush1.msra.mxu0 0.0
        %7179 = vmatprep.subr.mxu0 0.0
        %7180 = vmatpush1.msra.mxu0 0.0
        %7181 = vmatprep.subr.mxu0 0.0
        %7182 = vmatpush1.msra.mxu0 0.0
        %7183 = vmatprep.subr.mxu0 0.0
        %7184 = vmatpush1.msra.mxu0 0.0
        %7185 = vmatprep.subr.mxu0 0.0
        %7186 = vmatpush1.msra.mxu0 0.0
        %7187 = vmatprep.subr.mxu0 0.0
        %7188 = vmatpush1.msra.mxu0 0.0
        %7189 = vmatprep.subr.mxu0 0.0
        %7190 = vmatpush1.msra.mxu0 0.0
        %7191 = vmatprep.subr.mxu0 0.0
        %7192 = vmatpush1.msra.mxu0 0.0
        %7193 = vmatprep.subr.mxu0 0.0
        %7194 = vmatpush1.msra.mxu0 0.0
        %7195 = vmatprep.subr.mxu0 0.0
        %7196 = vmatpush1.msra.mxu0 0.0
        %7197 = vmatprep.subr.mxu0 0.0
        %7198 = vmatpush1.msra.mxu0 0.0
        %7199 = vmatprep.subr.mxu0 0.0
        %7200 = vmatpush1.msra.mxu0 0.0
        %7201 = vmatprep.subr.mxu0 0.0
        %7202 = vmatpush1.msra.mxu0 0.0
        %7203 = vmatprep.subr.mxu0 0.0
        %7204 = vmatpush1.msra.mxu0 0.0
        %7205 = vmatprep.mubr.f32.mxu0 0.0
        %7206 = vmatmul.mubr.f32.gmra.mrb[0].mxu0 %v7115
        %v7207 = vpop.f32.mrb[0].mxu0
        %v7208 = vadd.f32 0.0, %v7207
        %v7209 = vpop.f32.mrb[0].mxu0
        %7210 = vmatprep.mubr.f32.mxu0 0.0
        %7211 = vmatmul.mubr.f32.gmra.mrb[0].mxu0 %v7118
        %v7212 = vpop.f32.mrb[0].mxu0
        %v7213 = vadd.f32 0.0, %v7212
        %v7214 = vpop.f32.mrb[0].mxu0
        %7215 = vmatprep.mubr.f32.mxu0 0.0
        %7216 = vmatmul.mubr.f32.gmra.mrb[0].mxu0 %v7121
        %v7217 = vpop.f32.mrb[0].mxu0
        %v7218 = vadd.f32 0.0, %v7217
        %v7219 = vpop.f32.mrb[0].mxu0
        %7220 = vmatprep.mubr.f32.mxu0 0.0
        %7221 = vmatmul.mubr.f32.gmra.mrb[0].mxu0 %v7124
        %v7222 = vpop.f32.mrb[0].mxu0
        %v7223 = vadd.f32 0.0, %v7222
        %v7224 = vpop.f32.mrb[0].mxu0
        %7225 = vmatprep.mubr.f32.mxu0 0.0
        %7226 = vmatmul.mubr.f32.gmra.mrb[0].mxu0 %v7127
        %v7227 = vpop.f32.mrb[0].mxu0
        %v7228 = vadd.f32 0.0, %v7227
        %v7229 = vpop.f32.mrb[0].mxu0
        %7230 = vmatprep.mubr.f32.mxu0 0.0
        %7231 = vmatmul.mubr.f32.gmra.mrb[0].mxu0 %v7130
        %v7232 = vpop.f32.mrb[0].mxu0
        %v7233 = vadd.f32 0.0, %v7232
        %v7234 = vpop.f32.mrb[0].mxu0
        %7235 = vmatprep.mubr.f32.mxu0 0.0
        %7236 = vmatmul.mubr.f32.gmra.mrb[0].mxu0 %v7133
        %v7237 = vpop.f32.mrb[0].mxu0
        %v7238 = vadd.f32 0.0, %v7237
        %v7239 = vpop.f32.mrb[0].mxu0
        %7240 = vmatprep.mubr.f32.mxu0 0.0
        %7241 = vmatmul.mubr.f32.gmra.mrb[0].mxu0 %v7136
        %v7242 = vpop.f32.mrb[0].mxu0
        %v7243 = vadd.f32 0.0, %v7242
        %v7244 = vpop.f32.mrb[0].mxu0
        %7245 = vdwg.mxu0
        %v7247 = vsel %vm6734, %v6947, 0
        %v7250 = vsel %vm6734, %v6952, 0
        %v7253 = vsel %vm6734, %v6957, 0
        %v7256 = vsel %vm6734, %v6962, 0
        %v7259 = vsel %vm6734, %v6967, 0
        %v7262 = vsel %vm6734, %v6972, 0
        %v7265 = vsel %vm6734, %v6977, 0
        %v7268 = vsel %vm6734, %v6982, 0
        %v7271 = vsel %vm4113, %v6847, 0
        %7273 = vmatprep.subr.mxu0 0.0
        %7274 = vmatpush1.msra.mxu0 %v4470
        %7275 = vmatprep.subr.mxu0 0.0
        %7276 = vmatpush1.msra.mxu0 %v5433
        %7277 = vmatprep.subr.mxu0 0.0
        %7278 = vmatpush1.msra.mxu0 %v6846
        %7279 = vmatprep.subr.mxu0 0.0
        %7280 = vmatpush1.msra.mxu0 %v7271
        %7281 = vmatprep.subr.mxu0 0.0
        %7282 = vmatpush1.msra.mxu0 0.0
        %7283 = vmatprep.subr.mxu0 0.0
        %7284 = vmatpush1.msra.mxu0 0.0
        %7285 = vmatprep.subr.mxu0 0.0
        %7286 = vmatpush1.msra.mxu0 0.0
        %7287 = vmatprep.subr.mxu0 0.0
        %7288 = vmatpush1.msra.mxu0 0.0
        %7289 = vmatprep.subr.mxu0 0.0
        %7290 = vmatpush1.msra.mxu0 0.0
        %7291 = vmatprep.subr.mxu0 0.0
        %7292 = vmatpush1.msra.mxu0 0.0
        %7293 = vmatprep.subr.mxu0 0.0
        %7294 = vmatpush1.msra.mxu0 0.0
        %7295 = vmatprep.subr.mxu0 0.0
        %7296 = vmatpush1.msra.mxu0 0.0
        %7297 = vmatprep.subr.mxu0 0.0
        %7298 = vmatpush1.msra.mxu0 0.0
        %7299 = vmatprep.subr.mxu0 0.0
        %7300 = vmatpush1.msra.mxu0 0.0
        %7301 = vmatprep.subr.mxu0 0.0
        %7302 = vmatpush1.msra.mxu0 0.0
        %7303 = vmatprep.subr.mxu0 0.0
        %7304 = vmatpush1.msra.mxu0 0.0
        %7305 = vmatprep.subr.mxu0 0.0
        %7306 = vmatpush1.msra.mxu0 0.0
        %7307 = vmatprep.subr.mxu0 0.0
        %7308 = vmatpush1.msra.mxu0 0.0
        %7309 = vmatprep.subr.mxu0 0.0
        %7310 = vmatpush1.msra.mxu0 0.0
        %7311 = vmatprep.subr.mxu0 0.0
        %7312 = vmatpush1.msra.mxu0 0.0
        %7313 = vmatprep.subr.mxu0 0.0
        %7314 = vmatpush1.msra.mxu0 0.0
        %7315 = vmatprep.subr.mxu0 0.0
        %7316 = vmatpush1.msra.mxu0 0.0
        %7317 = vmatprep.subr.mxu0 0.0
        %7318 = vmatpush1.msra.mxu0 0.0
        %7319 = vmatprep.subr.mxu0 0.0
        %7320 = vmatpush1.msra.mxu0 0.0
        %7321 = vmatprep.subr.mxu0 0.0
        %7322 = vmatpush1.msra.mxu0 0.0
        %7323 = vmatprep.subr.mxu0 0.0
        %7324 = vmatpush1.msra.mxu0 0.0
        %7325 = vmatprep.subr.mxu0 0.0
        %7326 = vmatpush1.msra.mxu0 0.0
        %7327 = vmatprep.subr.mxu0 0.0
        %7328 = vmatpush1.msra.mxu0 0.0
        %7329 = vmatprep.subr.mxu0 0.0
        %7330 = vmatpush1.msra.mxu0 0.0
        %7331 = vmatprep.subr.mxu0 0.0
        %7332 = vmatpush1.msra.mxu0 0.0
        %7333 = vmatprep.subr.mxu0 0.0
        %7334 = vmatpush1.msra.mxu0 0.0
        %7335 = vmatprep.subr.mxu0 0.0
        %7336 = vmatpush1.msra.mxu0 0.0
        %7337 = vmatprep.mubr.f32.mxu0 0.0
        %7338 = vmatmul.mubr.f32.gmra.mrb[0].mxu0 %v7247
        %v7339 = vpop.f32.mrb[0].mxu0
        %v7340 = vadd.f32 %v7208, %v7339
        %v7341 = vpop.f32.mrb[0].mxu0
        %7342 = vmatprep.mubr.f32.mxu0 0.0
        %7343 = vmatmul.mubr.f32.gmra.mrb[0].mxu0 %v7250
        %v7344 = vpop.f32.mrb[0].mxu0
        %v7345 = vadd.f32 %v7213, %v7344
        %v7346 = vpop.f32.mrb[0].mxu0
        %7347 = vmatprep.mubr.f32.mxu0 0.0
        %7348 = vmatmul.mubr.f32.gmra.mrb[0].mxu0 %v7253
        %v7349 = vpop.f32.mrb[0].mxu0
        %v7350 = vadd.f32 %v7218, %v7349
        %v7351 = vpop.f32.mrb[0].mxu0
        %7352 = vmatprep.mubr.f32.mxu0 0.0
        %7353 = vmatmul.mubr.f32.gmra.mrb[0].mxu0 %v7256
        %v7354 = vpop.f32.mrb[0].mxu0
        %v7355 = vadd.f32 %v7223, %v7354
        %v7356 = vpop.f32.mrb[0].mxu0
        %7357 = vmatprep.mubr.f32.mxu0 0.0
        %7358 = vmatmul.mubr.f32.gmra.mrb[0].mxu0 %v7259
        %v7359 = vpop.f32.mrb[0].mxu0
        %v7360 = vadd.f32 %v7228, %v7359
        %v7361 = vpop.f32.mrb[0].mxu0
        %7362 = vmatprep.mubr.f32.mxu0 0.0
        %7363 = vmatmul.mubr.f32.gmra.mrb[0].mxu0 %v7262
        %v7364 = vpop.f32.mrb[0].mxu0
        %v7365 = vadd.f32 %v7233, %v7364
        %v7366 = vpop.f32.mrb[0].mxu0
        %7367 = vmatprep.mubr.f32.mxu0 0.0
        %7368 = vmatmul.mubr.f32.gmra.mrb[0].mxu0 %v7265
        %v7369 = vpop.f32.mrb[0].mxu0
        %v7370 = vadd.f32 %v7238, %v7369
        %v7371 = vpop.f32.mrb[0].mxu0
        %7372 = vmatprep.mubr.f32.mxu0 0.0
        %7373 = vmatmul.mubr.f32.gmra.mrb[0].mxu0 %v7268
        %v7374 = vpop.f32.mrb[0].mxu0
        %v7375 = vadd.f32 %v7243, %v7374
        %v7376 = vpop.f32.mrb[0].mxu0
        %7377 = vdwg.mxu0
        %7379 = vset.pattern.permute.xlu0 0
        %7380 = vperm.xlu0 %7379, %v6699
        %v7381 = vpop.permute.xlu0 %7380
        %7384 = vset.pattern.permute.xlu0 0
        %7385 = vperm.xlu0 %7384, %v6700
        %v7386 = vpop.permute.xlu0 %7385
        %7389 = vset.pattern.permute.xlu0 0
        %7390 = vperm.xlu0 %7389, %v6701
        %v7391 = vpop.permute.xlu0 %7390
        %7394 = vset.pattern.permute.xlu0 0
        %7395 = vperm.xlu0 %7394, %v6702
        %v7396 = vpop.permute.xlu0 %7395
        %7399 = vset.pattern.permute.xlu0 0
        %7400 = vperm.xlu0 %7399, %v6703
        %v7401 = vpop.permute.xlu0 %7400
        %7404 = vset.pattern.permute.xlu0 0
        %7405 = vperm.xlu0 %7404, %v6704
        %v7406 = vpop.permute.xlu0 %7405
        %7409 = vset.pattern.permute.xlu0 0
        %7410 = vperm.xlu0 %7409, %v6705
        %v7411 = vpop.permute.xlu0 %7410
        %7414 = vset.pattern.permute.xlu0 0
        %7415 = vperm.xlu0 %7414, %v6706
        %v7416 = vpop.permute.xlu0 %7415
        %v7418 = vadd.f32 %v7340, %v7381
        %v7419 = vadd.f32 %v7345, %v7386
        %v7420 = vadd.f32 %v7350, %v7391
        %v7421 = vadd.f32 %v7355, %v7396
        %v7422 = vadd.f32 %v7360, %v7401
        %v7423 = vadd.f32 %v7365, %v7406
        %v7424 = vadd.f32 %v7370, %v7411
        %v7425 = vadd.f32 %v7375, %v7416
        %vm7426 = vcmp.ge.f32.partialorder %v7418, 0.0
        %vm7427 = vcmp.ge.f32.partialorder %v7419, 0.0
        %vm7428 = vcmp.ge.f32.partialorder %v7420, 0.0
        %vm7429 = vcmp.ge.f32.partialorder %v7421, 0.0
        %vm7430 = vcmp.ge.f32.partialorder %v7422, 0.0
        %vm7431 = vcmp.ge.f32.partialorder %v7423, 0.0
        %vm7432 = vcmp.ge.f32.partialorder %v7424, 0.0
        %vm7433 = vcmp.ge.f32.partialorder %v7425, 0.0
        %v7434 = vmul.f32 %v7418, 0.01
        %v7435 = vmul.f32 %v7419, 0.01
        %v7436 = vmul.f32 %v7420, 0.01
        %v7437 = vmul.f32 %v7421, 0.01
        %v7438 = vmul.f32 %v7422, 0.01
        %v7439 = vmul.f32 %v7423, 0.01
        %v7440 = vmul.f32 %v7424, 0.01
        %v7441 = vmul.f32 %v7425, 0.01
        %v7442 = vsel %vm7426, %v7418, %v7434
        %v7443 = vsel %vm7427, %v7419, %v7435
        %v7444 = vsel %vm7428, %v7420, %v7436
        %v7445 = vsel %vm7429, %v7421, %v7437
        %v7446 = vsel %vm7430, %v7422, %v7438
        %v7447 = vsel %vm7431, %v7423, %v7439
        %v7448 = vsel %vm7432, %v7424, %v7440
        %v7449 = vsel %vm7433, %v7425, %v7441
        %vm7450 = vcmask 506880
        %v7451 = vsel %vm7450, %v7442, 0.0
        %7452 = vadd.xlane.f32.xlu0 %v7451
        %v7453 = vpop.xlane.xlu0 %7452
        %v7454 = vsel %vm7450, %v7443, 0.0
        %7455 = vadd.xlane.f32.xlu0 %v7454
        %v7456 = vpop.xlane.xlu0 %7455
        %v7457 = vsel %vm7450, %v7444, 0.0
        %7458 = vadd.xlane.f32.xlu0 %v7457
        %v7459 = vpop.xlane.xlu0 %7458
        %v7460 = vsel %vm7450, %v7445, 0.0
        %7461 = vadd.xlane.f32.xlu0 %v7460
        %v7462 = vpop.xlane.xlu0 %7461
        %v7463 = vsel %vm7450, %v7446, 0.0
        %7464 = vadd.xlane.f32.xlu0 %v7463
        %v7465 = vpop.xlane.xlu0 %7464
        %v7466 = vsel %vm7450, %v7447, 0.0
        %7467 = vadd.xlane.f32.xlu0 %v7466
        %v7468 = vpop.xlane.xlu0 %7467
        %v7469 = vsel %vm7450, %v7448, 0.0
        %7470 = vadd.xlane.f32.xlu0 %v7469
        %v7471 = vpop.xlane.xlu0 %7470
        %v7472 = vsel %vm7450, %v7449, 0.0
        %7473 = vadd.xlane.f32.xlu0 %v7472
        %v7474 = vpop.xlane.xlu0 %7473
        %v7475 = vrcp.pop 62.0
        %v7476 = vmul.f32 %v7453, %v7475
        %v7477 = vmul.f32 %v7456, %v7475
        %v7478 = vmul.f32 %v7459, %v7475
        %v7479 = vmul.f32 %v7462, %v7475
        %v7480 = vmul.f32 %v7465, %v7475
        %v7481 = vmul.f32 %v7468, %v7475
        %v7482 = vmul.f32 %v7471, %v7475
        %v7483 = vmul.f32 %v7474, %v7475
        %v7484 = vsub.f32 %v7442, %v7476
        %v7485 = vsub.f32 %v7443, %v7477
        %v7486 = vsub.f32 %v7444, %v7478
        %v7487 = vsub.f32 %v7445, %v7479
        %v7488 = vsub.f32 %v7446, %v7480
        %v7489 = vsub.f32 %v7447, %v7481
        %v7490 = vsub.f32 %v7448, %v7482
        %v7491 = vsub.f32 %v7449, %v7483
        %v7492 = vmul.f32 %v7484, %v7484
        %v7493 = vmul.f32 %v7485, %v7485
        %v7494 = vmul.f32 %v7486, %v7486
        %v7495 = vmul.f32 %v7487, %v7487
        %v7496 = vmul.f32 %v7488, %v7488
        %v7497 = vmul.f32 %v7489, %v7489
        %v7498 = vmul.f32 %v7490, %v7490
        %v7499 = vmul.f32 %v7491, %v7491
        %v7500 = vsel %vm7450, %v7492, 0.0
        %7501 = vadd.xlane.f32.xlu0 %v7500
        %v7502 = vpop.xlane.xlu0 %7501
        %v7503 = vsel %vm7450, %v7493, 0.0
        %7504 = vadd.xlane.f32.xlu0 %v7503
        %v7505 = vpop.xlane.xlu0 %7504
        %v7506 = vsel %vm7450, %v7494, 0.0
        %7507 = vadd.xlane.f32.xlu0 %v7506
        %v7508 = vpop.xlane.xlu0 %7507
        %v7509 = vsel %vm7450, %v7495, 0.0
        %7510 = vadd.xlane.f32.xlu0 %v7509
        %v7511 = vpop.xlane.xlu0 %7510
        %v7512 = vsel %vm7450, %v7496, 0.0
        %7513 = vadd.xlane.f32.xlu0 %v7512
        %v7514 = vpop.xlane.xlu0 %7513
        %v7515 = vsel %vm7450, %v7497, 0.0
        %7516 = vadd.xlane.f32.xlu0 %v7515
        %v7517 = vpop.xlane.xlu0 %7516
        %v7518 = vsel %vm7450, %v7498, 0.0
        %7519 = vadd.xlane.f32.xlu0 %v7518
        %v7520 = vpop.xlane.xlu0 %7519
        %v7521 = vsel %vm7450, %v7499, 0.0
        %7522 = vadd.xlane.f32.xlu0 %v7521
        %v7523 = vpop.xlane.xlu0 %7522
        %v7524 = vmul.f32 %v7502, %v7475
        %v7525 = vmul.f32 %v7505, %v7475
        %v7526 = vmul.f32 %v7508, %v7475
        %v7527 = vmul.f32 %v7511, %v7475
        %v7528 = vmul.f32 %v7514, %v7475
        %v7529 = vmul.f32 %v7517, %v7475
        %v7530 = vmul.f32 %v7520, %v7475
        %v7531 = vmul.f32 %v7523, %v7475
        %v7532 = vadd.f32 %v7524, 1e-05
        %v7533 = vadd.f32 %v7525, 1e-05
        %v7534 = vadd.f32 %v7526, 1e-05
        %v7535 = vadd.f32 %v7527, 1e-05
        %v7536 = vadd.f32 %v7528, 1e-05
        %v7537 = vadd.f32 %v7529, 1e-05
        %v7538 = vadd.f32 %v7530, 1e-05
        %v7539 = vadd.f32 %v7531, 1e-05
        %v7540 = vrsqrt.pop %v7532
        %v7541 = vrsqrt.pop %v7533
        %v7542 = vrsqrt.pop %v7534
        %v7543 = vrsqrt.pop %v7535
        %v7544 = vrsqrt.pop %v7536
        %v7545 = vrsqrt.pop %v7537
        %v7546 = vrsqrt.pop %v7538
        %v7547 = vrsqrt.pop %v7539
        %v7548 = vmul.f32 %v7484, %v7540
        %v7549 = vmul.f32 %v7485, %v7541
        %v7550 = vmul.f32 %v7486, %v7542
        %v7551 = vmul.f32 %v7487, %v7543
        %v7552 = vmul.f32 %v7488, %v7544
        %v7553 = vmul.f32 %v7489, %v7545
        %v7554 = vmul.f32 %v7490, %v7546
        %v7555 = vmul.f32 %v7491, %v7547
        %v7557 = vsel %vm7450, %v7548, 0
        %v7560 = vsel %vm7450, %v7549, 0
        %v7563 = vsel %vm7450, %v7550, 0
        %v7566 = vsel %vm7450, %v7551, 0
        %v7569 = vsel %vm7450, %v7552, 0
        %v7572 = vsel %vm7450, %v7553, 0
        %v7575 = vsel %vm7450, %v7554, 0
        %v7578 = vsel %vm7450, %v7555, 0
        %v7581 = vsel %vm3786, %v1713, 0
        %7583 = vmatprep.subr.mxu0 0.0
        %7584 = vmatpush1.msra.mxu0 %v1706
        %7585 = vmatprep.subr.mxu0 0.0
        %7586 = vmatpush1.msra.mxu0 %v1707
        %7587 = vmatprep.subr.mxu0 0.0
        %7588 = vmatpush1.msra.mxu0 %v1708
        %7589 = vmatprep.subr.mxu0 0.0
        %7590 = vmatpush1.msra.mxu0 %v1709
        %7591 = vmatprep.subr.mxu0 0.0
        %7592 = vmatpush1.msra.mxu0 %v1710
        %7593 = vmatprep.subr.mxu0 0.0
        %7594 = vmatpush1.msra.mxu0 %v1711
        %7595 = vmatprep.subr.mxu0 0.0
        %7596 = vmatpush1.msra.mxu0 %v1712
        %7597 = vmatprep.subr.mxu0 0.0
        %7598 = vmatpush1.msra.mxu0 %v7581
        %7599 = vmatprep.subr.mxu0 0.0
        %7600 = vmatpush1.msra.mxu0 0.0
        %7601 = vmatprep.subr.mxu0 0.0
        %7602 = vmatpush1.msra.mxu0 0.0
        %7603 = vmatprep.subr.mxu0 0.0
        %7604 = vmatpush1.msra.mxu0 0.0
        %7605 = vmatprep.subr.mxu0 0.0
        %7606 = vmatpush1.msra.mxu0 0.0
        %7607 = vmatprep.subr.mxu0 0.0
        %7608 = vmatpush1.msra.mxu0 0.0
        %7609 = vmatprep.subr.mxu0 0.0
        %7610 = vmatpush1.msra.mxu0 0.0
        %7611 = vmatprep.subr.mxu0 0.0
        %7612 = vmatpush1.msra.mxu0 0.0
        %7613 = vmatprep.subr.mxu0 0.0
        %7614 = vmatpush1.msra.mxu0 0.0
        %7615 = vmatprep.subr.mxu0 0.0
        %7616 = vmatpush1.msra.mxu0 0.0
        %7617 = vmatprep.subr.mxu0 0.0
        %7618 = vmatpush1.msra.mxu0 0.0
        %7619 = vmatprep.subr.mxu0 0.0
        %7620 = vmatpush1.msra.mxu0 0.0
        %7621 = vmatprep.subr.mxu0 0.0
        %7622 = vmatpush1.msra.mxu0 0.0
        %7623 = vmatprep.subr.mxu0 0.0
        %7624 = vmatpush1.msra.mxu0 0.0
        %7625 = vmatprep.subr.mxu0 0.0
        %7626 = vmatpush1.msra.mxu0 0.0
        %7627 = vmatprep.subr.mxu0 0.0
        %7628 = vmatpush1.msra.mxu0 0.0
        %7629 = vmatprep.subr.mxu0 0.0
        %7630 = vmatpush1.msra.mxu0 0.0
        %7631 = vmatprep.subr.mxu0 0.0
        %7632 = vmatpush1.msra.mxu0 0.0
        %7633 = vmatprep.subr.mxu0 0.0
        %7634 = vmatpush1.msra.mxu0 0.0
        %7635 = vmatprep.subr.mxu0 0.0
        %7636 = vmatpush1.msra.mxu0 0.0
        %7637 = vmatprep.subr.mxu0 0.0
        %7638 = vmatpush1.msra.mxu0 0.0
        %7639 = vmatprep.subr.mxu0 0.0
        %7640 = vmatpush1.msra.mxu0 0.0
        %7641 = vmatprep.subr.mxu0 0.0
        %7642 = vmatpush1.msra.mxu0 0.0
        %7643 = vmatprep.subr.mxu0 0.0
        %7644 = vmatpush1.msra.mxu0 0.0
        %7645 = vmatprep.subr.mxu0 0.0
        %7646 = vmatpush1.msra.mxu0 0.0
        %7647 = vmatprep.mubr.f32.mxu0 0.0
        %7648 = vmatmul.mubr.f32.gmra.mrb[0].mxu0 %v7557
        %v7649 = vpop.f32.mrb[0].mxu0
        %v7650 = vadd.f32 0.0, %v7649
        %v7651 = vpop.f32.mrb[0].mxu0
        %7652 = vmatprep.mubr.f32.mxu0 0.0
        %7653 = vmatmul.mubr.f32.gmra.mrb[0].mxu0 %v7560
        %v7654 = vpop.f32.mrb[0].mxu0
        %v7655 = vadd.f32 0.0, %v7654
        %v7656 = vpop.f32.mrb[0].mxu0
        %7657 = vmatprep.mubr.f32.mxu0 0.0
        %7658 = vmatmul.mubr.f32.gmra.mrb[0].mxu0 %v7563
        %v7659 = vpop.f32.mrb[0].mxu0
        %v7660 = vadd.f32 0.0, %v7659
        %v7661 = vpop.f32.mrb[0].mxu0
        %7662 = vmatprep.mubr.f32.mxu0 0.0
        %7663 = vmatmul.mubr.f32.gmra.mrb[0].mxu0 %v7566
        %v7664 = vpop.f32.mrb[0].mxu0
        %v7665 = vadd.f32 0.0, %v7664
        %v7666 = vpop.f32.mrb[0].mxu0
        %7667 = vmatprep.mubr.f32.mxu0 0.0
        %7668 = vmatmul.mubr.f32.gmra.mrb[0].mxu0 %v7569
        %v7669 = vpop.f32.mrb[0].mxu0
        %v7670 = vadd.f32 0.0, %v7669
        %v7671 = vpop.f32.mrb[0].mxu0
        %7672 = vmatprep.mubr.f32.mxu0 0.0
        %7673 = vmatmul.mubr.f32.gmra.mrb[0].mxu0 %v7572
        %v7674 = vpop.f32.mrb[0].mxu0
        %v7675 = vadd.f32 0.0, %v7674
        %v7676 = vpop.f32.mrb[0].mxu0
        %7677 = vmatprep.mubr.f32.mxu0 0.0
        %7678 = vmatmul.mubr.f32.gmra.mrb[0].mxu0 %v7575
        %v7679 = vpop.f32.mrb[0].mxu0
        %v7680 = vadd.f32 0.0, %v7679
        %v7681 = vpop.f32.mrb[0].mxu0
        %7682 = vmatprep.mubr.f32.mxu0 0.0
        %7683 = vmatmul.mubr.f32.gmra.mrb[0].mxu0 %v7578
        %v7684 = vpop.f32.mrb[0].mxu0
        %v7685 = vadd.f32 0.0, %v7684
        %v7686 = vpop.f32.mrb[0].mxu0
        %7687 = vdwg.mxu0
        %v7689 = vsel %vm3786, %v1570, 0
        %7691 = vmatprep.subr.mxu0 0.0
        %7692 = vmatpush1.msra.mxu0 %v1563
        %7693 = vmatprep.subr.mxu0 0.0
        %7694 = vmatpush1.msra.mxu0 %v1564
        %7695 = vmatprep.subr.mxu0 0.0
        %7696 = vmatpush1.msra.mxu0 %v1565
        %7697 = vmatprep.subr.mxu0 0.0
        %7698 = vmatpush1.msra.mxu0 %v1566
        %7699 = vmatprep.subr.mxu0 0.0
        %7700 = vmatpush1.msra.mxu0 %v1567
        %7701 = vmatprep.subr.mxu0 0.0
        %7702 = vmatpush1.msra.mxu0 %v1568
        %7703 = vmatprep.subr.mxu0 0.0
        %7704 = vmatpush1.msra.mxu0 %v1569
        %7705 = vmatprep.subr.mxu0 0.0
        %7706 = vmatpush1.msra.mxu0 %v7689
        %7707 = vmatprep.subr.mxu0 0.0
        %7708 = vmatpush1.msra.mxu0 0.0
        %7709 = vmatprep.subr.mxu0 0.0
        %7710 = vmatpush1.msra.mxu0 0.0
        %7711 = vmatprep.subr.mxu0 0.0
        %7712 = vmatpush1.msra.mxu0 0.0
        %7713 = vmatprep.subr.mxu0 0.0
        %7714 = vmatpush1.msra.mxu0 0.0
        %7715 = vmatprep.subr.mxu0 0.0
        %7716 = vmatpush1.msra.mxu0 0.0
        %7717 = vmatprep.subr.mxu0 0.0
        %7718 = vmatpush1.msra.mxu0 0.0
        %7719 = vmatprep.subr.mxu0 0.0
        %7720 = vmatpush1.msra.mxu0 0.0
        %7721 = vmatprep.subr.mxu0 0.0
        %7722 = vmatpush1.msra.mxu0 0.0
        %7723 = vmatprep.subr.mxu0 0.0
        %7724 = vmatpush1.msra.mxu0 0.0
        %7725 = vmatprep.subr.mxu0 0.0
        %7726 = vmatpush1.msra.mxu0 0.0
        %7727 = vmatprep.subr.mxu0 0.0
        %7728 = vmatpush1.msra.mxu0 0.0
        %7729 = vmatprep.subr.mxu0 0.0
        %7730 = vmatpush1.msra.mxu0 0.0
        %7731 = vmatprep.subr.mxu0 0.0
        %7732 = vmatpush1.msra.mxu0 0.0
        %7733 = vmatprep.subr.mxu0 0.0
        %7734 = vmatpush1.msra.mxu0 0.0
        %7735 = vmatprep.subr.mxu0 0.0
        %7736 = vmatpush1.msra.mxu0 0.0
        %7737 = vmatprep.subr.mxu0 0.0
        %7738 = vmatpush1.msra.mxu0 0.0
        %7739 = vmatprep.subr.mxu0 0.0
        %7740 = vmatpush1.msra.mxu0 0.0
        %7741 = vmatprep.subr.mxu0 0.0
        %7742 = vmatpush1.msra.mxu0 0.0
        %7743 = vmatprep.subr.mxu0 0.0
        %7744 = vmatpush1.msra.mxu0 0.0
        %7745 = vmatprep.subr.mxu0 0.0
        %7746 = vmatpush1.msra.mxu0 0.0
        %7747 = vmatprep.subr.mxu0 0.0
        %7748 = vmatpush1.msra.mxu0 0.0
        %7749 = vmatprep.subr.mxu0 0.0
        %7750 = vmatpush1.msra.mxu0 0.0
        %7751 = vmatprep.subr.mxu0 0.0
        %7752 = vmatpush1.msra.mxu0 0.0
        %7753 = vmatprep.subr.mxu0 0.0
        %7754 = vmatpush1.msra.mxu0 0.0
        %7755 = vmatprep.mubr.f32.mxu0 0.0
        %7756 = vmatmul.mubr.f32.gmra.mrb[0].mxu0 %v7557
        %v7757 = vpop.f32.mrb[0].mxu0
        %v7758 = vadd.f32 0.0, %v7757
        %v7759 = vpop.f32.mrb[0].mxu0
        %7760 = vmatprep.mubr.f32.mxu0 0.0
        %7761 = vmatmul.mubr.f32.gmra.mrb[0].mxu0 %v7560
        %v7762 = vpop.f32.mrb[0].mxu0
        %v7763 = vadd.f32 0.0, %v7762
        %v7764 = vpop.f32.mrb[0].mxu0
        %7765 = vmatprep.mubr.f32.mxu0 0.0
        %7766 = vmatmul.mubr.f32.gmra.mrb[0].mxu0 %v7563
        %v7767 = vpop.f32.mrb[0].mxu0
        %v7768 = vadd.f32 0.0, %v7767
        %v7769 = vpop.f32.mrb[0].mxu0
        %7770 = vmatprep.mubr.f32.mxu0 0.0
        %7771 = vmatmul.mubr.f32.gmra.mrb[0].mxu0 %v7566
        %v7772 = vpop.f32.mrb[0].mxu0
        %v7773 = vadd.f32 0.0, %v7772
        %v7774 = vpop.f32.mrb[0].mxu0
        %7775 = vmatprep.mubr.f32.mxu0 0.0
        %7776 = vmatmul.mubr.f32.gmra.mrb[0].mxu0 %v7569
        %v7777 = vpop.f32.mrb[0].mxu0
        %v7778 = vadd.f32 0.0, %v7777
        %v7779 = vpop.f32.mrb[0].mxu0
        %7780 = vmatprep.mubr.f32.mxu0 0.0
        %7781 = vmatmul.mubr.f32.gmra.mrb[0].mxu0 %v7572
        %v7782 = vpop.f32.mrb[0].mxu0
        %v7783 = vadd.f32 0.0, %v7782
        %v7784 = vpop.f32.mrb[0].mxu0
        %7785 = vmatprep.mubr.f32.mxu0 0.0
        %7786 = vmatmul.mubr.f32.gmra.mrb[0].mxu0 %v7575
        %v7787 = vpop.f32.mrb[0].mxu0
        %v7788 = vadd.f32 0.0, %v7787
        %v7789 = vpop.f32.mrb[0].mxu0
        %7790 = vmatprep.mubr.f32.mxu0 0.0
        %7791 = vmatmul.mubr.f32.gmra.mrb[0].mxu0 %v7578
        %v7792 = vpop.f32.mrb[0].mxu0
        %v7793 = vadd.f32 0.0, %v7792
        %v7794 = vpop.f32.mrb[0].mxu0
        %7795 = vdwg.mxu0
        %v7797 = vsel %vm5438, %v6708, 0
        %7799 = vmatprep.subr.mxu0 0.0
        %7800 = vmatpush1.msra.mxu0 %v7758
        %7801 = vmatprep.subr.mxu0 0.0
        %7802 = vmatpush1.msra.mxu0 %v7763
        %7803 = vmatprep.subr.mxu0 0.0
        %7804 = vmatpush1.msra.mxu0 %v7768
        %7805 = vmatprep.subr.mxu0 0.0
        %7806 = vmatpush1.msra.mxu0 %v7773
        %7807 = vmatprep.subr.mxu0 0.0
        %7808 = vmatpush1.msra.mxu0 %v7778
        %7809 = vmatprep.subr.mxu0 0.0
        %7810 = vmatpush1.msra.mxu0 %v7783
        %7811 = vmatprep.subr.mxu0 0.0
        %7812 = vmatpush1.msra.mxu0 %v7788
        %7813 = vmatprep.subr.mxu0 0.0
        %7814 = vmatpush1.msra.mxu0 %v7793
        %7815 = vmatprep.subr.mxu0 0.0
        %7816 = vmatpush1.msra.mxu0 0.0
        %7817 = vmatprep.subr.mxu0 0.0
        %7818 = vmatpush1.msra.mxu0 0.0
        %7819 = vmatprep.subr.mxu0 0.0
        %7820 = vmatpush1.msra.mxu0 0.0
        %7821 = vmatprep.subr.mxu0 0.0
        %7822 = vmatpush1.msra.mxu0 0.0
        %7823 = vmatprep.subr.mxu0 0.0
        %7824 = vmatpush1.msra.mxu0 0.0
        %7825 = vmatprep.subr.mxu0 0.0
        %7826 = vmatpush1.msra.mxu0 0.0
        %7827 = vmatprep.subr.mxu0 0.0
        %7828 = vmatpush1.msra.mxu0 0.0
        %7829 = vmatprep.subr.mxu0 0.0
        %7830 = vmatpush1.msra.mxu0 0.0
        %7831 = vmatprep.subr.mxu0 0.0
        %7832 = vmatpush1.msra.mxu0 0.0
        %7833 = vmatprep.subr.mxu0 0.0
        %7834 = vmatpush1.msra.mxu0 0.0
        %7835 = vmatprep.subr.mxu0 0.0
        %7836 = vmatpush1.msra.mxu0 0.0
        %7837 = vmatprep.subr.mxu0 0.0
        %7838 = vmatpush1.msra.mxu0 0.0
        %7839 = vmatprep.subr.mxu0 0.0
        %7840 = vmatpush1.msra.mxu0 0.0
        %7841 = vmatprep.subr.mxu0 0.0
        %7842 = vmatpush1.msra.mxu0 0.0
        %7843 = vmatprep.subr.mxu0 0.0
        %7844 = vmatpush1.msra.mxu0 0.0
        %7845 = vmatprep.subr.mxu0 0.0
        %7846 = vmatpush1.msra.mxu0 0.0
        %7847 = vmatprep.subr.mxu0 0.0
        %7848 = vmatpush1.msra.mxu0 0.0
        %7849 = vmatprep.subr.mxu0 0.0
        %7850 = vmatpush1.msra.mxu0 0.0
        %7851 = vmatprep.subr.mxu0 0.0
        %7852 = vmatpush1.msra.mxu0 0.0
        %7853 = vmatprep.subr.mxu0 0.0
        %7854 = vmatpush1.msra.mxu0 0.0
        %7855 = vmatprep.subr.mxu0 0.0
        %7856 = vmatpush1.msra.mxu0 0.0
        %7857 = vmatprep.subr.mxu0 0.0
        %7858 = vmatpush1.msra.mxu0 0.0
        %7859 = vmatprep.subr.mxu0 0.0
        %7860 = vmatpush1.msra.mxu0 0.0
        %7861 = vmatprep.subr.mxu0 0.0
        %7862 = vmatpush1.msra.mxu0 0.0
        %7863 = vmatprep.mubr.f32.mxu0 0.0
        %7864 = vmatmul.mubr.f32.gmra.mrb[0].mxu0 %v7797
        %v7865 = vpop.f32.mrb[0].mxu0
        %v7866 = vadd.f32 0.0, %v7865
        %v7867 = vpop.f32.mrb[0].mxu0
        %7868 = vdwg.mxu0
        %v7870 = vsel %vm5438, %v6707, 0
        %7872 = vmatprep.subr.mxu0 0.0
        %7873 = vmatpush1.msra.mxu0 %v7650
        %7874 = vmatprep.subr.mxu0 0.0
        %7875 = vmatpush1.msra.mxu0 %v7655
        %7876 = vmatprep.subr.mxu0 0.0
        %7877 = vmatpush1.msra.mxu0 %v7660
        %7878 = vmatprep.subr.mxu0 0.0
        %7879 = vmatpush1.msra.mxu0 %v7665
        %7880 = vmatprep.subr.mxu0 0.0
        %7881 = vmatpush1.msra.mxu0 %v7670
        %7882 = vmatprep.subr.mxu0 0.0
        %7883 = vmatpush1.msra.mxu0 %v7675
        %7884 = vmatprep.subr.mxu0 0.0
        %7885 = vmatpush1.msra.mxu0 %v7680
        %7886 = vmatprep.subr.mxu0 0.0
        %7887 = vmatpush1.msra.mxu0 %v7685
        %7888 = vmatprep.subr.mxu0 0.0
        %7889 = vmatpush1.msra.mxu0 0.0
        %7890 = vmatprep.subr.mxu0 0.0
        %7891 = vmatpush1.msra.mxu0 0.0
        %7892 = vmatprep.subr.mxu0 0.0
        %7893 = vmatpush1.msra.mxu0 0.0
        %7894 = vmatprep.subr.mxu0 0.0
        %7895 = vmatpush1.msra.mxu0 0.0
        %7896 = vmatprep.subr.mxu0 0.0
        %7897 = vmatpush1.msra.mxu0 0.0
        %7898 = vmatprep.subr.mxu0 0.0
        %7899 = vmatpush1.msra.mxu0 0.0
        %7900 = vmatprep.subr.mxu0 0.0
        %7901 = vmatpush1.msra.mxu0 0.0
        %7902 = vmatprep.subr.mxu0 0.0
        %7903 = vmatpush1.msra.mxu0 0.0
        %7904 = vmatprep.subr.mxu0 0.0
        %7905 = vmatpush1.msra.mxu0 0.0
        %7906 = vmatprep.subr.mxu0 0.0
        %7907 = vmatpush1.msra.mxu0 0.0
        %7908 = vmatprep.subr.mxu0 0.0
        %7909 = vmatpush1.msra.mxu0 0.0
        %7910 = vmatprep.subr.mxu0 0.0
        %7911 = vmatpush1.msra.mxu0 0.0
        %7912 = vmatprep.subr.mxu0 0.0
        %7913 = vmatpush1.msra.mxu0 0.0
        %7914 = vmatprep.subr.mxu0 0.0
        %7915 = vmatpush1.msra.mxu0 0.0
        %7916 = vmatprep.subr.mxu0 0.0
        %7917 = vmatpush1.msra.mxu0 0.0
        %7918 = vmatprep.subr.mxu0 0.0
        %7919 = vmatpush1.msra.mxu0 0.0
        %7920 = vmatprep.subr.mxu0 0.0
        %7921 = vmatpush1.msra.mxu0 0.0
        %7922 = vmatprep.subr.mxu0 0.0
        %7923 = vmatpush1.msra.mxu0 0.0
        %7924 = vmatprep.subr.mxu0 0.0
        %7925 = vmatpush1.msra.mxu0 0.0
        %7926 = vmatprep.subr.mxu0 0.0
        %7927 = vmatpush1.msra.mxu0 0.0
        %7928 = vmatprep.subr.mxu0 0.0
        %7929 = vmatpush1.msra.mxu0 0.0
        %7930 = vmatprep.subr.mxu0 0.0
        %7931 = vmatpush1.msra.mxu0 0.0
        %7932 = vmatprep.subr.mxu0 0.0
        %7933 = vmatpush1.msra.mxu0 0.0
        %7934 = vmatprep.subr.mxu0 0.0
        %7935 = vmatpush1.msra.mxu0 0.0
        %7936 = vmatprep.mubr.f32.mxu0 0.0
        %7937 = vmatmul.mubr.f32.gmra.mrb[0].mxu0 %v7870
        %v7938 = vpop.f32.mrb[0].mxu0
        %v7939 = vadd.f32 %v7866, %v7938
        %v7940 = vpop.f32.mrb[0].mxu0
        %7941 = vdwg.mxu0
        %7943 = vset.pattern.permute.xlu0 0
        %7944 = vperm.xlu0 %7943, %v6709
        %v7945 = vpop.permute.xlu0 %7944
        %v7947 = vadd.f32 %v7939, %v7945
        %v7948 = vld [vmem:[%s89] sm:$0xff]
        %v7949 = vld [vmem:[%s91] sm:$0xff]
        %v7950 = vld [vmem:[%s93] sm:$0xff]
        %v7951 = vld [vmem:[%s95] sm:$0x1]
        %v7952 = vld [vmem:[%s97] sm:$0x1]
        %v7953 = vld [vmem:[#allocation2] sm:$0x1]
        %vm7954 = vcmp.ge.f32.partialorder %v7947, 0.0
        %v7955 = vmul.f32 %v7947, 0.01
        %v7956 = vsel %vm7954, %v7947, %v7955
        %vm7957 = vcmask 515072
        %v7958 = vsel %vm7957, %v7956, 0.0
        %7959 = vadd.xlane.f32.xlu0 %v7958
        %v7960 = vpop.xlane.xlu0 %7959
        %v7961 = vrcp.pop 63.0
        %v7962 = vmul.f32 %v7960, %v7961
        %v7963 = vsub.f32 %v7956, %v7962
        %v7964 = vmul.f32 %v7963, %v7963
        %v7965 = vsel %vm7957, %v7964, 0.0
        %7966 = vadd.xlane.f32.xlu0 %v7965
        %v7967 = vpop.xlane.xlu0 %7966
        %v7968 = vmul.f32 %v7967, %v7961
        %v7969 = vadd.f32 %v7968, 1e-05
        %v7970 = vrsqrt.pop %v7969
        %v7971 = vmul.f32 %v7963, %v7970
        %v7972 = vmul.u32 %v1526, 2
        %v7973 = vmul.u32 %v1527, 2
        %v7974 = vmul.u32 %v1528, 2
        %v7975 = vmul.u32 %v1529, 2
        %vm7976 = vcmp.eq.s32.totalorder %v1536, %v7972
        %vm7977 = vcmp.eq.s32.totalorder %v1536, %v7973
        %vm7978 = vcmp.eq.s32.totalorder %v1536, %v7974
        %vm7979 = vcmp.eq.s32.totalorder %v1536, %v7975
        %v7980 = vsel %vm7976, 1, 0
        %v7981 = vsel %vm7977, 1, 0
        %v7982 = vsel %vm7978, 1, 0
        %v7983 = vsel %vm7979, 1, 0
        %v7984 = vcvt.s32.f32 %v7980
        %v7985 = vcvt.s32.f32 %v7981
        %v7986 = vcvt.s32.f32 %v7982
        %v7987 = vcvt.s32.f32 %v7983
        %v7988 = vadd.s32 %v7972, 1
        %v7989 = vadd.s32 %v7973, 1
        %v7990 = vadd.s32 %v7974, 1
        %v7991 = vadd.s32 %v7975, 1
        %vm7992 = vcmp.eq.s32.totalorder %v1536, %v7988
        %vm7993 = vcmp.eq.s32.totalorder %v1536, %v7989
        %vm7994 = vcmp.eq.s32.totalorder %v1536, %v7990
        %vm7995 = vcmp.eq.s32.totalorder %v1536, %v7991
        %v7996 = vsel %vm7992, 1, 0
        %v7997 = vsel %vm7993, 1, 0
        %v7998 = vsel %vm7994, 1, 0
        %v7999 = vsel %vm7995, 1, 0
        %v8000 = vcvt.s32.f32 %v7996
        %v8001 = vcvt.s32.f32 %v7997
        %v8002 = vcvt.s32.f32 %v7998
        %v8003 = vcvt.s32.f32 %v7999
        %vm8004 = vcmask 64512
        %v8006 = vsel %vm8004, %v7948, 0
        %8008 = vmatprep.subr.mxu0 0.0
        %8009 = vmatpush1.msra.mxu0 %v7971
        %8010 = vmatprep.subr.mxu0 0.0
        %8011 = vmatpush1.msra.mxu0 0.0
        %8012 = vmatprep.subr.mxu0 0.0
        %8013 = vmatpush1.msra.mxu0 0.0
        %8014 = vmatprep.subr.mxu0 0.0
        %8015 = vmatpush1.msra.mxu0 0.0
        %8016 = vmatprep.subr.mxu0 0.0
        %8017 = vmatpush1.msra.mxu0 0.0
        %8018 = vmatprep.subr.mxu0 0.0
        %8019 = vmatpush1.msra.mxu0 0.0
        %8020 = vmatprep.subr.mxu0 0.0
        %8021 = vmatpush1.msra.mxu0 0.0
        %8022 = vmatprep.subr.mxu0 0.0
        %8023 = vmatpush1.msra.mxu0 0.0
        %8024 = vmatprep.subr.mxu0 0.0
        %8025 = vmatpush1.msra.mxu0 0.0
        %8026 = vmatprep.subr.mxu0 0.0
        %8027 = vmatpush1.msra.mxu0 0.0
        %8028 = vmatprep.subr.mxu0 0.0
        %8029 = vmatpush1.msra.mxu0 0.0
        %8030 = vmatprep.subr.mxu0 0.0
        %8031 = vmatpush1.msra.mxu0 0.0
        %8032 = vmatprep.subr.mxu0 0.0
        %8033 = vmatpush1.msra.mxu0 0.0
        %8034 = vmatprep.subr.mxu0 0.0
        %8035 = vmatpush1.msra.mxu0 0.0
        %8036 = vmatprep.subr.mxu0 0.0
        %8037 = vmatpush1.msra.mxu0 0.0
        %8038 = vmatprep.subr.mxu0 0.0
        %8039 = vmatpush1.msra.mxu0 0.0
        %8040 = vmatprep.subr.mxu0 0.0
        %8041 = vmatpush1.msra.mxu0 0.0
        %8042 = vmatprep.subr.mxu0 0.0
        %8043 = vmatpush1.msra.mxu0 0.0
        %8044 = vmatprep.subr.mxu0 0.0
        %8045 = vmatpush1.msra.mxu0 0.0
        %8046 = vmatprep.subr.mxu0 0.0
        %8047 = vmatpush1.msra.mxu0 0.0
        %8048 = vmatprep.subr.mxu0 0.0
        %8049 = vmatpush1.msra.mxu0 0.0
        %8050 = vmatprep.subr.mxu0 0.0
        %8051 = vmatpush1.msra.mxu0 0.0
        %8052 = vmatprep.subr.mxu0 0.0
        %8053 = vmatpush1.msra.mxu0 0.0
        %8054 = vmatprep.subr.mxu0 0.0
        %8055 = vmatpush1.msra.mxu0 0.0
        %8056 = vmatprep.subr.mxu0 0.0
        %8057 = vmatpush1.msra.mxu0 0.0
        %8058 = vmatprep.subr.mxu0 0.0
        %8059 = vmatpush1.msra.mxu0 0.0
        %8060 = vmatprep.subr.mxu0 0.0
        %8061 = vmatpush1.msra.mxu0 0.0
        %8062 = vmatprep.subr.mxu0 0.0
        %8063 = vmatpush1.msra.mxu0 0.0
        %8064 = vmatprep.subr.mxu0 0.0
        %8065 = vmatpush1.msra.mxu0 0.0
        %8066 = vmatprep.subr.mxu0 0.0
        %8067 = vmatpush1.msra.mxu0 0.0
        %8068 = vmatprep.subr.mxu0 0.0
        %8069 = vmatpush1.msra.mxu0 0.0
        %8070 = vmatprep.subr.mxu0 0.0
        %8071 = vmatpush1.msra.mxu0 0.0
        %8072 = vmatprep.mubr.f32.mxu0 0.0
        %8073 = vmatmul.mubr.f32.gmra.mrb[0].mxu0 %v8006
        %v8074 = vpop.f32.mrb[0].mxu0
        %v8075 = vadd.f32 0.0, %v8074
        %v8076 = vpop.f32.mrb[0].mxu0
        %8077 = vdwg.mxu0
        %v8079 = vsel %vm8004, %v7949, 0
        %8081 = vmatprep.subr.mxu0 0.0
        %8082 = vmatpush1.msra.mxu0 %v7971
        %8083 = vmatprep.subr.mxu0 0.0
        %8084 = vmatpush1.msra.mxu0 0.0
        %8085 = vmatprep.subr.mxu0 0.0
        %8086 = vmatpush1.msra.mxu0 0.0
        %8087 = vmatprep.subr.mxu0 0.0
        %8088 = vmatpush1.msra.mxu0 0.0
        %8089 = vmatprep.subr.mxu0 0.0
        %8090 = vmatpush1.msra.mxu0 0.0
        %8091 = vmatprep.subr.mxu0 0.0
        %8092 = vmatpush1.msra.mxu0 0.0
        %8093 = vmatprep.subr.mxu0 0.0
        %8094 = vmatpush1.msra.mxu0 0.0
        %8095 = vmatprep.subr.mxu0 0.0
        %8096 = vmatpush1.msra.mxu0 0.0
        %8097 = vmatprep.subr.mxu0 0.0
        %8098 = vmatpush1.msra.mxu0 0.0
        %8099 = vmatprep.subr.mxu0 0.0
        %8100 = vmatpush1.msra.mxu0 0.0
        %8101 = vmatprep.subr.mxu0 0.0
        %8102 = vmatpush1.msra.mxu0 0.0
        %8103 = vmatprep.subr.mxu0 0.0
        %8104 = vmatpush1.msra.mxu0 0.0
        %8105 = vmatprep.subr.mxu0 0.0
        %8106 = vmatpush1.msra.mxu0 0.0
        %8107 = vmatprep.subr.mxu0 0.0
        %8108 = vmatpush1.msra.mxu0 0.0
        %8109 = vmatprep.subr.mxu0 0.0
        %8110 = vmatpush1.msra.mxu0 0.0
        %8111 = vmatprep.subr.mxu0 0.0
        %8112 = vmatpush1.msra.mxu0 0.0
        %8113 = vmatprep.subr.mxu0 0.0
        %8114 = vmatpush1.msra.mxu0 0.0
        %8115 = vmatprep.subr.mxu0 0.0
        %8116 = vmatpush1.msra.mxu0 0.0
        %8117 = vmatprep.subr.mxu0 0.0
        %8118 = vmatpush1.msra.mxu0 0.0
        %8119 = vmatprep.subr.mxu0 0.0
        %8120 = vmatpush1.msra.mxu0 0.0
        %8121 = vmatprep.subr.mxu0 0.0
        %8122 = vmatpush1.msra.mxu0 0.0
        %8123 = vmatprep.subr.mxu0 0.0
        %8124 = vmatpush1.msra.mxu0 0.0
        %8125 = vmatprep.subr.mxu0 0.0
        %8126 = vmatpush1.msra.mxu0 0.0
        %8127 = vmatprep.subr.mxu0 0.0
        %8128 = vmatpush1.msra.mxu0 0.0
        %8129 = vmatprep.subr.mxu0 0.0
        %8130 = vmatpush1.msra.mxu0 0.0
        %8131 = vmatprep.subr.mxu0 0.0
        %8132 = vmatpush1.msra.mxu0 0.0
        %8133 = vmatprep.subr.mxu0 0.0
        %8134 = vmatpush1.msra.mxu0 0.0
        %8135 = vmatprep.subr.mxu0 0.0
        %8136 = vmatpush1.msra.mxu0 0.0
        %8137 = vmatprep.subr.mxu0 0.0
        %8138 = vmatpush1.msra.mxu0 0.0
        %8139 = vmatprep.subr.mxu0 0.0
        %8140 = vmatpush1.msra.mxu0 0.0
        %8141 = vmatprep.subr.mxu0 0.0
        %8142 = vmatpush1.msra.mxu0 0.0
        %8143 = vmatprep.subr.mxu0 0.0
        %8144 = vmatpush1.msra.mxu0 0.0
        %8145 = vmatprep.mubr.f32.mxu0 0.0
        %8146 = vmatmul.mubr.f32.gmra.mrb[0].mxu0 %v8079
        %v8147 = vpop.f32.mrb[0].mxu0
        %v8148 = vadd.f32 0.0, %v8147
        %v8149 = vpop.f32.mrb[0].mxu0
        %8150 = vdwg.mxu0
        %v8152 = vsel %vm7957, %v8148, 0
        %v8155 = vsel %vm4113, %v8003, 0
        %8157 = vmatprep.subr.mxu0 0.0
        %8158 = vmatpush1.msra.mxu0 %v4474
        %8159 = vmatprep.subr.mxu0 0.0
        %8160 = vmatpush1.msra.mxu0 %v5437
        %8161 = vmatprep.subr.mxu0 0.0
        %8162 = vmatpush1.msra.mxu0 %v6854
        %8163 = vmatprep.subr.mxu0 0.0
        %8164 = vmatpush1.msra.mxu0 %v6855
        %8165 = vmatprep.subr.mxu0 0.0
        %8166 = vmatpush1.msra.mxu0 %v8000
        %8167 = vmatprep.subr.mxu0 0.0
        %8168 = vmatpush1.msra.mxu0 %v8001
        %8169 = vmatprep.subr.mxu0 0.0
        %8170 = vmatpush1.msra.mxu0 %v8002
        %8171 = vmatprep.subr.mxu0 0.0
        %8172 = vmatpush1.msra.mxu0 %v8155
        %8173 = vmatprep.subr.mxu0 0.0
        %8174 = vmatpush1.msra.mxu0 0.0
        %8175 = vmatprep.subr.mxu0 0.0
        %8176 = vmatpush1.msra.mxu0 0.0
        %8177 = vmatprep.subr.mxu0 0.0
        %8178 = vmatpush1.msra.mxu0 0.0
        %8179 = vmatprep.subr.mxu0 0.0
        %8180 = vmatpush1.msra.mxu0 0.0
        %8181 = vmatprep.subr.mxu0 0.0
        %8182 = vmatpush1.msra.mxu0 0.0
        %8183 = vmatprep.subr.mxu0 0.0
        %8184 = vmatpush1.msra.mxu0 0.0
        %8185 = vmatprep.subr.mxu0 0.0
        %8186 = vmatpush1.msra.mxu0 0.0
        %8187 = vmatprep.subr.mxu0 0.0
        %8188 = vmatpush1.msra.mxu0 0.0
        %8189 = vmatprep.subr.mxu0 0.0
        %8190 = vmatpush1.msra.mxu0 0.0
        %8191 = vmatprep.subr.mxu0 0.0
        %8192 = vmatpush1.msra.mxu0 0.0
        %8193 = vmatprep.subr.mxu0 0.0
        %8194 = vmatpush1.msra.mxu0 0.0
        %8195 = vmatprep.subr.mxu0 0.0
        %8196 = vmatpush1.msra.mxu0 0.0
        %8197 = vmatprep.subr.mxu0 0.0
        %8198 = vmatpush1.msra.mxu0 0.0
        %8199 = vmatprep.subr.mxu0 0.0
        %8200 = vmatpush1.msra.mxu0 0.0
        %8201 = vmatprep.subr.mxu0 0.0
        %8202 = vmatpush1.msra.mxu0 0.0
        %8203 = vmatprep.subr.mxu0 0.0
        %8204 = vmatpush1.msra.mxu0 0.0
        %8205 = vmatprep.subr.mxu0 0.0
        %8206 = vmatpush1.msra.mxu0 0.0
        %8207 = vmatprep.subr.mxu0 0.0
        %8208 = vmatpush1.msra.mxu0 0.0
        %8209 = vmatprep.subr.mxu0 0.0
        %8210 = vmatpush1.msra.mxu0 0.0
        %8211 = vmatprep.subr.mxu0 0.0
        %8212 = vmatpush1.msra.mxu0 0.0
        %8213 = vmatprep.subr.mxu0 0.0
        %8214 = vmatpush1.msra.mxu0 0.0
        %8215 = vmatprep.subr.mxu0 0.0
        %8216 = vmatpush1.msra.mxu0 0.0
        %8217 = vmatprep.subr.mxu0 0.0
        %8218 = vmatpush1.msra.mxu0 0.0
        %8219 = vmatprep.subr.mxu0 0.0
        %8220 = vmatpush1.msra.mxu0 0.0
        %8221 = vmatprep.mubr.f32.mxu0 0.0
        %8222 = vmatmul.mubr.f32.gmra.mrb[0].mxu0 %v8152
        %v8223 = vpop.f32.mrb[0].mxu0
        %v8224 = vadd.f32 0.0, %v8223
        %v8225 = vpop.f32.mrb[0].mxu0
        %8226 = vdwg.mxu0
        %v8228 = vsel %vm7957, %v8075, 0
        %v8231 = vsel %vm4113, %v7987, 0
        %8233 = vmatprep.subr.mxu0 0.0
        %8234 = vmatpush1.msra.mxu0 %v4470
        %8235 = vmatprep.subr.mxu0 0.0
        %8236 = vmatpush1.msra.mxu0 %v5433
        %8237 = vmatprep.subr.mxu0 0.0
        %8238 = vmatpush1.msra.mxu0 %v6846
        %8239 = vmatprep.subr.mxu0 0.0
        %8240 = vmatpush1.msra.mxu0 %v6847
        %8241 = vmatprep.subr.mxu0 0.0
        %8242 = vmatpush1.msra.mxu0 %v7984
        %8243 = vmatprep.subr.mxu0 0.0
        %8244 = vmatpush1.msra.mxu0 %v7985
        %8245 = vmatprep.subr.mxu0 0.0
        %8246 = vmatpush1.msra.mxu0 %v7986
        %8247 = vmatprep.subr.mxu0 0.0
        %8248 = vmatpush1.msra.mxu0 %v8231
        %8249 = vmatprep.subr.mxu0 0.0
        %8250 = vmatpush1.msra.mxu0 0.0
        %8251 = vmatprep.subr.mxu0 0.0
        %8252 = vmatpush1.msra.mxu0 0.0
        %8253 = vmatprep.subr.mxu0 0.0
        %8254 = vmatpush1.msra.mxu0 0.0
        %8255 = vmatprep.subr.mxu0 0.0
        %8256 = vmatpush1.msra.mxu0 0.0
        %8257 = vmatprep.subr.mxu0 0.0
        %8258 = vmatpush1.msra.mxu0 0.0
        %8259 = vmatprep.subr.mxu0 0.0
        %8260 = vmatpush1.msra.mxu0 0.0
        %8261 = vmatprep.subr.mxu0 0.0
        %8262 = vmatpush1.msra.mxu0 0.0
        %8263 = vmatprep.subr.mxu0 0.0
        %8264 = vmatpush1.msra.mxu0 0.0
        %8265 = vmatprep.subr.mxu0 0.0
        %8266 = vmatpush1.msra.mxu0 0.0
        %8267 = vmatprep.subr.mxu0 0.0
        %8268 = vmatpush1.msra.mxu0 0.0
        %8269 = vmatprep.subr.mxu0 0.0
        %8270 = vmatpush1.msra.mxu0 0.0
        %8271 = vmatprep.subr.mxu0 0.0
        %8272 = vmatpush1.msra.mxu0 0.0
        %8273 = vmatprep.subr.mxu0 0.0
        %8274 = vmatpush1.msra.mxu0 0.0
        %8275 = vmatprep.subr.mxu0 0.0
        %8276 = vmatpush1.msra.mxu0 0.0
        %8277 = vmatprep.subr.mxu0 0.0
        %8278 = vmatpush1.msra.mxu0 0.0
        %8279 = vmatprep.subr.mxu0 0.0
        %8280 = vmatpush1.msra.mxu0 0.0
        %8281 = vmatprep.subr.mxu0 0.0
        %8282 = vmatpush1.msra.mxu0 0.0
        %8283 = vmatprep.subr.mxu0 0.0
        %8284 = vmatpush1.msra.mxu0 0.0
        %8285 = vmatprep.subr.mxu0 0.0
        %8286 = vmatpush1.msra.mxu0 0.0
        %8287 = vmatprep.subr.mxu0 0.0
        %8288 = vmatpush1.msra.mxu0 0.0
        %8289 = vmatprep.subr.mxu0 0.0
        %8290 = vmatpush1.msra.mxu0 0.0
        %8291 = vmatprep.subr.mxu0 0.0
        %8292 = vmatpush1.msra.mxu0 0.0
        %8293 = vmatprep.subr.mxu0 0.0
        %8294 = vmatpush1.msra.mxu0 0.0
        %8295 = vmatprep.subr.mxu0 0.0
        %8296 = vmatpush1.msra.mxu0 0.0
        %8297 = vmatprep.mubr.f32.mxu0 0.0
        %8298 = vmatmul.mubr.f32.gmra.mrb[0].mxu0 %v8228
        %v8299 = vpop.f32.mrb[0].mxu0
        %v8300 = vadd.f32 %v8224, %v8299
        %v8301 = vpop.f32.mrb[0].mxu0
        %8302 = vdwg.mxu0
        %8304 = vset.pattern.permute.xlu0 0
        %8305 = vperm.xlu0 %8304, %v7950
        %v8306 = vpop.permute.xlu0 %8305
        %v8308 = vadd.f32 %v8300, %v8306
        %vm8309 = vcmp.ge.f32.partialorder %v8308, 0.0
        %v8310 = vmul.f32 %v8308, 0.01
        %v8311 = vsel %vm8309, %v8308, %v8310
        %vm8312 = vcmask 1031168
        %v8313 = vsel %vm8312, %v8311, 0.0
        %8314 = vadd.xlane.f32.xlu0 %v8313
        %v8315 = vpop.xlane.xlu0 %8314
        %v8316 = vrcp.pop 126.0
        %v8317 = vmul.f32 %v8315, %v8316
        %v8318 = vsub.f32 %v8311, %v8317
        %v8319 = vmul.f32 %v8318, %v8318
        %v8320 = vsel %vm8312, %v8319, 0.0
        %8321 = vadd.xlane.f32.xlu0 %v8320
        %v8322 = vpop.xlane.xlu0 %8321
        %v8323 = vmul.f32 %v8322, %v8316
        %v8324 = vadd.f32 %v8323, 1e-05
        %v8325 = vrsqrt.pop %v8324
        %v8326 = vmul.f32 %v8318, %v8325
        %v8327 = vadd.s32 %v1522, 120
        %v8328 = vadd.s32 %v1536, 128
        %v8329 = vsub.s32 %v1536, 2
        %v8330 = vsub.s32 %v8328, 2
        %vm8331 = vcmp.eq.s32.totalorder %v1522, %v8329
        %vm8332 = vcmp.eq.s32.totalorder %v1522, %v8330
        %vm8333 = vcmp.eq.s32.totalorder %v1523, %v8329
        %vm8334 = vcmp.eq.s32.totalorder %v1523, %v8330
        %vm8335 = vcmp.eq.s32.totalorder %v1524, %v8329
        %vm8336 = vcmp.eq.s32.totalorder %v1524, %v8330
        %vm8337 = vcmp.eq.s32.totalorder %v1525, %v8329
        %vm8338 = vcmp.eq.s32.totalorder %v1525, %v8330
        %vm8339 = vcmp.eq.s32.totalorder %v1526, %v8329
        %vm8340 = vcmp.eq.s32.totalorder %v1526, %v8330
        %vm8341 = vcmp.eq.s32.totalorder %v1527, %v8329
        %vm8342 = vcmp.eq.s32.totalorder %v1527, %v8330
        %vm8343 = vcmp.eq.s32.totalorder %v1528, %v8329
        %vm8344 = vcmp.eq.s32.totalorder %v1528, %v8330
        %vm8345 = vcmp.eq.s32.totalorder %v1529, %v8329
        %vm8346 = vcmp.eq.s32.totalorder %v1529, %v8330
        %vm8347 = vcmp.eq.s32.totalorder %v1530, %v8329
        %vm8348 = vcmp.eq.s32.totalorder %v1530, %v8330
        %vm8349 = vcmp.eq.s32.totalorder %v1531, %v8329
        %vm8350 = vcmp.eq.s32.totalorder %v1531, %v8330
        %vm8351 = vcmp.eq.s32.totalorder %v1532, %v8329
        %vm8352 = vcmp.eq.s32.totalorder %v1532, %v8330
        %vm8353 = vcmp.eq.s32.totalorder %v1533, %v8329
        %vm8354 = vcmp.eq.s32.totalorder %v1533, %v8330
        %vm8355 = vcmp.eq.s32.totalorder %v1534, %v8329
        %vm8356 = vcmp.eq.s32.totalorder %v1534, %v8330
        %vm8357 = vcmp.eq.s32.totalorder %v1676, %v8329
        %vm8358 = vcmp.eq.s32.totalorder %v1676, %v8330
        %vm8359 = vcmp.eq.s32.totalorder %v2045, %v8329
        %vm8360 = vcmp.eq.s32.totalorder %v2045, %v8330
        %vm8361 = vcmp.eq.s32.totalorder %v8327, %v8329
        %vm8362 = vcmp.eq.s32.totalorder %v8327, %v8330
        %v8363 = vsel %vm8331, 1, 0
        %v8364 = vsel %vm8332, 1, 0
        %v8365 = vsel %vm8333, 1, 0
        %v8366 = vsel %vm8334, 1, 0
        %v8367 = vsel %vm8335, 1, 0
        %v8368 = vsel %vm8336, 1, 0
        %v8369 = vsel %vm8337, 1, 0
        %v8370 = vsel %vm8338, 1, 0
        %v8371 = vsel %vm8339, 1, 0
        %v8372 = vsel %vm8340, 1, 0
        %v8373 = vsel %vm8341, 1, 0
        %v8374 = vsel %vm8342, 1, 0
        %v8375 = vsel %vm8343, 1, 0
        %v8376 = vsel %vm8344, 1, 0
        %v8377 = vsel %vm8345, 1, 0
        %v8378 = vsel %vm8346, 1, 0
        %v8379 = vsel %vm8347, 1, 0
        %v8380 = vsel %vm8348, 1, 0
        %v8381 = vsel %vm8349, 1, 0
        %v8382 = vsel %vm8350, 1, 0
        %v8383 = vsel %vm8351, 1, 0
        %v8384 = vsel %vm8352, 1, 0
        %v8385 = vsel %vm8353, 1, 0
        %v8386 = vsel %vm8354, 1, 0
        %v8387 = vsel %vm8355, 1, 0
        %v8388 = vsel %vm8356, 1, 0
        %v8389 = vsel %vm8357, 1, 0
        %v8390 = vsel %vm8358, 1, 0
        %v8391 = vsel %vm8359, 1, 0
        %v8392 = vsel %vm8360, 1, 0
        %v8393 = vsel %vm8361, 1, 0
        %v8394 = vsel %vm8362, 1, 0
        %v8395 = vcvt.s32.f32 %v8363
        %v8396 = vcvt.s32.f32 %v8364
        %v8397 = vcvt.s32.f32 %v8365
        %v8398 = vcvt.s32.f32 %v8366
        %v8399 = vcvt.s32.f32 %v8367
        %v8400 = vcvt.s32.f32 %v8368
        %v8401 = vcvt.s32.f32 %v8369
        %v8402 = vcvt.s32.f32 %v8370
        %v8403 = vcvt.s32.f32 %v8371
        %v8404 = vcvt.s32.f32 %v8372
        %v8405 = vcvt.s32.f32 %v8373
        %v8406 = vcvt.s32.f32 %v8374
        %v8407 = vcvt.s32.f32 %v8375
        %v8408 = vcvt.s32.f32 %v8376
        %v8409 = vcvt.s32.f32 %v8377
        %v8410 = vcvt.s32.f32 %v8378
        %v8411 = vcvt.s32.f32 %v8379
        %v8412 = vcvt.s32.f32 %v8380
        %v8413 = vcvt.s32.f32 %v8381
        %v8414 = vcvt.s32.f32 %v8382
        %v8415 = vcvt.s32.f32 %v8383
        %v8416 = vcvt.s32.f32 %v8384
        %v8417 = vcvt.s32.f32 %v8385
        %v8418 = vcvt.s32.f32 %v8386
        %v8419 = vcvt.s32.f32 %v8387
        %v8420 = vcvt.s32.f32 %v8388
        %v8421 = vcvt.s32.f32 %v8389
        %v8422 = vcvt.s32.f32 %v8390
        %v8423 = vcvt.s32.f32 %v8391
        %v8424 = vcvt.s32.f32 %v8392
        %v8425 = vcvt.s32.f32 %v8393
        %v8426 = vcvt.s32.f32 %v8394
        %v8427 = vadd.s32 %v1536, 1
        %v8428 = vadd.s32 %v8328, 1
        %v8429 = vsub.s32 %v8427, 2
        %v8430 = vsub.s32 %v8428, 2
        %vm8431 = vcmp.eq.s32.totalorder %v1522, %v8429
        %vm8432 = vcmp.eq.s32.totalorder %v1522, %v8430
        %vm8433 = vcmp.eq.s32.totalorder %v1523, %v8429
        %vm8434 = vcmp.eq.s32.totalorder %v1523, %v8430
        %vm8435 = vcmp.eq.s32.totalorder %v1524, %v8429
        %vm8436 = vcmp.eq.s32.totalorder %v1524, %v8430
        %vm8437 = vcmp.eq.s32.totalorder %v1525, %v8429
        %vm8438 = vcmp.eq.s32.totalorder %v1525, %v8430
        %vm8439 = vcmp.eq.s32.totalorder %v1526, %v8429
        %vm8440 = vcmp.eq.s32.totalorder %v1526, %v8430
        %vm8441 = vcmp.eq.s32.totalorder %v1527, %v8429
        %vm8442 = vcmp.eq.s32.totalorder %v1527, %v8430
        %vm8443 = vcmp.eq.s32.totalorder %v1528, %v8429
        %vm8444 = vcmp.eq.s32.totalorder %v1528, %v8430
        %vm8445 = vcmp.eq.s32.totalorder %v1529, %v8429
        %vm8446 = vcmp.eq.s32.totalorder %v1529, %v8430
        %vm8447 = vcmp.eq.s32.totalorder %v1530, %v8429
        %vm8448 = vcmp.eq.s32.totalorder %v1530, %v8430
        %vm8449 = vcmp.eq.s32.totalorder %v1531, %v8429
        %vm8450 = vcmp.eq.s32.totalorder %v1531, %v8430
        %vm8451 = vcmp.eq.s32.totalorder %v1532, %v8429
        %vm8452 = vcmp.eq.s32.totalorder %v1532, %v8430
        %vm8453 = vcmp.eq.s32.totalorder %v1533, %v8429
        %vm8454 = vcmp.eq.s32.totalorder %v1533, %v8430
        %vm8455 = vcmp.eq.s32.totalorder %v1534, %v8429
        %vm8456 = vcmp.eq.s32.totalorder %v1534, %v8430
        %vm8457 = vcmp.eq.s32.totalorder %v1676, %v8429
        %vm8458 = vcmp.eq.s32.totalorder %v1676, %v8430
        %vm8459 = vcmp.eq.s32.totalorder %v2045, %v8429
        %vm8460 = vcmp.eq.s32.totalorder %v2045, %v8430
        %vm8461 = vcmp.eq.s32.totalorder %v8327, %v8429
        %vm8462 = vcmp.eq.s32.totalorder %v8327, %v8430
        %v8463 = vsel %vm8431, 1, 0
        %v8464 = vsel %vm8432, 1, 0
        %v8465 = vsel %vm8433, 1, 0
        %v8466 = vsel %vm8434, 1, 0
        %v8467 = vsel %vm8435, 1, 0
        %v8468 = vsel %vm8436, 1, 0
        %v8469 = vsel %vm8437, 1, 0
        %v8470 = vsel %vm8438, 1, 0
        %v8471 = vsel %vm8439, 1, 0
        %v8472 = vsel %vm8440, 1, 0
        %v8473 = vsel %vm8441, 1, 0
        %v8474 = vsel %vm8442, 1, 0
        %v8475 = vsel %vm8443, 1, 0
        %v8476 = vsel %vm8444, 1, 0
        %v8477 = vsel %vm8445, 1, 0
        %v8478 = vsel %vm8446, 1, 0
        %v8479 = vsel %vm8447, 1, 0
        %v8480 = vsel %vm8448, 1, 0
        %v8481 = vsel %vm8449, 1, 0
        %v8482 = vsel %vm8450, 1, 0
        %v8483 = vsel %vm8451, 1, 0
        %v8484 = vsel %vm8452, 1, 0
        %v8485 = vsel %vm8453, 1, 0
        %v8486 = vsel %vm8454, 1, 0
        %v8487 = vsel %vm8455, 1, 0
        %v8488 = vsel %vm8456, 1, 0
        %v8489 = vsel %vm8457, 1, 0
        %v8490 = vsel %vm8458, 1, 0
        %v8491 = vsel %vm8459, 1, 0
        %v8492 = vsel %vm8460, 1, 0
        %v8493 = vsel %vm8461, 1, 0
        %v8494 = vsel %vm8462, 1, 0
        %v8495 = vcvt.s32.f32 %v8463
        %v8496 = vcvt.s32.f32 %v8464
        %v8497 = vcvt.s32.f32 %v8465
        %v8498 = vcvt.s32.f32 %v8466
        %v8499 = vcvt.s32.f32 %v8467
        %v8500 = vcvt.s32.f32 %v8468
        %v8501 = vcvt.s32.f32 %v8469
        %v8502 = vcvt.s32.f32 %v8470
        %v8503 = vcvt.s32.f32 %v8471
        %v8504 = vcvt.s32.f32 %v8472
        %v8505 = vcvt.s32.f32 %v8473
        %v8506 = vcvt.s32.f32 %v8474
        %v8507 = vcvt.s32.f32 %v8475
        %v8508 = vcvt.s32.f32 %v8476
        %v8509 = vcvt.s32.f32 %v8477
        %v8510 = vcvt.s32.f32 %v8478
        %v8511 = vcvt.s32.f32 %v8479
        %v8512 = vcvt.s32.f32 %v8480
        %v8513 = vcvt.s32.f32 %v8481
        %v8514 = vcvt.s32.f32 %v8482
        %v8515 = vcvt.s32.f32 %v8483
        %v8516 = vcvt.s32.f32 %v8484
        %v8517 = vcvt.s32.f32 %v8485
        %v8518 = vcvt.s32.f32 %v8486
        %v8519 = vcvt.s32.f32 %v8487
        %v8520 = vcvt.s32.f32 %v8488
        %v8521 = vcvt.s32.f32 %v8489
        %v8522 = vcvt.s32.f32 %v8490
        %v8523 = vcvt.s32.f32 %v8491
        %v8524 = vcvt.s32.f32 %v8492
        %v8525 = vcvt.s32.f32 %v8493
        %v8526 = vcvt.s32.f32 %v8494
        %v8528 = vsel %vm8312, %v8326, 0
        %v8531 = vsel %vm3786, %v8425, 0
        %v8534 = vsel %vm3786, %v8426, 0
        %8536 = vmatprep.subr.mxu0 %v8396
        %8537 = vmatpush1.msra.mxu0 %v8395
        %8538 = vmatprep.subr.mxu0 %v8398
        %8539 = vmatpush1.msra.mxu0 %v8397
        %8540 = vmatprep.subr.mxu0 %v8400
        %8541 = vmatpush1.msra.mxu0 %v8399
        %8542 = vmatprep.subr.mxu0 %v8402
        %8543 = vmatpush1.msra.mxu0 %v8401
        %8544 = vmatprep.subr.mxu0 %v8404
        %8545 = vmatpush1.msra.mxu0 %v8403
        %8546 = vmatprep.subr.mxu0 %v8406
        %8547 = vmatpush1.msra.mxu0 %v8405
        %8548 = vmatprep.subr.mxu0 %v8408
        %8549 = vmatpush1.msra.mxu0 %v8407
        %8550 = vmatprep.subr.mxu0 %v8410
        %8551 = vmatpush1.msra.mxu0 %v8409
        %8552 = vmatprep.subr.mxu0 %v8412
        %8553 = vmatpush1.msra.mxu0 %v8411
        %8554 = vmatprep.subr.mxu0 %v8414
        %8555 = vmatpush1.msra.mxu0 %v8413
        %8556 = vmatprep.subr.mxu0 %v8416
        %8557 = vmatpush1.msra.mxu0 %v8415
        %8558 = vmatprep.subr.mxu0 %v8418
        %8559 = vmatpush1.msra.mxu0 %v8417
        %8560 = vmatprep.subr.mxu0 %v8420
        %8561 = vmatpush1.msra.mxu0 %v8419
        %8562 = vmatprep.subr.mxu0 %v8422
        %8563 = vmatpush1.msra.mxu0 %v8421
        %8564 = vmatprep.subr.mxu0 %v8424
        %8565 = vmatpush1.msra.mxu0 %v8423
        %8566 = vmatprep.subr.mxu0 %v8534
        %8567 = vmatpush1.msra.mxu0 %v8531
        %8568 = vmatprep.subr.mxu0 0.0
        %8569 = vmatpush1.msra.mxu0 0.0
        %8570 = vmatprep.subr.mxu0 0.0
        %8571 = vmatpush1.msra.mxu0 0.0
        %8572 = vmatprep.subr.mxu0 0.0
        %8573 = vmatpush1.msra.mxu0 0.0
        %8574 = vmatprep.subr.mxu0 0.0
        %8575 = vmatpush1.msra.mxu0 0.0
        %8576 = vmatprep.subr.mxu0 0.0
        %8577 = vmatpush1.msra.mxu0 0.0
        %8578 = vmatprep.subr.mxu0 0.0
        %8579 = vmatpush1.msra.mxu0 0.0
        %8580 = vmatprep.subr.mxu0 0.0
        %8581 = vmatpush1.msra.mxu0 0.0
        %8582 = vmatprep.subr.mxu0 0.0
        %8583 = vmatpush1.msra.mxu0 0.0
        %8584 = vmatprep.subr.mxu0 0.0
        %8585 = vmatpush1.msra.mxu0 0.0
        %8586 = vmatprep.subr.mxu0 0.0
        %8587 = vmatpush1.msra.mxu0 0.0
        %8588 = vmatprep.subr.mxu0 0.0
        %8589 = vmatpush1.msra.mxu0 0.0
        %8590 = vmatprep.subr.mxu0 0.0
        %8591 = vmatpush1.msra.mxu0 0.0
        %8592 = vmatprep.subr.mxu0 0.0
        %8593 = vmatpush1.msra.mxu0 0.0
        %8594 = vmatprep.subr.mxu0 0.0
        %8595 = vmatpush1.msra.mxu0 0.0
        %8596 = vmatprep.subr.mxu0 0.0
        %8597 = vmatpush1.msra.mxu0 0.0
        %8598 = vmatprep.subr.mxu0 0.0
        %8599 = vmatpush1.msra.mxu0 0.0
        %8600 = vmatprep.mubr.f32.mxu0 0.0
        %8601 = vmatmul.mubr.f32.gmra.mrb[0].mxu0 %v8528
        %v8602 = vpop.f32.mrb[0].mxu0
        %v8603 = vadd.f32 0.0, %v8602
        %v8604 = vpop.f32.mrb[0].mxu0
        %v8605 = vadd.f32 0.0, %v8604
        %8606 = vdwg.mxu0
        %v8608 = vsel %vm3786, %v8525, 0
        %v8611 = vsel %vm3786, %v8526, 0
        %8613 = vmatprep.subr.mxu0 %v8496
        %8614 = vmatpush1.msra.mxu0 %v8495
        %8615 = vmatprep.subr.mxu0 %v8498
        %8616 = vmatpush1.msra.mxu0 %v8497
        %8617 = vmatprep.subr.mxu0 %v8500
        %8618 = vmatpush1.msra.mxu0 %v8499
        %8619 = vmatprep.subr.mxu0 %v8502
        %8620 = vmatpush1.msra.mxu0 %v8501
        %8621 = vmatprep.subr.mxu0 %v8504
        %8622 = vmatpush1.msra.mxu0 %v8503
        %8623 = vmatprep.subr.mxu0 %v8506
        %8624 = vmatpush1.msra.mxu0 %v8505
        %8625 = vmatprep.subr.mxu0 %v8508
        %8626 = vmatpush1.msra.mxu0 %v8507
        %8627 = vmatprep.subr.mxu0 %v8510
        %8628 = vmatpush1.msra.mxu0 %v8509
        %8629 = vmatprep.subr.mxu0 %v8512
        %8630 = vmatpush1.msra.mxu0 %v8511
        %8631 = vmatprep.subr.mxu0 %v8514
        %8632 = vmatpush1.msra.mxu0 %v8513
        %8633 = vmatprep.subr.mxu0 %v8516
        %8634 = vmatpush1.msra.mxu0 %v8515
        %8635 = vmatprep.subr.mxu0 %v8518
        %8636 = vmatpush1.msra.mxu0 %v8517
        %8637 = vmatprep.subr.mxu0 %v8520
        %8638 = vmatpush1.msra.mxu0 %v8519
        %8639 = vmatprep.subr.mxu0 %v8522
        %8640 = vmatpush1.msra.mxu0 %v8521
        %8641 = vmatprep.subr.mxu0 %v8524
        %8642 = vmatpush1.msra.mxu0 %v8523
        %8643 = vmatprep.subr.mxu0 %v8611
        %8644 = vmatpush1.msra.mxu0 %v8608
        %8645 = vmatprep.subr.mxu0 0.0
        %8646 = vmatpush1.msra.mxu0 0.0
        %8647 = vmatprep.subr.mxu0 0.0
        %8648 = vmatpush1.msra.mxu0 0.0
        %8649 = vmatprep.subr.mxu0 0.0
        %8650 = vmatpush1.msra.mxu0 0.0
        %8651 = vmatprep.subr.mxu0 0.0
        %8652 = vmatpush1.msra.mxu0 0.0
        %8653 = vmatprep.subr.mxu0 0.0
        %8654 = vmatpush1.msra.mxu0 0.0
        %8655 = vmatprep.subr.mxu0 0.0
        %8656 = vmatpush1.msra.mxu0 0.0
        %8657 = vmatprep.subr.mxu0 0.0
        %8658 = vmatpush1.msra.mxu0 0.0
        %8659 = vmatprep.subr.mxu0 0.0
        %8660 = vmatpush1.msra.mxu0 0.0
        %8661 = vmatprep.subr.mxu0 0.0
        %8662 = vmatpush1.msra.mxu0 0.0
        %8663 = vmatprep.subr.mxu0 0.0
        %8664 = vmatpush1.msra.mxu0 0.0
        %8665 = vmatprep.subr.mxu0 0.0
        %8666 = vmatpush1.msra.mxu0 0.0
        %8667 = vmatprep.subr.mxu0 0.0
        %8668 = vmatpush1.msra.mxu0 0.0
        %8669 = vmatprep.subr.mxu0 0.0
        %8670 = vmatpush1.msra.mxu0 0.0
        %8671 = vmatprep.subr.mxu0 0.0
        %8672 = vmatpush1.msra.mxu0 0.0
        %8673 = vmatprep.subr.mxu0 0.0
        %8674 = vmatpush1.msra.mxu0 0.0
        %8675 = vmatprep.subr.mxu0 0.0
        %8676 = vmatpush1.msra.mxu0 0.0
        %8677 = vmatprep.mubr.f32.mxu0 0.0
        %8678 = vmatmul.mubr.f32.gmra.mrb[0].mxu0 %v8528
        %v8679 = vpop.f32.mrb[0].mxu0
        %v8680 = vadd.f32 0.0, %v8679
        %v8681 = vpop.f32.mrb[0].mxu0
        %v8682 = vadd.f32 0.0, %v8681
        %8683 = vdwg.mxu0
        %v8685 = vsel %vm8004, %v7952, 0
        %8687 = vmatprep.subr.mxu0 %v8682
        %8688 = vmatpush1.msra.mxu0 %v8680
        %8689 = vmatprep.subr.mxu0 0.0
        %8690 = vmatpush1.msra.mxu0 0.0
        %8691 = vmatprep.subr.mxu0 0.0
        %8692 = vmatpush1.msra.mxu0 0.0
        %8693 = vmatprep.subr.mxu0 0.0
        %8694 = vmatpush1.msra.mxu0 0.0
        %8695 = vmatprep.subr.mxu0 0.0
        %8696 = vmatpush1.msra.mxu0 0.0
        %8697 = vmatprep.subr.mxu0 0.0
        %8698 = vmatpush1.msra.mxu0 0.0
        %8699 = vmatprep.subr.mxu0 0.0
        %8700 = vmatpush1.msra.mxu0 0.0
        %8701 = vmatprep.subr.mxu0 0.0
        %8702 = vmatpush1.msra.mxu0 0.0
        %8703 = vmatprep.subr.mxu0 0.0
        %8704 = vmatpush1.msra.mxu0 0.0
        %8705 = vmatprep.subr.mxu0 0.0
        %8706 = vmatpush1.msra.mxu0 0.0
        %8707 = vmatprep.subr.mxu0 0.0
        %8708 = vmatpush1.msra.mxu0 0.0
        %8709 = vmatprep.subr.mxu0 0.0
        %8710 = vmatpush1.msra.mxu0 0.0
        %8711 = vmatprep.subr.mxu0 0.0
        %8712 = vmatpush1.msra.mxu0 0.0
        %8713 = vmatprep.subr.mxu0 0.0
        %8714 = vmatpush1.msra.mxu0 0.0
        %8715 = vmatprep.subr.mxu0 0.0
        %8716 = vmatpush1.msra.mxu0 0.0
        %8717 = vmatprep.subr.mxu0 0.0
        %8718 = vmatpush1.msra.mxu0 0.0
        %8719 = vmatprep.subr.mxu0 0.0
        %8720 = vmatpush1.msra.mxu0 0.0
        %8721 = vmatprep.subr.mxu0 0.0
        %8722 = vmatpush1.msra.mxu0 0.0
        %8723 = vmatprep.subr.mxu0 0.0
        %8724 = vmatpush1.msra.mxu0 0.0
        %8725 = vmatprep.subr.mxu0 0.0
        %8726 = vmatpush1.msra.mxu0 0.0
        %8727 = vmatprep.subr.mxu0 0.0
        %8728 = vmatpush1.msra.mxu0 0.0
        %8729 = vmatprep.subr.mxu0 0.0
        %8730 = vmatpush1.msra.mxu0 0.0
        %8731 = vmatprep.subr.mxu0 0.0
        %8732 = vmatpush1.msra.mxu0 0.0
        %8733 = vmatprep.subr.mxu0 0.0
        %8734 = vmatpush1.msra.mxu0 0.0
        %8735 = vmatprep.subr.mxu0 0.0
        %8736 = vmatpush1.msra.mxu0 0.0
        %8737 = vmatprep.subr.mxu0 0.0
        %8738 = vmatpush1.msra.mxu0 0.0
        %8739 = vmatprep.subr.mxu0 0.0
        %8740 = vmatpush1.msra.mxu0 0.0
        %8741 = vmatprep.subr.mxu0 0.0
        %8742 = vmatpush1.msra.mxu0 0.0
        %8743 = vmatprep.subr.mxu0 0.0
        %8744 = vmatpush1.msra.mxu0 0.0
        %8745 = vmatprep.subr.mxu0 0.0
        %8746 = vmatpush1.msra.mxu0 0.0
        %8747 = vmatprep.subr.mxu0 0.0
        %8748 = vmatpush1.msra.mxu0 0.0
        %8749 = vmatprep.subr.mxu0 0.0
        %8750 = vmatpush1.msra.mxu0 0.0
        %8751 = vmatprep.mubr.f32.mxu0 0.0
        %8752 = vmatmul.mubr.f32.gmra.mrb[0].mxu0 %v8685
        %v8753 = vpop.f32.mrb[0].mxu0
        %v8754 = vadd.f32 0.0, %v8753
        %v8755 = vpop.f32.mrb[0].mxu0
        %8756 = vdwg.mxu0
        %v8758 = vsel %vm8004, %v7951, 0
        %8760 = vmatprep.subr.mxu0 %v8605
        %8761 = vmatpush1.msra.mxu0 %v8603
        %8762 = vmatprep.subr.mxu0 0.0
        %8763 = vmatpush1.msra.mxu0 0.0
        %8764 = vmatprep.subr.mxu0 0.0
        %8765 = vmatpush1.msra.mxu0 0.0
        %8766 = vmatprep.subr.mxu0 0.0
        %8767 = vmatpush1.msra.mxu0 0.0
        %8768 = vmatprep.subr.mxu0 0.0
        %8769 = vmatpush1.msra.mxu0 0.0
        %8770 = vmatprep.subr.mxu0 0.0
        %8771 = vmatpush1.msra.mxu0 0.0
        %8772 = vmatprep.subr.mxu0 0.0
        %8773 = vmatpush1.msra.mxu0 0.0
        %8774 = vmatprep.subr.mxu0 0.0
        %8775 = vmatpush1.msra.mxu0 0.0
        %8776 = vmatprep.subr.mxu0 0.0
        %8777 = vmatpush1.msra.mxu0 0.0
        %8778 = vmatprep.subr.mxu0 0.0
        %8779 = vmatpush1.msra.mxu0 0.0
        %8780 = vmatprep.subr.mxu0 0.0
        %8781 = vmatpush1.msra.mxu0 0.0
        %8782 = vmatprep.subr.mxu0 0.0
        %8783 = vmatpush1.msra.mxu0 0.0
        %8784 = vmatprep.subr.mxu0 0.0
        %8785 = vmatpush1.msra.mxu0 0.0
        %8786 = vmatprep.subr.mxu0 0.0
        %8787 = vmatpush1.msra.mxu0 0.0
        %8788 = vmatprep.subr.mxu0 0.0
        %8789 = vmatpush1.msra.mxu0 0.0
        %8790 = vmatprep.subr.mxu0 0.0
        %8791 = vmatpush1.msra.mxu0 0.0
        %8792 = vmatprep.subr.mxu0 0.0
        %8793 = vmatpush1.msra.mxu0 0.0
        %8794 = vmatprep.subr.mxu0 0.0
        %8795 = vmatpush1.msra.mxu0 0.0
        %8796 = vmatprep.subr.mxu0 0.0
        %8797 = vmatpush1.msra.mxu0 0.0
        %8798 = vmatprep.subr.mxu0 0.0
        %8799 = vmatpush1.msra.mxu0 0.0
        %8800 = vmatprep.subr.mxu0 0.0
        %8801 = vmatpush1.msra.mxu0 0.0
        %8802 = vmatprep.subr.mxu0 0.0
        %8803 = vmatpush1.msra.mxu0 0.0
        %8804 = vmatprep.subr.mxu0 0.0
        %8805 = vmatpush1.msra.mxu0 0.0
        %8806 = vmatprep.subr.mxu0 0.0
        %8807 = vmatpush1.msra.mxu0 0.0
        %8808 = vmatprep.subr.mxu0 0.0
        %8809 = vmatpush1.msra.mxu0 0.0
        %8810 = vmatprep.subr.mxu0 0.0
        %8811 = vmatpush1.msra.mxu0 0.0
        %8812 = vmatprep.subr.mxu0 0.0
        %8813 = vmatpush1.msra.mxu0 0.0
        %8814 = vmatprep.subr.mxu0 0.0
        %8815 = vmatpush1.msra.mxu0 0.0
        %8816 = vmatprep.subr.mxu0 0.0
        %8817 = vmatpush1.msra.mxu0 0.0
        %8818 = vmatprep.subr.mxu0 0.0
        %8819 = vmatpush1.msra.mxu0 0.0
        %8820 = vmatprep.subr.mxu0 0.0
        %8821 = vmatpush1.msra.mxu0 0.0
        %8822 = vmatprep.subr.mxu0 0.0
        %8823 = vmatpush1.msra.mxu0 0.0
        %8824 = vmatprep.mubr.f32.mxu0 0.0
        %8825 = vmatmul.mubr.f32.gmra.mrb[0].mxu0 %v8758
        %v8826 = vpop.f32.mrb[0].mxu0
        %v8827 = vadd.f32 %v8754, %v8826
        %v8828 = vpop.f32.mrb[0].mxu0
        %8829 = vdwg.mxu0
        %8831 = vset.pattern.permute.xlu0 0
        %8832 = vperm.xlu0 %8831, %v7953
        %v8833 = vpop.permute.xlu0 %8832
        %v8835 = vlaneseq
        %v8836 = vshrl.u32 %v8835, 7
        %v8837 = vsub.s32 0, %v8836
        %v8838 = vrot.slane %v8833, %v8837
        %v8839 = vadd.f32 %v8827, %v8838
        %vm8840 = vcmask 811008
        %8841 = vst.msk [vmem:[%s1516] sm:$0x1] %vm8840, %v8839
        %s8842 = sand.u32 %s1188, 1
        %s8843 = scalar_lea.sflag [#allocation5], %s8842
        %s8844 = sand.u32 %s1188, 1
        %s8845 = scalar_lea.vmem [#allocation6], %s8844
        // Predicated region
        $region225: #{forward.1} parent=219 // pred_check
          %p8846 = pneg %p1198
        $region226: #{forward.1} parent=219 // pred_check_branch
          %8848 = sbr.rel (%p8846) target = $region228
        $region227: #{forward.1} parent=219 // pred_region
          %s8850 = ssub.s32 16, 16
          %8851 = vsyncadd %s8843, %s8850
          %s8852 = smul.addr %s120, 16
          %s8853 = scalar_lea.hbm %s101, %s8852
          %s8855 = sshll.u32 %s8845, 4
          %s8856 = int_to_ptr.vmem [resolvable:$true] %s8855
          %8858 = dma.vmem_to_hbm [thread:$0]  %s8856, 16, %s8853, %s8843
        $region228: #{forward.1} parent=219 // pred_fallthru
          _
      $region220: #{forward.1} parent=5 // pred_fallthru
        _
      %p8859 = scmp.le.s32.totalorder 2, %s115
      // Predicated region
      $region229: #{forward.1} parent=5 // pred_check
        %p8860 = pneg %p8859
      $region230: #{forward.1} parent=5 // pred_check_branch
        %8862 = sbr.rel (%p8860) target = $region232
      $region231: #{forward.1} parent=5 // pred_region
        %s8863 = ssub.s32 %s115, 2
        // Predicated region
        $region233: #{forward.1} parent=231 // pred_check
          %p8864 = pneg %p1204
        $region234: #{forward.1} parent=231 // pred_check_branch
          %8866 = sbr.rel (%p8864) target = $region236
        $region235: #{forward.1} parent=231 // pred_region
          %s8867 = sand.u32 %s1189, 1
          %s8868 = scalar_lea.sflag [#allocation5], %s8867
          %s8869 = sand.u32 %s1189, 1
          %s8870 = scalar_lea.vmem [#allocation6], %s8869
          %8871 = dma.done %s8868, 16
        $region236: #{forward.1} parent=231 // pred_fallthru
          _
      $region232: #{forward.1} parent=5 // pred_fallthru
        _
    $region6: #{forward.1} parent=1 // loop_footer
      %s119 = sadd.s32 1, %s115
    $region7: #{forward.1} parent=1 // loop_footer_branch
      %114 = sbr.rel target = $region3
    $region8: #{forward.1} parent=1 // loop_exit
      _
    %8872 = vsyncpa [#allocation4], 1
    %s8873 = scalar_lea.sflag [#allocation4], 1
    %8874 = vsyncpa %s8873, 1
    %8875 = vsyncpa [#allocation5], 1
    %s8876 = scalar_lea.sflag [#allocation5], 1
    %8877 = vsyncpa %s8876, 1

</llo_original>
